<compile_context>
chip_gen: v5e
topology: v5e:2x2
jax: 0.10.0
libtpu: 0.0.40
codegen_flags: <defaults>
</compile_context>

<pallas_src>
import numpy as np
import jax
import jax.numpy as jnp
from jax.experimental import pallas as pl
from jax.experimental.pallas import tpu as pltpu

LEAKY_SLOPE = 0.01
BN_EPS = 1e-5
# Operand dtype for the MXU dots inside the kernel.  Flip to jnp.bfloat16 on v5e/v6e
# to halve MXU passes and operand bytes (accumulation stays float32).  Kept float32
# here because this model is launch/VMEM-residency bound, not MXU bound, and float32
# keeps the numerical self-check tight.
MATMUL_DTYPE = jnp.float32

_TAPS = tuple((dh, dw) for dh in (-1, 0, 1) for dw in (-1, 0, 1))  # (kh-1, kw-1), row-major
_C = 32  # channel width used throughout the model


def _leaky(v):
    return jnp.where(v >= 0, v, LEAKY_SLOPE * v)


def _mxdot(a, b):
    return jnp.dot(a.astype(MATMUL_DTYPE), b.astype(MATMUL_DTYPE),
                   preferred_element_type=jnp.float32)


# ---------------------------------------------------------------------------
# The fused whole-network kernel (one grid step == one batch element)
# ---------------------------------------------------------------------------
def _mfcc_kernel(
    # inputs -------------------------------------------------------------
    xcol_ref,                                   # (1, 256, 9) im2col of the raw input
    mask16_ref, mask6_ref, mask2_ref,           # (H*W, 9) tap-validity masks
    sel16_ref, sel6_ref, sel2_ref,              # (OH*OW, H*W) stride-3 selectors
    w1_ref, b1_ref,                             # model conv1: (9, 32), (1, 32)
    wcat_ref, bcat_ref, w2s_ref, b2s_ref,       # spatial blocks 1-3 (stacked)
    wc_ref, bc_ref, w2c_ref, b2c_ref,           # 1x1 blocks 4-9 (stacked)
    fc1w_ref, fc1b_ref, fc2w_ref, fc2b_ref,     # classifier head
    # output -------------------------------------------------------------
    o_ref,                                      # (1, 1, 2) log-probabilities
    # VMEM scratch: zero-padded activation slabs, one per spatial geometry -
    p16_ref, p6_ref, p2_ref,
):
    C = _C

    # conv1 (Cin=1, stride 1, pad 1): one (H*W, 9) @ (9, 32) matmul.
    v = _mxdot(xcol_ref[0], w1_ref[...]) + b1_ref[...]            # (256, 32)

    # --- spatial ResNet blocks 1-3 (16x16 -> 6x6 -> 2x2 -> 1x1) -----------
    geoms = ((16, 16, p16_ref, mask16_ref, sel16_ref),
             (6, 6, p6_ref, mask6_ref, sel6_ref),
             (2, 2, p2_ref, mask2_ref, sel2_ref))
    for i, (H, W, p_ref, mask_ref, sel_ref) in enumerate(geoms):
        M = H * W
        PAD = W + 1                      # zero rows above / below the flat slab
        mask = mask_ref[...]             # (M, 9)
        sel = sel_ref[...]               # (Mout, M)
        wcat = wcat_ref[i]               # (9*32, 64)  [conv1(+bn1 folded) | conv11]
        bcat = bcat_ref[i]               # (1, 64)
        w2m = w2s_ref[i]                 # (9*32, 32)  conv2
        b2 = b2s_ref[i]                  # (1, 32)

        def conv_fullres(wmat):
            """Stride-1 3x3 conv of the slab currently stored in p_ref."""
            acc = None
            for k, (dh, dw) in enumerate(_TAPS):
                off = PAD + dh * W + dw                         # static offset
                tap = p_ref[off:off + M, :] * mask[:, k:k + 1]  # masked row shift
                d = _mxdot(tap, wmat[k * C:(k + 1) * C, :])
                acc = d if acc is None else acc + d
            return acc

        # load block input x into the zero-padded scratch slab
        zpad = jnp.zeros((PAD, C), jnp.float32)
        p_ref[0:PAD, :] = zpad
        p_ref[PAD + M:PAD + M + PAD, :] = zpad
        p_ref[PAD:PAD + M, :] = v

        # fused conv1(+bn1) | conv11: taps read once, N = 64
        acc64 = conv_fullres(wcat)                              # (M, 64)
        h = _leaky(acc64[:, :C] + bcat[:, :C])                  # bn1 + LeakyReLU folded
        prev_mp = _mxdot(sel, acc64[:, C:]) + bcat[:, C:]       # conv11 (stride 3)

        # conv2 (stride 3) on h + residual; dropout is identity in eval mode
        p_ref[PAD:PAD + M, :] = h
        acc2 = conv_fullres(w2m)                                # (M, 32)
        v = _mxdot(sel, acc2) + b2 + prev_mp                    # (Mout, 32)

    # v is now (1, 32): spatial size collapsed to 1x1.
    # MaxPool2d(3, stride=3, padding=1) on a 1x1 map is the identity (all three
    # pools in this network act on 1x1 maps for the 16x16 input).
    # --- 1x1 ResNet blocks 4-9: only the centre tap of each 3x3 conv is live ---
    for j in range(6):
        t = _mxdot(v, wc_ref[j]) + bc_ref[j]                    # (1, 64)
        h = _leaky(t[:, :C])                                    # conv1 + bn1 + lrelu
        v = _mxdot(h, w2c_ref[j]) + b2c_ref[j] + t[:, C:]       # conv2 + residual

    # final BatchNorm was folded into block9's conv2/conv11; apply its LeakyReLU.
    v = _leaky(v)
    # final maxpool: identity; flatten -> (1, 32); dropout: identity (eval)

    f = _leaky(_mxdot(v, fc1w_ref[...]) + fc1b_ref[...])        # fc1 + lrelu
    logits = _mxdot(f, fc2w_ref[...]) + fc2b_ref[...]           # fc2
    m = jnp.max(logits, axis=-1, keepdims=True)
    s = logits - m
    o_ref[0] = s - jnp.log(jnp.sum(jnp.exp(s), axis=-1, keepdims=True))


# ---------------------------------------------------------------------------
# Weight packing (one-time, outside the kernel)
# ---------------------------------------------------------------------------
def _conv_w_to_mat(w):
    """(Cout, Cin, 3, 3) OIHW -> (9*Cin, Cout), taps (kh, kw) row-major."""
    cout, cin = w.shape[0], w.shape[1]
    return jnp.transpose(w, (2, 3, 1, 0)).reshape(9 * cin, cout)


def _fold_bn(w, b, bn):
    """Fold an eval-mode BatchNorm2d that FOLLOWS conv(w, b) into (w, b)."""
    gamma, beta, mean, var = bn
    s = gamma / jnp.sqrt(var + BN_EPS)
    return w * s[:, None, None, None], b * s + beta - mean * s


def _pack_spatial_block(p):
    w1f, b1f = _fold_bn(p["w1"], p["b1"], p["bn1"])
    wcat = jnp.concatenate([_conv_w_to_mat(w1f), _conv_w_to_mat(p["w11"])], axis=1)
    bcat = jnp.concatenate([b1f, p["b11"]]).reshape(1, 2 * _C)
    return wcat, bcat, _conv_w_to_mat(p["w2"]), p["b2"].reshape(1, _C)


def _pack_point_block(p, final_bn=None):
    """Blocks operating on 1x1 maps: only the centre tap of each conv is live."""
    w1f, b1f = _fold_bn(p["w1"], p["b1"], p["bn1"])
    w1c = w1f[:, :, 1, 1].T
    w11c, b11 = p["w11"][:, :, 1, 1].T, p["b11"]
    w2c, b2 = p["w2"][:, :, 1, 1].T, p["b2"]
    if final_bn is not None:
        # The model-level bn follows block9's (conv2 + residual): scale both
        # paths by s and add the shift exactly once.
        gamma, beta, mean, var = final_bn
        s = gamma / jnp.sqrt(var + BN_EPS)
        sh = beta - mean * s
        w11c, b11 = w11c * s[None, :], b11 * s
        w2c, b2 = w2c * s[None, :], b2 * s + sh
    wc = jnp.concatenate([w1c, w11c], axis=1)
    bc = jnp.concatenate([b1f, b11]).reshape(1, 2 * _C)
    return wc, bc, w2c, b2.reshape(1, _C)


def _geometry(H, W):
    """Per-tap validity masks + stride-3 subsample selector for an HxW map."""
    M = H * W
    mask = np.zeros((M, 9), np.float32)
    for k, (dh, dw) in enumerate(_TAPS):
        for h in range(H):
            for w in range(W):
                if 0 <= h + dh < H and 0 <= w + dw < W:
                    mask[h * W + w, k] = 1.0
    OH, OW = (H - 1) // 3 + 1, (W - 1) // 3 + 1
    sel = np.zeros((OH * OW, M), np.float32)
    for oh in range(OH):
        for ow in range(OW):
            sel[oh * OW + ow, (3 * oh) * W + (3 * ow)] = 1.0
    return jnp.asarray(mask), jnp.asarray(sel)


def pack_params(params):
    """One-time conversion of PyTorch-layout params into VMEM-friendly operands."""
    w1m = _conv_w_to_mat(params["conv1_w"])            # (9, 32)
    b1 = params["conv1_b"].reshape(1, _C)
    sp = [_pack_spatial_block(params[f"block{i}"]) for i in (1, 2, 3)]
    pt = [_pack_point_block(params[f"block{i}"],
                            final_bn=params["bn"] if i == 9 else None)
          for i in range(4, 10)]
    mask16, sel16 = _geometry(16, 16)
    mask6, sel6 = _geometry(6, 6)
    mask2, sel2 = _geometry(2, 2)
    return (
        mask16, mask6, mask2, sel16, sel6, sel2,
        w1m, b1,
        jnp.stack([t[0] for t in sp]), jnp.stack([t[1] for t in sp]),
        jnp.stack([t[2] for t in sp]), jnp.stack([t[3] for t in sp]),
        jnp.stack([t[0] for t in pt]), jnp.stack([t[1] for t in pt]),
        jnp.stack([t[2] for t in pt]), jnp.stack([t[3] for t in pt]),
        params["fc1_w"], params["fc1_b"].reshape(1, 128),
        params["fc2_w"], params["fc2_b"].reshape(1, 2),
    )


def _im2col_1ch(x):
    """(B, H, W) single-channel input -> (B, H*W, 9) im2col (~18 KiB total)."""
    B, H, W = x.shape
    xp = jnp.pad(x, ((0, 0), (1, 1), (1, 1)))
    taps = [xp[:, kh:kh + H, kw:kw + W].reshape(B, H * W, 1)
            for kh in range(3) for kw in range(3)]
    return jnp.concatenate(taps, axis=-1)


def mfcc_forward(x, packed):
    """x: (B, 16, 16) float32 -> (B, 2) log-probabilities."""
    B, H, W = x.shape
    assert (H, W) == (16, 16), "kernel geometry is specialised to 16x16 MFCC inputs"
    xcol = _im2col_1ch(x)

    def shared_spec(a):
        zero = (0,) * a.ndim
        return pl.BlockSpec(a.shape, lambda b: zero)

    in_specs = [pl.BlockSpec((1, H * W, 9), lambda b: (b, 0, 0))]
    in_specs += [shared_spec(a) for a in packed]

    out = pl.pallas_call(
        _mfcc_kernel,
        out_shape=jax.ShapeDtypeStruct((B, 1, 2), jnp.float32),
        grid_spec=pltpu.PrefetchScalarGridSpec(
            num_scalar_prefetch=0,
            grid=(B,),
            in_specs=in_specs,
            out_specs=pl.BlockSpec((1, 1, 2), lambda b: (b, 0, 0)),
            scratch_shapes=[
                pltpu.VMEM((16 * 16 + 2 * 17, _C), jnp.float32),
                pltpu.VMEM((6 * 6 + 2 * 7, _C), jnp.float32),
                pltpu.VMEM((2 * 2 + 2 * 3, _C), jnp.float32),
            ],
        ),
        compiler_params=pltpu.CompilerParams(
            dimension_semantics=("parallel",)),   # batch split across v7x's 2 TCs
    )(xcol, *packed)
    return out.reshape(B, 2)


# ---------------------------------------------------------------------------
# Pure-JAX (non-Pallas) reference for numerical validation
# ---------------------------------------------------------------------------
def _leaky_ref(x):
    return jnp.where(x >= 0, x, LEAKY_SLOPE * x)


def _bn_ref(x, bn):
    gamma, beta, mean, var = bn
    return (x - mean) * (gamma / jnp.sqrt(var + BN_EPS)) + beta


def _conv3x3_ref(x, w, b, stride):
    y = jax.lax.conv_general_dilated(
        x, jnp.transpose(w, (2, 3, 1, 0)),
        window_strides=(stride, stride), padding=((1, 1), (1, 1)),
        dimension_numbers=("NHWC", "HWIO", "NHWC"),
        precision=jax.lax.Precision.HIGHEST)
    return y + b


def _maxpool_ref(x):
    return jax.lax.reduce_window(
        x, jnp.array(-jnp.inf, dtype=x.dtype), jax.lax.max,
        window_dimensions=(1, 3, 3, 1), window_strides=(1, 3, 3, 1),
        padding=((0, 0), (1, 1), (1, 1), (0, 0)))


def _block_ref(x, p):
    prev_mp = _conv3x3_ref(x, p["w11"], p["b11"], 3)
    h = _conv3x3_ref(x, p["w1"], p["b1"], 1)
    h = _leaky_ref(_bn_ref(h, p["bn1"]))
    return _conv3x3_ref(h, p["w2"], p["b2"], 3) + prev_mp


def mfcc_forward_ref(x, params):
    B = x.shape[0]
    h = _conv3x3_ref(x[..., None], params["conv1_w"], params["conv1_b"], 1)
    for i in (1, 2, 3):
        h = _block_ref(h, params[f"block{i}"])
    h = _maxpool_ref(h)
    for i in (4, 5, 6):
        h = _block_ref(h, params[f"block{i}"])
    h = _maxpool_ref(h)
    for i in (7, 8, 9):
        h = _block_ref(h, params[f"block{i}"])
    h = _leaky_ref(_bn_ref(h, params["bn"]))
    h = _maxpool_ref(h)
    h = h.reshape(B, -1)
    h = _leaky_ref(jnp.dot(h, params["fc1_w"],
                           precision=jax.lax.Precision.HIGHEST) + params["fc1_b"])
    h = jnp.dot(h, params["fc2_w"],
                precision=jax.lax.Precision.HIGHEST) + params["fc2_b"]
    return jax.nn.log_softmax(h, axis=-1)


# ---------------------------------------------------------------------------
# Deterministic synthetic parameters (shapes per MFCCModel.__init__)
# ---------------------------------------------------------------------------
def init_params(key):
    keys = iter(jax.random.split(key, 128))

    def conv_p(cin, cout):
        w = jax.random.normal(next(keys), (cout, cin, 3, 3), jnp.float32) / np.sqrt(cin * 9)
        b = 0.1 * jax.random.normal(next(keys), (cout,), jnp.float32)
        return w, b

    def bn_p(c):
        gamma = 1.0 + 0.1 * jax.random.normal(next(keys), (c,), jnp.float32)
        beta = 0.1 * jax.random.normal(next(keys), (c,), jnp.float32)
        mean = 0.1 * jax.random.normal(next(keys), (c,), jnp.float32)
        var = jax.random.uniform(next(keys), (c,), jnp.float32, minval=0.5, maxval=1.5)
        return gamma, beta, mean, var

    def block_p(cin, c):
        w1, b1 = conv_p(cin, c)
        w2, b2 = conv_p(c, c)
        w11, b11 = conv_p(cin, c)
        return dict(w1=w1, b1=b1, w2=w2, b2=b2, w11=w11, b11=b11, bn1=bn_p(c))

    params = {}
    params["conv1_w"], params["conv1_b"] = conv_p(1, 32)
    for i in range(1, 10):
        params[f"block{i}"] = block_p(32, 32)
    params["bn"] = bn_p(32)
    params["fc1_w"] = jax.random.normal(next(keys), (32, 128), jnp.float32) / np.sqrt(32)
    params["fc1_b"] = 0.1 * jax.random.normal(next(keys), (128,), jnp.float32)
    params["fc2_w"] = jax.random.normal(next(keys), (128, 2), jnp.float32) / np.sqrt(128)
    params["fc2_b"] = 0.1 * jax.random.normal(next(keys), (2,), jnp.float32)
    return params


if __name__ == "__main__":
    key = jax.random.PRNGKey(0)
    pkey, xkey = jax.random.split(key)
    params = init_params(pkey)
    # (B, H, W) MFCC-like input; 16x16 reduces to a 1x1 map before fc1.
    x = jax.random.normal(xkey, (2, 16, 16), jnp.float32)

    packed = pack_params(params)               # one-time weight packing / BN folding
    fwd = jax.jit(mfcc_forward)
    out = jax.block_until_ready(fwd(x, packed))

    assert out.shape == (2, 2), out.shape
    assert bool(jnp.all(jnp.isfinite(out)))

    # Numerical self-check against a pure-JAX (non-Pallas) reference.
    ref = jax.block_until_ready(jax.jit(mfcc_forward_ref)(x, params))
    err = float(jnp.max(jnp.abs(out - ref)))
    assert err < 2e-2, f"kernel/reference mismatch: max |diff| = {err}"
    print("KERNEL_OK")
</pallas_src>

<mosaic_0001>
module attributes {stable_mosaic.version = 11 : i64} {
  func.func @_mfcc_kernel(%arg0: i32, %arg1: memref<1x256x9xf32, #tpu.memory_space<vmem>>, %arg2: memref<256x9xf32, #tpu.memory_space<vmem>>, %arg3: memref<36x9xf32, #tpu.memory_space<vmem>>, %arg4: memref<4x9xf32, #tpu.memory_space<vmem>>, %arg5: memref<36x256xf32, #tpu.memory_space<vmem>>, %arg6: memref<4x36xf32, #tpu.memory_space<vmem>>, %arg7: memref<1x4xf32, #tpu.memory_space<vmem>>, %arg8: memref<9x32xf32, #tpu.memory_space<vmem>>, %arg9: memref<1x32xf32, #tpu.memory_space<vmem>>, %arg10: memref<3x288x64xf32, #tpu.memory_space<vmem>>, %arg11: memref<3x1x64xf32, #tpu.memory_space<vmem>>, %arg12: memref<3x288x32xf32, #tpu.memory_space<vmem>>, %arg13: memref<3x1x32xf32, #tpu.memory_space<vmem>>, %arg14: memref<6x32x64xf32, #tpu.memory_space<vmem>>, %arg15: memref<6x1x64xf32, #tpu.memory_space<vmem>>, %arg16: memref<6x32x32xf32, #tpu.memory_space<vmem>>, %arg17: memref<6x1x32xf32, #tpu.memory_space<vmem>>, %arg18: memref<32x128xf32, #tpu.memory_space<vmem>>, %arg19: memref<1x128xf32, #tpu.memory_space<vmem>>, %arg20: memref<128x2xf32, #tpu.memory_space<vmem>>, %arg21: memref<1x2xf32, #tpu.memory_space<vmem>>, %arg22: memref<1x1x2xf32, #tpu.memory_space<vmem>>, %arg23: memref<290x32xf32, #tpu.memory_space<vmem>>, %arg24: memref<50x32xf32, #tpu.memory_space<vmem>>, %arg25: memref<10x32xf32, #tpu.memory_space<vmem>>) attributes {dimension_semantics = [#tpu.dimension_semantics<parallel>], iteration_bounds = array<i64: 2>, scalar_prefetch = 0 : i64, scratch_operands = 3 : i64, tpu.core_type = #tpu.core_type<tc>, window_params = [{transform_indices = @transform_0, window_bounds = array<i64: 1, 256, 9>}, {pipeline_mode = #tpu.pipeline_mode<synchronous>, transform_indices = @transform_1, window_bounds = array<i64: 256, 9>}, {pipeline_mode = #tpu.pipeline_mode<synchronous>, transform_indices = @transform_2, window_bounds = array<i64: 36, 9>}, {pipeline_mode = #tpu.pipeline_mode<synchronous>, transform_indices = @transform_3, window_bounds = array<i64: 4, 9>}, {pipeline_mode = #tpu.pipeline_mode<synchronous>, transform_indices = @transform_4, window_bounds = array<i64: 36, 256>}, {pipeline_mode = #tpu.pipeline_mode<synchronous>, transform_indices = @transform_5, window_bounds = array<i64: 4, 36>}, {pipeline_mode = #tpu.pipeline_mode<synchronous>, transform_indices = @transform_6, window_bounds = array<i64: 1, 4>}, {pipeline_mode = #tpu.pipeline_mode<synchronous>, transform_indices = @transform_7, window_bounds = array<i64: 9, 32>}, {pipeline_mode = #tpu.pipeline_mode<synchronous>, transform_indices = @transform_8, window_bounds = array<i64: 1, 32>}, {pipeline_mode = #tpu.pipeline_mode<synchronous>, transform_indices = @transform_9, window_bounds = array<i64: 3, 288, 64>}, {pipeline_mode = #tpu.pipeline_mode<synchronous>, transform_indices = @transform_10, window_bounds = array<i64: 3, 1, 64>}, {pipeline_mode = #tpu.pipeline_mode<synchronous>, transform_indices = @transform_11, window_bounds = array<i64: 3, 288, 32>}, {pipeline_mode = #tpu.pipeline_mode<synchronous>, transform_indices = @transform_12, window_bounds = array<i64: 3, 1, 32>}, {pipeline_mode = #tpu.pipeline_mode<synchronous>, transform_indices = @transform_13, window_bounds = array<i64: 6, 32, 64>}, {pipeline_mode = #tpu.pipeline_mode<synchronous>, transform_indices = @transform_14, window_bounds = array<i64: 6, 1, 64>}, {pipeline_mode = #tpu.pipeline_mode<synchronous>, transform_indices = @transform_15, window_bounds = array<i64: 6, 32, 32>}, {pipeline_mode = #tpu.pipeline_mode<synchronous>, transform_indices = @transform_16, window_bounds = array<i64: 6, 1, 32>}, {pipeline_mode = #tpu.pipeline_mode<synchronous>, transform_indices = @transform_17, window_bounds = array<i64: 32, 128>}, {pipeline_mode = #tpu.pipeline_mode<synchronous>, transform_indices = @transform_18, window_bounds = array<i64: 1, 128>}, {pipeline_mode = #tpu.pipeline_mode<synchronous>, transform_indices = @transform_19, window_bounds = array<i64: 128, 2>}, {pipeline_mode = #tpu.pipeline_mode<synchronous>, transform_indices = @transform_20, window_bounds = array<i64: 1, 2>}, {transform_indices = @transform_21, window_bounds = array<i64: 1, 1, 2>}]} {
    %c0 = arith.constant 0 : index
    %c0_0 = arith.constant 0 : index
    %c0_1 = arith.constant 0 : index
    %0 = vector.load %arg1[%c0, %c0_0, %c0_1] : memref<1x256x9xf32, #tpu.memory_space<vmem>>, vector<1x256x9xf32>
    %1 = vector.shape_cast %0 : vector<1x256x9xf32> to vector<256x9xf32>
    %c0_2 = arith.constant 0 : index
    %c0_3 = arith.constant 0 : index
    %2 = vector.load %arg8[%c0_2, %c0_3] : memref<9x32xf32, #tpu.memory_space<vmem>>, vector<9x32xf32>
    %cst = arith.constant dense<0.000000e+00> : vector<256x32xf32>
    %3 = tpu.matmul %1, %2, %cst {dimension_numbers = #tpu.dot_dimension_numbers<[1], [0], [0], [1], [0, 0, 1, 1], [], []>} : vector<256x9xf32>, vector<9x32xf32>, vector<256x32xf32> -> vector<256x32xf32>
    %c0_4 = arith.constant 0 : index
    %c0_5 = arith.constant 0 : index
    %4 = vector.load %arg9[%c0_4, %c0_5] : memref<1x32xf32, #tpu.memory_space<vmem>>, vector<1x32xf32>
    %5 = vector.broadcast %4 : vector<1x32xf32> to vector<256x32xf32>
    %6 = arith.addf %3, %5 : vector<256x32xf32>
    %c0_6 = arith.constant 0 : index
    %c0_7 = arith.constant 0 : index
    %7 = vector.load %arg2[%c0_6, %c0_7] : memref<256x9xf32, #tpu.memory_space<vmem>>, vector<256x9xf32>
    %c0_8 = arith.constant 0 : index
    %c0_9 = arith.constant 0 : index
    %8 = vector.load %arg5[%c0_8, %c0_9] : memref<36x256xf32, #tpu.memory_space<vmem>>, vector<36x256xf32>
    %c0_10 = arith.constant 0 : index
    %c0_11 = arith.constant 0 : index
    %c0_12 = arith.constant 0 : index
    %9 = vector.load %arg10[%c0_10, %c0_11, %c0_12] : memref<3x288x64xf32, #tpu.memory_space<vmem>>, vector<1x288x64xf32>
    %10 = vector.shape_cast %9 : vector<1x288x64xf32> to vector<288x64xf32>
    %c0_13 = arith.constant 0 : index
    %c0_14 = arith.constant 0 : index
    %c0_15 = arith.constant 0 : index
    %11 = vector.load %arg11[%c0_13, %c0_14, %c0_15] : memref<3x1x64xf32, #tpu.memory_space<vmem>>, vector<1x1x64xf32>
    %12 = vector.shape_cast %11 : vector<1x1x64xf32> to vector<1x64xf32>
    %c0_16 = arith.constant 0 : index
    %c0_17 = arith.constant 0 : index
    %c0_18 = arith.constant 0 : index
    %13 = vector.load %arg12[%c0_16, %c0_17, %c0_18] : memref<3x288x32xf32, #tpu.memory_space<vmem>>, vector<1x288x32xf32>
    %14 = vector.shape_cast %13 : vector<1x288x32xf32> to vector<288x32xf32>
    %c0_19 = arith.constant 0 : index
    %c0_20 = arith.constant 0 : index
    %c0_21 = arith.constant 0 : index
    %15 = vector.load %arg13[%c0_19, %c0_20, %c0_21] : memref<3x1x32xf32, #tpu.memory_space<vmem>>, vector<1x1x32xf32>
    %16 = vector.shape_cast %15 : vector<1x1x32xf32> to vector<1x32xf32>
    %cst_22 = arith.constant 0.000000e+00 : f32
    %17 = vector.broadcast %cst_22 : f32 to vector<17x32xf32>
    %c0_23 = arith.constant 0 : index
    %c0_24 = arith.constant 0 : index
    %18 = vector.load %arg23[%c0_23, %c0_24] : memref<290x32xf32, #tpu.memory_space<vmem>>, vector<17x32xf32>
    tpu.vector_store %arg23[%c0_23, %c0_24], %17 {strides = array<i32>} : memref<290x32xf32, #tpu.memory_space<vmem>>, vector<17x32xf32>,
    %c273 = arith.constant 273 : index
    %c0_25 = arith.constant 0 : index
    %19 = vector.load %arg23[%c273, %c0_25] : memref<290x32xf32, #tpu.memory_space<vmem>>, vector<17x32xf32>
    tpu.vector_store %arg23[%c273, %c0_25], %17 {strides = array<i32>} : memref<290x32xf32, #tpu.memory_space<vmem>>, vector<17x32xf32>,
    %c17 = arith.constant 17 : index
    %c0_26 = arith.constant 0 : index
    %20 = vector.load %arg23[%c17, %c0_26] : memref<290x32xf32, #tpu.memory_space<vmem>>, vector<256x32xf32>
    tpu.vector_store %arg23[%c17, %c0_26], %6 {strides = array<i32>} : memref<290x32xf32, #tpu.memory_space<vmem>>, vector<256x32xf32>,
    %c0_27 = arith.constant 0 : index
    %c0_28 = arith.constant 0 : index
    %21 = vector.load %arg23[%c0_27, %c0_28] : memref<290x32xf32, #tpu.memory_space<vmem>>, vector<256x32xf32>
    %22 = vector.extract_strided_slice %7 {offsets = [0, 0], sizes = [256, 1], strides = [1, 1]} : vector<256x9xf32> to vector<256x1xf32>
    %23 = vector.broadcast %22 : vector<256x1xf32> to vector<256x32xf32>
    %24 = arith.mulf %21, %23 : vector<256x32xf32>
    %25 = vector.extract_strided_slice %10 {offsets = [0, 0], sizes = [32, 64], strides = [1, 1]} : vector<288x64xf32> to vector<32x64xf32>
    %cst_29 = arith.constant dense<0.000000e+00> : vector<256x64xf32>
    %26 = tpu.matmul %24, %25, %cst_29 {dimension_numbers = #tpu.dot_dimension_numbers<[1], [0], [0], [1], [0, 0, 1, 1], [], []>} : vector<256x32xf32>, vector<32x64xf32>, vector<256x64xf32> -> vector<256x64xf32>
    %c1 = arith.constant 1 : index
    %c0_30 = arith.constant 0 : index
    %27 = vector.load %arg23[%c1, %c0_30] : memref<290x32xf32, #tpu.memory_space<vmem>>, vector<256x32xf32>
    %28 = vector.extract_strided_slice %7 {offsets = [0, 1], sizes = [256, 1], strides = [1, 1]} : vector<256x9xf32> to vector<256x1xf32>
    %29 = vector.broadcast %28 : vector<256x1xf32> to vector<256x32xf32>
    %30 = arith.mulf %27, %29 : vector<256x32xf32>
    %31 = vector.extract_strided_slice %10 {offsets = [32, 0], sizes = [32, 64], strides = [1, 1]} : vector<288x64xf32> to vector<32x64xf32>
    %cst_31 = arith.constant dense<0.000000e+00> : vector<256x64xf32>
    %32 = tpu.matmul %30, %31, %cst_31 {dimension_numbers = #tpu.dot_dimension_numbers<[1], [0], [0], [1], [0, 0, 1, 1], [], []>} : vector<256x32xf32>, vector<32x64xf32>, vector<256x64xf32> -> vector<256x64xf32>
    %33 = arith.addf %26, %32 : vector<256x64xf32>
    %c2 = arith.constant 2 : index
    %c0_32 = arith.constant 0 : index
    %34 = vector.load %arg23[%c2, %c0_32] : memref<290x32xf32, #tpu.memory_space<vmem>>, vector<256x32xf32>
    %35 = vector.extract_strided_slice %7 {offsets = [0, 2], sizes = [256, 1], strides = [1, 1]} : vector<256x9xf32> to vector<256x1xf32>
    %36 = vector.broadcast %35 : vector<256x1xf32> to vector<256x32xf32>
    %37 = arith.mulf %34, %36 : vector<256x32xf32>
    %38 = vector.extract_strided_slice %10 {offsets = [64, 0], sizes = [32, 64], strides = [1, 1]} : vector<288x64xf32> to vector<32x64xf32>
    %cst_33 = arith.constant dense<0.000000e+00> : vector<256x64xf32>
    %39 = tpu.matmul %37, %38, %cst_33 {dimension_numbers = #tpu.dot_dimension_numbers<[1], [0], [0], [1], [0, 0, 1, 1], [], []>} : vector<256x32xf32>, vector<32x64xf32>, vector<256x64xf32> -> vector<256x64xf32>
    %40 = arith.addf %33, %39 : vector<256x64xf32>
    %c16 = arith.constant 16 : index
    %c0_34 = arith.constant 0 : index
    %41 = vector.load %arg23[%c16, %c0_34] : memref<290x32xf32, #tpu.memory_space<vmem>>, vector<256x32xf32>
    %42 = vector.extract_strided_slice %7 {offsets = [0, 3], sizes = [256, 1], strides = [1, 1]} : vector<256x9xf32> to vector<256x1xf32>
    %43 = vector.broadcast %42 : vector<256x1xf32> to vector<256x32xf32>
    %44 = arith.mulf %41, %43 : vector<256x32xf32>
    %45 = vector.extract_strided_slice %10 {offsets = [96, 0], sizes = [32, 64], strides = [1, 1]} : vector<288x64xf32> to vector<32x64xf32>
    %cst_35 = arith.constant dense<0.000000e+00> : vector<256x64xf32>
    %46 = tpu.matmul %44, %45, %cst_35 {dimension_numbers = #tpu.dot_dimension_numbers<[1], [0], [0], [1], [0, 0, 1, 1], [], []>} : vector<256x32xf32>, vector<32x64xf32>, vector<256x64xf32> -> vector<256x64xf32>
    %47 = arith.addf %40, %46 : vector<256x64xf32>
    %c17_36 = arith.constant 17 : index
    %c0_37 = arith.constant 0 : index
    %48 = vector.load %arg23[%c17_36, %c0_37] : memref<290x32xf32, #tpu.memory_space<vmem>>, vector<256x32xf32>
    %49 = vector.extract_strided_slice %7 {offsets = [0, 4], sizes = [256, 1], strides = [1, 1]} : vector<256x9xf32> to vector<256x1xf32>
    %50 = vector.broadcast %49 : vector<256x1xf32> to vector<256x32xf32>
    %51 = arith.mulf %48, %50 : vector<256x32xf32>
    %52 = vector.extract_strided_slice %10 {offsets = [128, 0], sizes = [32, 64], strides = [1, 1]} : vector<288x64xf32> to vector<32x64xf32>
    %cst_38 = arith.constant dense<0.000000e+00> : vector<256x64xf32>
    %53 = tpu.matmul %51, %52, %cst_38 {dimension_numbers = #tpu.dot_dimension_numbers<[1], [0], [0], [1], [0, 0, 1, 1], [], []>} : vector<256x32xf32>, vector<32x64xf32>, vector<256x64xf32> -> vector<256x64xf32>
    %54 = arith.addf %47, %53 : vector<256x64xf32>
    %c18 = arith.constant 18 : index
    %c0_39 = arith.constant 0 : index
    %55 = vector.load %arg23[%c18, %c0_39] : memref<290x32xf32, #tpu.memory_space<vmem>>, vector<256x32xf32>
    %56 = vector.extract_strided_slice %7 {offsets = [0, 5], sizes = [256, 1], strides = [1, 1]} : vector<256x9xf32> to vector<256x1xf32>
    %57 = vector.broadcast %56 : vector<256x1xf32> to vector<256x32xf32>
    %58 = arith.mulf %55, %57 : vector<256x32xf32>
    %59 = vector.extract_strided_slice %10 {offsets = [160, 0], sizes = [32, 64], strides = [1, 1]} : vector<288x64xf32> to vector<32x64xf32>
    %cst_40 = arith.constant dense<0.000000e+00> : vector<256x64xf32>
    %60 = tpu.matmul %58, %59, %cst_40 {dimension_numbers = #tpu.dot_dimension_numbers<[1], [0], [0], [1], [0, 0, 1, 1], [], []>} : vector<256x32xf32>, vector<32x64xf32>, vector<256x64xf32> -> vector<256x64xf32>
    %61 = arith.addf %54, %60 : vector<256x64xf32>
    %c32 = arith.constant 32 : index
    %c0_41 = arith.constant 0 : index
    %62 = vector.load %arg23[%c32, %c0_41] : memref<290x32xf32, #tpu.memory_space<vmem>>, vector<256x32xf32>
    %63 = vector.extract_strided_slice %7 {offsets = [0, 6], sizes = [256, 1], strides = [1, 1]} : vector<256x9xf32> to vector<256x1xf32>
    %64 = vector.broadcast %63 : vector<256x1xf32> to vector<256x32xf32>
    %65 = arith.mulf %62, %64 : vector<256x32xf32>
    %66 = vector.extract_strided_slice %10 {offsets = [192, 0], sizes = [32, 64], strides = [1, 1]} : vector<288x64xf32> to vector<32x64xf32>
    %cst_42 = arith.constant dense<0.000000e+00> : vector<256x64xf32>
    %67 = tpu.matmul %65, %66, %cst_42 {dimension_numbers = #tpu.dot_dimension_numbers<[1], [0], [0], [1], [0, 0, 1, 1], [], []>} : vector<256x32xf32>, vector<32x64xf32>, vector<256x64xf32> -> vector<256x64xf32>
    %68 = arith.addf %61, %67 : vector<256x64xf32>
    %c33 = arith.constant 33 : index
    %c0_43 = arith.constant 0 : index
    %69 = vector.load %arg23[%c33, %c0_43] : memref<290x32xf32, #tpu.memory_space<vmem>>, vector<256x32xf32>
    %70 = vector.extract_strided_slice %7 {offsets = [0, 7], sizes = [256, 1], strides = [1, 1]} : vector<256x9xf32> to vector<256x1xf32>
    %71 = vector.broadcast %70 : vector<256x1xf32> to vector<256x32xf32>
    %72 = arith.mulf %69, %71 : vector<256x32xf32>
    %73 = vector.extract_strided_slice %10 {offsets = [224, 0], sizes = [32, 64], strides = [1, 1]} : vector<288x64xf32> to vector<32x64xf32>
    %cst_44 = arith.constant dense<0.000000e+00> : vector<256x64xf32>
    %74 = tpu.matmul %72, %73, %cst_44 {dimension_numbers = #tpu.dot_dimension_numbers<[1], [0], [0], [1], [0, 0, 1, 1], [], []>} : vector<256x32xf32>, vector<32x64xf32>, vector<256x64xf32> -> vector<256x64xf32>
    %75 = arith.addf %68, %74 : vector<256x64xf32>
    %c34 = arith.constant 34 : index
    %c0_45 = arith.constant 0 : index
    %76 = vector.load %arg23[%c34, %c0_45] : memref<290x32xf32, #tpu.memory_space<vmem>>, vector<256x32xf32>
    %77 = vector.extract_strided_slice %7 {offsets = [0, 8], sizes = [256, 1], strides = [1, 1]} : vector<256x9xf32> to vector<256x1xf32>
    %78 = vector.broadcast %77 : vector<256x1xf32> to vector<256x32xf32>
    %79 = arith.mulf %76, %78 : vector<256x32xf32>
    %80 = vector.extract_strided_slice %10 {offsets = [256, 0], sizes = [32, 64], strides = [1, 1]} : vector<288x64xf32> to vector<32x64xf32>
    %cst_46 = arith.constant dense<0.000000e+00> : vector<256x64xf32>
    %81 = tpu.matmul %79, %80, %cst_46 {dimension_numbers = #tpu.dot_dimension_numbers<[1], [0], [0], [1], [0, 0, 1, 1], [], []>} : vector<256x32xf32>, vector<32x64xf32>, vector<256x64xf32> -> vector<256x64xf32>
    %82 = arith.addf %75, %81 : vector<256x64xf32>
    %83 = vector.extract_strided_slice %82 {offsets = [0, 0], sizes = [256, 32], strides = [1, 1]} : vector<256x64xf32> to vector<256x32xf32>
    %84 = vector.extract_strided_slice %12 {offsets = [0, 0], sizes = [1, 32], strides = [1, 1]} : vector<1x64xf32> to vector<1x32xf32>
    %85 = vector.broadcast %84 : vector<1x32xf32> to vector<256x32xf32>
    %86 = arith.addf %83, %85 : vector<256x32xf32>
    %cst_47 = arith.constant 0.000000e+00 : f32
    %87 = vector.broadcast %cst_47 : f32 to vector<256x32xf32>
    %88 = arith.cmpf oge, %86, %87 : vector<256x32xf32>
    %cst_48 = arith.constant 0.00999999977 : f32
    %89 = vector.broadcast %cst_48 : f32 to vector<256x32xf32>
    %90 = arith.mulf %89, %86 : vector<256x32xf32>
    %91 = arith.select %88, %86, %90 : vector<256x32xi1>, vector<256x32xf32>
    %92 = vector.extract_strided_slice %82 {offsets = [0, 32], sizes = [256, 32], strides = [1, 1]} : vector<256x64xf32> to vector<256x32xf32>
    %cst_49 = arith.constant dense<0.000000e+00> : vector<36x32xf32>
    %93 = tpu.matmul %8, %92, %cst_49 {dimension_numbers = #tpu.dot_dimension_numbers<[1], [0], [0], [1], [0, 0, 1, 1], [], []>} : vector<36x256xf32>, vector<256x32xf32>, vector<36x32xf32> -> vector<36x32xf32>
    %94 = vector.extract_strided_slice %12 {offsets = [0, 32], sizes = [1, 32], strides = [1, 1]} : vector<1x64xf32> to vector<1x32xf32>
    %95 = vector.broadcast %94 : vector<1x32xf32> to vector<36x32xf32>
    %96 = arith.addf %93, %95 : vector<36x32xf32>
    %c17_50 = arith.constant 17 : index
    %c0_51 = arith.constant 0 : index
    %97 = vector.load %arg23[%c17_50, %c0_51] : memref<290x32xf32, #tpu.memory_space<vmem>>, vector<256x32xf32>
    tpu.vector_store %arg23[%c17_50, %c0_51], %91 {strides = array<i32>} : memref<290x32xf32, #tpu.memory_space<vmem>>, vector<256x32xf32>,
    %c0_52 = arith.constant 0 : index
    %c0_53 = arith.constant 0 : index
    %98 = vector.load %arg23[%c0_52, %c0_53] : memref<290x32xf32, #tpu.memory_space<vmem>>, vector<256x32xf32>
    %99 = vector.extract_strided_slice %7 {offsets = [0, 0], sizes = [256, 1], strides = [1, 1]} : vector<256x9xf32> to vector<256x1xf32>
    %100 = vector.broadcast %99 : vector<256x1xf32> to vector<256x32xf32>
    %101 = arith.mulf %98, %100 : vector<256x32xf32>
    %102 = vector.extract_strided_slice %14 {offsets = [0, 0], sizes = [32, 32], strides = [1, 1]} : vector<288x32xf32> to vector<32x32xf32>
    %cst_54 = arith.constant dense<0.000000e+00> : vector<256x32xf32>
    %103 = tpu.matmul %101, %102, %cst_54 {dimension_numbers = #tpu.dot_dimension_numbers<[1], [0], [0], [1], [0, 0, 1, 1], [], []>} : vector<256x32xf32>, vector<32x32xf32>, vector<256x32xf32> -> vector<256x32xf32>
    %c1_55 = arith.constant 1 : index
    %c0_56 = arith.constant 0 : index
    %104 = vector.load %arg23[%c1_55, %c0_56] : memref<290x32xf32, #tpu.memory_space<vmem>>, vector<256x32xf32>
    %105 = vector.extract_strided_slice %7 {offsets = [0, 1], sizes = [256, 1], strides = [1, 1]} : vector<256x9xf32> to vector<256x1xf32>
    %106 = vector.broadcast %105 : vector<256x1xf32> to vector<256x32xf32>
    %107 = arith.mulf %104, %106 : vector<256x32xf32>
    %108 = vector.extract_strided_slice %14 {offsets = [32, 0], sizes = [32, 32], strides = [1, 1]} : vector<288x32xf32> to vector<32x32xf32>
    %cst_57 = arith.constant dense<0.000000e+00> : vector<256x32xf32>
    %109 = tpu.matmul %107, %108, %cst_57 {dimension_numbers = #tpu.dot_dimension_numbers<[1], [0], [0], [1], [0, 0, 1, 1], [], []>} : vector<256x32xf32>, vector<32x32xf32>, vector<256x32xf32> -> vector<256x32xf32>
    %110 = arith.addf %103, %109 : vector<256x32xf32>
    %c2_58 = arith.constant 2 : index
    %c0_59 = arith.constant 0 : index
    %111 = vector.load %arg23[%c2_58, %c0_59] : memref<290x32xf32, #tpu.memory_space<vmem>>, vector<256x32xf32>
    %112 = vector.extract_strided_slice %7 {offsets = [0, 2], sizes = [256, 1], strides = [1, 1]} : vector<256x9xf32> to vector<256x1xf32>
    %113 = vector.broadcast %112 : vector<256x1xf32> to vector<256x32xf32>
    %114 = arith.mulf %111, %113 : vector<256x32xf32>
    %115 = vector.extract_strided_slice %14 {offsets = [64, 0], sizes = [32, 32], strides = [1, 1]} : vector<288x32xf32> to vector<32x32xf32>
    %cst_60 = arith.constant dense<0.000000e+00> : vector<256x32xf32>
    %116 = tpu.matmul %114, %115, %cst_60 {dimension_numbers = #tpu.dot_dimension_numbers<[1], [0], [0], [1], [0, 0, 1, 1], [], []>} : vector<256x32xf32>, vector<32x32xf32>, vector<256x32xf32> -> vector<256x32xf32>
    %117 = arith.addf %110, %116 : vector<256x32xf32>
    %c16_61 = arith.constant 16 : index
    %c0_62 = arith.constant 0 : index
    %118 = vector.load %arg23[%c16_61, %c0_62] : memref<290x32xf32, #tpu.memory_space<vmem>>, vector<256x32xf32>
    %119 = vector.extract_strided_slice %7 {offsets = [0, 3], sizes = [256, 1], strides = [1, 1]} : vector<256x9xf32> to vector<256x1xf32>
    %120 = vector.broadcast %119 : vector<256x1xf32> to vector<256x32xf32>
    %121 = arith.mulf %118, %120 : vector<256x32xf32>
    %122 = vector.extract_strided_slice %14 {offsets = [96, 0], sizes = [32, 32], strides = [1, 1]} : vector<288x32xf32> to vector<32x32xf32>
    %cst_63 = arith.constant dense<0.000000e+00> : vector<256x32xf32>
    %123 = tpu.matmul %121, %122, %cst_63 {dimension_numbers = #tpu.dot_dimension_numbers<[1], [0], [0], [1], [0, 0, 1, 1], [], []>} : vector<256x32xf32>, vector<32x32xf32>, vector<256x32xf32> -> vector<256x32xf32>
    %124 = arith.addf %117, %123 : vector<256x32xf32>
    %c17_64 = arith.constant 17 : index
    %c0_65 = arith.constant 0 : index
    %125 = vector.load %arg23[%c17_64, %c0_65] : memref<290x32xf32, #tpu.memory_space<vmem>>, vector<256x32xf32>
    %126 = vector.extract_strided_slice %7 {offsets = [0, 4], sizes = [256, 1], strides = [1, 1]} : vector<256x9xf32> to vector<256x1xf32>
    %127 = vector.broadcast %126 : vector<256x1xf32> to vector<256x32xf32>
    %128 = arith.mulf %125, %127 : vector<256x32xf32>
    %129 = vector.extract_strided_slice %14 {offsets = [128, 0], sizes = [32, 32], strides = [1, 1]} : vector<288x32xf32> to vector<32x32xf32>
    %cst_66 = arith.constant dense<0.000000e+00> : vector<256x32xf32>
    %130 = tpu.matmul %128, %129, %cst_66 {dimension_numbers = #tpu.dot_dimension_numbers<[1], [0], [0], [1], [0, 0, 1, 1], [], []>} : vector<256x32xf32>, vector<32x32xf32>, vector<256x32xf32> -> vector<256x32xf32>
    %131 = arith.addf %124, %130 : vector<256x32xf32>
    %c18_67 = arith.constant 18 : index
    %c0_68 = arith.constant 0 : index
    %132 = vector.load %arg23[%c18_67, %c0_68] : memref<290x32xf32, #tpu.memory_space<vmem>>, vector<256x32xf32>
    %133 = vector.extract_strided_slice %7 {offsets = [0, 5], sizes = [256, 1], strides = [1, 1]} : vector<256x9xf32> to vector<256x1xf32>
    %134 = vector.broadcast %133 : vector<256x1xf32> to vector<256x32xf32>
    %135 = arith.mulf %132, %134 : vector<256x32xf32>
    %136 = vector.extract_strided_slice %14 {offsets = [160, 0], sizes = [32, 32], strides = [1, 1]} : vector<288x32xf32> to vector<32x32xf32>
    %cst_69 = arith.constant dense<0.000000e+00> : vector<256x32xf32>
    %137 = tpu.matmul %135, %136, %cst_69 {dimension_numbers = #tpu.dot_dimension_numbers<[1], [0], [0], [1], [0, 0, 1, 1], [], []>} : vector<256x32xf32>, vector<32x32xf32>, vector<256x32xf32> -> vector<256x32xf32>
    %138 = arith.addf %131, %137 : vector<256x32xf32>
    %c32_70 = arith.constant 32 : index
    %c0_71 = arith.constant 0 : index
    %139 = vector.load %arg23[%c32_70, %c0_71] : memref<290x32xf32, #tpu.memory_space<vmem>>, vector<256x32xf32>
    %140 = vector.extract_strided_slice %7 {offsets = [0, 6], sizes = [256, 1], strides = [1, 1]} : vector<256x9xf32> to vector<256x1xf32>
    %141 = vector.broadcast %140 : vector<256x1xf32> to vector<256x32xf32>
    %142 = arith.mulf %139, %141 : vector<256x32xf32>
    %143 = vector.extract_strided_slice %14 {offsets = [192, 0], sizes = [32, 32], strides = [1, 1]} : vector<288x32xf32> to vector<32x32xf32>
    %cst_72 = arith.constant dense<0.000000e+00> : vector<256x32xf32>
    %144 = tpu.matmul %142, %143, %cst_72 {dimension_numbers = #tpu.dot_dimension_numbers<[1], [0], [0], [1], [0, 0, 1, 1], [], []>} : vector<256x32xf32>, vector<32x32xf32>, vector<256x32xf32> -> vector<256x32xf32>
    %145 = arith.addf %138, %144 : vector<256x32xf32>
    %c33_73 = arith.constant 33 : index
    %c0_74 = arith.constant 0 : index
    %146 = vector.load %arg23[%c33_73, %c0_74] : memref<290x32xf32, #tpu.memory_space<vmem>>, vector<256x32xf32>
    %147 = vector.extract_strided_slice %7 {offsets = [0, 7], sizes = [256, 1], strides = [1, 1]} : vector<256x9xf32> to vector<256x1xf32>
    %148 = vector.broadcast %147 : vector<256x1xf32> to vector<256x32xf32>
    %149 = arith.mulf %146, %148 : vector<256x32xf32>
    %150 = vector.extract_strided_slice %14 {offsets = [224, 0], sizes = [32, 32], strides = [1, 1]} : vector<288x32xf32> to vector<32x32xf32>
    %cst_75 = arith.constant dense<0.000000e+00> : vector<256x32xf32>
    %151 = tpu.matmul %149, %150, %cst_75 {dimension_numbers = #tpu.dot_dimension_numbers<[1], [0], [0], [1], [0, 0, 1, 1], [], []>} : vector<256x32xf32>, vector<32x32xf32>, vector<256x32xf32> -> vector<256x32xf32>
    %152 = arith.addf %145, %151 : vector<256x32xf32>
    %c34_76 = arith.constant 34 : index
    %c0_77 = arith.constant 0 : index
    %153 = vector.load %arg23[%c34_76, %c0_77] : memref<290x32xf32, #tpu.memory_space<vmem>>, vector<256x32xf32>
    %154 = vector.extract_strided_slice %7 {offsets = [0, 8], sizes = [256, 1], strides = [1, 1]} : vector<256x9xf32> to vector<256x1xf32>
    %155 = vector.broadcast %154 : vector<256x1xf32> to vector<256x32xf32>
    %156 = arith.mulf %153, %155 : vector<256x32xf32>
    %157 = vector.extract_strided_slice %14 {offsets = [256, 0], sizes = [32, 32], strides = [1, 1]} : vector<288x32xf32> to vector<32x32xf32>
    %cst_78 = arith.constant dense<0.000000e+00> : vector<256x32xf32>
    %158 = tpu.matmul %156, %157, %cst_78 {dimension_numbers = #tpu.dot_dimension_numbers<[1], [0], [0], [1], [0, 0, 1, 1], [], []>} : vector<256x32xf32>, vector<32x32xf32>, vector<256x32xf32> -> vector<256x32xf32>
    %159 = arith.addf %152, %158 : vector<256x32xf32>
    %cst_79 = arith.constant dense<0.000000e+00> : vector<36x32xf32>
    %160 = tpu.matmul %8, %159, %cst_79 {dimension_numbers = #tpu.dot_dimension_numbers<[1], [0], [0], [1], [0, 0, 1, 1], [], []>} : vector<36x256xf32>, vector<256x32xf32>, vector<36x32xf32> -> vector<36x32xf32>
    %161 = vector.broadcast %16 : vector<1x32xf32> to vector<36x32xf32>
    %162 = arith.addf %160, %161 : vector<36x32xf32>
    %163 = arith.addf %162, %96 : vector<36x32xf32>
    %c0_80 = arith.constant 0 : index
    %c0_81 = arith.constant 0 : index
    %164 = vector.load %arg3[%c0_80, %c0_81] : memref<36x9xf32, #tpu.memory_space<vmem>>, vector<36x9xf32>
    %c0_82 = arith.constant 0 : index
    %c0_83 = arith.constant 0 : index
    %165 = vector.load %arg6[%c0_82, %c0_83] : memref<4x36xf32, #tpu.memory_space<vmem>>, vector<4x36xf32>
    %c1_84 = arith.constant 1 : index
    %c0_85 = arith.constant 0 : index
    %c0_86 = arith.constant 0 : index
    %166 = vector.load %arg10[%c1_84, %c0_85, %c0_86] : memref<3x288x64xf32, #tpu.memory_space<vmem>>, vector<1x288x64xf32>
    %167 = vector.shape_cast %166 : vector<1x288x64xf32> to vector<288x64xf32>
    %c1_87 = arith.constant 1 : index
    %c0_88 = arith.constant 0 : index
    %c0_89 = arith.constant 0 : index
    %168 = vector.load %arg11[%c1_87, %c0_88, %c0_89] : memref<3x1x64xf32, #tpu.memory_space<vmem>>, vector<1x1x64xf32>
    %169 = vector.shape_cast %168 : vector<1x1x64xf32> to vector<1x64xf32>
    %c1_90 = arith.constant 1 : index
    %c0_91 = arith.constant 0 : index
    %c0_92 = arith.constant 0 : index
    %170 = vector.load %arg12[%c1_90, %c0_91, %c0_92] : memref<3x288x32xf32, #tpu.memory_space<vmem>>, vector<1x288x32xf32>
    %171 = vector.shape_cast %170 : vector<1x288x32xf32> to vector<288x32xf32>
    %c1_93 = arith.constant 1 : index
    %c0_94 = arith.constant 0 : index
    %c0_95 = arith.constant 0 : index
    %172 = vector.load %arg13[%c1_93, %c0_94, %c0_95] : memref<3x1x32xf32, #tpu.memory_space<vmem>>, vector<1x1x32xf32>
    %173 = vector.shape_cast %172 : vector<1x1x32xf32> to vector<1x32xf32>
    %cst_96 = arith.constant 0.000000e+00 : f32
    %174 = vector.broadcast %cst_96 : f32 to vector<7x32xf32>
    %c0_97 = arith.constant 0 : index
    %c0_98 = arith.constant 0 : index
    %175 = vector.load %arg24[%c0_97, %c0_98] : memref<50x32xf32, #tpu.memory_space<vmem>>, vector<7x32xf32>
    tpu.vector_store %arg24[%c0_97, %c0_98], %174 {strides = array<i32>} : memref<50x32xf32, #tpu.memory_space<vmem>>, vector<7x32xf32>,
    %c43 = arith.constant 43 : index
    %c0_99 = arith.constant 0 : index
    %176 = vector.load %arg24[%c43, %c0_99] : memref<50x32xf32, #tpu.memory_space<vmem>>, vector<7x32xf32>
    tpu.vector_store %arg24[%c43, %c0_99], %174 {strides = array<i32>} : memref<50x32xf32, #tpu.memory_space<vmem>>, vector<7x32xf32>,
    %c7 = arith.constant 7 : index
    %c0_100 = arith.constant 0 : index
    %177 = vector.load %arg24[%c7, %c0_100] : memref<50x32xf32, #tpu.memory_space<vmem>>, vector<36x32xf32>
    tpu.vector_store %arg24[%c7, %c0_100], %163 {strides = array<i32>} : memref<50x32xf32, #tpu.memory_space<vmem>>, vector<36x32xf32>,
    %c0_101 = arith.constant 0 : index
    %c0_102 = arith.constant 0 : index
    %178 = vector.load %arg24[%c0_101, %c0_102] : memref<50x32xf32, #tpu.memory_space<vmem>>, vector<36x32xf32>
    %179 = vector.extract_strided_slice %164 {offsets = [0, 0], sizes = [36, 1], strides = [1, 1]} : vector<36x9xf32> to vector<36x1xf32>
    %180 = vector.broadcast %179 : vector<36x1xf32> to vector<36x32xf32>
    %181 = arith.mulf %178, %180 : vector<36x32xf32>
    %182 = vector.extract_strided_slice %167 {offsets = [0, 0], sizes = [32, 64], strides = [1, 1]} : vector<288x64xf32> to vector<32x64xf32>
    %cst_103 = arith.constant dense<0.000000e+00> : vector<36x64xf32>
    %183 = tpu.matmul %181, %182, %cst_103 {dimension_numbers = #tpu.dot_dimension_numbers<[1], [0], [0], [1], [0, 0, 1, 1], [], []>} : vector<36x32xf32>, vector<32x64xf32>, vector<36x64xf32> -> vector<36x64xf32>
    %c1_104 = arith.constant 1 : index
    %c0_105 = arith.constant 0 : index
    %184 = vector.load %arg24[%c1_104, %c0_105] : memref<50x32xf32, #tpu.memory_space<vmem>>, vector<36x32xf32>
    %185 = vector.extract_strided_slice %164 {offsets = [0, 1], sizes = [36, 1], strides = [1, 1]} : vector<36x9xf32> to vector<36x1xf32>
    %186 = vector.broadcast %185 : vector<36x1xf32> to vector<36x32xf32>
    %187 = arith.mulf %184, %186 : vector<36x32xf32>
    %188 = vector.extract_strided_slice %167 {offsets = [32, 0], sizes = [32, 64], strides = [1, 1]} : vector<288x64xf32> to vector<32x64xf32>
    %cst_106 = arith.constant dense<0.000000e+00> : vector<36x64xf32>
    %189 = tpu.matmul %187, %188, %cst_106 {dimension_numbers = #tpu.dot_dimension_numbers<[1], [0], [0], [1], [0, 0, 1, 1], [], []>} : vector<36x32xf32>, vector<32x64xf32>, vector<36x64xf32> -> vector<36x64xf32>
    %190 = arith.addf %183, %189 : vector<36x64xf32>
    %c2_107 = arith.constant 2 : index
    %c0_108 = arith.constant 0 : index
    %191 = vector.load %arg24[%c2_107, %c0_108] : memref<50x32xf32, #tpu.memory_space<vmem>>, vector<36x32xf32>
    %192 = vector.extract_strided_slice %164 {offsets = [0, 2], sizes = [36, 1], strides = [1, 1]} : vector<36x9xf32> to vector<36x1xf32>
    %193 = vector.broadcast %192 : vector<36x1xf32> to vector<36x32xf32>
    %194 = arith.mulf %191, %193 : vector<36x32xf32>
    %195 = vector.extract_strided_slice %167 {offsets = [64, 0], sizes = [32, 64], strides = [1, 1]} : vector<288x64xf32> to vector<32x64xf32>
    %cst_109 = arith.constant dense<0.000000e+00> : vector<36x64xf32>
    %196 = tpu.matmul %194, %195, %cst_109 {dimension_numbers = #tpu.dot_dimension_numbers<[1], [0], [0], [1], [0, 0, 1, 1], [], []>} : vector<36x32xf32>, vector<32x64xf32>, vector<36x64xf32> -> vector<36x64xf32>
    %197 = arith.addf %190, %196 : vector<36x64xf32>
    %c6 = arith.constant 6 : index
    %c0_110 = arith.constant 0 : index
    %198 = vector.load %arg24[%c6, %c0_110] : memref<50x32xf32, #tpu.memory_space<vmem>>, vector<36x32xf32>
    %199 = vector.extract_strided_slice %164 {offsets = [0, 3], sizes = [36, 1], strides = [1, 1]} : vector<36x9xf32> to vector<36x1xf32>
    %200 = vector.broadcast %199 : vector<36x1xf32> to vector<36x32xf32>
    %201 = arith.mulf %198, %200 : vector<36x32xf32>
    %202 = vector.extract_strided_slice %167 {offsets = [96, 0], sizes = [32, 64], strides = [1, 1]} : vector<288x64xf32> to vector<32x64xf32>
    %cst_111 = arith.constant dense<0.000000e+00> : vector<36x64xf32>
    %203 = tpu.matmul %201, %202, %cst_111 {dimension_numbers = #tpu.dot_dimension_numbers<[1], [0], [0], [1], [0, 0, 1, 1], [], []>} : vector<36x32xf32>, vector<32x64xf32>, vector<36x64xf32> -> vector<36x64xf32>
    %204 = arith.addf %197, %203 : vector<36x64xf32>
    %c7_112 = arith.constant 7 : index
    %c0_113 = arith.constant 0 : index
    %205 = vector.load %arg24[%c7_112, %c0_113] : memref<50x32xf32, #tpu.memory_space<vmem>>, vector<36x32xf32>
    %206 = vector.extract_strided_slice %164 {offsets = [0, 4], sizes = [36, 1], strides = [1, 1]} : vector<36x9xf32> to vector<36x1xf32>
    %207 = vector.broadcast %206 : vector<36x1xf32> to vector<36x32xf32>
    %208 = arith.mulf %205, %207 : vector<36x32xf32>
    %209 = vector.extract_strided_slice %167 {offsets = [128, 0], sizes = [32, 64], strides = [1, 1]} : vector<288x64xf32> to vector<32x64xf32>
    %cst_114 = arith.constant dense<0.000000e+00> : vector<36x64xf32>
    %210 = tpu.matmul %208, %209, %cst_114 {dimension_numbers = #tpu.dot_dimension_numbers<[1], [0], [0], [1], [0, 0, 1, 1], [], []>} : vector<36x32xf32>, vector<32x64xf32>, vector<36x64xf32> -> vector<36x64xf32>
    %211 = arith.addf %204, %210 : vector<36x64xf32>
    %c8 = arith.constant 8 : index
    %c0_115 = arith.constant 0 : index
    %212 = vector.load %arg24[%c8, %c0_115] : memref<50x32xf32, #tpu.memory_space<vmem>>, vector<36x32xf32>
    %213 = vector.extract_strided_slice %164 {offsets = [0, 5], sizes = [36, 1], strides = [1, 1]} : vector<36x9xf32> to vector<36x1xf32>
    %214 = vector.broadcast %213 : vector<36x1xf32> to vector<36x32xf32>
    %215 = arith.mulf %212, %214 : vector<36x32xf32>
    %216 = vector.extract_strided_slice %167 {offsets = [160, 0], sizes = [32, 64], strides = [1, 1]} : vector<288x64xf32> to vector<32x64xf32>
    %cst_116 = arith.constant dense<0.000000e+00> : vector<36x64xf32>
    %217 = tpu.matmul %215, %216, %cst_116 {dimension_numbers = #tpu.dot_dimension_numbers<[1], [0], [0], [1], [0, 0, 1, 1], [], []>} : vector<36x32xf32>, vector<32x64xf32>, vector<36x64xf32> -> vector<36x64xf32>
    %218 = arith.addf %211, %217 : vector<36x64xf32>
    %c12 = arith.constant 12 : index
    %c0_117 = arith.constant 0 : index
    %219 = vector.load %arg24[%c12, %c0_117] : memref<50x32xf32, #tpu.memory_space<vmem>>, vector<36x32xf32>
    %220 = vector.extract_strided_slice %164 {offsets = [0, 6], sizes = [36, 1], strides = [1, 1]} : vector<36x9xf32> to vector<36x1xf32>
    %221 = vector.broadcast %220 : vector<36x1xf32> to vector<36x32xf32>
    %222 = arith.mulf %219, %221 : vector<36x32xf32>
    %223 = vector.extract_strided_slice %167 {offsets = [192, 0], sizes = [32, 64], strides = [1, 1]} : vector<288x64xf32> to vector<32x64xf32>
    %cst_118 = arith.constant dense<0.000000e+00> : vector<36x64xf32>
    %224 = tpu.matmul %222, %223, %cst_118 {dimension_numbers = #tpu.dot_dimension_numbers<[1], [0], [0], [1], [0, 0, 1, 1], [], []>} : vector<36x32xf32>, vector<32x64xf32>, vector<36x64xf32> -> vector<36x64xf32>
    %225 = arith.addf %218, %224 : vector<36x64xf32>
    %c13 = arith.constant 13 : index
    %c0_119 = arith.constant 0 : index
    %226 = vector.load %arg24[%c13, %c0_119] : memref<50x32xf32, #tpu.memory_space<vmem>>, vector<36x32xf32>
    %227 = vector.extract_strided_slice %164 {offsets = [0, 7], sizes = [36, 1], strides = [1, 1]} : vector<36x9xf32> to vector<36x1xf32>
    %228 = vector.broadcast %227 : vector<36x1xf32> to vector<36x32xf32>
    %229 = arith.mulf %226, %228 : vector<36x32xf32>
    %230 = vector.extract_strided_slice %167 {offsets = [224, 0], sizes = [32, 64], strides = [1, 1]} : vector<288x64xf32> to vector<32x64xf32>
    %cst_120 = arith.constant dense<0.000000e+00> : vector<36x64xf32>
    %231 = tpu.matmul %229, %230, %cst_120 {dimension_numbers = #tpu.dot_dimension_numbers<[1], [0], [0], [1], [0, 0, 1, 1], [], []>} : vector<36x32xf32>, vector<32x64xf32>, vector<36x64xf32> -> vector<36x64xf32>
    %232 = arith.addf %225, %231 : vector<36x64xf32>
    %c14 = arith.constant 14 : index
    %c0_121 = arith.constant 0 : index
    %233 = vector.load %arg24[%c14, %c0_121] : memref<50x32xf32, #tpu.memory_space<vmem>>, vector<36x32xf32>
    %234 = vector.extract_strided_slice %164 {offsets = [0, 8], sizes = [36, 1], strides = [1, 1]} : vector<36x9xf32> to vector<36x1xf32>
    %235 = vector.broadcast %234 : vector<36x1xf32> to vector<36x32xf32>
    %236 = arith.mulf %233, %235 : vector<36x32xf32>
    %237 = vector.extract_strided_slice %167 {offsets = [256, 0], sizes = [32, 64], strides = [1, 1]} : vector<288x64xf32> to vector<32x64xf32>
    %cst_122 = arith.constant dense<0.000000e+00> : vector<36x64xf32>
    %238 = tpu.matmul %236, %237, %cst_122 {dimension_numbers = #tpu.dot_dimension_numbers<[1], [0], [0], [1], [0, 0, 1, 1], [], []>} : vector<36x32xf32>, vector<32x64xf32>, vector<36x64xf32> -> vector<36x64xf32>
    %239 = arith.addf %232, %238 : vector<36x64xf32>
    %240 = vector.extract_strided_slice %239 {offsets = [0, 0], sizes = [36, 32], strides = [1, 1]} : vector<36x64xf32> to vector<36x32xf32>
    %241 = vector.extract_strided_slice %169 {offsets = [0, 0], sizes = [1, 32], strides = [1, 1]} : vector<1x64xf32> to vector<1x32xf32>
    %242 = vector.broadcast %241 : vector<1x32xf32> to vector<36x32xf32>
    %243 = arith.addf %240, %242 : vector<36x32xf32>
    %cst_123 = arith.constant 0.000000e+00 : f32
    %244 = vector.broadcast %cst_123 : f32 to vector<36x32xf32>
    %245 = arith.cmpf oge, %243, %244 : vector<36x32xf32>
    %cst_124 = arith.constant 0.00999999977 : f32
    %246 = vector.broadcast %cst_124 : f32 to vector<36x32xf32>
    %247 = arith.mulf %246, %243 : vector<36x32xf32>
    %248 = arith.select %245, %243, %247 : vector<36x32xi1>, vector<36x32xf32>
    %249 = vector.extract_strided_slice %239 {offsets = [0, 32], sizes = [36, 32], strides = [1, 1]} : vector<36x64xf32> to vector<36x32xf32>
    %cst_125 = arith.constant dense<0.000000e+00> : vector<4x32xf32>
    %250 = tpu.matmul %165, %249, %cst_125 {dimension_numbers = #tpu.dot_dimension_numbers<[1], [0], [0], [1], [0, 0, 1, 1], [], []>} : vector<4x36xf32>, vector<36x32xf32>, vector<4x32xf32> -> vector<4x32xf32>
    %251 = vector.extract_strided_slice %169 {offsets = [0, 32], sizes = [1, 32], strides = [1, 1]} : vector<1x64xf32> to vector<1x32xf32>
    %252 = vector.broadcast %251 : vector<1x32xf32> to vector<4x32xf32>
    %253 = arith.addf %250, %252 : vector<4x32xf32>
    %c7_126 = arith.constant 7 : index
    %c0_127 = arith.constant 0 : index
    %254 = vector.load %arg24[%c7_126, %c0_127] : memref<50x32xf32, #tpu.memory_space<vmem>>, vector<36x32xf32>
    tpu.vector_store %arg24[%c7_126, %c0_127], %248 {strides = array<i32>} : memref<50x32xf32, #tpu.memory_space<vmem>>, vector<36x32xf32>,
    %c0_128 = arith.constant 0 : index
    %c0_129 = arith.constant 0 : index
    %255 = vector.load %arg24[%c0_128, %c0_129] : memref<50x32xf32, #tpu.memory_space<vmem>>, vector<36x32xf32>
    %256 = vector.extract_strided_slice %164 {offsets = [0, 0], sizes = [36, 1], strides = [1, 1]} : vector<36x9xf32> to vector<36x1xf32>
    %257 = vector.broadcast %256 : vector<36x1xf32> to vector<36x32xf32>
    %258 = arith.mulf %255, %257 : vector<36x32xf32>
    %259 = vector.extract_strided_slice %171 {offsets = [0, 0], sizes = [32, 32], strides = [1, 1]} : vector<288x32xf32> to vector<32x32xf32>
    %cst_130 = arith.constant dense<0.000000e+00> : vector<36x32xf32>
    %260 = tpu.matmul %258, %259, %cst_130 {dimension_numbers = #tpu.dot_dimension_numbers<[1], [0], [0], [1], [0, 0, 1, 1], [], []>} : vector<36x32xf32>, vector<32x32xf32>, vector<36x32xf32> -> vector<36x32xf32>
    %c1_131 = arith.constant 1 : index
    %c0_132 = arith.constant 0 : index
    %261 = vector.load %arg24[%c1_131, %c0_132] : memref<50x32xf32, #tpu.memory_space<vmem>>, vector<36x32xf32>
    %262 = vector.extract_strided_slice %164 {offsets = [0, 1], sizes = [36, 1], strides = [1, 1]} : vector<36x9xf32> to vector<36x1xf32>
    %263 = vector.broadcast %262 : vector<36x1xf32> to vector<36x32xf32>
    %264 = arith.mulf %261, %263 : vector<36x32xf32>
    %265 = vector.extract_strided_slice %171 {offsets = [32, 0], sizes = [32, 32], strides = [1, 1]} : vector<288x32xf32> to vector<32x32xf32>
    %cst_133 = arith.constant dense<0.000000e+00> : vector<36x32xf32>
    %266 = tpu.matmul %264, %265, %cst_133 {dimension_numbers = #tpu.dot_dimension_numbers<[1], [0], [0], [1], [0, 0, 1, 1], [], []>} : vector<36x32xf32>, vector<32x32xf32>, vector<36x32xf32> -> vector<36x32xf32>
    %267 = arith.addf %260, %266 : vector<36x32xf32>
    %c2_134 = arith.constant 2 : index
    %c0_135 = arith.constant 0 : index
    %268 = vector.load %arg24[%c2_134, %c0_135] : memref<50x32xf32, #tpu.memory_space<vmem>>, vector<36x32xf32>
    %269 = vector.extract_strided_slice %164 {offsets = [0, 2], sizes = [36, 1], strides = [1, 1]} : vector<36x9xf32> to vector<36x1xf32>
    %270 = vector.broadcast %269 : vector<36x1xf32> to vector<36x32xf32>
    %271 = arith.mulf %268, %270 : vector<36x32xf32>
    %272 = vector.extract_strided_slice %171 {offsets = [64, 0], sizes = [32, 32], strides = [1, 1]} : vector<288x32xf32> to vector<32x32xf32>
    %cst_136 = arith.constant dense<0.000000e+00> : vector<36x32xf32>
    %273 = tpu.matmul %271, %272, %cst_136 {dimension_numbers = #tpu.dot_dimension_numbers<[1], [0], [0], [1], [0, 0, 1, 1], [], []>} : vector<36x32xf32>, vector<32x32xf32>, vector<36x32xf32> -> vector<36x32xf32>
    %274 = arith.addf %267, %273 : vector<36x32xf32>
    %c6_137 = arith.constant 6 : index
    %c0_138 = arith.constant 0 : index
    %275 = vector.load %arg24[%c6_137, %c0_138] : memref<50x32xf32, #tpu.memory_space<vmem>>, vector<36x32xf32>
    %276 = vector.extract_strided_slice %164 {offsets = [0, 3], sizes = [36, 1], strides = [1, 1]} : vector<36x9xf32> to vector<36x1xf32>
    %277 = vector.broadcast %276 : vector<36x1xf32> to vector<36x32xf32>
    %278 = arith.mulf %275, %277 : vector<36x32xf32>
    %279 = vector.extract_strided_slice %171 {offsets = [96, 0], sizes = [32, 32], strides = [1, 1]} : vector<288x32xf32> to vector<32x32xf32>
    %cst_139 = arith.constant dense<0.000000e+00> : vector<36x32xf32>
    %280 = tpu.matmul %278, %279, %cst_139 {dimension_numbers = #tpu.dot_dimension_numbers<[1], [0], [0], [1], [0, 0, 1, 1], [], []>} : vector<36x32xf32>, vector<32x32xf32>, vector<36x32xf32> -> vector<36x32xf32>
    %281 = arith.addf %274, %280 : vector<36x32xf32>
    %c7_140 = arith.constant 7 : index
    %c0_141 = arith.constant 0 : index
    %282 = vector.load %arg24[%c7_140, %c0_141] : memref<50x32xf32, #tpu.memory_space<vmem>>, vector<36x32xf32>
    %283 = vector.extract_strided_slice %164 {offsets = [0, 4], sizes = [36, 1], strides = [1, 1]} : vector<36x9xf32> to vector<36x1xf32>
    %284 = vector.broadcast %283 : vector<36x1xf32> to vector<36x32xf32>
    %285 = arith.mulf %282, %284 : vector<36x32xf32>
    %286 = vector.extract_strided_slice %171 {offsets = [128, 0], sizes = [32, 32], strides = [1, 1]} : vector<288x32xf32> to vector<32x32xf32>
    %cst_142 = arith.constant dense<0.000000e+00> : vector<36x32xf32>
    %287 = tpu.matmul %285, %286, %cst_142 {dimension_numbers = #tpu.dot_dimension_numbers<[1], [0], [0], [1], [0, 0, 1, 1], [], []>} : vector<36x32xf32>, vector<32x32xf32>, vector<36x32xf32> -> vector<36x32xf32>
    %288 = arith.addf %281, %287 : vector<36x32xf32>
    %c8_143 = arith.constant 8 : index
    %c0_144 = arith.constant 0 : index
    %289 = vector.load %arg24[%c8_143, %c0_144] : memref<50x32xf32, #tpu.memory_space<vmem>>, vector<36x32xf32>
    %290 = vector.extract_strided_slice %164 {offsets = [0, 5], sizes = [36, 1], strides = [1, 1]} : vector<36x9xf32> to vector<36x1xf32>
    %291 = vector.broadcast %290 : vector<36x1xf32> to vector<36x32xf32>
    %292 = arith.mulf %289, %291 : vector<36x32xf32>
    %293 = vector.extract_strided_slice %171 {offsets = [160, 0], sizes = [32, 32], strides = [1, 1]} : vector<288x32xf32> to vector<32x32xf32>
    %cst_145 = arith.constant dense<0.000000e+00> : vector<36x32xf32>
    %294 = tpu.matmul %292, %293, %cst_145 {dimension_numbers = #tpu.dot_dimension_numbers<[1], [0], [0], [1], [0, 0, 1, 1], [], []>} : vector<36x32xf32>, vector<32x32xf32>, vector<36x32xf32> -> vector<36x32xf32>
    %295 = arith.addf %288, %294 : vector<36x32xf32>
    %c12_146 = arith.constant 12 : index
    %c0_147 = arith.constant 0 : index
    %296 = vector.load %arg24[%c12_146, %c0_147] : memref<50x32xf32, #tpu.memory_space<vmem>>, vector<36x32xf32>
    %297 = vector.extract_strided_slice %164 {offsets = [0, 6], sizes = [36, 1], strides = [1, 1]} : vector<36x9xf32> to vector<36x1xf32>
    %298 = vector.broadcast %297 : vector<36x1xf32> to vector<36x32xf32>
    %299 = arith.mulf %296, %298 : vector<36x32xf32>
    %300 = vector.extract_strided_slice %171 {offsets = [192, 0], sizes = [32, 32], strides = [1, 1]} : vector<288x32xf32> to vector<32x32xf32>
    %cst_148 = arith.constant dense<0.000000e+00> : vector<36x32xf32>
    %301 = tpu.matmul %299, %300, %cst_148 {dimension_numbers = #tpu.dot_dimension_numbers<[1], [0], [0], [1], [0, 0, 1, 1], [], []>} : vector<36x32xf32>, vector<32x32xf32>, vector<36x32xf32> -> vector<36x32xf32>
    %302 = arith.addf %295, %301 : vector<36x32xf32>
    %c13_149 = arith.constant 13 : index
    %c0_150 = arith.constant 0 : index
    %303 = vector.load %arg24[%c13_149, %c0_150] : memref<50x32xf32, #tpu.memory_space<vmem>>, vector<36x32xf32>
    %304 = vector.extract_strided_slice %164 {offsets = [0, 7], sizes = [36, 1], strides = [1, 1]} : vector<36x9xf32> to vector<36x1xf32>
    %305 = vector.broadcast %304 : vector<36x1xf32> to vector<36x32xf32>
    %306 = arith.mulf %303, %305 : vector<36x32xf32>
    %307 = vector.extract_strided_slice %171 {offsets = [224, 0], sizes = [32, 32], strides = [1, 1]} : vector<288x32xf32> to vector<32x32xf32>
    %cst_151 = arith.constant dense<0.000000e+00> : vector<36x32xf32>
    %308 = tpu.matmul %306, %307, %cst_151 {dimension_numbers = #tpu.dot_dimension_numbers<[1], [0], [0], [1], [0, 0, 1, 1], [], []>} : vector<36x32xf32>, vector<32x32xf32>, vector<36x32xf32> -> vector<36x32xf32>
    %309 = arith.addf %302, %308 : vector<36x32xf32>
    %c14_152 = arith.constant 14 : index
    %c0_153 = arith.constant 0 : index
    %310 = vector.load %arg24[%c14_152, %c0_153] : memref<50x32xf32, #tpu.memory_space<vmem>>, vector<36x32xf32>
    %311 = vector.extract_strided_slice %164 {offsets = [0, 8], sizes = [36, 1], strides = [1, 1]} : vector<36x9xf32> to vector<36x1xf32>
    %312 = vector.broadcast %311 : vector<36x1xf32> to vector<36x32xf32>
    %313 = arith.mulf %310, %312 : vector<36x32xf32>
    %314 = vector.extract_strided_slice %171 {offsets = [256, 0], sizes = [32, 32], strides = [1, 1]} : vector<288x32xf32> to vector<32x32xf32>
    %cst_154 = arith.constant dense<0.000000e+00> : vector<36x32xf32>
    %315 = tpu.matmul %313, %314, %cst_154 {dimension_numbers = #tpu.dot_dimension_numbers<[1], [0], [0], [1], [0, 0, 1, 1], [], []>} : vector<36x32xf32>, vector<32x32xf32>, vector<36x32xf32> -> vector<36x32xf32>
    %316 = arith.addf %309, %315 : vector<36x32xf32>
    %cst_155 = arith.constant dense<0.000000e+00> : vector<4x32xf32>
    %317 = tpu.matmul %165, %316, %cst_155 {dimension_numbers = #tpu.dot_dimension_numbers<[1], [0], [0], [1], [0, 0, 1, 1], [], []>} : vector<4x36xf32>, vector<36x32xf32>, vector<4x32xf32> -> vector<4x32xf32>
    %318 = vector.broadcast %173 : vector<1x32xf32> to vector<4x32xf32>
    %319 = arith.addf %317, %318 : vector<4x32xf32>
    %320 = arith.addf %319, %253 : vector<4x32xf32>
    %c0_156 = arith.constant 0 : index
    %c0_157 = arith.constant 0 : index
    %321 = vector.load %arg4[%c0_156, %c0_157] : memref<4x9xf32, #tpu.memory_space<vmem>>, vector<4x9xf32>
    %c0_158 = arith.constant 0 : index
    %c0_159 = arith.constant 0 : index
    %322 = vector.load %arg7[%c0_158, %c0_159] : memref<1x4xf32, #tpu.memory_space<vmem>>, vector<1x4xf32>
    %c2_160 = arith.constant 2 : index
    %c0_161 = arith.constant 0 : index
    %c0_162 = arith.constant 0 : index
    %323 = vector.load %arg10[%c2_160, %c0_161, %c0_162] : memref<3x288x64xf32, #tpu.memory_space<vmem>>, vector<1x288x64xf32>
    %324 = vector.shape_cast %323 : vector<1x288x64xf32> to vector<288x64xf32>
    %c2_163 = arith.constant 2 : index
    %c0_164 = arith.constant 0 : index
    %c0_165 = arith.constant 0 : index
    %325 = vector.load %arg11[%c2_163, %c0_164, %c0_165] : memref<3x1x64xf32, #tpu.memory_space<vmem>>, vector<1x1x64xf32>
    %326 = vector.shape_cast %325 : vector<1x1x64xf32> to vector<1x64xf32>
    %c2_166 = arith.constant 2 : index
    %c0_167 = arith.constant 0 : index
    %c0_168 = arith.constant 0 : index
    %327 = vector.load %arg12[%c2_166, %c0_167, %c0_168] : memref<3x288x32xf32, #tpu.memory_space<vmem>>, vector<1x288x32xf32>
    %328 = vector.shape_cast %327 : vector<1x288x32xf32> to vector<288x32xf32>
    %c2_169 = arith.constant 2 : index
    %c0_170 = arith.constant 0 : index
    %c0_171 = arith.constant 0 : index
    %329 = vector.load %arg13[%c2_169, %c0_170, %c0_171] : memref<3x1x32xf32, #tpu.memory_space<vmem>>, vector<1x1x32xf32>
    %330 = vector.shape_cast %329 : vector<1x1x32xf32> to vector<1x32xf32>
    %cst_172 = arith.constant 0.000000e+00 : f32
    %331 = vector.broadcast %cst_172 : f32 to vector<3x32xf32>
    %c0_173 = arith.constant 0 : index
    %c0_174 = arith.constant 0 : index
    %332 = vector.load %arg25[%c0_173, %c0_174] : memref<10x32xf32, #tpu.memory_space<vmem>>, vector<3x32xf32>
    tpu.vector_store %arg25[%c0_173, %c0_174], %331 {strides = array<i32>} : memref<10x32xf32, #tpu.memory_space<vmem>>, vector<3x32xf32>,
    %c7_175 = arith.constant 7 : index
    %c0_176 = arith.constant 0 : index
    %333 = vector.load %arg25[%c7_175, %c0_176] : memref<10x32xf32, #tpu.memory_space<vmem>>, vector<3x32xf32>
    tpu.vector_store %arg25[%c7_175, %c0_176], %331 {strides = array<i32>} : memref<10x32xf32, #tpu.memory_space<vmem>>, vector<3x32xf32>,
    %c3 = arith.constant 3 : index
    %c0_177 = arith.constant 0 : index
    %334 = vector.load %arg25[%c3, %c0_177] : memref<10x32xf32, #tpu.memory_space<vmem>>, vector<4x32xf32>
    tpu.vector_store %arg25[%c3, %c0_177], %320 {strides = array<i32>} : memref<10x32xf32, #tpu.memory_space<vmem>>, vector<4x32xf32>,
    %c0_178 = arith.constant 0 : index
    %c0_179 = arith.constant 0 : index
    %335 = vector.load %arg25[%c0_178, %c0_179] : memref<10x32xf32, #tpu.memory_space<vmem>>, vector<4x32xf32>
    %336 = vector.extract_strided_slice %321 {offsets = [0, 0], sizes = [4, 1], strides = [1, 1]} : vector<4x9xf32> to vector<4x1xf32>
    %337 = vector.broadcast %336 : vector<4x1xf32> to vector<4x32xf32>
    %338 = arith.mulf %335, %337 : vector<4x32xf32>
    %339 = vector.extract_strided_slice %324 {offsets = [0, 0], sizes = [32, 64], strides = [1, 1]} : vector<288x64xf32> to vector<32x64xf32>
    %cst_180 = arith.constant dense<0.000000e+00> : vector<4x64xf32>
    %340 = tpu.matmul %338, %339, %cst_180 {dimension_numbers = #tpu.dot_dimension_numbers<[1], [0], [0], [1], [0, 0, 1, 1], [], []>} : vector<4x32xf32>, vector<32x64xf32>, vector<4x64xf32> -> vector<4x64xf32>
    %c1_181 = arith.constant 1 : index
    %c0_182 = arith.constant 0 : index
    %341 = vector.load %arg25[%c1_181, %c0_182] : memref<10x32xf32, #tpu.memory_space<vmem>>, vector<4x32xf32>
    %342 = vector.extract_strided_slice %321 {offsets = [0, 1], sizes = [4, 1], strides = [1, 1]} : vector<4x9xf32> to vector<4x1xf32>
    %343 = vector.broadcast %342 : vector<4x1xf32> to vector<4x32xf32>
    %344 = arith.mulf %341, %343 : vector<4x32xf32>
    %345 = vector.extract_strided_slice %324 {offsets = [32, 0], sizes = [32, 64], strides = [1, 1]} : vector<288x64xf32> to vector<32x64xf32>
    %cst_183 = arith.constant dense<0.000000e+00> : vector<4x64xf32>
    %346 = tpu.matmul %344, %345, %cst_183 {dimension_numbers = #tpu.dot_dimension_numbers<[1], [0], [0], [1], [0, 0, 1, 1], [], []>} : vector<4x32xf32>, vector<32x64xf32>, vector<4x64xf32> -> vector<4x64xf32>
    %347 = arith.addf %340, %346 : vector<4x64xf32>
    %c2_184 = arith.constant 2 : index
    %c0_185 = arith.constant 0 : index
    %348 = vector.load %arg25[%c2_184, %c0_185] : memref<10x32xf32, #tpu.memory_space<vmem>>, vector<4x32xf32>
    %349 = vector.extract_strided_slice %321 {offsets = [0, 2], sizes = [4, 1], strides = [1, 1]} : vector<4x9xf32> to vector<4x1xf32>
    %350 = vector.broadcast %349 : vector<4x1xf32> to vector<4x32xf32>
    %351 = arith.mulf %348, %350 : vector<4x32xf32>
    %352 = vector.extract_strided_slice %324 {offsets = [64, 0], sizes = [32, 64], strides = [1, 1]} : vector<288x64xf32> to vector<32x64xf32>
    %cst_186 = arith.constant dense<0.000000e+00> : vector<4x64xf32>
    %353 = tpu.matmul %351, %352, %cst_186 {dimension_numbers = #tpu.dot_dimension_numbers<[1], [0], [0], [1], [0, 0, 1, 1], [], []>} : vector<4x32xf32>, vector<32x64xf32>, vector<4x64xf32> -> vector<4x64xf32>
    %354 = arith.addf %347, %353 : vector<4x64xf32>
    %c2_187 = arith.constant 2 : index
    %c0_188 = arith.constant 0 : index
    %355 = vector.load %arg25[%c2_187, %c0_188] : memref<10x32xf32, #tpu.memory_space<vmem>>, vector<4x32xf32>
    %356 = vector.extract_strided_slice %321 {offsets = [0, 3], sizes = [4, 1], strides = [1, 1]} : vector<4x9xf32> to vector<4x1xf32>
    %357 = vector.broadcast %356 : vector<4x1xf32> to vector<4x32xf32>
    %358 = arith.mulf %355, %357 : vector<4x32xf32>
    %359 = vector.extract_strided_slice %324 {offsets = [96, 0], sizes = [32, 64], strides = [1, 1]} : vector<288x64xf32> to vector<32x64xf32>
    %cst_189 = arith.constant dense<0.000000e+00> : vector<4x64xf32>
    %360 = tpu.matmul %358, %359, %cst_189 {dimension_numbers = #tpu.dot_dimension_numbers<[1], [0], [0], [1], [0, 0, 1, 1], [], []>} : vector<4x32xf32>, vector<32x64xf32>, vector<4x64xf32> -> vector<4x64xf32>
    %361 = arith.addf %354, %360 : vector<4x64xf32>
    %c3_190 = arith.constant 3 : index
    %c0_191 = arith.constant 0 : index
    %362 = vector.load %arg25[%c3_190, %c0_191] : memref<10x32xf32, #tpu.memory_space<vmem>>, vector<4x32xf32>
    %363 = vector.extract_strided_slice %321 {offsets = [0, 4], sizes = [4, 1], strides = [1, 1]} : vector<4x9xf32> to vector<4x1xf32>
    %364 = vector.broadcast %363 : vector<4x1xf32> to vector<4x32xf32>
    %365 = arith.mulf %362, %364 : vector<4x32xf32>
    %366 = vector.extract_strided_slice %324 {offsets = [128, 0], sizes = [32, 64], strides = [1, 1]} : vector<288x64xf32> to vector<32x64xf32>
    %cst_192 = arith.constant dense<0.000000e+00> : vector<4x64xf32>
    %367 = tpu.matmul %365, %366, %cst_192 {dimension_numbers = #tpu.dot_dimension_numbers<[1], [0], [0], [1], [0, 0, 1, 1], [], []>} : vector<4x32xf32>, vector<32x64xf32>, vector<4x64xf32> -> vector<4x64xf32>
    %368 = arith.addf %361, %367 : vector<4x64xf32>
    %c4 = arith.constant 4 : index
    %c0_193 = arith.constant 0 : index
    %369 = vector.load %arg25[%c4, %c0_193] : memref<10x32xf32, #tpu.memory_space<vmem>>, vector<4x32xf32>
    %370 = vector.extract_strided_slice %321 {offsets = [0, 5], sizes = [4, 1], strides = [1, 1]} : vector<4x9xf32> to vector<4x1xf32>
    %371 = vector.broadcast %370 : vector<4x1xf32> to vector<4x32xf32>
    %372 = arith.mulf %369, %371 : vector<4x32xf32>
    %373 = vector.extract_strided_slice %324 {offsets = [160, 0], sizes = [32, 64], strides = [1, 1]} : vector<288x64xf32> to vector<32x64xf32>
    %cst_194 = arith.constant dense<0.000000e+00> : vector<4x64xf32>
    %374 = tpu.matmul %372, %373, %cst_194 {dimension_numbers = #tpu.dot_dimension_numbers<[1], [0], [0], [1], [0, 0, 1, 1], [], []>} : vector<4x32xf32>, vector<32x64xf32>, vector<4x64xf32> -> vector<4x64xf32>
    %375 = arith.addf %368, %374 : vector<4x64xf32>
    %c4_195 = arith.constant 4 : index
    %c0_196 = arith.constant 0 : index
    %376 = vector.load %arg25[%c4_195, %c0_196] : memref<10x32xf32, #tpu.memory_space<vmem>>, vector<4x32xf32>
    %377 = vector.extract_strided_slice %321 {offsets = [0, 6], sizes = [4, 1], strides = [1, 1]} : vector<4x9xf32> to vector<4x1xf32>
    %378 = vector.broadcast %377 : vector<4x1xf32> to vector<4x32xf32>
    %379 = arith.mulf %376, %378 : vector<4x32xf32>
    %380 = vector.extract_strided_slice %324 {offsets = [192, 0], sizes = [32, 64], strides = [1, 1]} : vector<288x64xf32> to vector<32x64xf32>
    %cst_197 = arith.constant dense<0.000000e+00> : vector<4x64xf32>
    %381 = tpu.matmul %379, %380, %cst_197 {dimension_numbers = #tpu.dot_dimension_numbers<[1], [0], [0], [1], [0, 0, 1, 1], [], []>} : vector<4x32xf32>, vector<32x64xf32>, vector<4x64xf32> -> vector<4x64xf32>
    %382 = arith.addf %375, %381 : vector<4x64xf32>
    %c5 = arith.constant 5 : index
    %c0_198 = arith.constant 0 : index
    %383 = vector.load %arg25[%c5, %c0_198] : memref<10x32xf32, #tpu.memory_space<vmem>>, vector<4x32xf32>
    %384 = vector.extract_strided_slice %321 {offsets = [0, 7], sizes = [4, 1], strides = [1, 1]} : vector<4x9xf32> to vector<4x1xf32>
    %385 = vector.broadcast %384 : vector<4x1xf32> to vector<4x32xf32>
    %386 = arith.mulf %383, %385 : vector<4x32xf32>
    %387 = vector.extract_strided_slice %324 {offsets = [224, 0], sizes = [32, 64], strides = [1, 1]} : vector<288x64xf32> to vector<32x64xf32>
    %cst_199 = arith.constant dense<0.000000e+00> : vector<4x64xf32>
    %388 = tpu.matmul %386, %387, %cst_199 {dimension_numbers = #tpu.dot_dimension_numbers<[1], [0], [0], [1], [0, 0, 1, 1], [], []>} : vector<4x32xf32>, vector<32x64xf32>, vector<4x64xf32> -> vector<4x64xf32>
    %389 = arith.addf %382, %388 : vector<4x64xf32>
    %c6_200 = arith.constant 6 : index
    %c0_201 = arith.constant 0 : index
    %390 = vector.load %arg25[%c6_200, %c0_201] : memref<10x32xf32, #tpu.memory_space<vmem>>, vector<4x32xf32>
    %391 = vector.extract_strided_slice %321 {offsets = [0, 8], sizes = [4, 1], strides = [1, 1]} : vector<4x9xf32> to vector<4x1xf32>
    %392 = vector.broadcast %391 : vector<4x1xf32> to vector<4x32xf32>
    %393 = arith.mulf %390, %392 : vector<4x32xf32>
    %394 = vector.extract_strided_slice %324 {offsets = [256, 0], sizes = [32, 64], strides = [1, 1]} : vector<288x64xf32> to vector<32x64xf32>
    %cst_202 = arith.constant dense<0.000000e+00> : vector<4x64xf32>
    %395 = tpu.matmul %393, %394, %cst_202 {dimension_numbers = #tpu.dot_dimension_numbers<[1], [0], [0], [1], [0, 0, 1, 1], [], []>} : vector<4x32xf32>, vector<32x64xf32>, vector<4x64xf32> -> vector<4x64xf32>
    %396 = arith.addf %389, %395 : vector<4x64xf32>
    %397 = vector.extract_strided_slice %396 {offsets = [0, 0], sizes = [4, 32], strides = [1, 1]} : vector<4x64xf32> to vector<4x32xf32>
    %398 = vector.extract_strided_slice %326 {offsets = [0, 0], sizes = [1, 32], strides = [1, 1]} : vector<1x64xf32> to vector<1x32xf32>
    %399 = vector.broadcast %398 : vector<1x32xf32> to vector<4x32xf32>
    %400 = arith.addf %397, %399 : vector<4x32xf32>
    %cst_203 = arith.constant 0.000000e+00 : f32
    %401 = vector.broadcast %cst_203 : f32 to vector<4x32xf32>
    %402 = arith.cmpf oge, %400, %401 : vector<4x32xf32>
    %cst_204 = arith.constant 0.00999999977 : f32
    %403 = vector.broadcast %cst_204 : f32 to vector<4x32xf32>
    %404 = arith.mulf %403, %400 : vector<4x32xf32>
    %405 = arith.select %402, %400, %404 : vector<4x32xi1>, vector<4x32xf32>
    %406 = vector.extract_strided_slice %396 {offsets = [0, 32], sizes = [4, 32], strides = [1, 1]} : vector<4x64xf32> to vector<4x32xf32>
    %cst_205 = arith.constant dense<0.000000e+00> : vector<1x32xf32>
    %407 = tpu.matmul %322, %406, %cst_205 {dimension_numbers = #tpu.dot_dimension_numbers<[1], [0], [0], [1], [0, 0, 1, 1], [], []>} : vector<1x4xf32>, vector<4x32xf32>, vector<1x32xf32> -> vector<1x32xf32>
    %408 = vector.extract_strided_slice %326 {offsets = [0, 32], sizes = [1, 32], strides = [1, 1]} : vector<1x64xf32> to vector<1x32xf32>
    %409 = arith.addf %407, %408 : vector<1x32xf32>
    %c3_206 = arith.constant 3 : index
    %c0_207 = arith.constant 0 : index
    %410 = vector.load %arg25[%c3_206, %c0_207] : memref<10x32xf32, #tpu.memory_space<vmem>>, vector<4x32xf32>
    tpu.vector_store %arg25[%c3_206, %c0_207], %405 {strides = array<i32>} : memref<10x32xf32, #tpu.memory_space<vmem>>, vector<4x32xf32>,
    %c0_208 = arith.constant 0 : index
    %c0_209 = arith.constant 0 : index
    %411 = vector.load %arg25[%c0_208, %c0_209] : memref<10x32xf32, #tpu.memory_space<vmem>>, vector<4x32xf32>
    %412 = vector.extract_strided_slice %321 {offsets = [0, 0], sizes = [4, 1], strides = [1, 1]} : vector<4x9xf32> to vector<4x1xf32>
    %413 = vector.broadcast %412 : vector<4x1xf32> to vector<4x32xf32>
    %414 = arith.mulf %411, %413 : vector<4x32xf32>
    %415 = vector.extract_strided_slice %328 {offsets = [0, 0], sizes = [32, 32], strides = [1, 1]} : vector<288x32xf32> to vector<32x32xf32>
    %cst_210 = arith.constant dense<0.000000e+00> : vector<4x32xf32>
    %416 = tpu.matmul %414, %415, %cst_210 {dimension_numbers = #tpu.dot_dimension_numbers<[1], [0], [0], [1], [0, 0, 1, 1], [], []>} : vector<4x32xf32>, vector<32x32xf32>, vector<4x32xf32> -> vector<4x32xf32>
    %c1_211 = arith.constant 1 : index
    %c0_212 = arith.constant 0 : index
    %417 = vector.load %arg25[%c1_211, %c0_212] : memref<10x32xf32, #tpu.memory_space<vmem>>, vector<4x32xf32>
    %418 = vector.extract_strided_slice %321 {offsets = [0, 1], sizes = [4, 1], strides = [1, 1]} : vector<4x9xf32> to vector<4x1xf32>
    %419 = vector.broadcast %418 : vector<4x1xf32> to vector<4x32xf32>
    %420 = arith.mulf %417, %419 : vector<4x32xf32>
    %421 = vector.extract_strided_slice %328 {offsets = [32, 0], sizes = [32, 32], strides = [1, 1]} : vector<288x32xf32> to vector<32x32xf32>
    %cst_213 = arith.constant dense<0.000000e+00> : vector<4x32xf32>
    %422 = tpu.matmul %420, %421, %cst_213 {dimension_numbers = #tpu.dot_dimension_numbers<[1], [0], [0], [1], [0, 0, 1, 1], [], []>} : vector<4x32xf32>, vector<32x32xf32>, vector<4x32xf32> -> vector<4x32xf32>
    %423 = arith.addf %416, %422 : vector<4x32xf32>
    %c2_214 = arith.constant 2 : index
    %c0_215 = arith.constant 0 : index
    %424 = vector.load %arg25[%c2_214, %c0_215] : memref<10x32xf32, #tpu.memory_space<vmem>>, vector<4x32xf32>
    %425 = vector.extract_strided_slice %321 {offsets = [0, 2], sizes = [4, 1], strides = [1, 1]} : vector<4x9xf32> to vector<4x1xf32>
    %426 = vector.broadcast %425 : vector<4x1xf32> to vector<4x32xf32>
    %427 = arith.mulf %424, %426 : vector<4x32xf32>
    %428 = vector.extract_strided_slice %328 {offsets = [64, 0], sizes = [32, 32], strides = [1, 1]} : vector<288x32xf32> to vector<32x32xf32>
    %cst_216 = arith.constant dense<0.000000e+00> : vector<4x32xf32>
    %429 = tpu.matmul %427, %428, %cst_216 {dimension_numbers = #tpu.dot_dimension_numbers<[1], [0], [0], [1], [0, 0, 1, 1], [], []>} : vector<4x32xf32>, vector<32x32xf32>, vector<4x32xf32> -> vector<4x32xf32>
    %430 = arith.addf %423, %429 : vector<4x32xf32>
    %c2_217 = arith.constant 2 : index
    %c0_218 = arith.constant 0 : index
    %431 = vector.load %arg25[%c2_217, %c0_218] : memref<10x32xf32, #tpu.memory_space<vmem>>, vector<4x32xf32>
    %432 = vector.extract_strided_slice %321 {offsets = [0, 3], sizes = [4, 1], strides = [1, 1]} : vector<4x9xf32> to vector<4x1xf32>
    %433 = vector.broadcast %432 : vector<4x1xf32> to vector<4x32xf32>
    %434 = arith.mulf %431, %433 : vector<4x32xf32>
    %435 = vector.extract_strided_slice %328 {offsets = [96, 0], sizes = [32, 32], strides = [1, 1]} : vector<288x32xf32> to vector<32x32xf32>
    %cst_219 = arith.constant dense<0.000000e+00> : vector<4x32xf32>
    %436 = tpu.matmul %434, %435, %cst_219 {dimension_numbers = #tpu.dot_dimension_numbers<[1], [0], [0], [1], [0, 0, 1, 1], [], []>} : vector<4x32xf32>, vector<32x32xf32>, vector<4x32xf32> -> vector<4x32xf32>
    %437 = arith.addf %430, %436 : vector<4x32xf32>
    %c3_220 = arith.constant 3 : index
    %c0_221 = arith.constant 0 : index
    %438 = vector.load %arg25[%c3_220, %c0_221] : memref<10x32xf32, #tpu.memory_space<vmem>>, vector<4x32xf32>
    %439 = vector.extract_strided_slice %321 {offsets = [0, 4], sizes = [4, 1], strides = [1, 1]} : vector<4x9xf32> to vector<4x1xf32>
    %440 = vector.broadcast %439 : vector<4x1xf32> to vector<4x32xf32>
    %441 = arith.mulf %438, %440 : vector<4x32xf32>
    %442 = vector.extract_strided_slice %328 {offsets = [128, 0], sizes = [32, 32], strides = [1, 1]} : vector<288x32xf32> to vector<32x32xf32>
    %cst_222 = arith.constant dense<0.000000e+00> : vector<4x32xf32>
    %443 = tpu.matmul %441, %442, %cst_222 {dimension_numbers = #tpu.dot_dimension_numbers<[1], [0], [0], [1], [0, 0, 1, 1], [], []>} : vector<4x32xf32>, vector<32x32xf32>, vector<4x32xf32> -> vector<4x32xf32>
    %444 = arith.addf %437, %443 : vector<4x32xf32>
    %c4_223 = arith.constant 4 : index
    %c0_224 = arith.constant 0 : index
    %445 = vector.load %arg25[%c4_223, %c0_224] : memref<10x32xf32, #tpu.memory_space<vmem>>, vector<4x32xf32>
    %446 = vector.extract_strided_slice %321 {offsets = [0, 5], sizes = [4, 1], strides = [1, 1]} : vector<4x9xf32> to vector<4x1xf32>
    %447 = vector.broadcast %446 : vector<4x1xf32> to vector<4x32xf32>
    %448 = arith.mulf %445, %447 : vector<4x32xf32>
    %449 = vector.extract_strided_slice %328 {offsets = [160, 0], sizes = [32, 32], strides = [1, 1]} : vector<288x32xf32> to vector<32x32xf32>
    %cst_225 = arith.constant dense<0.000000e+00> : vector<4x32xf32>
    %450 = tpu.matmul %448, %449, %cst_225 {dimension_numbers = #tpu.dot_dimension_numbers<[1], [0], [0], [1], [0, 0, 1, 1], [], []>} : vector<4x32xf32>, vector<32x32xf32>, vector<4x32xf32> -> vector<4x32xf32>
    %451 = arith.addf %444, %450 : vector<4x32xf32>
    %c4_226 = arith.constant 4 : index
    %c0_227 = arith.constant 0 : index
    %452 = vector.load %arg25[%c4_226, %c0_227] : memref<10x32xf32, #tpu.memory_space<vmem>>, vector<4x32xf32>
    %453 = vector.extract_strided_slice %321 {offsets = [0, 6], sizes = [4, 1], strides = [1, 1]} : vector<4x9xf32> to vector<4x1xf32>
    %454 = vector.broadcast %453 : vector<4x1xf32> to vector<4x32xf32>
    %455 = arith.mulf %452, %454 : vector<4x32xf32>
    %456 = vector.extract_strided_slice %328 {offsets = [192, 0], sizes = [32, 32], strides = [1, 1]} : vector<288x32xf32> to vector<32x32xf32>
    %cst_228 = arith.constant dense<0.000000e+00> : vector<4x32xf32>
    %457 = tpu.matmul %455, %456, %cst_228 {dimension_numbers = #tpu.dot_dimension_numbers<[1], [0], [0], [1], [0, 0, 1, 1], [], []>} : vector<4x32xf32>, vector<32x32xf32>, vector<4x32xf32> -> vector<4x32xf32>
    %458 = arith.addf %451, %457 : vector<4x32xf32>
    %c5_229 = arith.constant 5 : index
    %c0_230 = arith.constant 0 : index
    %459 = vector.load %arg25[%c5_229, %c0_230] : memref<10x32xf32, #tpu.memory_space<vmem>>, vector<4x32xf32>
    %460 = vector.extract_strided_slice %321 {offsets = [0, 7], sizes = [4, 1], strides = [1, 1]} : vector<4x9xf32> to vector<4x1xf32>
    %461 = vector.broadcast %460 : vector<4x1xf32> to vector<4x32xf32>
    %462 = arith.mulf %459, %461 : vector<4x32xf32>
    %463 = vector.extract_strided_slice %328 {offsets = [224, 0], sizes = [32, 32], strides = [1, 1]} : vector<288x32xf32> to vector<32x32xf32>
    %cst_231 = arith.constant dense<0.000000e+00> : vector<4x32xf32>
    %464 = tpu.matmul %462, %463, %cst_231 {dimension_numbers = #tpu.dot_dimension_numbers<[1], [0], [0], [1], [0, 0, 1, 1], [], []>} : vector<4x32xf32>, vector<32x32xf32>, vector<4x32xf32> -> vector<4x32xf32>
    %465 = arith.addf %458, %464 : vector<4x32xf32>
    %c6_232 = arith.constant 6 : index
    %c0_233 = arith.constant 0 : index
    %466 = vector.load %arg25[%c6_232, %c0_233] : memref<10x32xf32, #tpu.memory_space<vmem>>, vector<4x32xf32>
    %467 = vector.extract_strided_slice %321 {offsets = [0, 8], sizes = [4, 1], strides = [1, 1]} : vector<4x9xf32> to vector<4x1xf32>
    %468 = vector.broadcast %467 : vector<4x1xf32> to vector<4x32xf32>
    %469 = arith.mulf %466, %468 : vector<4x32xf32>
    %470 = vector.extract_strided_slice %328 {offsets = [256, 0], sizes = [32, 32], strides = [1, 1]} : vector<288x32xf32> to vector<32x32xf32>
    %cst_234 = arith.constant dense<0.000000e+00> : vector<4x32xf32>
    %471 = tpu.matmul %469, %470, %cst_234 {dimension_numbers = #tpu.dot_dimension_numbers<[1], [0], [0], [1], [0, 0, 1, 1], [], []>} : vector<4x32xf32>, vector<32x32xf32>, vector<4x32xf32> -> vector<4x32xf32>
    %472 = arith.addf %465, %471 : vector<4x32xf32>
    %cst_235 = arith.constant dense<0.000000e+00> : vector<1x32xf32>
    %473 = tpu.matmul %322, %472, %cst_235 {dimension_numbers = #tpu.dot_dimension_numbers<[1], [0], [0], [1], [0, 0, 1, 1], [], []>} : vector<1x4xf32>, vector<4x32xf32>, vector<1x32xf32> -> vector<1x32xf32>
    %474 = arith.addf %473, %330 : vector<1x32xf32>
    %475 = arith.addf %474, %409 : vector<1x32xf32>
    %c0_236 = arith.constant 0 : index
    %c0_237 = arith.constant 0 : index
    %c0_238 = arith.constant 0 : index
    %476 = vector.load %arg14[%c0_236, %c0_237, %c0_238] : memref<6x32x64xf32, #tpu.memory_space<vmem>>, vector<1x32x64xf32>
    %477 = vector.shape_cast %476 : vector<1x32x64xf32> to vector<32x64xf32>
    %cst_239 = arith.constant dense<0.000000e+00> : vector<1x64xf32>
    %478 = tpu.matmul %475, %477, %cst_239 {dimension_numbers = #tpu.dot_dimension_numbers<[1], [0], [0], [1], [0, 0, 1, 1], [], []>} : vector<1x32xf32>, vector<32x64xf32>, vector<1x64xf32> -> vector<1x64xf32>
    %c0_240 = arith.constant 0 : index
    %c0_241 = arith.constant 0 : index
    %c0_242 = arith.constant 0 : index
    %479 = vector.load %arg15[%c0_240, %c0_241, %c0_242] : memref<6x1x64xf32, #tpu.memory_space<vmem>>, vector<1x1x64xf32>
    %480 = vector.shape_cast %479 : vector<1x1x64xf32> to vector<1x64xf32>
    %481 = arith.addf %478, %480 : vector<1x64xf32>
    %482 = vector.extract_strided_slice %481 {offsets = [0, 0], sizes = [1, 32], strides = [1, 1]} : vector<1x64xf32> to vector<1x32xf32>
    %cst_243 = arith.constant 0.000000e+00 : f32
    %483 = vector.broadcast %cst_243 : f32 to vector<1x32xf32>
    %484 = arith.cmpf oge, %482, %483 : vector<1x32xf32>
    %cst_244 = arith.constant 0.00999999977 : f32
    %485 = vector.broadcast %cst_244 : f32 to vector<1x32xf32>
    %486 = arith.mulf %485, %482 : vector<1x32xf32>
    %487 = arith.select %484, %482, %486 : vector<1x32xi1>, vector<1x32xf32>
    %c0_245 = arith.constant 0 : index
    %c0_246 = arith.constant 0 : index
    %c0_247 = arith.constant 0 : index
    %488 = vector.load %arg16[%c0_245, %c0_246, %c0_247] : memref<6x32x32xf32, #tpu.memory_space<vmem>>, vector<1x32x32xf32>
    %489 = vector.shape_cast %488 : vector<1x32x32xf32> to vector<32x32xf32>
    %cst_248 = arith.constant dense<0.000000e+00> : vector<1x32xf32>
    %490 = tpu.matmul %487, %489, %cst_248 {dimension_numbers = #tpu.dot_dimension_numbers<[1], [0], [0], [1], [0, 0, 1, 1], [], []>} : vector<1x32xf32>, vector<32x32xf32>, vector<1x32xf32> -> vector<1x32xf32>
    %c0_249 = arith.constant 0 : index
    %c0_250 = arith.constant 0 : index
    %c0_251 = arith.constant 0 : index
    %491 = vector.load %arg17[%c0_249, %c0_250, %c0_251] : memref<6x1x32xf32, #tpu.memory_space<vmem>>, vector<1x1x32xf32>
    %492 = vector.shape_cast %491 : vector<1x1x32xf32> to vector<1x32xf32>
    %493 = arith.addf %490, %492 : vector<1x32xf32>
    %494 = vector.extract_strided_slice %481 {offsets = [0, 32], sizes = [1, 32], strides = [1, 1]} : vector<1x64xf32> to vector<1x32xf32>
    %495 = arith.addf %493, %494 : vector<1x32xf32>
    %c1_252 = arith.constant 1 : index
    %c0_253 = arith.constant 0 : index
    %c0_254 = arith.constant 0 : index
    %496 = vector.load %arg14[%c1_252, %c0_253, %c0_254] : memref<6x32x64xf32, #tpu.memory_space<vmem>>, vector<1x32x64xf32>
    %497 = vector.shape_cast %496 : vector<1x32x64xf32> to vector<32x64xf32>
    %cst_255 = arith.constant dense<0.000000e+00> : vector<1x64xf32>
    %498 = tpu.matmul %495, %497, %cst_255 {dimension_numbers = #tpu.dot_dimension_numbers<[1], [0], [0], [1], [0, 0, 1, 1], [], []>} : vector<1x32xf32>, vector<32x64xf32>, vector<1x64xf32> -> vector<1x64xf32>
    %c1_256 = arith.constant 1 : index
    %c0_257 = arith.constant 0 : index
    %c0_258 = arith.constant 0 : index
    %499 = vector.load %arg15[%c1_256, %c0_257, %c0_258] : memref<6x1x64xf32, #tpu.memory_space<vmem>>, vector<1x1x64xf32>
    %500 = vector.shape_cast %499 : vector<1x1x64xf32> to vector<1x64xf32>
    %501 = arith.addf %498, %500 : vector<1x64xf32>
    %502 = vector.extract_strided_slice %501 {offsets = [0, 0], sizes = [1, 32], strides = [1, 1]} : vector<1x64xf32> to vector<1x32xf32>
    %cst_259 = arith.constant 0.000000e+00 : f32
    %503 = vector.broadcast %cst_259 : f32 to vector<1x32xf32>
    %504 = arith.cmpf oge, %502, %503 : vector<1x32xf32>
    %cst_260 = arith.constant 0.00999999977 : f32
    %505 = vector.broadcast %cst_260 : f32 to vector<1x32xf32>
    %506 = arith.mulf %505, %502 : vector<1x32xf32>
    %507 = arith.select %504, %502, %506 : vector<1x32xi1>, vector<1x32xf32>
    %c1_261 = arith.constant 1 : index
    %c0_262 = arith.constant 0 : index
    %c0_263 = arith.constant 0 : index
    %508 = vector.load %arg16[%c1_261, %c0_262, %c0_263] : memref<6x32x32xf32, #tpu.memory_space<vmem>>, vector<1x32x32xf32>
    %509 = vector.shape_cast %508 : vector<1x32x32xf32> to vector<32x32xf32>
    %cst_264 = arith.constant dense<0.000000e+00> : vector<1x32xf32>
    %510 = tpu.matmul %507, %509, %cst_264 {dimension_numbers = #tpu.dot_dimension_numbers<[1], [0], [0], [1], [0, 0, 1, 1], [], []>} : vector<1x32xf32>, vector<32x32xf32>, vector<1x32xf32> -> vector<1x32xf32>
    %c1_265 = arith.constant 1 : index
    %c0_266 = arith.constant 0 : index
    %c0_267 = arith.constant 0 : index
    %511 = vector.load %arg17[%c1_265, %c0_266, %c0_267] : memref<6x1x32xf32, #tpu.memory_space<vmem>>, vector<1x1x32xf32>
    %512 = vector.shape_cast %511 : vector<1x1x32xf32> to vector<1x32xf32>
    %513 = arith.addf %510, %512 : vector<1x32xf32>
    %514 = vector.extract_strided_slice %501 {offsets = [0, 32], sizes = [1, 32], strides = [1, 1]} : vector<1x64xf32> to vector<1x32xf32>
    %515 = arith.addf %513, %514 : vector<1x32xf32>
    %c2_268 = arith.constant 2 : index
    %c0_269 = arith.constant 0 : index
    %c0_270 = arith.constant 0 : index
    %516 = vector.load %arg14[%c2_268, %c0_269, %c0_270] : memref<6x32x64xf32, #tpu.memory_space<vmem>>, vector<1x32x64xf32>
    %517 = vector.shape_cast %516 : vector<1x32x64xf32> to vector<32x64xf32>
    %cst_271 = arith.constant dense<0.000000e+00> : vector<1x64xf32>
    %518 = tpu.matmul %515, %517, %cst_271 {dimension_numbers = #tpu.dot_dimension_numbers<[1], [0], [0], [1], [0, 0, 1, 1], [], []>} : vector<1x32xf32>, vector<32x64xf32>, vector<1x64xf32> -> vector<1x64xf32>
    %c2_272 = arith.constant 2 : index
    %c0_273 = arith.constant 0 : index
    %c0_274 = arith.constant 0 : index
    %519 = vector.load %arg15[%c2_272, %c0_273, %c0_274] : memref<6x1x64xf32, #tpu.memory_space<vmem>>, vector<1x1x64xf32>
    %520 = vector.shape_cast %519 : vector<1x1x64xf32> to vector<1x64xf32>
    %521 = arith.addf %518, %520 : vector<1x64xf32>
    %522 = vector.extract_strided_slice %521 {offsets = [0, 0], sizes = [1, 32], strides = [1, 1]} : vector<1x64xf32> to vector<1x32xf32>
    %cst_275 = arith.constant 0.000000e+00 : f32
    %523 = vector.broadcast %cst_275 : f32 to vector<1x32xf32>
    %524 = arith.cmpf oge, %522, %523 : vector<1x32xf32>
    %cst_276 = arith.constant 0.00999999977 : f32
    %525 = vector.broadcast %cst_276 : f32 to vector<1x32xf32>
    %526 = arith.mulf %525, %522 : vector<1x32xf32>
    %527 = arith.select %524, %522, %526 : vector<1x32xi1>, vector<1x32xf32>
    %c2_277 = arith.constant 2 : index
    %c0_278 = arith.constant 0 : index
    %c0_279 = arith.constant 0 : index
    %528 = vector.load %arg16[%c2_277, %c0_278, %c0_279] : memref<6x32x32xf32, #tpu.memory_space<vmem>>, vector<1x32x32xf32>
    %529 = vector.shape_cast %528 : vector<1x32x32xf32> to vector<32x32xf32>
    %cst_280 = arith.constant dense<0.000000e+00> : vector<1x32xf32>
    %530 = tpu.matmul %527, %529, %cst_280 {dimension_numbers = #tpu.dot_dimension_numbers<[1], [0], [0], [1], [0, 0, 1, 1], [], []>} : vector<1x32xf32>, vector<32x32xf32>, vector<1x32xf32> -> vector<1x32xf32>
    %c2_281 = arith.constant 2 : index
    %c0_282 = arith.constant 0 : index
    %c0_283 = arith.constant 0 : index
    %531 = vector.load %arg17[%c2_281, %c0_282, %c0_283] : memref<6x1x32xf32, #tpu.memory_space<vmem>>, vector<1x1x32xf32>
    %532 = vector.shape_cast %531 : vector<1x1x32xf32> to vector<1x32xf32>
    %533 = arith.addf %530, %532 : vector<1x32xf32>
    %534 = vector.extract_strided_slice %521 {offsets = [0, 32], sizes = [1, 32], strides = [1, 1]} : vector<1x64xf32> to vector<1x32xf32>
    %535 = arith.addf %533, %534 : vector<1x32xf32>
    %c3_284 = arith.constant 3 : index
    %c0_285 = arith.constant 0 : index
    %c0_286 = arith.constant 0 : index
    %536 = vector.load %arg14[%c3_284, %c0_285, %c0_286] : memref<6x32x64xf32, #tpu.memory_space<vmem>>, vector<1x32x64xf32>
    %537 = vector.shape_cast %536 : vector<1x32x64xf32> to vector<32x64xf32>
    %cst_287 = arith.constant dense<0.000000e+00> : vector<1x64xf32>
    %538 = tpu.matmul %535, %537, %cst_287 {dimension_numbers = #tpu.dot_dimension_numbers<[1], [0], [0], [1], [0, 0, 1, 1], [], []>} : vector<1x32xf32>, vector<32x64xf32>, vector<1x64xf32> -> vector<1x64xf32>
    %c3_288 = arith.constant 3 : index
    %c0_289 = arith.constant 0 : index
    %c0_290 = arith.constant 0 : index
    %539 = vector.load %arg15[%c3_288, %c0_289, %c0_290] : memref<6x1x64xf32, #tpu.memory_space<vmem>>, vector<1x1x64xf32>
    %540 = vector.shape_cast %539 : vector<1x1x64xf32> to vector<1x64xf32>
    %541 = arith.addf %538, %540 : vector<1x64xf32>
    %542 = vector.extract_strided_slice %541 {offsets = [0, 0], sizes = [1, 32], strides = [1, 1]} : vector<1x64xf32> to vector<1x32xf32>
    %cst_291 = arith.constant 0.000000e+00 : f32
    %543 = vector.broadcast %cst_291 : f32 to vector<1x32xf32>
    %544 = arith.cmpf oge, %542, %543 : vector<1x32xf32>
    %cst_292 = arith.constant 0.00999999977 : f32
    %545 = vector.broadcast %cst_292 : f32 to vector<1x32xf32>
    %546 = arith.mulf %545, %542 : vector<1x32xf32>
    %547 = arith.select %544, %542, %546 : vector<1x32xi1>, vector<1x32xf32>
    %c3_293 = arith.constant 3 : index
    %c0_294 = arith.constant 0 : index
    %c0_295 = arith.constant 0 : index
    %548 = vector.load %arg16[%c3_293, %c0_294, %c0_295] : memref<6x32x32xf32, #tpu.memory_space<vmem>>, vector<1x32x32xf32>
    %549 = vector.shape_cast %548 : vector<1x32x32xf32> to vector<32x32xf32>
    %cst_296 = arith.constant dense<0.000000e+00> : vector<1x32xf32>
    %550 = tpu.matmul %547, %549, %cst_296 {dimension_numbers = #tpu.dot_dimension_numbers<[1], [0], [0], [1], [0, 0, 1, 1], [], []>} : vector<1x32xf32>, vector<32x32xf32>, vector<1x32xf32> -> vector<1x32xf32>
    %c3_297 = arith.constant 3 : index
    %c0_298 = arith.constant 0 : index
    %c0_299 = arith.constant 0 : index
    %551 = vector.load %arg17[%c3_297, %c0_298, %c0_299] : memref<6x1x32xf32, #tpu.memory_space<vmem>>, vector<1x1x32xf32>
    %552 = vector.shape_cast %551 : vector<1x1x32xf32> to vector<1x32xf32>
    %553 = arith.addf %550, %552 : vector<1x32xf32>
    %554 = vector.extract_strided_slice %541 {offsets = [0, 32], sizes = [1, 32], strides = [1, 1]} : vector<1x64xf32> to vector<1x32xf32>
    %555 = arith.addf %553, %554 : vector<1x32xf32>
    %c4_300 = arith.constant 4 : index
    %c0_301 = arith.constant 0 : index
    %c0_302 = arith.constant 0 : index
    %556 = vector.load %arg14[%c4_300, %c0_301, %c0_302] : memref<6x32x64xf32, #tpu.memory_space<vmem>>, vector<1x32x64xf32>
    %557 = vector.shape_cast %556 : vector<1x32x64xf32> to vector<32x64xf32>
    %cst_303 = arith.constant dense<0.000000e+00> : vector<1x64xf32>
    %558 = tpu.matmul %555, %557, %cst_303 {dimension_numbers = #tpu.dot_dimension_numbers<[1], [0], [0], [1], [0, 0, 1, 1], [], []>} : vector<1x32xf32>, vector<32x64xf32>, vector<1x64xf32> -> vector<1x64xf32>
    %c4_304 = arith.constant 4 : index
    %c0_305 = arith.constant 0 : index
    %c0_306 = arith.constant 0 : index
    %559 = vector.load %arg15[%c4_304, %c0_305, %c0_306] : memref<6x1x64xf32, #tpu.memory_space<vmem>>, vector<1x1x64xf32>
    %560 = vector.shape_cast %559 : vector<1x1x64xf32> to vector<1x64xf32>
    %561 = arith.addf %558, %560 : vector<1x64xf32>
    %562 = vector.extract_strided_slice %561 {offsets = [0, 0], sizes = [1, 32], strides = [1, 1]} : vector<1x64xf32> to vector<1x32xf32>
    %cst_307 = arith.constant 0.000000e+00 : f32
    %563 = vector.broadcast %cst_307 : f32 to vector<1x32xf32>
    %564 = arith.cmpf oge, %562, %563 : vector<1x32xf32>
    %cst_308 = arith.constant 0.00999999977 : f32
    %565 = vector.broadcast %cst_308 : f32 to vector<1x32xf32>
    %566 = arith.mulf %565, %562 : vector<1x32xf32>
    %567 = arith.select %564, %562, %566 : vector<1x32xi1>, vector<1x32xf32>
    %c4_309 = arith.constant 4 : index
    %c0_310 = arith.constant 0 : index
    %c0_311 = arith.constant 0 : index
    %568 = vector.load %arg16[%c4_309, %c0_310, %c0_311] : memref<6x32x32xf32, #tpu.memory_space<vmem>>, vector<1x32x32xf32>
    %569 = vector.shape_cast %568 : vector<1x32x32xf32> to vector<32x32xf32>
    %cst_312 = arith.constant dense<0.000000e+00> : vector<1x32xf32>
    %570 = tpu.matmul %567, %569, %cst_312 {dimension_numbers = #tpu.dot_dimension_numbers<[1], [0], [0], [1], [0, 0, 1, 1], [], []>} : vector<1x32xf32>, vector<32x32xf32>, vector<1x32xf32> -> vector<1x32xf32>
    %c4_313 = arith.constant 4 : index
    %c0_314 = arith.constant 0 : index
    %c0_315 = arith.constant 0 : index
    %571 = vector.load %arg17[%c4_313, %c0_314, %c0_315] : memref<6x1x32xf32, #tpu.memory_space<vmem>>, vector<1x1x32xf32>
    %572 = vector.shape_cast %571 : vector<1x1x32xf32> to vector<1x32xf32>
    %573 = arith.addf %570, %572 : vector<1x32xf32>
    %574 = vector.extract_strided_slice %561 {offsets = [0, 32], sizes = [1, 32], strides = [1, 1]} : vector<1x64xf32> to vector<1x32xf32>
    %575 = arith.addf %573, %574 : vector<1x32xf32>
    %c5_316 = arith.constant 5 : index
    %c0_317 = arith.constant 0 : index
    %c0_318 = arith.constant 0 : index
    %576 = vector.load %arg14[%c5_316, %c0_317, %c0_318] : memref<6x32x64xf32, #tpu.memory_space<vmem>>, vector<1x32x64xf32>
    %577 = vector.shape_cast %576 : vector<1x32x64xf32> to vector<32x64xf32>
    %cst_319 = arith.constant dense<0.000000e+00> : vector<1x64xf32>
    %578 = tpu.matmul %575, %577, %cst_319 {dimension_numbers = #tpu.dot_dimension_numbers<[1], [0], [0], [1], [0, 0, 1, 1], [], []>} : vector<1x32xf32>, vector<32x64xf32>, vector<1x64xf32> -> vector<1x64xf32>
    %c5_320 = arith.constant 5 : index
    %c0_321 = arith.constant 0 : index
    %c0_322 = arith.constant 0 : index
    %579 = vector.load %arg15[%c5_320, %c0_321, %c0_322] : memref<6x1x64xf32, #tpu.memory_space<vmem>>, vector<1x1x64xf32>
    %580 = vector.shape_cast %579 : vector<1x1x64xf32> to vector<1x64xf32>
    %581 = arith.addf %578, %580 : vector<1x64xf32>
    %582 = vector.extract_strided_slice %581 {offsets = [0, 0], sizes = [1, 32], strides = [1, 1]} : vector<1x64xf32> to vector<1x32xf32>
    %cst_323 = arith.constant 0.000000e+00 : f32
    %583 = vector.broadcast %cst_323 : f32 to vector<1x32xf32>
    %584 = arith.cmpf oge, %582, %583 : vector<1x32xf32>
    %cst_324 = arith.constant 0.00999999977 : f32
    %585 = vector.broadcast %cst_324 : f32 to vector<1x32xf32>
    %586 = arith.mulf %585, %582 : vector<1x32xf32>
    %587 = arith.select %584, %582, %586 : vector<1x32xi1>, vector<1x32xf32>
    %c5_325 = arith.constant 5 : index
    %c0_326 = arith.constant 0 : index
    %c0_327 = arith.constant 0 : index
    %588 = vector.load %arg16[%c5_325, %c0_326, %c0_327] : memref<6x32x32xf32, #tpu.memory_space<vmem>>, vector<1x32x32xf32>
    %589 = vector.shape_cast %588 : vector<1x32x32xf32> to vector<32x32xf32>
    %cst_328 = arith.constant dense<0.000000e+00> : vector<1x32xf32>
    %590 = tpu.matmul %587, %589, %cst_328 {dimension_numbers = #tpu.dot_dimension_numbers<[1], [0], [0], [1], [0, 0, 1, 1], [], []>} : vector<1x32xf32>, vector<32x32xf32>, vector<1x32xf32> -> vector<1x32xf32>
    %c5_329 = arith.constant 5 : index
    %c0_330 = arith.constant 0 : index
    %c0_331 = arith.constant 0 : index
    %591 = vector.load %arg17[%c5_329, %c0_330, %c0_331] : memref<6x1x32xf32, #tpu.memory_space<vmem>>, vector<1x1x32xf32>
    %592 = vector.shape_cast %591 : vector<1x1x32xf32> to vector<1x32xf32>
    %593 = arith.addf %590, %592 : vector<1x32xf32>
    %594 = vector.extract_strided_slice %581 {offsets = [0, 32], sizes = [1, 32], strides = [1, 1]} : vector<1x64xf32> to vector<1x32xf32>
    %595 = arith.addf %593, %594 : vector<1x32xf32>
    %cst_332 = arith.constant 0.000000e+00 : f32
    %596 = vector.broadcast %cst_332 : f32 to vector<1x32xf32>
    %597 = arith.cmpf oge, %595, %596 : vector<1x32xf32>
    %cst_333 = arith.constant 0.00999999977 : f32
    %598 = vector.broadcast %cst_333 : f32 to vector<1x32xf32>
    %599 = arith.mulf %598, %595 : vector<1x32xf32>
    %600 = arith.select %597, %595, %599 : vector<1x32xi1>, vector<1x32xf32>
    %c0_334 = arith.constant 0 : index
    %c0_335 = arith.constant 0 : index
    %601 = vector.load %arg18[%c0_334, %c0_335] : memref<32x128xf32, #tpu.memory_space<vmem>>, vector<32x128xf32>
    %cst_336 = arith.constant dense<0.000000e+00> : vector<1x128xf32>
    %602 = tpu.matmul %600, %601, %cst_336 {dimension_numbers = #tpu.dot_dimension_numbers<[1], [0], [0], [1], [0, 0, 1, 1], [], []>} : vector<1x32xf32>, vector<32x128xf32>, vector<1x128xf32> -> vector<1x128xf32>
    %c0_337 = arith.constant 0 : index
    %c0_338 = arith.constant 0 : index
    %603 = vector.load %arg19[%c0_337, %c0_338] : memref<1x128xf32, #tpu.memory_space<vmem>>, vector<1x128xf32>
    %604 = arith.addf %602, %603 : vector<1x128xf32>
    %cst_339 = arith.constant 0.000000e+00 : f32
    %605 = vector.broadcast %cst_339 : f32 to vector<1x128xf32>
    %606 = arith.cmpf oge, %604, %605 : vector<1x128xf32>
    %cst_340 = arith.constant 0.00999999977 : f32
    %607 = vector.broadcast %cst_340 : f32 to vector<1x128xf32>
    %608 = arith.mulf %607, %604 : vector<1x128xf32>
    %609 = arith.select %606, %604, %608 : vector<1x128xi1>, vector<1x128xf32>
    %c0_341 = arith.constant 0 : index
    %c0_342 = arith.constant 0 : index
    %610 = vector.load %arg20[%c0_341, %c0_342] : memref<128x2xf32, #tpu.memory_space<vmem>>, vector<128x2xf32>
    %cst_343 = arith.constant dense<0.000000e+00> : vector<1x2xf32>
    %611 = tpu.matmul %609, %610, %cst_343 {dimension_numbers = #tpu.dot_dimension_numbers<[1], [0], [0], [1], [0, 0, 1, 1], [], []>} : vector<1x128xf32>, vector<128x2xf32>, vector<1x2xf32> -> vector<1x2xf32>
    %c0_344 = arith.constant 0 : index
    %c0_345 = arith.constant 0 : index
    %612 = vector.load %arg21[%c0_344, %c0_345] : memref<1x2xf32, #tpu.memory_space<vmem>>, vector<1x2xf32>
    %613 = arith.addf %611, %612 : vector<1x2xf32>
    %cst_346 = arith.constant dense<0xFF800000> : vector<1xf32>
    %614 = vector.multi_reduction <maximumf>, %613, %cst_346 [1] : vector<1x2xf32> to vector<1xf32>
    %615 = vector.shape_cast %614 : vector<1xf32> to vector<1x1xf32>
    %616 = vector.broadcast %615 : vector<1x1xf32> to vector<1x2xf32>
    %617 = arith.subf %613, %616 : vector<1x2xf32>
    %618 = math.exp %617 : vector<1x2xf32>
    %cst_347 = arith.constant dense<0.000000e+00> : vector<1xf32>
    %619 = vector.multi_reduction <add>, %618, %cst_347 [1] : vector<1x2xf32> to vector<1xf32>
    %620 = vector.shape_cast %619 : vector<1xf32> to vector<1x1xf32>
    %621 = math.log %620 : vector<1x1xf32>
    %622 = vector.broadcast %621 : vector<1x1xf32> to vector<1x2xf32>
    %623 = arith.subf %617, %622 : vector<1x2xf32>
    %c0_348 = arith.constant 0 : index
    %c0_349 = arith.constant 0 : index
    %c0_350 = arith.constant 0 : index
    %624 = vector.load %arg22[%c0_348, %c0_349, %c0_350] : memref<1x1x2xf32, #tpu.memory_space<vmem>>, vector<1x1x2xf32>
    %625 = vector.shape_cast %624 : vector<1x1x2xf32> to vector<1x2xf32>
    %626 = vector.shape_cast %623 : vector<1x2xf32> to vector<1x1x2xf32>
    tpu.vector_store %arg22[%c0_348, %c0_349, %c0_350], %626 {strides = array<i32>} : memref<1x1x2xf32, #tpu.memory_space<vmem>>, vector<1x1x2xf32>,
    return
  }
  func.func @transform_0(%arg0: i32) -> (i32, i32, i32) {
    %c0_i32 = arith.constant 0 : i32
    %c0_i32_0 = arith.constant 0 : i32
    %c0_i32_1 = arith.constant 0 : i32
    return %arg0, %c0_i32, %c0_i32_0 : i32, i32, i32
  }
  func.func @transform_1(%arg0: i32) -> (i32, i32) {
    %c0_i32 = arith.constant 0 : i32
    %c0_i32_0 = arith.constant 0 : i32
    %c0_i32_1 = arith.constant 0 : i32
    return %c0_i32, %c0_i32_0 : i32, i32
  }
  func.func @transform_2(%arg0: i32) -> (i32, i32) {
    %c0_i32 = arith.constant 0 : i32
    %c0_i32_0 = arith.constant 0 : i32
    %c0_i32_1 = arith.constant 0 : i32
    return %c0_i32, %c0_i32_0 : i32, i32
  }
  func.func @transform_3(%arg0: i32) -> (i32, i32) {
    %c0_i32 = arith.constant 0 : i32
    %c0_i32_0 = arith.constant 0 : i32
    %c0_i32_1 = arith.constant 0 : i32
    return %c0_i32, %c0_i32_0 : i32, i32
  }
  func.func @transform_4(%arg0: i32) -> (i32, i32) {
    %c0_i32 = arith.constant 0 : i32
    %c0_i32_0 = arith.constant 0 : i32
    %c0_i32_1 = arith.constant 0 : i32
    return %c0_i32, %c0_i32_0 : i32, i32
  }
  func.func @transform_5(%arg0: i32) -> (i32, i32) {
    %c0_i32 = arith.constant 0 : i32
    %c0_i32_0 = arith.constant 0 : i32
    %c0_i32_1 = arith.constant 0 : i32
    return %c0_i32, %c0_i32_0 : i32, i32
  }
  func.func @transform_6(%arg0: i32) -> (i32, i32) {
    %c0_i32 = arith.constant 0 : i32
    %c0_i32_0 = arith.constant 0 : i32
    %c0_i32_1 = arith.constant 0 : i32
    return %c0_i32, %c0_i32_0 : i32, i32
  }
  func.func @transform_7(%arg0: i32) -> (i32, i32) {
    %c0_i32 = arith.constant 0 : i32
    %c0_i32_0 = arith.constant 0 : i32
    %c0_i32_1 = arith.constant 0 : i32
    return %c0_i32, %c0_i32_0 : i32, i32
  }
  func.func @transform_8(%arg0: i32) -> (i32, i32) {
    %c0_i32 = arith.constant 0 : i32
    %c0_i32_0 = arith.constant 0 : i32
    %c0_i32_1 = arith.constant 0 : i32
    return %c0_i32, %c0_i32_0 : i32, i32
  }
  func.func @transform_9(%arg0: i32) -> (i32, i32, i32) {
    %c0_i32 = arith.constant 0 : i32
    %c0_i32_0 = arith.constant 0 : i32
    %c0_i32_1 = arith.constant 0 : i32
    %c0_i32_2 = arith.constant 0 : i32
    return %c0_i32, %c0_i32_0, %c0_i32_1 : i32, i32, i32
  }
  func.func @transform_10(%arg0: i32) -> (i32, i32, i32) {
    %c0_i32 = arith.constant 0 : i32
    %c0_i32_0 = arith.constant 0 : i32
    %c0_i32_1 = arith.constant 0 : i32
    %c0_i32_2 = arith.constant 0 : i32
    return %c0_i32, %c0_i32_0, %c0_i32_1 : i32, i32, i32
  }
  func.func @transform_11(%arg0: i32) -> (i32, i32, i32) {
    %c0_i32 = arith.constant 0 : i32
    %c0_i32_0 = arith.constant 0 : i32
    %c0_i32_1 = arith.constant 0 : i32
    %c0_i32_2 = arith.constant 0 : i32
    return %c0_i32, %c0_i32_0, %c0_i32_1 : i32, i32, i32
  }
  func.func @transform_12(%arg0: i32) -> (i32, i32, i32) {
    %c0_i32 = arith.constant 0 : i32
    %c0_i32_0 = arith.constant 0 : i32
    %c0_i32_1 = arith.constant 0 : i32
    %c0_i32_2 = arith.constant 0 : i32
    return %c0_i32, %c0_i32_0, %c0_i32_1 : i32, i32, i32
  }
  func.func @transform_13(%arg0: i32) -> (i32, i32, i32) {
    %c0_i32 = arith.constant 0 : i32
    %c0_i32_0 = arith.constant 0 : i32
    %c0_i32_1 = arith.constant 0 : i32
    %c0_i32_2 = arith.constant 0 : i32
    return %c0_i32, %c0_i32_0, %c0_i32_1 : i32, i32, i32
  }
  func.func @transform_14(%arg0: i32) -> (i32, i32, i32) {
    %c0_i32 = arith.constant 0 : i32
    %c0_i32_0 = arith.constant 0 : i32
    %c0_i32_1 = arith.constant 0 : i32
    %c0_i32_2 = arith.constant 0 : i32
    return %c0_i32, %c0_i32_0, %c0_i32_1 : i32, i32, i32
  }
  func.func @transform_15(%arg0: i32) -> (i32, i32, i32) {
    %c0_i32 = arith.constant 0 : i32
    %c0_i32_0 = arith.constant 0 : i32
    %c0_i32_1 = arith.constant 0 : i32
    %c0_i32_2 = arith.constant 0 : i32
    return %c0_i32, %c0_i32_0, %c0_i32_1 : i32, i32, i32
  }
  func.func @transform_16(%arg0: i32) -> (i32, i32, i32) {
    %c0_i32 = arith.constant 0 : i32
    %c0_i32_0 = arith.constant 0 : i32
    %c0_i32_1 = arith.constant 0 : i32
    %c0_i32_2 = arith.constant 0 : i32
    return %c0_i32, %c0_i32_0, %c0_i32_1 : i32, i32, i32
  }
  func.func @transform_17(%arg0: i32) -> (i32, i32) {
    %c0_i32 = arith.constant 0 : i32
    %c0_i32_0 = arith.constant 0 : i32
    %c0_i32_1 = arith.constant 0 : i32
    return %c0_i32, %c0_i32_0 : i32, i32
  }
  func.func @transform_18(%arg0: i32) -> (i32, i32) {
    %c0_i32 = arith.constant 0 : i32
    %c0_i32_0 = arith.constant 0 : i32
    %c0_i32_1 = arith.constant 0 : i32
    return %c0_i32, %c0_i32_0 : i32, i32
  }
  func.func @transform_19(%arg0: i32) -> (i32, i32) {
    %c0_i32 = arith.constant 0 : i32
    %c0_i32_0 = arith.constant 0 : i32
    %c0_i32_1 = arith.constant 0 : i32
    return %c0_i32, %c0_i32_0 : i32, i32
  }
  func.func @transform_20(%arg0: i32) -> (i32, i32) {
    %c0_i32 = arith.constant 0 : i32
    %c0_i32_0 = arith.constant 0 : i32
    %c0_i32_1 = arith.constant 0 : i32
    return %c0_i32, %c0_i32_0 : i32, i32
  }
  func.func @transform_21(%arg0: i32) -> (i32, i32, i32) {
    %c0_i32 = arith.constant 0 : i32
    %c0_i32_0 = arith.constant 0 : i32
    %c0_i32_1 = arith.constant 0 : i32
    return %arg0, %c0_i32, %c0_i32_0 : i32, i32, i32
  }
}

</mosaic_0001>

<llo_original>
// kernel: mfcc_forward.1
$region0: #{mfcc_forward.1}
  #allocation0 [shape = 'u32[]', space=smem, size = 0x4, offset = 0x4, fixed_abs, tag = 'smem constant byte address 0x4 - core index']
  #allocation1 [shape = 'u32[72,128]{1,0:T(1,128)}', space=vmem, size = 0x9000, scoped, tag = 'internal scratch']
  #allocation2 [shape = 'f32[290,32]{1,0:T(8,128)}', space=vmem, size = 0x25000, scoped, tag = 'scratch operand']
  #allocation3 [shape = 'f32[50,32]{1,0:T(8,128)}', space=vmem, size = 0x7000, scoped, tag = 'scratch operand']
  #allocation4 [shape = 'f32[10,32]{1,0:T(8,128)}', space=vmem, size = 0x2000, scoped, tag = 'scratch operand']
  %s0 = inlined_call_operand.vmem [shape: f32[2,256,9], index: 0, kind: input, shape index: {}]
  %s1 = inlined_call_operand.vmem [shape: f32[256,9], index: 1, kind: input, shape index: {}]
  %s2 = inlined_call_operand.vmem [shape: f32[36,9], index: 2, kind: input, shape index: {}]
  %s3 = inlined_call_operand.vmem [shape: f32[4,9], index: 3, kind: input, shape index: {}]
  %s4 = inlined_call_operand.vmem [shape: f32[36,256], index: 4, kind: input, shape index: {}]
  %s5 = inlined_call_operand.vmem [shape: f32[4,36], index: 5, kind: input, shape index: {}]
  %s6 = inlined_call_operand.vmem [shape: f32[1,4], index: 6, kind: input, shape index: {}]
  %s7 = inlined_call_operand.vmem [shape: f32[9,32], index: 7, kind: input, shape index: {}]
  %s8 = inlined_call_operand.vmem [shape: f32[1,32], index: 8, kind: input, shape index: {}]
  %s9 = inlined_call_operand.vmem [shape: f32[3,288,64], index: 9, kind: input, shape index: {}]
  %s10 = inlined_call_operand.vmem [shape: f32[3,1,64], index: 10, kind: input, shape index: {}]
  %s11 = inlined_call_operand.vmem [shape: f32[3,288,32], index: 11, kind: input, shape index: {}]
  %s12 = inlined_call_operand.vmem [shape: f32[3,1,32], index: 12, kind: input, shape index: {}]
  %s13 = inlined_call_operand.vmem [shape: f32[6,32,64], index: 13, kind: input, shape index: {}]
  %s14 = inlined_call_operand.vmem [shape: f32[6,1,64], index: 14, kind: input, shape index: {}]
  %s15 = inlined_call_operand.vmem [shape: f32[6,32,32], index: 15, kind: input, shape index: {}]
  %s16 = inlined_call_operand.vmem [shape: f32[6,1,32], index: 16, kind: input, shape index: {}]
  %s17 = inlined_call_operand.vmem [shape: f32[32,128], index: 17, kind: input, shape index: {}]
  %s18 = inlined_call_operand.vmem [shape: f32[1,128], index: 18, kind: input, shape index: {}]
  %s19 = inlined_call_operand.vmem [shape: f32[128,2], index: 19, kind: input, shape index: {}]
  %s20 = inlined_call_operand.vmem [shape: f32[1,2], index: 20, kind: input, shape index: {}]
  %s21 = inlined_call_operand.hbm [shape: f32[2,1,2], index: 21, kind: output, shape index: {}]
  %s22 = sld [smem:[#allocation0]]
  $region117: #{mfcc_forward.1} parent=0
    _
  %s24 = ssub.s32 1, %s22
  %s25 = scalar_select 0, %s24, %s22
  $region1: #{mfcc_forward.1} parent=0
    #allocation5 [shape = 'u8[1024]{0}', space=vmem, size = 0x400, scoped, tag = 'output window, operand 0']
    #allocation6 [shape = 's32[2]{0}', space=sflag, size = 0x8, scoped, tag = 'scoped memory for mfcc_forward.1']
    %26 = vsyncpa [#allocation6], 0
    %s27 = scalar_lea.sflag [#allocation6], 1
    %28 = vsyncpa %s27, 0
    loop: start=0, step=1, limit=4
    $region2: #{mfcc_forward.1} parent=1 // loop_pre_header
      _
    $region3: #{mfcc_forward.1} parent=1 // loop_header
      %s30 = sphi 0, %s34
      %p31 = scmp.ge.s32.totalorder %s30, 4
      %s40 = sphi 0, %s42
      %s43 = sphi 0, %s40
      %s44 = sphi 0, %s43
      %s60 = sphi 0, %s44
      %s64 = sphi 0, %s64
      %s66 = sphi 0, %s64
      %s67 = sphi 0, %s66
      %s81 = sphi 0, %s67
      %s85 = sphi 0, %s85
      %s87 = sphi 0, %s85
      %s88 = sphi 0, %s87
      %s102 = sphi 0, %s88
      %s106 = sphi 0, %s106
      %s108 = sphi 0, %s106
      %s109 = sphi 0, %s108
      %s123 = sphi 0, %s109
      %s127 = sphi 0, %s127
      %s129 = sphi 0, %s127
      %s130 = sphi 0, %s129
      %s144 = sphi 0, %s130
      %s148 = sphi 0, %s148
      %s150 = sphi 0, %s148
      %s151 = sphi 0, %s150
      %s165 = sphi 0, %s151
      %s169 = sphi 0, %s169
      %s171 = sphi 0, %s169
      %s172 = sphi 0, %s171
      %s186 = sphi 0, %s172
      %s190 = sphi 0, %s190
      %s192 = sphi 0, %s190
      %s193 = sphi 0, %s192
      %s207 = sphi 0, %s193
      %s211 = sphi 0, %s211
      %s213 = sphi 0, %s211
      %s214 = sphi 0, %s213
      %s228 = sphi 0, %s214
      %s232 = sphi 0, %s232
      %s234 = sphi 0, %s232
      %s235 = sphi 0, %s234
      %s249 = sphi 0, %s235
      %s253 = sphi 0, %s253
      %s255 = sphi 0, %s253
      %s256 = sphi 0, %s255
      %s270 = sphi 0, %s256
      %s274 = sphi 0, %s274
      %s276 = sphi 0, %s274
      %s277 = sphi 0, %s276
      %s291 = sphi 0, %s277
      %s295 = sphi 0, %s295
      %s297 = sphi 0, %s295
      %s298 = sphi 0, %s297
      %s312 = sphi 0, %s298
      %s316 = sphi 0, %s316
      %s318 = sphi 0, %s316
      %s319 = sphi 0, %s318
      %s333 = sphi 0, %s319
      %s337 = sphi 0, %s337
      %s339 = sphi 0, %s337
      %s340 = sphi 0, %s339
      %s354 = sphi 0, %s340
      %s358 = sphi 0, %s358
      %s360 = sphi 0, %s358
      %s361 = sphi 0, %s360
      %s375 = sphi 0, %s361
      %s379 = sphi 0, %s379
      %s381 = sphi 0, %s379
      %s382 = sphi 0, %s381
      %s396 = sphi 0, %s382
      %s400 = sphi 0, %s400
      %s402 = sphi 0, %s400
      %s403 = sphi 0, %s402
      %s417 = sphi 0, %s403
      %s421 = sphi 0, %s421
      %s423 = sphi 0, %s421
      %s424 = sphi 0, %s423
      %s438 = sphi 0, %s424
      %s442 = sphi 0, %s442
      %s444 = sphi 0, %s442
      %s445 = sphi 0, %s444
      %s459 = sphi 0, %s445
      %s463 = sphi 0, %s463
      %s465 = sphi 0, %s463
      %s466 = sphi 0, %s465
      %s480 = sphi 0, %s466
      %s486 = sphi 0, %s488
      %s489 = sphi 0, %s486
      %s490 = sphi 0, %s489
      %s506 = sphi 0, %s490
    $region4: #{mfcc_forward.1} parent=1 // loop_header_branch
      %33 = sbr.rel (%p31) target = $region8
    $region5: #{mfcc_forward.1} parent=1 // loop_body
      %s35 = ssub.s32 %s30, 1
      %s36 = ssub.s32 %s30, 2
      %s37 = sadd.s32 %s30, 1
      %s38 = ssub.s32 %s30, %s37
      %p39 = scmp.eq.s32.totalorder %s38, 0
      %s41 = sadd.s32 %s40, 1
      %s42 = scalar_select %p39, %s40, %s41
      %p45 = pneg %p39
      %p46 = scmp.eq.s32.totalorder %s30, 1
      %p47 = por %p45, %p46
      %p48 = scmp.ne.s32.totalorder %s40, %s43
      %p49 = scmp.eq.s32.totalorder %s30, 0
      %p50 = por %p48, %p49
      %p51 = scmp.ne.s32.totalorder %s40, %s43
      %p52 = scmp.eq.s32.totalorder %s35, 1
      %p53 = por %p51, %p52
      %p54 = scmp.ne.s32.totalorder %s43, %s44
      %p55 = scmp.eq.s32.totalorder %s35, 0
      %p56 = por %p54, %p55
      %p57 = scmp.ne.s32.totalorder %s43, %s44
      %p58 = scmp.eq.s32.totalorder %s36, 1
      %p59 = por %p57, %p58
      %p61 = scmp.ne.s32.totalorder %s44, %s60
      %p62 = scmp.eq.s32.totalorder %s36, 0
      %p63 = por %p61, %p62
      %s65 = sadd.s32 %s64, 1
      %p68 = scmp.eq.s32.totalorder %s30, 1
      %p69 = scmp.ne.s32.totalorder %s64, %s66
      %p70 = scmp.eq.s32.totalorder %s30, 0
      %p71 = por %p69, %p70
      %p72 = scmp.ne.s32.totalorder %s64, %s66
      %p73 = scmp.eq.s32.totalorder %s35, 1
      %p74 = por %p72, %p73
      %p75 = scmp.ne.s32.totalorder %s66, %s67
      %p76 = scmp.eq.s32.totalorder %s35, 0
      %p77 = por %p75, %p76
      %p78 = scmp.ne.s32.totalorder %s66, %s67
      %p79 = scmp.eq.s32.totalorder %s36, 1
      %p80 = por %p78, %p79
      %p82 = scmp.ne.s32.totalorder %s67, %s81
      %p83 = scmp.eq.s32.totalorder %s36, 0
      %p84 = por %p82, %p83
      %s86 = sadd.s32 %s85, 1
      %p89 = scmp.eq.s32.totalorder %s30, 1
      %p90 = scmp.ne.s32.totalorder %s85, %s87
      %p91 = scmp.eq.s32.totalorder %s30, 0
      %p92 = por %p90, %p91
      %p93 = scmp.ne.s32.totalorder %s85, %s87
      %p94 = scmp.eq.s32.totalorder %s35, 1
      %p95 = por %p93, %p94
      %p96 = scmp.ne.s32.totalorder %s87, %s88
      %p97 = scmp.eq.s32.totalorder %s35, 0
      %p98 = por %p96, %p97
      %p99 = scmp.ne.s32.totalorder %s87, %s88
      %p100 = scmp.eq.s32.totalorder %s36, 1
      %p101 = por %p99, %p100
      %p103 = scmp.ne.s32.totalorder %s88, %s102
      %p104 = scmp.eq.s32.totalorder %s36, 0
      %p105 = por %p103, %p104
      %s107 = sadd.s32 %s106, 1
      %p110 = scmp.eq.s32.totalorder %s30, 1
      %p111 = scmp.ne.s32.totalorder %s106, %s108
      %p112 = scmp.eq.s32.totalorder %s30, 0
      %p113 = por %p111, %p112
      %p114 = scmp.ne.s32.totalorder %s106, %s108
      %p115 = scmp.eq.s32.totalorder %s35, 1
      %p116 = por %p114, %p115
      %p117 = scmp.ne.s32.totalorder %s108, %s109
      %p118 = scmp.eq.s32.totalorder %s35, 0
      %p119 = por %p117, %p118
      %p120 = scmp.ne.s32.totalorder %s108, %s109
      %p121 = scmp.eq.s32.totalorder %s36, 1
      %p122 = por %p120, %p121
      %p124 = scmp.ne.s32.totalorder %s109, %s123
      %p125 = scmp.eq.s32.totalorder %s36, 0
      %p126 = por %p124, %p125
      %s128 = sadd.s32 %s127, 1
      %p131 = scmp.eq.s32.totalorder %s30, 1
      %p132 = scmp.ne.s32.totalorder %s127, %s129
      %p133 = scmp.eq.s32.totalorder %s30, 0
      %p134 = por %p132, %p133
      %p135 = scmp.ne.s32.totalorder %s127, %s129
      %p136 = scmp.eq.s32.totalorder %s35, 1
      %p137 = por %p135, %p136
      %p138 = scmp.ne.s32.totalorder %s129, %s130
      %p139 = scmp.eq.s32.totalorder %s35, 0
      %p140 = por %p138, %p139
      %p141 = scmp.ne.s32.totalorder %s129, %s130
      %p142 = scmp.eq.s32.totalorder %s36, 1
      %p143 = por %p141, %p142
      %p145 = scmp.ne.s32.totalorder %s130, %s144
      %p146 = scmp.eq.s32.totalorder %s36, 0
      %p147 = por %p145, %p146
      %s149 = sadd.s32 %s148, 1
      %p152 = scmp.eq.s32.totalorder %s30, 1
      %p153 = scmp.ne.s32.totalorder %s148, %s150
      %p154 = scmp.eq.s32.totalorder %s30, 0
      %p155 = por %p153, %p154
      %p156 = scmp.ne.s32.totalorder %s148, %s150
      %p157 = scmp.eq.s32.totalorder %s35, 1
      %p158 = por %p156, %p157
      %p159 = scmp.ne.s32.totalorder %s150, %s151
      %p160 = scmp.eq.s32.totalorder %s35, 0
      %p161 = por %p159, %p160
      %p162 = scmp.ne.s32.totalorder %s150, %s151
      %p163 = scmp.eq.s32.totalorder %s36, 1
      %p164 = por %p162, %p163
      %p166 = scmp.ne.s32.totalorder %s151, %s165
      %p167 = scmp.eq.s32.totalorder %s36, 0
      %p168 = por %p166, %p167
      %s170 = sadd.s32 %s169, 1
      %p173 = scmp.eq.s32.totalorder %s30, 1
      %p174 = scmp.ne.s32.totalorder %s169, %s171
      %p175 = scmp.eq.s32.totalorder %s30, 0
      %p176 = por %p174, %p175
      %p177 = scmp.ne.s32.totalorder %s169, %s171
      %p178 = scmp.eq.s32.totalorder %s35, 1
      %p179 = por %p177, %p178
      %p180 = scmp.ne.s32.totalorder %s171, %s172
      %p181 = scmp.eq.s32.totalorder %s35, 0
      %p182 = por %p180, %p181
      %p183 = scmp.ne.s32.totalorder %s171, %s172
      %p184 = scmp.eq.s32.totalorder %s36, 1
      %p185 = por %p183, %p184
      %p187 = scmp.ne.s32.totalorder %s172, %s186
      %p188 = scmp.eq.s32.totalorder %s36, 0
      %p189 = por %p187, %p188
      %s191 = sadd.s32 %s190, 1
      %p194 = scmp.eq.s32.totalorder %s30, 1
      %p195 = scmp.ne.s32.totalorder %s190, %s192
      %p196 = scmp.eq.s32.totalorder %s30, 0
      %p197 = por %p195, %p196
      %p198 = scmp.ne.s32.totalorder %s190, %s192
      %p199 = scmp.eq.s32.totalorder %s35, 1
      %p200 = por %p198, %p199
      %p201 = scmp.ne.s32.totalorder %s192, %s193
      %p202 = scmp.eq.s32.totalorder %s35, 0
      %p203 = por %p201, %p202
      %p204 = scmp.ne.s32.totalorder %s192, %s193
      %p205 = scmp.eq.s32.totalorder %s36, 1
      %p206 = por %p204, %p205
      %p208 = scmp.ne.s32.totalorder %s193, %s207
      %p209 = scmp.eq.s32.totalorder %s36, 0
      %p210 = por %p208, %p209
      %s212 = sadd.s32 %s211, 1
      %p215 = scmp.eq.s32.totalorder %s30, 1
      %p216 = scmp.ne.s32.totalorder %s211, %s213
      %p217 = scmp.eq.s32.totalorder %s30, 0
      %p218 = por %p216, %p217
      %p219 = scmp.ne.s32.totalorder %s211, %s213
      %p220 = scmp.eq.s32.totalorder %s35, 1
      %p221 = por %p219, %p220
      %p222 = scmp.ne.s32.totalorder %s213, %s214
      %p223 = scmp.eq.s32.totalorder %s35, 0
      %p224 = por %p222, %p223
      %p225 = scmp.ne.s32.totalorder %s213, %s214
      %p226 = scmp.eq.s32.totalorder %s36, 1
      %p227 = por %p225, %p226
      %p229 = scmp.ne.s32.totalorder %s214, %s228
      %p230 = scmp.eq.s32.totalorder %s36, 0
      %p231 = por %p229, %p230
      %s233 = sadd.s32 %s232, 1
      %p236 = scmp.eq.s32.totalorder %s30, 1
      %p237 = scmp.ne.s32.totalorder %s232, %s234
      %p238 = scmp.eq.s32.totalorder %s30, 0
      %p239 = por %p237, %p238
      %p240 = scmp.ne.s32.totalorder %s232, %s234
      %p241 = scmp.eq.s32.totalorder %s35, 1
      %p242 = por %p240, %p241
      %p243 = scmp.ne.s32.totalorder %s234, %s235
      %p244 = scmp.eq.s32.totalorder %s35, 0
      %p245 = por %p243, %p244
      %p246 = scmp.ne.s32.totalorder %s234, %s235
      %p247 = scmp.eq.s32.totalorder %s36, 1
      %p248 = por %p246, %p247
      %p250 = scmp.ne.s32.totalorder %s235, %s249
      %p251 = scmp.eq.s32.totalorder %s36, 0
      %p252 = por %p250, %p251
      %s254 = sadd.s32 %s253, 1
      %p257 = scmp.eq.s32.totalorder %s30, 1
      %p258 = scmp.ne.s32.totalorder %s253, %s255
      %p259 = scmp.eq.s32.totalorder %s30, 0
      %p260 = por %p258, %p259
      %p261 = scmp.ne.s32.totalorder %s253, %s255
      %p262 = scmp.eq.s32.totalorder %s35, 1
      %p263 = por %p261, %p262
      %p264 = scmp.ne.s32.totalorder %s255, %s256
      %p265 = scmp.eq.s32.totalorder %s35, 0
      %p266 = por %p264, %p265
      %p267 = scmp.ne.s32.totalorder %s255, %s256
      %p268 = scmp.eq.s32.totalorder %s36, 1
      %p269 = por %p267, %p268
      %p271 = scmp.ne.s32.totalorder %s256, %s270
      %p272 = scmp.eq.s32.totalorder %s36, 0
      %p273 = por %p271, %p272
      %s275 = sadd.s32 %s274, 1
      %p278 = scmp.eq.s32.totalorder %s30, 1
      %p279 = scmp.ne.s32.totalorder %s274, %s276
      %p280 = scmp.eq.s32.totalorder %s30, 0
      %p281 = por %p279, %p280
      %p282 = scmp.ne.s32.totalorder %s274, %s276
      %p283 = scmp.eq.s32.totalorder %s35, 1
      %p284 = por %p282, %p283
      %p285 = scmp.ne.s32.totalorder %s276, %s277
      %p286 = scmp.eq.s32.totalorder %s35, 0
      %p287 = por %p285, %p286
      %p288 = scmp.ne.s32.totalorder %s276, %s277
      %p289 = scmp.eq.s32.totalorder %s36, 1
      %p290 = por %p288, %p289
      %p292 = scmp.ne.s32.totalorder %s277, %s291
      %p293 = scmp.eq.s32.totalorder %s36, 0
      %p294 = por %p292, %p293
      %s296 = sadd.s32 %s295, 1
      %p299 = scmp.eq.s32.totalorder %s30, 1
      %p300 = scmp.ne.s32.totalorder %s295, %s297
      %p301 = scmp.eq.s32.totalorder %s30, 0
      %p302 = por %p300, %p301
      %p303 = scmp.ne.s32.totalorder %s295, %s297
      %p304 = scmp.eq.s32.totalorder %s35, 1
      %p305 = por %p303, %p304
      %p306 = scmp.ne.s32.totalorder %s297, %s298
      %p307 = scmp.eq.s32.totalorder %s35, 0
      %p308 = por %p306, %p307
      %p309 = scmp.ne.s32.totalorder %s297, %s298
      %p310 = scmp.eq.s32.totalorder %s36, 1
      %p311 = por %p309, %p310
      %p313 = scmp.ne.s32.totalorder %s298, %s312
      %p314 = scmp.eq.s32.totalorder %s36, 0
      %p315 = por %p313, %p314
      %s317 = sadd.s32 %s316, 1
      %p320 = scmp.eq.s32.totalorder %s30, 1
      %p321 = scmp.ne.s32.totalorder %s316, %s318
      %p322 = scmp.eq.s32.totalorder %s30, 0
      %p323 = por %p321, %p322
      %p324 = scmp.ne.s32.totalorder %s316, %s318
      %p325 = scmp.eq.s32.totalorder %s35, 1
      %p326 = por %p324, %p325
      %p327 = scmp.ne.s32.totalorder %s318, %s319
      %p328 = scmp.eq.s32.totalorder %s35, 0
      %p329 = por %p327, %p328
      %p330 = scmp.ne.s32.totalorder %s318, %s319
      %p331 = scmp.eq.s32.totalorder %s36, 1
      %p332 = por %p330, %p331
      %p334 = scmp.ne.s32.totalorder %s319, %s333
      %p335 = scmp.eq.s32.totalorder %s36, 0
      %p336 = por %p334, %p335
      %s338 = sadd.s32 %s337, 1
      %p341 = scmp.eq.s32.totalorder %s30, 1
      %p342 = scmp.ne.s32.totalorder %s337, %s339
      %p343 = scmp.eq.s32.totalorder %s30, 0
      %p344 = por %p342, %p343
      %p345 = scmp.ne.s32.totalorder %s337, %s339
      %p346 = scmp.eq.s32.totalorder %s35, 1
      %p347 = por %p345, %p346
      %p348 = scmp.ne.s32.totalorder %s339, %s340
      %p349 = scmp.eq.s32.totalorder %s35, 0
      %p350 = por %p348, %p349
      %p351 = scmp.ne.s32.totalorder %s339, %s340
      %p352 = scmp.eq.s32.totalorder %s36, 1
      %p353 = por %p351, %p352
      %p355 = scmp.ne.s32.totalorder %s340, %s354
      %p356 = scmp.eq.s32.totalorder %s36, 0
      %p357 = por %p355, %p356
      %s359 = sadd.s32 %s358, 1
      %p362 = scmp.eq.s32.totalorder %s30, 1
      %p363 = scmp.ne.s32.totalorder %s358, %s360
      %p364 = scmp.eq.s32.totalorder %s30, 0
      %p365 = por %p363, %p364
      %p366 = scmp.ne.s32.totalorder %s358, %s360
      %p367 = scmp.eq.s32.totalorder %s35, 1
      %p368 = por %p366, %p367
      %p369 = scmp.ne.s32.totalorder %s360, %s361
      %p370 = scmp.eq.s32.totalorder %s35, 0
      %p371 = por %p369, %p370
      %p372 = scmp.ne.s32.totalorder %s360, %s361
      %p373 = scmp.eq.s32.totalorder %s36, 1
      %p374 = por %p372, %p373
      %p376 = scmp.ne.s32.totalorder %s361, %s375
      %p377 = scmp.eq.s32.totalorder %s36, 0
      %p378 = por %p376, %p377
      %s380 = sadd.s32 %s379, 1
      %p383 = scmp.eq.s32.totalorder %s30, 1
      %p384 = scmp.ne.s32.totalorder %s379, %s381
      %p385 = scmp.eq.s32.totalorder %s30, 0
      %p386 = por %p384, %p385
      %p387 = scmp.ne.s32.totalorder %s379, %s381
      %p388 = scmp.eq.s32.totalorder %s35, 1
      %p389 = por %p387, %p388
      %p390 = scmp.ne.s32.totalorder %s381, %s382
      %p391 = scmp.eq.s32.totalorder %s35, 0
      %p392 = por %p390, %p391
      %p393 = scmp.ne.s32.totalorder %s381, %s382
      %p394 = scmp.eq.s32.totalorder %s36, 1
      %p395 = por %p393, %p394
      %p397 = scmp.ne.s32.totalorder %s382, %s396
      %p398 = scmp.eq.s32.totalorder %s36, 0
      %p399 = por %p397, %p398
      %s401 = sadd.s32 %s400, 1
      %p404 = scmp.eq.s32.totalorder %s30, 1
      %p405 = scmp.ne.s32.totalorder %s400, %s402
      %p406 = scmp.eq.s32.totalorder %s30, 0
      %p407 = por %p405, %p406
      %p408 = scmp.ne.s32.totalorder %s400, %s402
      %p409 = scmp.eq.s32.totalorder %s35, 1
      %p410 = por %p408, %p409
      %p411 = scmp.ne.s32.totalorder %s402, %s403
      %p412 = scmp.eq.s32.totalorder %s35, 0
      %p413 = por %p411, %p412
      %p414 = scmp.ne.s32.totalorder %s402, %s403
      %p415 = scmp.eq.s32.totalorder %s36, 1
      %p416 = por %p414, %p415
      %p418 = scmp.ne.s32.totalorder %s403, %s417
      %p419 = scmp.eq.s32.totalorder %s36, 0
      %p420 = por %p418, %p419
      %s422 = sadd.s32 %s421, 1
      %p425 = scmp.eq.s32.totalorder %s30, 1
      %p426 = scmp.ne.s32.totalorder %s421, %s423
      %p427 = scmp.eq.s32.totalorder %s30, 0
      %p428 = por %p426, %p427
      %p429 = scmp.ne.s32.totalorder %s421, %s423
      %p430 = scmp.eq.s32.totalorder %s35, 1
      %p431 = por %p429, %p430
      %p432 = scmp.ne.s32.totalorder %s423, %s424
      %p433 = scmp.eq.s32.totalorder %s35, 0
      %p434 = por %p432, %p433
      %p435 = scmp.ne.s32.totalorder %s423, %s424
      %p436 = scmp.eq.s32.totalorder %s36, 1
      %p437 = por %p435, %p436
      %p439 = scmp.ne.s32.totalorder %s424, %s438
      %p440 = scmp.eq.s32.totalorder %s36, 0
      %p441 = por %p439, %p440
      %s443 = sadd.s32 %s442, 1
      %p446 = scmp.eq.s32.totalorder %s30, 1
      %p447 = scmp.ne.s32.totalorder %s442, %s444
      %p448 = scmp.eq.s32.totalorder %s30, 0
      %p449 = por %p447, %p448
      %p450 = scmp.ne.s32.totalorder %s442, %s444
      %p451 = scmp.eq.s32.totalorder %s35, 1
      %p452 = por %p450, %p451
      %p453 = scmp.ne.s32.totalorder %s444, %s445
      %p454 = scmp.eq.s32.totalorder %s35, 0
      %p455 = por %p453, %p454
      %p456 = scmp.ne.s32.totalorder %s444, %s445
      %p457 = scmp.eq.s32.totalorder %s36, 1
      %p458 = por %p456, %p457
      %p460 = scmp.ne.s32.totalorder %s445, %s459
      %p461 = scmp.eq.s32.totalorder %s36, 0
      %p462 = por %p460, %p461
      %s464 = sadd.s32 %s463, 1
      %p467 = scmp.eq.s32.totalorder %s30, 1
      %p468 = scmp.ne.s32.totalorder %s463, %s465
      %p469 = scmp.eq.s32.totalorder %s30, 0
      %p470 = por %p468, %p469
      %p471 = scmp.ne.s32.totalorder %s463, %s465
      %p472 = scmp.eq.s32.totalorder %s35, 1
      %p473 = por %p471, %p472
      %p474 = scmp.ne.s32.totalorder %s465, %s466
      %p475 = scmp.eq.s32.totalorder %s35, 0
      %p476 = por %p474, %p475
      %p477 = scmp.ne.s32.totalorder %s465, %s466
      %p478 = scmp.eq.s32.totalorder %s36, 1
      %p479 = por %p477, %p478
      %p481 = scmp.ne.s32.totalorder %s466, %s480
      %p482 = scmp.eq.s32.totalorder %s36, 0
      %p483 = por %p481, %p482
      %s484 = ssub.s32 %s30, %s37
      %p485 = scmp.eq.s32.totalorder %s484, 0
      %s487 = sadd.s32 %s486, 1
      %s488 = scalar_select %p485, %s486, %s487
      %p491 = pneg %p485
      %p492 = scmp.eq.s32.totalorder %s30, 1
      %p493 = por %p491, %p492
      %p494 = scmp.ne.s32.totalorder %s486, %s489
      %p495 = scmp.eq.s32.totalorder %s30, 0
      %p496 = por %p494, %p495
      %p497 = scmp.ne.s32.totalorder %s486, %s489
      %p498 = scmp.eq.s32.totalorder %s35, 1
      %p499 = por %p497, %p498
      %p500 = scmp.ne.s32.totalorder %s489, %s490
      %p501 = scmp.eq.s32.totalorder %s35, 0
      %p502 = por %p500, %p501
      %p503 = scmp.ne.s32.totalorder %s489, %s490
      %p504 = scmp.eq.s32.totalorder %s36, 1
      %p505 = por %p503, %p504
      %p507 = scmp.ne.s32.totalorder %s490, %s506
      %p508 = scmp.eq.s32.totalorder %s36, 0
      %p509 = por %p507, %p508
      %p510 = scmp.le.s32.totalorder 1, %s30
      %p511 = scmp.lt.s32.totalorder %s30, 3
      %p512 = pnand %p510, %p511
      %p513 = pneg %p512
      // Predicated region
      $region9: #{mfcc_forward.1} parent=5 // pred_check
        _
      $region10: #{mfcc_forward.1} parent=5 // pred_check_branch
        %515 = sbr.rel (%p512) target = $region12
      $region11: #{mfcc_forward.1} parent=5 // pred_region
        %s516 = ssub.s32 %s30, 1
        // Predicated region
        $region13: #{mfcc_forward.1} parent=11 // pred_check
          %p517 = pneg %p77
        $region14: #{mfcc_forward.1} parent=11 // pred_check_branch
          %519 = sbr.rel (%p517) target = $region16
        $region15: #{mfcc_forward.1} parent=11 // pred_region
          _
        $region16: #{mfcc_forward.1} parent=11 // pred_fallthru
          _
        // Predicated region
        $region17: #{mfcc_forward.1} parent=11 // pred_check
          %p520 = pneg %p98
        $region18: #{mfcc_forward.1} parent=11 // pred_check_branch
          %522 = sbr.rel (%p520) target = $region20
        $region19: #{mfcc_forward.1} parent=11 // pred_region
          _
        $region20: #{mfcc_forward.1} parent=11 // pred_fallthru
          _
        // Predicated region
        $region21: #{mfcc_forward.1} parent=11 // pred_check
          %p523 = pneg %p119
        $region22: #{mfcc_forward.1} parent=11 // pred_check_branch
          %525 = sbr.rel (%p523) target = $region24
        $region23: #{mfcc_forward.1} parent=11 // pred_region
          _
        $region24: #{mfcc_forward.1} parent=11 // pred_fallthru
          _
        // Predicated region
        $region25: #{mfcc_forward.1} parent=11 // pred_check
          %p526 = pneg %p140
        $region26: #{mfcc_forward.1} parent=11 // pred_check_branch
          %528 = sbr.rel (%p526) target = $region28
        $region27: #{mfcc_forward.1} parent=11 // pred_region
          _
        $region28: #{mfcc_forward.1} parent=11 // pred_fallthru
          _
        // Predicated region
        $region29: #{mfcc_forward.1} parent=11 // pred_check
          %p529 = pneg %p161
        $region30: #{mfcc_forward.1} parent=11 // pred_check_branch
          %531 = sbr.rel (%p529) target = $region32
        $region31: #{mfcc_forward.1} parent=11 // pred_region
          _
        $region32: #{mfcc_forward.1} parent=11 // pred_fallthru
          _
        // Predicated region
        $region33: #{mfcc_forward.1} parent=11 // pred_check
          %p532 = pneg %p182
        $region34: #{mfcc_forward.1} parent=11 // pred_check_branch
          %534 = sbr.rel (%p532) target = $region36
        $region35: #{mfcc_forward.1} parent=11 // pred_region
          _
        $region36: #{mfcc_forward.1} parent=11 // pred_fallthru
          _
        // Predicated region
        $region37: #{mfcc_forward.1} parent=11 // pred_check
          %p535 = pneg %p203
        $region38: #{mfcc_forward.1} parent=11 // pred_check_branch
          %537 = sbr.rel (%p535) target = $region40
        $region39: #{mfcc_forward.1} parent=11 // pred_region
          _
        $region40: #{mfcc_forward.1} parent=11 // pred_fallthru
          _
        // Predicated region
        $region41: #{mfcc_forward.1} parent=11 // pred_check
          %p538 = pneg %p224
        $region42: #{mfcc_forward.1} parent=11 // pred_check_branch
          %540 = sbr.rel (%p538) target = $region44
        $region43: #{mfcc_forward.1} parent=11 // pred_region
          _
        $region44: #{mfcc_forward.1} parent=11 // pred_fallthru
          _
        // Predicated region
        $region45: #{mfcc_forward.1} parent=11 // pred_check
          %p541 = pneg %p245
        $region46: #{mfcc_forward.1} parent=11 // pred_check_branch
          %543 = sbr.rel (%p541) target = $region48
        $region47: #{mfcc_forward.1} parent=11 // pred_region
          _
        $region48: #{mfcc_forward.1} parent=11 // pred_fallthru
          _
        // Predicated region
        $region49: #{mfcc_forward.1} parent=11 // pred_check
          %p544 = pneg %p266
        $region50: #{mfcc_forward.1} parent=11 // pred_check_branch
          %546 = sbr.rel (%p544) target = $region52
        $region51: #{mfcc_forward.1} parent=11 // pred_region
          _
        $region52: #{mfcc_forward.1} parent=11 // pred_fallthru
          _
        // Predicated region
        $region53: #{mfcc_forward.1} parent=11 // pred_check
          %p547 = pneg %p287
        $region54: #{mfcc_forward.1} parent=11 // pred_check_branch
          %549 = sbr.rel (%p547) target = $region56
        $region55: #{mfcc_forward.1} parent=11 // pred_region
          _
        $region56: #{mfcc_forward.1} parent=11 // pred_fallthru
          _
        // Predicated region
        $region57: #{mfcc_forward.1} parent=11 // pred_check
          %p550 = pneg %p308
        $region58: #{mfcc_forward.1} parent=11 // pred_check_branch
          %552 = sbr.rel (%p550) target = $region60
        $region59: #{mfcc_forward.1} parent=11 // pred_region
          _
        $region60: #{mfcc_forward.1} parent=11 // pred_fallthru
          _
        // Predicated region
        $region61: #{mfcc_forward.1} parent=11 // pred_check
          %p553 = pneg %p329
        $region62: #{mfcc_forward.1} parent=11 // pred_check_branch
          %555 = sbr.rel (%p553) target = $region64
        $region63: #{mfcc_forward.1} parent=11 // pred_region
          _
        $region64: #{mfcc_forward.1} parent=11 // pred_fallthru
          _
        // Predicated region
        $region65: #{mfcc_forward.1} parent=11 // pred_check
          %p556 = pneg %p350
        $region66: #{mfcc_forward.1} parent=11 // pred_check_branch
          %558 = sbr.rel (%p556) target = $region68
        $region67: #{mfcc_forward.1} parent=11 // pred_region
          _
        $region68: #{mfcc_forward.1} parent=11 // pred_fallthru
          _
        // Predicated region
        $region69: #{mfcc_forward.1} parent=11 // pred_check
          %p559 = pneg %p371
        $region70: #{mfcc_forward.1} parent=11 // pred_check_branch
          %561 = sbr.rel (%p559) target = $region72
        $region71: #{mfcc_forward.1} parent=11 // pred_region
          _
        $region72: #{mfcc_forward.1} parent=11 // pred_fallthru
          _
        // Predicated region
        $region73: #{mfcc_forward.1} parent=11 // pred_check
          %p562 = pneg %p392
        $region74: #{mfcc_forward.1} parent=11 // pred_check_branch
          %564 = sbr.rel (%p562) target = $region76
        $region75: #{mfcc_forward.1} parent=11 // pred_region
          _
        $region76: #{mfcc_forward.1} parent=11 // pred_fallthru
          _
        // Predicated region
        $region77: #{mfcc_forward.1} parent=11 // pred_check
          %p565 = pneg %p413
        $region78: #{mfcc_forward.1} parent=11 // pred_check_branch
          %567 = sbr.rel (%p565) target = $region80
        $region79: #{mfcc_forward.1} parent=11 // pred_region
          _
        $region80: #{mfcc_forward.1} parent=11 // pred_fallthru
          _
        // Predicated region
        $region81: #{mfcc_forward.1} parent=11 // pred_check
          %p568 = pneg %p434
        $region82: #{mfcc_forward.1} parent=11 // pred_check_branch
          %570 = sbr.rel (%p568) target = $region84
        $region83: #{mfcc_forward.1} parent=11 // pred_region
          _
        $region84: #{mfcc_forward.1} parent=11 // pred_fallthru
          _
        // Predicated region
        $region85: #{mfcc_forward.1} parent=11 // pred_check
          %p571 = pneg %p455
        $region86: #{mfcc_forward.1} parent=11 // pred_check_branch
          %573 = sbr.rel (%p571) target = $region88
        $region87: #{mfcc_forward.1} parent=11 // pred_region
          _
        $region88: #{mfcc_forward.1} parent=11 // pred_fallthru
          _
        // Predicated region
        $region89: #{mfcc_forward.1} parent=11 // pred_check
          %p574 = pneg %p476
        $region90: #{mfcc_forward.1} parent=11 // pred_check_branch
          %576 = sbr.rel (%p574) target = $region92
        $region91: #{mfcc_forward.1} parent=11 // pred_region
          _
        $region92: #{mfcc_forward.1} parent=11 // pred_fallthru
          _
      $region12: #{mfcc_forward.1} parent=5 // pred_fallthru
        _
      %p577 = scmp.lt.s32.totalorder %s30, 2
      // Predicated region
      $region93: #{mfcc_forward.1} parent=5 // pred_check
        %p578 = pneg %p577
      $region94: #{mfcc_forward.1} parent=5 // pred_check_branch
        %580 = sbr.rel (%p578) target = $region96
      $region95: #{mfcc_forward.1} parent=5 // pred_region
        // Predicated region
        $region97: #{mfcc_forward.1} parent=95 // pred_check
          %p581 = pneg %p50
        $region98: #{mfcc_forward.1} parent=95 // pred_check_branch
          %583 = sbr.rel (%p581) target = $region100
        $region99: #{mfcc_forward.1} parent=95 // pred_region
          %p584 = scmp.lt.s32.totalorder %s30, 1
          %s585 = scalar_select %p584, %s30, 1
          %s586 = smul.addr %s585, 32
          %s587 = smul.addr %s586, 8
          %s588 = scalar_lea.vmem %s0, %s587
        $region100: #{mfcc_forward.1} parent=95 // pred_fallthru
          _
      $region96: #{mfcc_forward.1} parent=5 // pred_fallthru
        _
      %p589 = scmp.le.s32.totalorder 1, %s30
      %p590 = scmp.lt.s32.totalorder %s30, 3
      %p591 = pnand %p589, %p590
      %p592 = pneg %p591
      // Predicated region
      $region101: #{mfcc_forward.1} parent=5 // pred_check
        _
      $region102: #{mfcc_forward.1} parent=5 // pred_check_branch
        %594 = sbr.rel (%p591) target = $region104
      $region103: #{mfcc_forward.1} parent=5 // pred_region
        %s595 = ssub.s32 %s30, 1
        %p596 = scmp.lt.s32.totalorder %s35, 1
        %s597 = scalar_select %p596, %s35, 1
        %s598 = smul.addr %s597, 32
        %s599 = smul.addr %s598, 8
        %s600 = scalar_lea.vmem %s0, %s599
        %p601 = pneg %p56
        %p602 = pneg %p53
        %p603 = pneg %p77
        %p604 = pneg %p74
        %p605 = pneg %p98
        %p606 = pneg %p95
        %p607 = pneg %p119
        %p608 = pneg %p116
        %p609 = pneg %p140
        %p610 = pneg %p137
        %p611 = pneg %p161
        %p612 = pneg %p158
        %p613 = pneg %p182
        %p614 = pneg %p179
        %p615 = pneg %p203
        %p616 = pneg %p200
        %p617 = pneg %p224
        %p618 = pneg %p221
        %p619 = pneg %p245
        %p620 = pneg %p242
        %p621 = pneg %p266
        %p622 = pneg %p263
        %p623 = pneg %p287
        %p624 = pneg %p284
        %p625 = pneg %p308
        %p626 = pneg %p305
        %p627 = pneg %p329
        %p628 = pneg %p326
        %p629 = pneg %p350
        %p630 = pneg %p347
        %p631 = pneg %p371
        %p632 = pneg %p368
        %p633 = pneg %p392
        %p634 = pneg %p389
        %p635 = pneg %p413
        %p636 = pneg %p410
        %p637 = pneg %p434
        %p638 = pneg %p431
        %p639 = pneg %p455
        %p640 = pneg %p452
        %p641 = pneg %p476
        %p642 = pneg %p473
        %p643 = pneg %p502
        %p644 = pneg %p499
        %s645 = sand.u32 %s489, 1
        %s646 = scalar_lea.sflag [#allocation6], %s645
        %s647 = sand.u32 %s489, 1
        %s648 = scalar_lea.vmem [#allocation5], %s647
        %p649 = scmp.lt.s32.totalorder %s35, 1
        %s650 = scalar_select %p649, %s35, 1
        %s651 = smul.addr %s650, 32
        %s652 = smul.addr %s651, 8
        %s653 = scalar_lea.vmem %s0, %s652
        %v654 = vld [vmem:[%s653] sm:$0xff]
        %v655 = vld [vmem:[%s653 + $0x8] sm:$0xff]
        %v656 = vld [vmem:[%s653 + $0x10] sm:$0xff]
        %v657 = vld [vmem:[%s653 + $0x18] sm:$0xff]
        %v658 = vld [vmem:[%s653 + $0x20] sm:$0xff]
        %v659 = vld [vmem:[%s653 + $0x28] sm:$0xff]
        %v660 = vld [vmem:[%s653 + $0x30] sm:$0xff]
        %v661 = vld [vmem:[%s653 + $0x38] sm:$0xff]
        %v662 = vld [vmem:[%s653 + $0x40] sm:$0xff]
        %v663 = vld [vmem:[%s653 + $0x48] sm:$0xff]
        %v664 = vld [vmem:[%s653 + $0x50] sm:$0xff]
        %v665 = vld [vmem:[%s653 + $0x58] sm:$0xff]
        %v666 = vld [vmem:[%s653 + $0x60] sm:$0xff]
        %v667 = vld [vmem:[%s653 + $0x68] sm:$0xff]
        %v668 = vld [vmem:[%s653 + $0x70] sm:$0xff]
        %v669 = vld [vmem:[%s653 + $0x78] sm:$0xff]
        %v670 = vld [vmem:[%s653 + $0x80] sm:$0xff]
        %v671 = vld [vmem:[%s653 + $0x88] sm:$0xff]
        %v672 = vld [vmem:[%s653 + $0x90] sm:$0xff]
        %v673 = vld [vmem:[%s653 + $0x98] sm:$0xff]
        %v674 = vld [vmem:[%s653 + $0xa0] sm:$0xff]
        %v675 = vld [vmem:[%s653 + $0xa8] sm:$0xff]
        %v676 = vld [vmem:[%s653 + $0xb0] sm:$0xff]
        %v677 = vld [vmem:[%s653 + $0xb8] sm:$0xff]
        %v678 = vld [vmem:[%s653 + $0xc0] sm:$0xff]
        %v679 = vld [vmem:[%s653 + $0xc8] sm:$0xff]
        %v680 = vld [vmem:[%s653 + $0xd0] sm:$0xff]
        %v681 = vld [vmem:[%s653 + $0xd8] sm:$0xff]
        %v682 = vld [vmem:[%s653 + $0xe0] sm:$0xff]
        %v683 = vld [vmem:[%s653 + $0xe8] sm:$0xff]
        %v684 = vld [vmem:[%s653 + $0xf0] sm:$0xff]
        %v685 = vld [vmem:[%s653 + $0xf8] sm:$0xff]
        %v686 = vld [vmem:[%s7] sm:$0xff]
        %v687 = vld [vmem:[%s7 + $0x8] sm:$0x1]
        %v688 = vld [vmem:[%s8] sm:$0x1]
        %v690 = vperm.slane %v688, 0
        %vm692 = vcmask 72704
        %v694 = vsel %vm692, %v654, 0
        %v697 = vsel %vm692, %v655, 0
        %v700 = vsel %vm692, %v656, 0
        %v703 = vsel %vm692, %v657, 0
        %v706 = vsel %vm692, %v658, 0
        %v709 = vsel %vm692, %v659, 0
        %v712 = vsel %vm692, %v660, 0
        %v715 = vsel %vm692, %v661, 0
        %v718 = vsel %vm692, %v662, 0
        %v721 = vsel %vm692, %v663, 0
        %v724 = vsel %vm692, %v664, 0
        %v727 = vsel %vm692, %v665, 0
        %v730 = vsel %vm692, %v666, 0
        %v733 = vsel %vm692, %v667, 0
        %v736 = vsel %vm692, %v668, 0
        %v739 = vsel %vm692, %v669, 0
        %v742 = vsel %vm692, %v670, 0
        %v745 = vsel %vm692, %v671, 0
        %v748 = vsel %vm692, %v672, 0
        %v751 = vsel %vm692, %v673, 0
        %v754 = vsel %vm692, %v674, 0
        %v757 = vsel %vm692, %v675, 0
        %v760 = vsel %vm692, %v676, 0
        %v763 = vsel %vm692, %v677, 0
        %v766 = vsel %vm692, %v678, 0
        %v769 = vsel %vm692, %v679, 0
        %v772 = vsel %vm692, %v680, 0
        %v775 = vsel %vm692, %v681, 0
        %v778 = vsel %vm692, %v682, 0
        %v781 = vsel %vm692, %v683, 0
        %v784 = vsel %vm692, %v684, 0
        %v787 = vsel %vm692, %v685, 0
        %vm789 = vcmask 1040384
        %v791 = vsel %vm789, %v687, 0
        %793 = vmatpush.msra.mxu0 0.0
        %794 = vmatpush.msra.mxu0 0.0
        %795 = vmatpush.msra.mxu0 0.0
        %796 = vmatpush.msra.mxu0 0.0
        %797 = vmatpush.msra.mxu0 0.0
        %798 = vmatpush.msra.mxu0 0.0
        %799 = vmatpush.msra.mxu0 0.0
        %800 = vmatpush.msra.mxu0 0.0
        %801 = vmatpush.msra.mxu0 0.0
        %802 = vmatpush.msra.mxu0 0.0
        %803 = vmatpush.msra.mxu0 0.0
        %804 = vmatpush.msra.mxu0 0.0
        %805 = vmatpush.msra.mxu0 0.0
        %806 = vmatpush.msra.mxu0 0.0
        %807 = vmatpush.msra.mxu0 %v791
        %808 = vmatpush.msra.mxu0 %v686
        %809 = vmatmul.f32.gmra.mxu0 %v694
        %v810 = vpop.f32.mrf.mxu0
        %v811 = vadd.f32 %v690, %v810
        %812 = vmatmul.f32.gmra.mxu0 %v697
        %v813 = vpop.f32.mrf.mxu0
        %v814 = vadd.f32 %v690, %v813
        %815 = vmatmul.f32.gmra.mxu0 %v700
        %v816 = vpop.f32.mrf.mxu0
        %v817 = vadd.f32 %v690, %v816
        %818 = vmatmul.f32.gmra.mxu0 %v703
        %v819 = vpop.f32.mrf.mxu0
        %v820 = vadd.f32 %v690, %v819
        %821 = vmatmul.f32.gmra.mxu0 %v706
        %v822 = vpop.f32.mrf.mxu0
        %v823 = vadd.f32 %v690, %v822
        %824 = vmatmul.f32.gmra.mxu0 %v709
        %v825 = vpop.f32.mrf.mxu0
        %v826 = vadd.f32 %v690, %v825
        %827 = vmatmul.f32.gmra.mxu0 %v712
        %v828 = vpop.f32.mrf.mxu0
        %v829 = vadd.f32 %v690, %v828
        %830 = vmatmul.f32.gmra.mxu0 %v715
        %v831 = vpop.f32.mrf.mxu0
        %v832 = vadd.f32 %v690, %v831
        %833 = vmatmul.f32.gmra.mxu0 %v718
        %v834 = vpop.f32.mrf.mxu0
        %v835 = vadd.f32 %v690, %v834
        %836 = vmatmul.f32.gmra.mxu0 %v721
        %v837 = vpop.f32.mrf.mxu0
        %v838 = vadd.f32 %v690, %v837
        %839 = vmatmul.f32.gmra.mxu0 %v724
        %v840 = vpop.f32.mrf.mxu0
        %v841 = vadd.f32 %v690, %v840
        %842 = vmatmul.f32.gmra.mxu0 %v727
        %v843 = vpop.f32.mrf.mxu0
        %v844 = vadd.f32 %v690, %v843
        %845 = vmatmul.f32.gmra.mxu0 %v730
        %v846 = vpop.f32.mrf.mxu0
        %v847 = vadd.f32 %v690, %v846
        %848 = vmatmul.f32.gmra.mxu0 %v733
        %v849 = vpop.f32.mrf.mxu0
        %v850 = vadd.f32 %v690, %v849
        %851 = vmatmul.f32.gmra.mxu0 %v736
        %v852 = vpop.f32.mrf.mxu0
        %v853 = vadd.f32 %v690, %v852
        %854 = vmatmul.f32.gmra.mxu0 %v739
        %v855 = vpop.f32.mrf.mxu0
        %v856 = vadd.f32 %v690, %v855
        %857 = vmatmul.f32.gmra.mxu0 %v742
        %v858 = vpop.f32.mrf.mxu0
        %v859 = vadd.f32 %v690, %v858
        %860 = vmatmul.f32.gmra.mxu0 %v745
        %v861 = vpop.f32.mrf.mxu0
        %v862 = vadd.f32 %v690, %v861
        %863 = vmatmul.f32.gmra.mxu0 %v748
        %v864 = vpop.f32.mrf.mxu0
        %v865 = vadd.f32 %v690, %v864
        %866 = vmatmul.f32.gmra.mxu0 %v751
        %v867 = vpop.f32.mrf.mxu0
        %v868 = vadd.f32 %v690, %v867
        %869 = vmatmul.f32.gmra.mxu0 %v754
        %v870 = vpop.f32.mrf.mxu0
        %v871 = vadd.f32 %v690, %v870
        %872 = vmatmul.f32.gmra.mxu0 %v757
        %v873 = vpop.f32.mrf.mxu0
        %v874 = vadd.f32 %v690, %v873
        %875 = vmatmul.f32.gmra.mxu0 %v760
        %v876 = vpop.f32.mrf.mxu0
        %v877 = vadd.f32 %v690, %v876
        %878 = vmatmul.f32.gmra.mxu0 %v763
        %v879 = vpop.f32.mrf.mxu0
        %v880 = vadd.f32 %v690, %v879
        %881 = vmatmul.f32.gmra.mxu0 %v766
        %v882 = vpop.f32.mrf.mxu0
        %v883 = vadd.f32 %v690, %v882
        %884 = vmatmul.f32.gmra.mxu0 %v769
        %v885 = vpop.f32.mrf.mxu0
        %v886 = vadd.f32 %v690, %v885
        %887 = vmatmul.f32.gmra.mxu0 %v772
        %v888 = vpop.f32.mrf.mxu0
        %v889 = vadd.f32 %v690, %v888
        %890 = vmatmul.f32.gmra.mxu0 %v775
        %v891 = vpop.f32.mrf.mxu0
        %v892 = vadd.f32 %v690, %v891
        %893 = vmatmul.f32.gmra.mxu0 %v778
        %v894 = vpop.f32.mrf.mxu0
        %v895 = vadd.f32 %v690, %v894
        %896 = vmatmul.f32.gmra.mxu0 %v781
        %v897 = vpop.f32.mrf.mxu0
        %v898 = vadd.f32 %v690, %v897
        %899 = vmatmul.f32.gmra.mxu0 %v784
        %v900 = vpop.f32.mrf.mxu0
        %v901 = vadd.f32 %v690, %v900
        %902 = vmatmul.f32.gmra.mxu0 %v787
        %v903 = vpop.f32.mrf.mxu0
        %v904 = vadd.f32 %v690, %v903
        %905 = vdwg.mxu0
        %v906 = vld [vmem:[%s1] sm:$0xff]
        %v907 = vld [vmem:[%s1 + $0x8] sm:$0xff]
        %v908 = vld [vmem:[%s1 + $0x10] sm:$0xff]
        %v909 = vld [vmem:[%s1 + $0x18] sm:$0xff]
        %v910 = vld [vmem:[%s1 + $0x20] sm:$0xff]
        %v911 = vld [vmem:[%s1 + $0x28] sm:$0xff]
        %v912 = vld [vmem:[%s1 + $0x30] sm:$0xff]
        %v913 = vld [vmem:[%s1 + $0x38] sm:$0xff]
        %v914 = vld [vmem:[%s1 + $0x40] sm:$0xff]
        %v915 = vld [vmem:[%s1 + $0x48] sm:$0xff]
        %v916 = vld [vmem:[%s1 + $0x50] sm:$0xff]
        %v917 = vld [vmem:[%s1 + $0x58] sm:$0xff]
        %v918 = vld [vmem:[%s1 + $0x60] sm:$0xff]
        %v919 = vld [vmem:[%s1 + $0x68] sm:$0xff]
        %v920 = vld [vmem:[%s1 + $0x70] sm:$0xff]
        %v921 = vld [vmem:[%s1 + $0x78] sm:$0xff]
        %v922 = vld [vmem:[%s1 + $0x80] sm:$0xff]
        %v923 = vld [vmem:[%s1 + $0x88] sm:$0xff]
        %v924 = vld [vmem:[%s1 + $0x90] sm:$0xff]
        %v925 = vld [vmem:[%s1 + $0x98] sm:$0xff]
        %v926 = vld [vmem:[%s1 + $0xa0] sm:$0xff]
        %v927 = vld [vmem:[%s1 + $0xa8] sm:$0xff]
        %v928 = vld [vmem:[%s1 + $0xb0] sm:$0xff]
        %v929 = vld [vmem:[%s1 + $0xb8] sm:$0xff]
        %v930 = vld [vmem:[%s1 + $0xc0] sm:$0xff]
        %v931 = vld [vmem:[%s1 + $0xc8] sm:$0xff]
        %v932 = vld [vmem:[%s1 + $0xd0] sm:$0xff]
        %v933 = vld [vmem:[%s1 + $0xd8] sm:$0xff]
        %v934 = vld [vmem:[%s1 + $0xe0] sm:$0xff]
        %v935 = vld [vmem:[%s1 + $0xe8] sm:$0xff]
        %v936 = vld [vmem:[%s1 + $0xf0] sm:$0xff]
        %v937 = vld [vmem:[%s1 + $0xf8] sm:$0xff]
        %v938 = vld [vmem:[%s4] sm:$0xff]
        %v939 = vld [vmem:[%s4 + $0x8] sm:$0xff]
        %v940 = vld [vmem:[%s4 + $0x10] sm:$0xff]
        %v941 = vld [vmem:[%s4 + $0x18] sm:$0xff]
        %v942 = vld [vmem:[%s4 + $0x20] sm:$0xff]
        %v943 = vld [vmem:[%s4 + $0x28] sm:$0xff]
        %v944 = vld [vmem:[%s4 + $0x30] sm:$0xff]
        %v945 = vld [vmem:[%s4 + $0x38] sm:$0xff]
        %v946 = vld [vmem:[%s4 + $0x40] sm:$0xf]
        %v947 = vld [vmem:[%s4 + $0x48] sm:$0xf]
        %v948 = vld [vmem:[%s9] sm:$0xff]
        %v949 = vld [vmem:[%s9 + $0x8] sm:$0xff]
        %v950 = vld [vmem:[%s9 + $0x10] sm:$0xff]
        %v951 = vld [vmem:[%s9 + $0x18] sm:$0xff]
        %v952 = vld [vmem:[%s9 + $0x20] sm:$0xff]
        %v953 = vld [vmem:[%s9 + $0x28] sm:$0xff]
        %v954 = vld [vmem:[%s9 + $0x30] sm:$0xff]
        %v955 = vld [vmem:[%s9 + $0x38] sm:$0xff]
        %v956 = vld [vmem:[%s9 + $0x40] sm:$0xff]
        %v957 = vld [vmem:[%s9 + $0x48] sm:$0xff]
        %v958 = vld [vmem:[%s9 + $0x50] sm:$0xff]
        %v959 = vld [vmem:[%s9 + $0x58] sm:$0xff]
        %v960 = vld [vmem:[%s9 + $0x60] sm:$0xff]
        %v961 = vld [vmem:[%s9 + $0x68] sm:$0xff]
        %v962 = vld [vmem:[%s9 + $0x70] sm:$0xff]
        %v963 = vld [vmem:[%s9 + $0x78] sm:$0xff]
        %v964 = vld [vmem:[%s9 + $0x80] sm:$0xff]
        %v965 = vld [vmem:[%s9 + $0x88] sm:$0xff]
        %v966 = vld [vmem:[%s9 + $0x90] sm:$0xff]
        %v967 = vld [vmem:[%s9 + $0x98] sm:$0xff]
        %v968 = vld [vmem:[%s9 + $0xa0] sm:$0xff]
        %v969 = vld [vmem:[%s9 + $0xa8] sm:$0xff]
        %v970 = vld [vmem:[%s9 + $0xb0] sm:$0xff]
        %v971 = vld [vmem:[%s9 + $0xb8] sm:$0xff]
        %v972 = vld [vmem:[%s9 + $0xc0] sm:$0xff]
        %v973 = vld [vmem:[%s9 + $0xc8] sm:$0xff]
        %v974 = vld [vmem:[%s9 + $0xd0] sm:$0xff]
        %v975 = vld [vmem:[%s9 + $0xd8] sm:$0xff]
        %v976 = vld [vmem:[%s9 + $0xe0] sm:$0xff]
        %v977 = vld [vmem:[%s9 + $0xe8] sm:$0xff]
        %v978 = vld [vmem:[%s9 + $0xf0] sm:$0xff]
        %v979 = vld [vmem:[%s9 + $0xf8] sm:$0xff]
        %v980 = vld [vmem:[%s9 + $0x100] sm:$0xff]
        %v981 = vld [vmem:[%s9 + $0x108] sm:$0xff]
        %v982 = vld [vmem:[%s9 + $0x110] sm:$0xff]
        %v983 = vld [vmem:[%s9 + $0x118] sm:$0xff]
        %v984 = vld [vmem:[%s10] sm:$0x1]
        %v985 = vld [vmem:[%s11] sm:$0xff]
        %v986 = vld [vmem:[%s11 + $0x8] sm:$0xff]
        %v987 = vld [vmem:[%s11 + $0x10] sm:$0xff]
        %v988 = vld [vmem:[%s11 + $0x18] sm:$0xff]
        %v989 = vld [vmem:[%s11 + $0x20] sm:$0xff]
        %v990 = vld [vmem:[%s11 + $0x28] sm:$0xff]
        %v991 = vld [vmem:[%s11 + $0x30] sm:$0xff]
        %v992 = vld [vmem:[%s11 + $0x38] sm:$0xff]
        %v993 = vld [vmem:[%s11 + $0x40] sm:$0xff]
        %v994 = vld [vmem:[%s11 + $0x48] sm:$0xff]
        %v995 = vld [vmem:[%s11 + $0x50] sm:$0xff]
        %v996 = vld [vmem:[%s11 + $0x58] sm:$0xff]
        %v997 = vld [vmem:[%s11 + $0x60] sm:$0xff]
        %v998 = vld [vmem:[%s11 + $0x68] sm:$0xff]
        %v999 = vld [vmem:[%s11 + $0x70] sm:$0xff]
        %v1000 = vld [vmem:[%s11 + $0x78] sm:$0xff]
        %v1001 = vld [vmem:[%s11 + $0x80] sm:$0xff]
        %v1002 = vld [vmem:[%s11 + $0x88] sm:$0xff]
        %v1003 = vld [vmem:[%s11 + $0x90] sm:$0xff]
        %v1004 = vld [vmem:[%s11 + $0x98] sm:$0xff]
        %v1005 = vld [vmem:[%s11 + $0xa0] sm:$0xff]
        %v1006 = vld [vmem:[%s11 + $0xa8] sm:$0xff]
        %v1007 = vld [vmem:[%s11 + $0xb0] sm:$0xff]
        %v1008 = vld [vmem:[%s11 + $0xb8] sm:$0xff]
        %v1009 = vld [vmem:[%s11 + $0xc0] sm:$0xff]
        %v1010 = vld [vmem:[%s11 + $0xc8] sm:$0xff]
        %v1011 = vld [vmem:[%s11 + $0xd0] sm:$0xff]
        %v1012 = vld [vmem:[%s11 + $0xd8] sm:$0xff]
        %v1013 = vld [vmem:[%s11 + $0xe0] sm:$0xff]
        %v1014 = vld [vmem:[%s11 + $0xe8] sm:$0xff]
        %v1015 = vld [vmem:[%s11 + $0xf0] sm:$0xff]
        %v1016 = vld [vmem:[%s11 + $0xf8] sm:$0xff]
        %v1017 = vld [vmem:[%s11 + $0x100] sm:$0xff]
        %v1018 = vld [vmem:[%s11 + $0x108] sm:$0xff]
        %v1019 = vld [vmem:[%s11 + $0x110] sm:$0xff]
        %v1020 = vld [vmem:[%s11 + $0x118] sm:$0xff]
        %v1021 = vld [vmem:[%s12] sm:$0x1]
        %vm1022 = vcmask 261120
        %1023 = vst.msk [vmem:[#allocation2] sm:$0xff] %vm1022, 0.0
        %1024 = vst.msk [vmem:[#allocation2 + $0x8] sm:$0xff] %vm1022, 0.0
        %vm1025 = vcmask 253952
        %1026 = vst.msk [vmem:[#allocation2 + $0x10] sm:$0x1] %vm1025, 0.0
        %1027 = vst.msk [vmem:[#allocation2 + $0x111] sm:$0xff] %vm1022, 0.0
        %1028 = vst.msk [vmem:[#allocation2 + $0x119] sm:$0xff] %vm1022, 0.0
        %1029 = vst.msk [vmem:[#allocation2 + $0x121] sm:$0x1] %vm1025, 0.0
        %1030 = vst.msk [vmem:[#allocation2 + $0x11] sm:$0xff] %vm1022, %v811
        %1031 = vst.msk [vmem:[#allocation2 + $0x19] sm:$0xff] %vm1022, %v814
        %1032 = vst.msk [vmem:[#allocation2 + $0x21] sm:$0xff] %vm1022, %v817
        %1033 = vst.msk [vmem:[#allocation2 + $0x29] sm:$0xff] %vm1022, %v820
        %1034 = vst.msk [vmem:[#allocation2 + $0x31] sm:$0xff] %vm1022, %v823
        %1035 = vst.msk [vmem:[#allocation2 + $0x39] sm:$0xff] %vm1022, %v826
        %1036 = vst.msk [vmem:[#allocation2 + $0x41] sm:$0xff] %vm1022, %v829
        %1037 = vst.msk [vmem:[#allocation2 + $0x49] sm:$0xff] %vm1022, %v832
        %1038 = vst.msk [vmem:[#allocation2 + $0x51] sm:$0xff] %vm1022, %v835
        %1039 = vst.msk [vmem:[#allocation2 + $0x59] sm:$0xff] %vm1022, %v838
        %1040 = vst.msk [vmem:[#allocation2 + $0x61] sm:$0xff] %vm1022, %v841
        %1041 = vst.msk [vmem:[#allocation2 + $0x69] sm:$0xff] %vm1022, %v844
        %1042 = vst.msk [vmem:[#allocation2 + $0x71] sm:$0xff] %vm1022, %v847
        %1043 = vst.msk [vmem:[#allocation2 + $0x79] sm:$0xff] %vm1022, %v850
        %1044 = vst.msk [vmem:[#allocation2 + $0x81] sm:$0xff] %vm1022, %v853
        %1045 = vst.msk [vmem:[#allocation2 + $0x89] sm:$0xff] %vm1022, %v856
        %1046 = vst.msk [vmem:[#allocation2 + $0x91] sm:$0xff] %vm1022, %v859
        %1047 = vst.msk [vmem:[#allocation2 + $0x99] sm:$0xff] %vm1022, %v862
        %1048 = vst.msk [vmem:[#allocation2 + $0xa1] sm:$0xff] %vm1022, %v865
        %1049 = vst.msk [vmem:[#allocation2 + $0xa9] sm:$0xff] %vm1022, %v868
        %1050 = vst.msk [vmem:[#allocation2 + $0xb1] sm:$0xff] %vm1022, %v871
        %1051 = vst.msk [vmem:[#allocation2 + $0xb9] sm:$0xff] %vm1022, %v874
        %1052 = vst.msk [vmem:[#allocation2 + $0xc1] sm:$0xff] %vm1022, %v877
        %1053 = vst.msk [vmem:[#allocation2 + $0xc9] sm:$0xff] %vm1022, %v880
        %1054 = vst.msk [vmem:[#allocation2 + $0xd1] sm:$0xff] %vm1022, %v883
        %1055 = vst.msk [vmem:[#allocation2 + $0xd9] sm:$0xff] %vm1022, %v886
        %1056 = vst.msk [vmem:[#allocation2 + $0xe1] sm:$0xff] %vm1022, %v889
        %1057 = vst.msk [vmem:[#allocation2 + $0xe9] sm:$0xff] %vm1022, %v892
        %1058 = vst.msk [vmem:[#allocation2 + $0xf1] sm:$0xff] %vm1022, %v895
        %1059 = vst.msk [vmem:[#allocation2 + $0xf9] sm:$0xff] %vm1022, %v898
        %1060 = vst.msk [vmem:[#allocation2 + $0x101] sm:$0xff] %vm1022, %v901
        %1061 = vst.msk [vmem:[#allocation2 + $0x109] sm:$0xff] %vm1022, %v904
        %v1062 = vld [vmem:[#allocation2] sm:$0xff]
        %v1063 = vld [vmem:[#allocation2 + $0x8] sm:$0xff]
        %v1064 = vld [vmem:[#allocation2 + $0x10] sm:$0xff]
        %v1065 = vld [vmem:[#allocation2 + $0x18] sm:$0xff]
        %v1066 = vld [vmem:[#allocation2 + $0x20] sm:$0xff]
        %v1067 = vld [vmem:[#allocation2 + $0x28] sm:$0xff]
        %v1068 = vld [vmem:[#allocation2 + $0x30] sm:$0xff]
        %v1069 = vld [vmem:[#allocation2 + $0x38] sm:$0xff]
        %v1070 = vld [vmem:[#allocation2 + $0x40] sm:$0xff]
        %v1071 = vld [vmem:[#allocation2 + $0x48] sm:$0xff]
        %v1072 = vld [vmem:[#allocation2 + $0x50] sm:$0xff]
        %v1073 = vld [vmem:[#allocation2 + $0x58] sm:$0xff]
        %v1074 = vld [vmem:[#allocation2 + $0x60] sm:$0xff]
        %v1075 = vld [vmem:[#allocation2 + $0x68] sm:$0xff]
        %v1076 = vld [vmem:[#allocation2 + $0x70] sm:$0xff]
        %v1077 = vld [vmem:[#allocation2 + $0x78] sm:$0xff]
        %v1078 = vld [vmem:[#allocation2 + $0x80] sm:$0xff]
        %v1079 = vld [vmem:[#allocation2 + $0x88] sm:$0xff]
        %v1080 = vld [vmem:[#allocation2 + $0x90] sm:$0xff]
        %v1081 = vld [vmem:[#allocation2 + $0x98] sm:$0xff]
        %v1082 = vld [vmem:[#allocation2 + $0xa0] sm:$0xff]
        %v1083 = vld [vmem:[#allocation2 + $0xa8] sm:$0xff]
        %v1084 = vld [vmem:[#allocation2 + $0xb0] sm:$0xff]
        %v1085 = vld [vmem:[#allocation2 + $0xb8] sm:$0xff]
        %v1086 = vld [vmem:[#allocation2 + $0xc0] sm:$0xff]
        %v1087 = vld [vmem:[#allocation2 + $0xc8] sm:$0xff]
        %v1088 = vld [vmem:[#allocation2 + $0xd0] sm:$0xff]
        %v1089 = vld [vmem:[#allocation2 + $0xd8] sm:$0xff]
        %v1090 = vld [vmem:[#allocation2 + $0xe0] sm:$0xff]
        %v1091 = vld [vmem:[#allocation2 + $0xe8] sm:$0xff]
        %v1092 = vld [vmem:[#allocation2 + $0xf0] sm:$0xff]
        %v1093 = vld [vmem:[#allocation2 + $0xf8] sm:$0xff]
        %1095 = vset.pattern.permute.xlu0 0
        %1096 = vperm.xlu0 %1095, %v906
        %v1097 = vpop.permute.xlu0 %1096
        %1100 = vset.pattern.permute.xlu0 0
        %1101 = vperm.xlu0 %1100, %v907
        %v1102 = vpop.permute.xlu0 %1101
        %1105 = vset.pattern.permute.xlu0 0
        %1106 = vperm.xlu0 %1105, %v908
        %v1107 = vpop.permute.xlu0 %1106
        %1110 = vset.pattern.permute.xlu0 0
        %1111 = vperm.xlu0 %1110, %v909
        %v1112 = vpop.permute.xlu0 %1111
        %1115 = vset.pattern.permute.xlu0 0
        %1116 = vperm.xlu0 %1115, %v910
        %v1117 = vpop.permute.xlu0 %1116
        %1120 = vset.pattern.permute.xlu0 0
        %1121 = vperm.xlu0 %1120, %v911
        %v1122 = vpop.permute.xlu0 %1121
        %1125 = vset.pattern.permute.xlu0 0
        %1126 = vperm.xlu0 %1125, %v912
        %v1127 = vpop.permute.xlu0 %1126
        %1130 = vset.pattern.permute.xlu0 0
        %1131 = vperm.xlu0 %1130, %v913
        %v1132 = vpop.permute.xlu0 %1131
        %1135 = vset.pattern.permute.xlu0 0
        %1136 = vperm.xlu0 %1135, %v914
        %v1137 = vpop.permute.xlu0 %1136
        %1140 = vset.pattern.permute.xlu0 0
        %1141 = vperm.xlu0 %1140, %v915
        %v1142 = vpop.permute.xlu0 %1141
        %1145 = vset.pattern.permute.xlu0 0
        %1146 = vperm.xlu0 %1145, %v916
        %v1147 = vpop.permute.xlu0 %1146
        %1150 = vset.pattern.permute.xlu0 0
        %1151 = vperm.xlu0 %1150, %v917
        %v1152 = vpop.permute.xlu0 %1151
        %1155 = vset.pattern.permute.xlu0 0
        %1156 = vperm.xlu0 %1155, %v918
        %v1157 = vpop.permute.xlu0 %1156
        %1160 = vset.pattern.permute.xlu0 0
        %1161 = vperm.xlu0 %1160, %v919
        %v1162 = vpop.permute.xlu0 %1161
        %1165 = vset.pattern.permute.xlu0 0
        %1166 = vperm.xlu0 %1165, %v920
        %v1167 = vpop.permute.xlu0 %1166
        %1170 = vset.pattern.permute.xlu0 0
        %1171 = vperm.xlu0 %1170, %v921
        %v1172 = vpop.permute.xlu0 %1171
        %1175 = vset.pattern.permute.xlu0 0
        %1176 = vperm.xlu0 %1175, %v922
        %v1177 = vpop.permute.xlu0 %1176
        %1180 = vset.pattern.permute.xlu0 0
        %1181 = vperm.xlu0 %1180, %v923
        %v1182 = vpop.permute.xlu0 %1181
        %1185 = vset.pattern.permute.xlu0 0
        %1186 = vperm.xlu0 %1185, %v924
        %v1187 = vpop.permute.xlu0 %1186
        %1190 = vset.pattern.permute.xlu0 0
        %1191 = vperm.xlu0 %1190, %v925
        %v1192 = vpop.permute.xlu0 %1191
        %1195 = vset.pattern.permute.xlu0 0
        %1196 = vperm.xlu0 %1195, %v926
        %v1197 = vpop.permute.xlu0 %1196
        %1200 = vset.pattern.permute.xlu0 0
        %1201 = vperm.xlu0 %1200, %v927
        %v1202 = vpop.permute.xlu0 %1201
        %1205 = vset.pattern.permute.xlu0 0
        %1206 = vperm.xlu0 %1205, %v928
        %v1207 = vpop.permute.xlu0 %1206
        %1210 = vset.pattern.permute.xlu0 0
        %1211 = vperm.xlu0 %1210, %v929
        %v1212 = vpop.permute.xlu0 %1211
        %1215 = vset.pattern.permute.xlu0 0
        %1216 = vperm.xlu0 %1215, %v930
        %v1217 = vpop.permute.xlu0 %1216
        %1220 = vset.pattern.permute.xlu0 0
        %1221 = vperm.xlu0 %1220, %v931
        %v1222 = vpop.permute.xlu0 %1221
        %1225 = vset.pattern.permute.xlu0 0
        %1226 = vperm.xlu0 %1225, %v932
        %v1227 = vpop.permute.xlu0 %1226
        %1230 = vset.pattern.permute.xlu0 0
        %1231 = vperm.xlu0 %1230, %v933
        %v1232 = vpop.permute.xlu0 %1231
        %1235 = vset.pattern.permute.xlu0 0
        %1236 = vperm.xlu0 %1235, %v934
        %v1237 = vpop.permute.xlu0 %1236
        %1240 = vset.pattern.permute.xlu0 0
        %1241 = vperm.xlu0 %1240, %v935
        %v1242 = vpop.permute.xlu0 %1241
        %1245 = vset.pattern.permute.xlu0 0
        %1246 = vperm.xlu0 %1245, %v936
        %v1247 = vpop.permute.xlu0 %1246
        %1250 = vset.pattern.permute.xlu0 0
        %1251 = vperm.xlu0 %1250, %v937
        %v1252 = vpop.permute.xlu0 %1251
        %v1254 = vmul.f32 %v1062, %v1097
        %v1255 = vmul.f32 %v1063, %v1102
        %v1256 = vmul.f32 %v1064, %v1107
        %v1257 = vmul.f32 %v1065, %v1112
        %v1258 = vmul.f32 %v1066, %v1117
        %v1259 = vmul.f32 %v1067, %v1122
        %v1260 = vmul.f32 %v1068, %v1127
        %v1261 = vmul.f32 %v1069, %v1132
        %v1262 = vmul.f32 %v1070, %v1137
        %v1263 = vmul.f32 %v1071, %v1142
        %v1264 = vmul.f32 %v1072, %v1147
        %v1265 = vmul.f32 %v1073, %v1152
        %v1266 = vmul.f32 %v1074, %v1157
        %v1267 = vmul.f32 %v1075, %v1162
        %v1268 = vmul.f32 %v1076, %v1167
        %v1269 = vmul.f32 %v1077, %v1172
        %v1270 = vmul.f32 %v1078, %v1177
        %v1271 = vmul.f32 %v1079, %v1182
        %v1272 = vmul.f32 %v1080, %v1187
        %v1273 = vmul.f32 %v1081, %v1192
        %v1274 = vmul.f32 %v1082, %v1197
        %v1275 = vmul.f32 %v1083, %v1202
        %v1276 = vmul.f32 %v1084, %v1207
        %v1277 = vmul.f32 %v1085, %v1212
        %v1278 = vmul.f32 %v1086, %v1217
        %v1279 = vmul.f32 %v1087, %v1222
        %v1280 = vmul.f32 %v1088, %v1227
        %v1281 = vmul.f32 %v1089, %v1232
        %v1282 = vmul.f32 %v1090, %v1237
        %v1283 = vmul.f32 %v1091, %v1242
        %v1284 = vmul.f32 %v1092, %v1247
        %v1285 = vmul.f32 %v1093, %v1252
        %v1286 = vld [vmem:[#allocation2 + $0x1] sm:$0xff]
        %v1287 = vld [vmem:[#allocation2 + $0x9] sm:$0xff]
        %v1288 = vld [vmem:[#allocation2 + $0x11] sm:$0xff]
        %v1289 = vld [vmem:[#allocation2 + $0x19] sm:$0xff]
        %v1290 = vld [vmem:[#allocation2 + $0x21] sm:$0xff]
        %v1291 = vld [vmem:[#allocation2 + $0x29] sm:$0xff]
        %v1292 = vld [vmem:[#allocation2 + $0x31] sm:$0xff]
        %v1293 = vld [vmem:[#allocation2 + $0x39] sm:$0xff]
        %v1294 = vld [vmem:[#allocation2 + $0x41] sm:$0xff]
        %v1295 = vld [vmem:[#allocation2 + $0x49] sm:$0xff]
        %v1296 = vld [vmem:[#allocation2 + $0x51] sm:$0xff]
        %v1297 = vld [vmem:[#allocation2 + $0x59] sm:$0xff]
        %v1298 = vld [vmem:[#allocation2 + $0x61] sm:$0xff]
        %v1299 = vld [vmem:[#allocation2 + $0x69] sm:$0xff]
        %v1300 = vld [vmem:[#allocation2 + $0x71] sm:$0xff]
        %v1301 = vld [vmem:[#allocation2 + $0x79] sm:$0xff]
        %v1302 = vld [vmem:[#allocation2 + $0x81] sm:$0xff]
        %v1303 = vld [vmem:[#allocation2 + $0x89] sm:$0xff]
        %v1304 = vld [vmem:[#allocation2 + $0x91] sm:$0xff]
        %v1305 = vld [vmem:[#allocation2 + $0x99] sm:$0xff]
        %v1306 = vld [vmem:[#allocation2 + $0xa1] sm:$0xff]
        %v1307 = vld [vmem:[#allocation2 + $0xa9] sm:$0xff]
        %v1308 = vld [vmem:[#allocation2 + $0xb1] sm:$0xff]
        %v1309 = vld [vmem:[#allocation2 + $0xb9] sm:$0xff]
        %v1310 = vld [vmem:[#allocation2 + $0xc1] sm:$0xff]
        %v1311 = vld [vmem:[#allocation2 + $0xc9] sm:$0xff]
        %v1312 = vld [vmem:[#allocation2 + $0xd1] sm:$0xff]
        %v1313 = vld [vmem:[#allocation2 + $0xd9] sm:$0xff]
        %v1314 = vld [vmem:[#allocation2 + $0xe1] sm:$0xff]
        %v1315 = vld [vmem:[#allocation2 + $0xe9] sm:$0xff]
        %v1316 = vld [vmem:[#allocation2 + $0xf1] sm:$0xff]
        %v1317 = vld [vmem:[#allocation2 + $0xf9] sm:$0xff]
        %1318 = vset.pattern.permute.xlu0 1
        %1319 = vperm.xlu0 %1318, %v906
        %v1320 = vpop.permute.xlu0 %1319
        %1322 = vset.pattern.permute.xlu0 1
        %1323 = vperm.xlu0 %1322, %v907
        %v1324 = vpop.permute.xlu0 %1323
        %1326 = vset.pattern.permute.xlu0 1
        %1327 = vperm.xlu0 %1326, %v908
        %v1328 = vpop.permute.xlu0 %1327
        %1330 = vset.pattern.permute.xlu0 1
        %1331 = vperm.xlu0 %1330, %v909
        %v1332 = vpop.permute.xlu0 %1331
        %1334 = vset.pattern.permute.xlu0 1
        %1335 = vperm.xlu0 %1334, %v910
        %v1336 = vpop.permute.xlu0 %1335
        %1338 = vset.pattern.permute.xlu0 1
        %1339 = vperm.xlu0 %1338, %v911
        %v1340 = vpop.permute.xlu0 %1339
        %1342 = vset.pattern.permute.xlu0 1
        %1343 = vperm.xlu0 %1342, %v912
        %v1344 = vpop.permute.xlu0 %1343
        %1346 = vset.pattern.permute.xlu0 1
        %1347 = vperm.xlu0 %1346, %v913
        %v1348 = vpop.permute.xlu0 %1347
        %1350 = vset.pattern.permute.xlu0 1
        %1351 = vperm.xlu0 %1350, %v914
        %v1352 = vpop.permute.xlu0 %1351
        %1354 = vset.pattern.permute.xlu0 1
        %1355 = vperm.xlu0 %1354, %v915
        %v1356 = vpop.permute.xlu0 %1355
        %1358 = vset.pattern.permute.xlu0 1
        %1359 = vperm.xlu0 %1358, %v916
        %v1360 = vpop.permute.xlu0 %1359
        %1362 = vset.pattern.permute.xlu0 1
        %1363 = vperm.xlu0 %1362, %v917
        %v1364 = vpop.permute.xlu0 %1363
        %1366 = vset.pattern.permute.xlu0 1
        %1367 = vperm.xlu0 %1366, %v918
        %v1368 = vpop.permute.xlu0 %1367
        %1370 = vset.pattern.permute.xlu0 1
        %1371 = vperm.xlu0 %1370, %v919
        %v1372 = vpop.permute.xlu0 %1371
        %1374 = vset.pattern.permute.xlu0 1
        %1375 = vperm.xlu0 %1374, %v920
        %v1376 = vpop.permute.xlu0 %1375
        %1378 = vset.pattern.permute.xlu0 1
        %1379 = vperm.xlu0 %1378, %v921
        %v1380 = vpop.permute.xlu0 %1379
        %1382 = vset.pattern.permute.xlu0 1
        %1383 = vperm.xlu0 %1382, %v922
        %v1384 = vpop.permute.xlu0 %1383
        %1386 = vset.pattern.permute.xlu0 1
        %1387 = vperm.xlu0 %1386, %v923
        %v1388 = vpop.permute.xlu0 %1387
        %1390 = vset.pattern.permute.xlu0 1
        %1391 = vperm.xlu0 %1390, %v924
        %v1392 = vpop.permute.xlu0 %1391
        %1394 = vset.pattern.permute.xlu0 1
        %1395 = vperm.xlu0 %1394, %v925
        %v1396 = vpop.permute.xlu0 %1395
        %1398 = vset.pattern.permute.xlu0 1
        %1399 = vperm.xlu0 %1398, %v926
        %v1400 = vpop.permute.xlu0 %1399
        %1402 = vset.pattern.permute.xlu0 1
        %1403 = vperm.xlu0 %1402, %v927
        %v1404 = vpop.permute.xlu0 %1403
        %1406 = vset.pattern.permute.xlu0 1
        %1407 = vperm.xlu0 %1406, %v928
        %v1408 = vpop.permute.xlu0 %1407
        %1410 = vset.pattern.permute.xlu0 1
        %1411 = vperm.xlu0 %1410, %v929
        %v1412 = vpop.permute.xlu0 %1411
        %1414 = vset.pattern.permute.xlu0 1
        %1415 = vperm.xlu0 %1414, %v930
        %v1416 = vpop.permute.xlu0 %1415
        %1418 = vset.pattern.permute.xlu0 1
        %1419 = vperm.xlu0 %1418, %v931
        %v1420 = vpop.permute.xlu0 %1419
        %1422 = vset.pattern.permute.xlu0 1
        %1423 = vperm.xlu0 %1422, %v932
        %v1424 = vpop.permute.xlu0 %1423
        %1426 = vset.pattern.permute.xlu0 1
        %1427 = vperm.xlu0 %1426, %v933
        %v1428 = vpop.permute.xlu0 %1427
        %1430 = vset.pattern.permute.xlu0 1
        %1431 = vperm.xlu0 %1430, %v934
        %v1432 = vpop.permute.xlu0 %1431
        %1434 = vset.pattern.permute.xlu0 1
        %1435 = vperm.xlu0 %1434, %v935
        %v1436 = vpop.permute.xlu0 %1435
        %1438 = vset.pattern.permute.xlu0 1
        %1439 = vperm.xlu0 %1438, %v936
        %v1440 = vpop.permute.xlu0 %1439
        %1442 = vset.pattern.permute.xlu0 1
        %1443 = vperm.xlu0 %1442, %v937
        %v1444 = vpop.permute.xlu0 %1443
        %v1446 = vmul.f32 %v1286, %v1320
        %v1447 = vmul.f32 %v1287, %v1324
        %v1448 = vmul.f32 %v1288, %v1328
        %v1449 = vmul.f32 %v1289, %v1332
        %v1450 = vmul.f32 %v1290, %v1336
        %v1451 = vmul.f32 %v1291, %v1340
        %v1452 = vmul.f32 %v1292, %v1344
        %v1453 = vmul.f32 %v1293, %v1348
        %v1454 = vmul.f32 %v1294, %v1352
        %v1455 = vmul.f32 %v1295, %v1356
        %v1456 = vmul.f32 %v1296, %v1360
        %v1457 = vmul.f32 %v1297, %v1364
        %v1458 = vmul.f32 %v1298, %v1368
        %v1459 = vmul.f32 %v1299, %v1372
        %v1460 = vmul.f32 %v1300, %v1376
        %v1461 = vmul.f32 %v1301, %v1380
        %v1462 = vmul.f32 %v1302, %v1384
        %v1463 = vmul.f32 %v1303, %v1388
        %v1464 = vmul.f32 %v1304, %v1392
        %v1465 = vmul.f32 %v1305, %v1396
        %v1466 = vmul.f32 %v1306, %v1400
        %v1467 = vmul.f32 %v1307, %v1404
        %v1468 = vmul.f32 %v1308, %v1408
        %v1469 = vmul.f32 %v1309, %v1412
        %v1470 = vmul.f32 %v1310, %v1416
        %v1471 = vmul.f32 %v1311, %v1420
        %v1472 = vmul.f32 %v1312, %v1424
        %v1473 = vmul.f32 %v1313, %v1428
        %v1474 = vmul.f32 %v1314, %v1432
        %v1475 = vmul.f32 %v1315, %v1436
        %v1476 = vmul.f32 %v1316, %v1440
        %v1477 = vmul.f32 %v1317, %v1444
        %v1479 = vsel %vm1022, %v1446, 0
        %v1482 = vsel %vm1022, %v1447, 0
        %v1485 = vsel %vm1022, %v1448, 0
        %v1488 = vsel %vm1022, %v1449, 0
        %v1491 = vsel %vm1022, %v1450, 0
        %v1494 = vsel %vm1022, %v1451, 0
        %v1497 = vsel %vm1022, %v1452, 0
        %v1500 = vsel %vm1022, %v1453, 0
        %v1503 = vsel %vm1022, %v1454, 0
        %v1506 = vsel %vm1022, %v1455, 0
        %v1509 = vsel %vm1022, %v1456, 0
        %v1512 = vsel %vm1022, %v1457, 0
        %v1515 = vsel %vm1022, %v1458, 0
        %v1518 = vsel %vm1022, %v1459, 0
        %v1521 = vsel %vm1022, %v1460, 0
        %v1524 = vsel %vm1022, %v1461, 0
        %v1527 = vsel %vm1022, %v1462, 0
        %v1530 = vsel %vm1022, %v1463, 0
        %v1533 = vsel %vm1022, %v1464, 0
        %v1536 = vsel %vm1022, %v1465, 0
        %v1539 = vsel %vm1022, %v1466, 0
        %v1542 = vsel %vm1022, %v1467, 0
        %v1545 = vsel %vm1022, %v1468, 0
        %v1548 = vsel %vm1022, %v1469, 0
        %v1551 = vsel %vm1022, %v1470, 0
        %v1554 = vsel %vm1022, %v1471, 0
        %v1557 = vsel %vm1022, %v1472, 0
        %v1560 = vsel %vm1022, %v1473, 0
        %v1563 = vsel %vm1022, %v1474, 0
        %v1566 = vsel %vm1022, %v1475, 0
        %v1569 = vsel %vm1022, %v1476, 0
        %v1572 = vsel %vm1022, %v1477, 0
        %1574 = vmatpush.msra.mxu0 0.0
        %1575 = vmatpush.msra.mxu0 0.0
        %1576 = vmatpush.msra.mxu0 0.0
        %1577 = vmatpush.msra.mxu0 0.0
        %1578 = vmatpush.msra.mxu0 0.0
        %1579 = vmatpush.msra.mxu0 0.0
        %1580 = vmatpush.msra.mxu0 0.0
        %1581 = vmatpush.msra.mxu0 0.0
        %1582 = vmatpush.msra.mxu0 0.0
        %1583 = vmatpush.msra.mxu0 0.0
        %1584 = vmatpush.msra.mxu0 0.0
        %1585 = vmatpush.msra.mxu0 0.0
        %1586 = vmatpush.msra.mxu0 %v955
        %1587 = vmatpush.msra.mxu0 %v954
        %1588 = vmatpush.msra.mxu0 %v953
        %1589 = vmatpush.msra.mxu0 %v952
        %1590 = vmatmul.f32.gmra.mxu0 %v1479
        %v1591 = vpop.f32.mrf.mxu0
        %v1592 = vadd.f32 0.0, %v1591
        %1593 = vmatmul.f32.gmra.mxu0 %v1482
        %v1594 = vpop.f32.mrf.mxu0
        %v1595 = vadd.f32 0.0, %v1594
        %1596 = vmatmul.f32.gmra.mxu0 %v1485
        %v1597 = vpop.f32.mrf.mxu0
        %v1598 = vadd.f32 0.0, %v1597
        %1599 = vmatmul.f32.gmra.mxu0 %v1488
        %v1600 = vpop.f32.mrf.mxu0
        %v1601 = vadd.f32 0.0, %v1600
        %1602 = vmatmul.f32.gmra.mxu0 %v1491
        %v1603 = vpop.f32.mrf.mxu0
        %v1604 = vadd.f32 0.0, %v1603
        %1605 = vmatmul.f32.gmra.mxu0 %v1494
        %v1606 = vpop.f32.mrf.mxu0
        %v1607 = vadd.f32 0.0, %v1606
        %1608 = vmatmul.f32.gmra.mxu0 %v1497
        %v1609 = vpop.f32.mrf.mxu0
        %v1610 = vadd.f32 0.0, %v1609
        %1611 = vmatmul.f32.gmra.mxu0 %v1500
        %v1612 = vpop.f32.mrf.mxu0
        %v1613 = vadd.f32 0.0, %v1612
        %1614 = vmatmul.f32.gmra.mxu0 %v1503
        %v1615 = vpop.f32.mrf.mxu0
        %v1616 = vadd.f32 0.0, %v1615
        %1617 = vmatmul.f32.gmra.mxu0 %v1506
        %v1618 = vpop.f32.mrf.mxu0
        %v1619 = vadd.f32 0.0, %v1618
        %1620 = vmatmul.f32.gmra.mxu0 %v1509
        %v1621 = vpop.f32.mrf.mxu0
        %v1622 = vadd.f32 0.0, %v1621
        %1623 = vmatmul.f32.gmra.mxu0 %v1512
        %v1624 = vpop.f32.mrf.mxu0
        %v1625 = vadd.f32 0.0, %v1624
        %1626 = vmatmul.f32.gmra.mxu0 %v1515
        %v1627 = vpop.f32.mrf.mxu0
        %v1628 = vadd.f32 0.0, %v1627
        %1629 = vmatmul.f32.gmra.mxu0 %v1518
        %v1630 = vpop.f32.mrf.mxu0
        %v1631 = vadd.f32 0.0, %v1630
        %1632 = vmatmul.f32.gmra.mxu0 %v1521
        %v1633 = vpop.f32.mrf.mxu0
        %v1634 = vadd.f32 0.0, %v1633
        %1635 = vmatmul.f32.gmra.mxu0 %v1524
        %v1636 = vpop.f32.mrf.mxu0
        %v1637 = vadd.f32 0.0, %v1636
        %1638 = vmatmul.f32.gmra.mxu0 %v1527
        %v1639 = vpop.f32.mrf.mxu0
        %v1640 = vadd.f32 0.0, %v1639
        %1641 = vmatmul.f32.gmra.mxu0 %v1530
        %v1642 = vpop.f32.mrf.mxu0
        %v1643 = vadd.f32 0.0, %v1642
        %1644 = vmatmul.f32.gmra.mxu0 %v1533
        %v1645 = vpop.f32.mrf.mxu0
        %v1646 = vadd.f32 0.0, %v1645
        %1647 = vmatmul.f32.gmra.mxu0 %v1536
        %v1648 = vpop.f32.mrf.mxu0
        %v1649 = vadd.f32 0.0, %v1648
        %1650 = vmatmul.f32.gmra.mxu0 %v1539
        %v1651 = vpop.f32.mrf.mxu0
        %v1652 = vadd.f32 0.0, %v1651
        %1653 = vmatmul.f32.gmra.mxu0 %v1542
        %v1654 = vpop.f32.mrf.mxu0
        %v1655 = vadd.f32 0.0, %v1654
        %1656 = vmatmul.f32.gmra.mxu0 %v1545
        %v1657 = vpop.f32.mrf.mxu0
        %v1658 = vadd.f32 0.0, %v1657
        %1659 = vmatmul.f32.gmra.mxu0 %v1548
        %v1660 = vpop.f32.mrf.mxu0
        %v1661 = vadd.f32 0.0, %v1660
        %1662 = vmatmul.f32.gmra.mxu0 %v1551
        %v1663 = vpop.f32.mrf.mxu0
        %v1664 = vadd.f32 0.0, %v1663
        %1665 = vmatmul.f32.gmra.mxu0 %v1554
        %v1666 = vpop.f32.mrf.mxu0
        %v1667 = vadd.f32 0.0, %v1666
        %1668 = vmatmul.f32.gmra.mxu0 %v1557
        %v1669 = vpop.f32.mrf.mxu0
        %v1670 = vadd.f32 0.0, %v1669
        %1671 = vmatmul.f32.gmra.mxu0 %v1560
        %v1672 = vpop.f32.mrf.mxu0
        %v1673 = vadd.f32 0.0, %v1672
        %1674 = vmatmul.f32.gmra.mxu0 %v1563
        %v1675 = vpop.f32.mrf.mxu0
        %v1676 = vadd.f32 0.0, %v1675
        %1677 = vmatmul.f32.gmra.mxu0 %v1566
        %v1678 = vpop.f32.mrf.mxu0
        %v1679 = vadd.f32 0.0, %v1678
        %1680 = vmatmul.f32.gmra.mxu0 %v1569
        %v1681 = vpop.f32.mrf.mxu0
        %v1682 = vadd.f32 0.0, %v1681
        %1683 = vmatmul.f32.gmra.mxu0 %v1572
        %v1684 = vpop.f32.mrf.mxu0
        %v1685 = vadd.f32 0.0, %v1684
        %1686 = vdwg.mxu0
        %v1688 = vsel %vm1022, %v1254, 0
        %v1691 = vsel %vm1022, %v1255, 0
        %v1694 = vsel %vm1022, %v1256, 0
        %v1697 = vsel %vm1022, %v1257, 0
        %v1700 = vsel %vm1022, %v1258, 0
        %v1703 = vsel %vm1022, %v1259, 0
        %v1706 = vsel %vm1022, %v1260, 0
        %v1709 = vsel %vm1022, %v1261, 0
        %v1712 = vsel %vm1022, %v1262, 0
        %v1715 = vsel %vm1022, %v1263, 0
        %v1718 = vsel %vm1022, %v1264, 0
        %v1721 = vsel %vm1022, %v1265, 0
        %v1724 = vsel %vm1022, %v1266, 0
        %v1727 = vsel %vm1022, %v1267, 0
        %v1730 = vsel %vm1022, %v1268, 0
        %v1733 = vsel %vm1022, %v1269, 0
        %v1736 = vsel %vm1022, %v1270, 0
        %v1739 = vsel %vm1022, %v1271, 0
        %v1742 = vsel %vm1022, %v1272, 0
        %v1745 = vsel %vm1022, %v1273, 0
        %v1748 = vsel %vm1022, %v1274, 0
        %v1751 = vsel %vm1022, %v1275, 0
        %v1754 = vsel %vm1022, %v1276, 0
        %v1757 = vsel %vm1022, %v1277, 0
        %v1760 = vsel %vm1022, %v1278, 0
        %v1763 = vsel %vm1022, %v1279, 0
        %v1766 = vsel %vm1022, %v1280, 0
        %v1769 = vsel %vm1022, %v1281, 0
        %v1772 = vsel %vm1022, %v1282, 0
        %v1775 = vsel %vm1022, %v1283, 0
        %v1778 = vsel %vm1022, %v1284, 0
        %v1781 = vsel %vm1022, %v1285, 0
        %1783 = vmatpush.msra.mxu0 0.0
        %1784 = vmatpush.msra.mxu0 0.0
        %1785 = vmatpush.msra.mxu0 0.0
        %1786 = vmatpush.msra.mxu0 0.0
        %1787 = vmatpush.msra.mxu0 0.0
        %1788 = vmatpush.msra.mxu0 0.0
        %1789 = vmatpush.msra.mxu0 0.0
        %1790 = vmatpush.msra.mxu0 0.0
        %1791 = vmatpush.msra.mxu0 0.0
        %1792 = vmatpush.msra.mxu0 0.0
        %1793 = vmatpush.msra.mxu0 0.0
        %1794 = vmatpush.msra.mxu0 0.0
        %1795 = vmatpush.msra.mxu0 %v951
        %1796 = vmatpush.msra.mxu0 %v950
        %1797 = vmatpush.msra.mxu0 %v949
        %1798 = vmatpush.msra.mxu0 %v948
        %1799 = vmatmul.f32.gmra.mxu0 %v1688
        %v1800 = vpop.f32.mrf.mxu0
        %v1801 = vadd.f32 %v1592, %v1800
        %1802 = vmatmul.f32.gmra.mxu0 %v1691
        %v1803 = vpop.f32.mrf.mxu0
        %v1804 = vadd.f32 %v1595, %v1803
        %1805 = vmatmul.f32.gmra.mxu0 %v1694
        %v1806 = vpop.f32.mrf.mxu0
        %v1807 = vadd.f32 %v1598, %v1806
        %1808 = vmatmul.f32.gmra.mxu0 %v1697
        %v1809 = vpop.f32.mrf.mxu0
        %v1810 = vadd.f32 %v1601, %v1809
        %1811 = vmatmul.f32.gmra.mxu0 %v1700
        %v1812 = vpop.f32.mrf.mxu0
        %v1813 = vadd.f32 %v1604, %v1812
        %1814 = vmatmul.f32.gmra.mxu0 %v1703
        %v1815 = vpop.f32.mrf.mxu0
        %v1816 = vadd.f32 %v1607, %v1815
        %1817 = vmatmul.f32.gmra.mxu0 %v1706
        %v1818 = vpop.f32.mrf.mxu0
        %v1819 = vadd.f32 %v1610, %v1818
        %1820 = vmatmul.f32.gmra.mxu0 %v1709
        %v1821 = vpop.f32.mrf.mxu0
        %v1822 = vadd.f32 %v1613, %v1821
        %1823 = vmatmul.f32.gmra.mxu0 %v1712
        %v1824 = vpop.f32.mrf.mxu0
        %v1825 = vadd.f32 %v1616, %v1824
        %1826 = vmatmul.f32.gmra.mxu0 %v1715
        %v1827 = vpop.f32.mrf.mxu0
        %v1828 = vadd.f32 %v1619, %v1827
        %1829 = vmatmul.f32.gmra.mxu0 %v1718
        %v1830 = vpop.f32.mrf.mxu0
        %v1831 = vadd.f32 %v1622, %v1830
        %1832 = vmatmul.f32.gmra.mxu0 %v1721
        %v1833 = vpop.f32.mrf.mxu0
        %v1834 = vadd.f32 %v1625, %v1833
        %1835 = vmatmul.f32.gmra.mxu0 %v1724
        %v1836 = vpop.f32.mrf.mxu0
        %v1837 = vadd.f32 %v1628, %v1836
        %1838 = vmatmul.f32.gmra.mxu0 %v1727
        %v1839 = vpop.f32.mrf.mxu0
        %v1840 = vadd.f32 %v1631, %v1839
        %1841 = vmatmul.f32.gmra.mxu0 %v1730
        %v1842 = vpop.f32.mrf.mxu0
        %v1843 = vadd.f32 %v1634, %v1842
        %1844 = vmatmul.f32.gmra.mxu0 %v1733
        %v1845 = vpop.f32.mrf.mxu0
        %v1846 = vadd.f32 %v1637, %v1845
        %1847 = vmatmul.f32.gmra.mxu0 %v1736
        %v1848 = vpop.f32.mrf.mxu0
        %v1849 = vadd.f32 %v1640, %v1848
        %1850 = vmatmul.f32.gmra.mxu0 %v1739
        %v1851 = vpop.f32.mrf.mxu0
        %v1852 = vadd.f32 %v1643, %v1851
        %1853 = vmatmul.f32.gmra.mxu0 %v1742
        %v1854 = vpop.f32.mrf.mxu0
        %v1855 = vadd.f32 %v1646, %v1854
        %1856 = vmatmul.f32.gmra.mxu0 %v1745
        %v1857 = vpop.f32.mrf.mxu0
        %v1858 = vadd.f32 %v1649, %v1857
        %1859 = vmatmul.f32.gmra.mxu0 %v1748
        %v1860 = vpop.f32.mrf.mxu0
        %v1861 = vadd.f32 %v1652, %v1860
        %1862 = vmatmul.f32.gmra.mxu0 %v1751
        %v1863 = vpop.f32.mrf.mxu0
        %v1864 = vadd.f32 %v1655, %v1863
        %1865 = vmatmul.f32.gmra.mxu0 %v1754
        %v1866 = vpop.f32.mrf.mxu0
        %v1867 = vadd.f32 %v1658, %v1866
        %1868 = vmatmul.f32.gmra.mxu0 %v1757
        %v1869 = vpop.f32.mrf.mxu0
        %v1870 = vadd.f32 %v1661, %v1869
        %1871 = vmatmul.f32.gmra.mxu0 %v1760
        %v1872 = vpop.f32.mrf.mxu0
        %v1873 = vadd.f32 %v1664, %v1872
        %1874 = vmatmul.f32.gmra.mxu0 %v1763
        %v1875 = vpop.f32.mrf.mxu0
        %v1876 = vadd.f32 %v1667, %v1875
        %1877 = vmatmul.f32.gmra.mxu0 %v1766
        %v1878 = vpop.f32.mrf.mxu0
        %v1879 = vadd.f32 %v1670, %v1878
        %1880 = vmatmul.f32.gmra.mxu0 %v1769
        %v1881 = vpop.f32.mrf.mxu0
        %v1882 = vadd.f32 %v1673, %v1881
        %1883 = vmatmul.f32.gmra.mxu0 %v1772
        %v1884 = vpop.f32.mrf.mxu0
        %v1885 = vadd.f32 %v1676, %v1884
        %1886 = vmatmul.f32.gmra.mxu0 %v1775
        %v1887 = vpop.f32.mrf.mxu0
        %v1888 = vadd.f32 %v1679, %v1887
        %1889 = vmatmul.f32.gmra.mxu0 %v1778
        %v1890 = vpop.f32.mrf.mxu0
        %v1891 = vadd.f32 %v1682, %v1890
        %1892 = vmatmul.f32.gmra.mxu0 %v1781
        %v1893 = vpop.f32.mrf.mxu0
        %v1894 = vadd.f32 %v1685, %v1893
        %1895 = vdwg.mxu0
        %v1896 = vld [vmem:[#allocation2 + $0x2] sm:$0xff]
        %v1897 = vld [vmem:[#allocation2 + $0xa] sm:$0xff]
        %v1898 = vld [vmem:[#allocation2 + $0x12] sm:$0xff]
        %v1899 = vld [vmem:[#allocation2 + $0x1a] sm:$0xff]
        %v1900 = vld [vmem:[#allocation2 + $0x22] sm:$0xff]
        %v1901 = vld [vmem:[#allocation2 + $0x2a] sm:$0xff]
        %v1902 = vld [vmem:[#allocation2 + $0x32] sm:$0xff]
        %v1903 = vld [vmem:[#allocation2 + $0x3a] sm:$0xff]
        %v1904 = vld [vmem:[#allocation2 + $0x42] sm:$0xff]
        %v1905 = vld [vmem:[#allocation2 + $0x4a] sm:$0xff]
        %v1906 = vld [vmem:[#allocation2 + $0x52] sm:$0xff]
        %v1907 = vld [vmem:[#allocation2 + $0x5a] sm:$0xff]
        %v1908 = vld [vmem:[#allocation2 + $0x62] sm:$0xff]
        %v1909 = vld [vmem:[#allocation2 + $0x6a] sm:$0xff]
        %v1910 = vld [vmem:[#allocation2 + $0x72] sm:$0xff]
        %v1911 = vld [vmem:[#allocation2 + $0x7a] sm:$0xff]
        %v1912 = vld [vmem:[#allocation2 + $0x82] sm:$0xff]
        %v1913 = vld [vmem:[#allocation2 + $0x8a] sm:$0xff]
        %v1914 = vld [vmem:[#allocation2 + $0x92] sm:$0xff]
        %v1915 = vld [vmem:[#allocation2 + $0x9a] sm:$0xff]
        %v1916 = vld [vmem:[#allocation2 + $0xa2] sm:$0xff]
        %v1917 = vld [vmem:[#allocation2 + $0xaa] sm:$0xff]
        %v1918 = vld [vmem:[#allocation2 + $0xb2] sm:$0xff]
        %v1919 = vld [vmem:[#allocation2 + $0xba] sm:$0xff]
        %v1920 = vld [vmem:[#allocation2 + $0xc2] sm:$0xff]
        %v1921 = vld [vmem:[#allocation2 + $0xca] sm:$0xff]
        %v1922 = vld [vmem:[#allocation2 + $0xd2] sm:$0xff]
        %v1923 = vld [vmem:[#allocation2 + $0xda] sm:$0xff]
        %v1924 = vld [vmem:[#allocation2 + $0xe2] sm:$0xff]
        %v1925 = vld [vmem:[#allocation2 + $0xea] sm:$0xff]
        %v1926 = vld [vmem:[#allocation2 + $0xf2] sm:$0xff]
        %v1927 = vld [vmem:[#allocation2 + $0xfa] sm:$0xff]
        %1928 = vset.pattern.permute.xlu0 2
        %1929 = vperm.xlu0 %1928, %v906
        %v1930 = vpop.permute.xlu0 %1929
        %1932 = vset.pattern.permute.xlu0 2
        %1933 = vperm.xlu0 %1932, %v907
        %v1934 = vpop.permute.xlu0 %1933
        %1936 = vset.pattern.permute.xlu0 2
        %1937 = vperm.xlu0 %1936, %v908
        %v1938 = vpop.permute.xlu0 %1937
        %1940 = vset.pattern.permute.xlu0 2
        %1941 = vperm.xlu0 %1940, %v909
        %v1942 = vpop.permute.xlu0 %1941
        %1944 = vset.pattern.permute.xlu0 2
        %1945 = vperm.xlu0 %1944, %v910
        %v1946 = vpop.permute.xlu0 %1945
        %1948 = vset.pattern.permute.xlu0 2
        %1949 = vperm.xlu0 %1948, %v911
        %v1950 = vpop.permute.xlu0 %1949
        %1952 = vset.pattern.permute.xlu0 2
        %1953 = vperm.xlu0 %1952, %v912
        %v1954 = vpop.permute.xlu0 %1953
        %1956 = vset.pattern.permute.xlu0 2
        %1957 = vperm.xlu0 %1956, %v913
        %v1958 = vpop.permute.xlu0 %1957
        %1960 = vset.pattern.permute.xlu0 2
        %1961 = vperm.xlu0 %1960, %v914
        %v1962 = vpop.permute.xlu0 %1961
        %1964 = vset.pattern.permute.xlu0 2
        %1965 = vperm.xlu0 %1964, %v915
        %v1966 = vpop.permute.xlu0 %1965
        %1968 = vset.pattern.permute.xlu0 2
        %1969 = vperm.xlu0 %1968, %v916
        %v1970 = vpop.permute.xlu0 %1969
        %1972 = vset.pattern.permute.xlu0 2
        %1973 = vperm.xlu0 %1972, %v917
        %v1974 = vpop.permute.xlu0 %1973
        %1976 = vset.pattern.permute.xlu0 2
        %1977 = vperm.xlu0 %1976, %v918
        %v1978 = vpop.permute.xlu0 %1977
        %1980 = vset.pattern.permute.xlu0 2
        %1981 = vperm.xlu0 %1980, %v919
        %v1982 = vpop.permute.xlu0 %1981
        %1984 = vset.pattern.permute.xlu0 2
        %1985 = vperm.xlu0 %1984, %v920
        %v1986 = vpop.permute.xlu0 %1985
        %1988 = vset.pattern.permute.xlu0 2
        %1989 = vperm.xlu0 %1988, %v921
        %v1990 = vpop.permute.xlu0 %1989
        %1992 = vset.pattern.permute.xlu0 2
        %1993 = vperm.xlu0 %1992, %v922
        %v1994 = vpop.permute.xlu0 %1993
        %1996 = vset.pattern.permute.xlu0 2
        %1997 = vperm.xlu0 %1996, %v923
        %v1998 = vpop.permute.xlu0 %1997
        %2000 = vset.pattern.permute.xlu0 2
        %2001 = vperm.xlu0 %2000, %v924
        %v2002 = vpop.permute.xlu0 %2001
        %2004 = vset.pattern.permute.xlu0 2
        %2005 = vperm.xlu0 %2004, %v925
        %v2006 = vpop.permute.xlu0 %2005
        %2008 = vset.pattern.permute.xlu0 2
        %2009 = vperm.xlu0 %2008, %v926
        %v2010 = vpop.permute.xlu0 %2009
        %2012 = vset.pattern.permute.xlu0 2
        %2013 = vperm.xlu0 %2012, %v927
        %v2014 = vpop.permute.xlu0 %2013
        %2016 = vset.pattern.permute.xlu0 2
        %2017 = vperm.xlu0 %2016, %v928
        %v2018 = vpop.permute.xlu0 %2017
        %2020 = vset.pattern.permute.xlu0 2
        %2021 = vperm.xlu0 %2020, %v929
        %v2022 = vpop.permute.xlu0 %2021
        %2024 = vset.pattern.permute.xlu0 2
        %2025 = vperm.xlu0 %2024, %v930
        %v2026 = vpop.permute.xlu0 %2025
        %2028 = vset.pattern.permute.xlu0 2
        %2029 = vperm.xlu0 %2028, %v931
        %v2030 = vpop.permute.xlu0 %2029
        %2032 = vset.pattern.permute.xlu0 2
        %2033 = vperm.xlu0 %2032, %v932
        %v2034 = vpop.permute.xlu0 %2033
        %2036 = vset.pattern.permute.xlu0 2
        %2037 = vperm.xlu0 %2036, %v933
        %v2038 = vpop.permute.xlu0 %2037
        %2040 = vset.pattern.permute.xlu0 2
        %2041 = vperm.xlu0 %2040, %v934
        %v2042 = vpop.permute.xlu0 %2041
        %2044 = vset.pattern.permute.xlu0 2
        %2045 = vperm.xlu0 %2044, %v935
        %v2046 = vpop.permute.xlu0 %2045
        %2048 = vset.pattern.permute.xlu0 2
        %2049 = vperm.xlu0 %2048, %v936
        %v2050 = vpop.permute.xlu0 %2049
        %2052 = vset.pattern.permute.xlu0 2
        %2053 = vperm.xlu0 %2052, %v937
        %v2054 = vpop.permute.xlu0 %2053
        %v2056 = vmul.f32 %v1896, %v1930
        %v2057 = vmul.f32 %v1897, %v1934
        %v2058 = vmul.f32 %v1898, %v1938
        %v2059 = vmul.f32 %v1899, %v1942
        %v2060 = vmul.f32 %v1900, %v1946
        %v2061 = vmul.f32 %v1901, %v1950
        %v2062 = vmul.f32 %v1902, %v1954
        %v2063 = vmul.f32 %v1903, %v1958
        %v2064 = vmul.f32 %v1904, %v1962
        %v2065 = vmul.f32 %v1905, %v1966
        %v2066 = vmul.f32 %v1906, %v1970
        %v2067 = vmul.f32 %v1907, %v1974
        %v2068 = vmul.f32 %v1908, %v1978
        %v2069 = vmul.f32 %v1909, %v1982
        %v2070 = vmul.f32 %v1910, %v1986
        %v2071 = vmul.f32 %v1911, %v1990
        %v2072 = vmul.f32 %v1912, %v1994
        %v2073 = vmul.f32 %v1913, %v1998
        %v2074 = vmul.f32 %v1914, %v2002
        %v2075 = vmul.f32 %v1915, %v2006
        %v2076 = vmul.f32 %v1916, %v2010
        %v2077 = vmul.f32 %v1917, %v2014
        %v2078 = vmul.f32 %v1918, %v2018
        %v2079 = vmul.f32 %v1919, %v2022
        %v2080 = vmul.f32 %v1920, %v2026
        %v2081 = vmul.f32 %v1921, %v2030
        %v2082 = vmul.f32 %v1922, %v2034
        %v2083 = vmul.f32 %v1923, %v2038
        %v2084 = vmul.f32 %v1924, %v2042
        %v2085 = vmul.f32 %v1925, %v2046
        %v2086 = vmul.f32 %v1926, %v2050
        %v2087 = vmul.f32 %v1927, %v2054
        %v2089 = vsel %vm1022, %v2056, 0
        %v2092 = vsel %vm1022, %v2057, 0
        %v2095 = vsel %vm1022, %v2058, 0
        %v2098 = vsel %vm1022, %v2059, 0
        %v2101 = vsel %vm1022, %v2060, 0
        %v2104 = vsel %vm1022, %v2061, 0
        %v2107 = vsel %vm1022, %v2062, 0
        %v2110 = vsel %vm1022, %v2063, 0
        %v2113 = vsel %vm1022, %v2064, 0
        %v2116 = vsel %vm1022, %v2065, 0
        %v2119 = vsel %vm1022, %v2066, 0
        %v2122 = vsel %vm1022, %v2067, 0
        %v2125 = vsel %vm1022, %v2068, 0
        %v2128 = vsel %vm1022, %v2069, 0
        %v2131 = vsel %vm1022, %v2070, 0
        %v2134 = vsel %vm1022, %v2071, 0
        %v2137 = vsel %vm1022, %v2072, 0
        %v2140 = vsel %vm1022, %v2073, 0
        %v2143 = vsel %vm1022, %v2074, 0
        %v2146 = vsel %vm1022, %v2075, 0
        %v2149 = vsel %vm1022, %v2076, 0
        %v2152 = vsel %vm1022, %v2077, 0
        %v2155 = vsel %vm1022, %v2078, 0
        %v2158 = vsel %vm1022, %v2079, 0
        %v2161 = vsel %vm1022, %v2080, 0
        %v2164 = vsel %vm1022, %v2081, 0
        %v2167 = vsel %vm1022, %v2082, 0
        %v2170 = vsel %vm1022, %v2083, 0
        %v2173 = vsel %vm1022, %v2084, 0
        %v2176 = vsel %vm1022, %v2085, 0
        %v2179 = vsel %vm1022, %v2086, 0
        %v2182 = vsel %vm1022, %v2087, 0
        %2184 = vmatpush.msra.mxu0 0.0
        %2185 = vmatpush.msra.mxu0 0.0
        %2186 = vmatpush.msra.mxu0 0.0
        %2187 = vmatpush.msra.mxu0 0.0
        %2188 = vmatpush.msra.mxu0 0.0
        %2189 = vmatpush.msra.mxu0 0.0
        %2190 = vmatpush.msra.mxu0 0.0
        %2191 = vmatpush.msra.mxu0 0.0
        %2192 = vmatpush.msra.mxu0 0.0
        %2193 = vmatpush.msra.mxu0 0.0
        %2194 = vmatpush.msra.mxu0 0.0
        %2195 = vmatpush.msra.mxu0 0.0
        %2196 = vmatpush.msra.mxu0 %v959
        %2197 = vmatpush.msra.mxu0 %v958
        %2198 = vmatpush.msra.mxu0 %v957
        %2199 = vmatpush.msra.mxu0 %v956
        %2200 = vmatmul.f32.gmra.mxu0 %v2089
        %v2201 = vpop.f32.mrf.mxu0
        %v2202 = vadd.f32 0.0, %v2201
        %2203 = vmatmul.f32.gmra.mxu0 %v2092
        %v2204 = vpop.f32.mrf.mxu0
        %v2205 = vadd.f32 0.0, %v2204
        %2206 = vmatmul.f32.gmra.mxu0 %v2095
        %v2207 = vpop.f32.mrf.mxu0
        %v2208 = vadd.f32 0.0, %v2207
        %2209 = vmatmul.f32.gmra.mxu0 %v2098
        %v2210 = vpop.f32.mrf.mxu0
        %v2211 = vadd.f32 0.0, %v2210
        %2212 = vmatmul.f32.gmra.mxu0 %v2101
        %v2213 = vpop.f32.mrf.mxu0
        %v2214 = vadd.f32 0.0, %v2213
        %2215 = vmatmul.f32.gmra.mxu0 %v2104
        %v2216 = vpop.f32.mrf.mxu0
        %v2217 = vadd.f32 0.0, %v2216
        %2218 = vmatmul.f32.gmra.mxu0 %v2107
        %v2219 = vpop.f32.mrf.mxu0
        %v2220 = vadd.f32 0.0, %v2219
        %2221 = vmatmul.f32.gmra.mxu0 %v2110
        %v2222 = vpop.f32.mrf.mxu0
        %v2223 = vadd.f32 0.0, %v2222
        %2224 = vmatmul.f32.gmra.mxu0 %v2113
        %v2225 = vpop.f32.mrf.mxu0
        %v2226 = vadd.f32 0.0, %v2225
        %2227 = vmatmul.f32.gmra.mxu0 %v2116
        %v2228 = vpop.f32.mrf.mxu0
        %v2229 = vadd.f32 0.0, %v2228
        %2230 = vmatmul.f32.gmra.mxu0 %v2119
        %v2231 = vpop.f32.mrf.mxu0
        %v2232 = vadd.f32 0.0, %v2231
        %2233 = vmatmul.f32.gmra.mxu0 %v2122
        %v2234 = vpop.f32.mrf.mxu0
        %v2235 = vadd.f32 0.0, %v2234
        %2236 = vmatmul.f32.gmra.mxu0 %v2125
        %v2237 = vpop.f32.mrf.mxu0
        %v2238 = vadd.f32 0.0, %v2237
        %2239 = vmatmul.f32.gmra.mxu0 %v2128
        %v2240 = vpop.f32.mrf.mxu0
        %v2241 = vadd.f32 0.0, %v2240
        %2242 = vmatmul.f32.gmra.mxu0 %v2131
        %v2243 = vpop.f32.mrf.mxu0
        %v2244 = vadd.f32 0.0, %v2243
        %2245 = vmatmul.f32.gmra.mxu0 %v2134
        %v2246 = vpop.f32.mrf.mxu0
        %v2247 = vadd.f32 0.0, %v2246
        %2248 = vmatmul.f32.gmra.mxu0 %v2137
        %v2249 = vpop.f32.mrf.mxu0
        %v2250 = vadd.f32 0.0, %v2249
        %2251 = vmatmul.f32.gmra.mxu0 %v2140
        %v2252 = vpop.f32.mrf.mxu0
        %v2253 = vadd.f32 0.0, %v2252
        %2254 = vmatmul.f32.gmra.mxu0 %v2143
        %v2255 = vpop.f32.mrf.mxu0
        %v2256 = vadd.f32 0.0, %v2255
        %2257 = vmatmul.f32.gmra.mxu0 %v2146
        %v2258 = vpop.f32.mrf.mxu0
        %v2259 = vadd.f32 0.0, %v2258
        %2260 = vmatmul.f32.gmra.mxu0 %v2149
        %v2261 = vpop.f32.mrf.mxu0
        %v2262 = vadd.f32 0.0, %v2261
        %2263 = vmatmul.f32.gmra.mxu0 %v2152
        %v2264 = vpop.f32.mrf.mxu0
        %v2265 = vadd.f32 0.0, %v2264
        %2266 = vmatmul.f32.gmra.mxu0 %v2155
        %v2267 = vpop.f32.mrf.mxu0
        %v2268 = vadd.f32 0.0, %v2267
        %2269 = vmatmul.f32.gmra.mxu0 %v2158
        %v2270 = vpop.f32.mrf.mxu0
        %v2271 = vadd.f32 0.0, %v2270
        %2272 = vmatmul.f32.gmra.mxu0 %v2161
        %v2273 = vpop.f32.mrf.mxu0
        %v2274 = vadd.f32 0.0, %v2273
        %2275 = vmatmul.f32.gmra.mxu0 %v2164
        %v2276 = vpop.f32.mrf.mxu0
        %v2277 = vadd.f32 0.0, %v2276
        %2278 = vmatmul.f32.gmra.mxu0 %v2167
        %v2279 = vpop.f32.mrf.mxu0
        %v2280 = vadd.f32 0.0, %v2279
        %2281 = vmatmul.f32.gmra.mxu0 %v2170
        %v2282 = vpop.f32.mrf.mxu0
        %v2283 = vadd.f32 0.0, %v2282
        %2284 = vmatmul.f32.gmra.mxu0 %v2173
        %v2285 = vpop.f32.mrf.mxu0
        %v2286 = vadd.f32 0.0, %v2285
        %2287 = vmatmul.f32.gmra.mxu0 %v2176
        %v2288 = vpop.f32.mrf.mxu0
        %v2289 = vadd.f32 0.0, %v2288
        %2290 = vmatmul.f32.gmra.mxu0 %v2179
        %v2291 = vpop.f32.mrf.mxu0
        %v2292 = vadd.f32 0.0, %v2291
        %2293 = vmatmul.f32.gmra.mxu0 %v2182
        %v2294 = vpop.f32.mrf.mxu0
        %v2295 = vadd.f32 0.0, %v2294
        %2296 = vdwg.mxu0
        %v2297 = vadd.f32 %v1801, %v2202
        %v2298 = vadd.f32 %v1804, %v2205
        %v2299 = vadd.f32 %v1807, %v2208
        %v2300 = vadd.f32 %v1810, %v2211
        %v2301 = vadd.f32 %v1813, %v2214
        %v2302 = vadd.f32 %v1816, %v2217
        %v2303 = vadd.f32 %v1819, %v2220
        %v2304 = vadd.f32 %v1822, %v2223
        %v2305 = vadd.f32 %v1825, %v2226
        %v2306 = vadd.f32 %v1828, %v2229
        %v2307 = vadd.f32 %v1831, %v2232
        %v2308 = vadd.f32 %v1834, %v2235
        %v2309 = vadd.f32 %v1837, %v2238
        %v2310 = vadd.f32 %v1840, %v2241
        %v2311 = vadd.f32 %v1843, %v2244
        %v2312 = vadd.f32 %v1846, %v2247
        %v2313 = vadd.f32 %v1849, %v2250
        %v2314 = vadd.f32 %v1852, %v2253
        %v2315 = vadd.f32 %v1855, %v2256
        %v2316 = vadd.f32 %v1858, %v2259
        %v2317 = vadd.f32 %v1861, %v2262
        %v2318 = vadd.f32 %v1864, %v2265
        %v2319 = vadd.f32 %v1867, %v2268
        %v2320 = vadd.f32 %v1870, %v2271
        %v2321 = vadd.f32 %v1873, %v2274
        %v2322 = vadd.f32 %v1876, %v2277
        %v2323 = vadd.f32 %v1879, %v2280
        %v2324 = vadd.f32 %v1882, %v2283
        %v2325 = vadd.f32 %v1885, %v2286
        %v2326 = vadd.f32 %v1888, %v2289
        %v2327 = vadd.f32 %v1891, %v2292
        %v2328 = vadd.f32 %v1894, %v2295
        %v2329 = vld [vmem:[#allocation2 + $0x10] sm:$0xff]
        %v2330 = vld [vmem:[#allocation2 + $0x18] sm:$0xff]
        %v2331 = vld [vmem:[#allocation2 + $0x20] sm:$0xff]
        %v2332 = vld [vmem:[#allocation2 + $0x28] sm:$0xff]
        %v2333 = vld [vmem:[#allocation2 + $0x30] sm:$0xff]
        %v2334 = vld [vmem:[#allocation2 + $0x38] sm:$0xff]
        %v2335 = vld [vmem:[#allocation2 + $0x40] sm:$0xff]
        %v2336 = vld [vmem:[#allocation2 + $0x48] sm:$0xff]
        %v2337 = vld [vmem:[#allocation2 + $0x50] sm:$0xff]
        %v2338 = vld [vmem:[#allocation2 + $0x58] sm:$0xff]
        %v2339 = vld [vmem:[#allocation2 + $0x60] sm:$0xff]
        %v2340 = vld [vmem:[#allocation2 + $0x68] sm:$0xff]
        %v2341 = vld [vmem:[#allocation2 + $0x70] sm:$0xff]
        %v2342 = vld [vmem:[#allocation2 + $0x78] sm:$0xff]
        %v2343 = vld [vmem:[#allocation2 + $0x80] sm:$0xff]
        %v2344 = vld [vmem:[#allocation2 + $0x88] sm:$0xff]
        %v2345 = vld [vmem:[#allocation2 + $0x90] sm:$0xff]
        %v2346 = vld [vmem:[#allocation2 + $0x98] sm:$0xff]
        %v2347 = vld [vmem:[#allocation2 + $0xa0] sm:$0xff]
        %v2348 = vld [vmem:[#allocation2 + $0xa8] sm:$0xff]
        %v2349 = vld [vmem:[#allocation2 + $0xb0] sm:$0xff]
        %v2350 = vld [vmem:[#allocation2 + $0xb8] sm:$0xff]
        %v2351 = vld [vmem:[#allocation2 + $0xc0] sm:$0xff]
        %v2352 = vld [vmem:[#allocation2 + $0xc8] sm:$0xff]
        %v2353 = vld [vmem:[#allocation2 + $0xd0] sm:$0xff]
        %v2354 = vld [vmem:[#allocation2 + $0xd8] sm:$0xff]
        %v2355 = vld [vmem:[#allocation2 + $0xe0] sm:$0xff]
        %v2356 = vld [vmem:[#allocation2 + $0xe8] sm:$0xff]
        %v2357 = vld [vmem:[#allocation2 + $0xf0] sm:$0xff]
        %v2358 = vld [vmem:[#allocation2 + $0xf8] sm:$0xff]
        %v2359 = vld [vmem:[#allocation2 + $0x100] sm:$0xff]
        %v2360 = vld [vmem:[#allocation2 + $0x108] sm:$0xff]
        %2361 = vset.pattern.permute.xlu0 3
        %2362 = vperm.xlu0 %2361, %v906
        %v2363 = vpop.permute.xlu0 %2362
        %2365 = vset.pattern.permute.xlu0 3
        %2366 = vperm.xlu0 %2365, %v907
        %v2367 = vpop.permute.xlu0 %2366
        %2369 = vset.pattern.permute.xlu0 3
        %2370 = vperm.xlu0 %2369, %v908
        %v2371 = vpop.permute.xlu0 %2370
        %2373 = vset.pattern.permute.xlu0 3
        %2374 = vperm.xlu0 %2373, %v909
        %v2375 = vpop.permute.xlu0 %2374
        %2377 = vset.pattern.permute.xlu0 3
        %2378 = vperm.xlu0 %2377, %v910
        %v2379 = vpop.permute.xlu0 %2378
        %2381 = vset.pattern.permute.xlu0 3
        %2382 = vperm.xlu0 %2381, %v911
        %v2383 = vpop.permute.xlu0 %2382
        %2385 = vset.pattern.permute.xlu0 3
        %2386 = vperm.xlu0 %2385, %v912
        %v2387 = vpop.permute.xlu0 %2386
        %2389 = vset.pattern.permute.xlu0 3
        %2390 = vperm.xlu0 %2389, %v913
        %v2391 = vpop.permute.xlu0 %2390
        %2393 = vset.pattern.permute.xlu0 3
        %2394 = vperm.xlu0 %2393, %v914
        %v2395 = vpop.permute.xlu0 %2394
        %2397 = vset.pattern.permute.xlu0 3
        %2398 = vperm.xlu0 %2397, %v915
        %v2399 = vpop.permute.xlu0 %2398
        %2401 = vset.pattern.permute.xlu0 3
        %2402 = vperm.xlu0 %2401, %v916
        %v2403 = vpop.permute.xlu0 %2402
        %2405 = vset.pattern.permute.xlu0 3
        %2406 = vperm.xlu0 %2405, %v917
        %v2407 = vpop.permute.xlu0 %2406
        %2409 = vset.pattern.permute.xlu0 3
        %2410 = vperm.xlu0 %2409, %v918
        %v2411 = vpop.permute.xlu0 %2410
        %2413 = vset.pattern.permute.xlu0 3
        %2414 = vperm.xlu0 %2413, %v919
        %v2415 = vpop.permute.xlu0 %2414
        %2417 = vset.pattern.permute.xlu0 3
        %2418 = vperm.xlu0 %2417, %v920
        %v2419 = vpop.permute.xlu0 %2418
        %2421 = vset.pattern.permute.xlu0 3
        %2422 = vperm.xlu0 %2421, %v921
        %v2423 = vpop.permute.xlu0 %2422
        %2425 = vset.pattern.permute.xlu0 3
        %2426 = vperm.xlu0 %2425, %v922
        %v2427 = vpop.permute.xlu0 %2426
        %2429 = vset.pattern.permute.xlu0 3
        %2430 = vperm.xlu0 %2429, %v923
        %v2431 = vpop.permute.xlu0 %2430
        %2433 = vset.pattern.permute.xlu0 3
        %2434 = vperm.xlu0 %2433, %v924
        %v2435 = vpop.permute.xlu0 %2434
        %2437 = vset.pattern.permute.xlu0 3
        %2438 = vperm.xlu0 %2437, %v925
        %v2439 = vpop.permute.xlu0 %2438
        %2441 = vset.pattern.permute.xlu0 3
        %2442 = vperm.xlu0 %2441, %v926
        %v2443 = vpop.permute.xlu0 %2442
        %2445 = vset.pattern.permute.xlu0 3
        %2446 = vperm.xlu0 %2445, %v927
        %v2447 = vpop.permute.xlu0 %2446
        %2449 = vset.pattern.permute.xlu0 3
        %2450 = vperm.xlu0 %2449, %v928
        %v2451 = vpop.permute.xlu0 %2450
        %2453 = vset.pattern.permute.xlu0 3
        %2454 = vperm.xlu0 %2453, %v929
        %v2455 = vpop.permute.xlu0 %2454
        %2457 = vset.pattern.permute.xlu0 3
        %2458 = vperm.xlu0 %2457, %v930
        %v2459 = vpop.permute.xlu0 %2458
        %2461 = vset.pattern.permute.xlu0 3
        %2462 = vperm.xlu0 %2461, %v931
        %v2463 = vpop.permute.xlu0 %2462
        %2465 = vset.pattern.permute.xlu0 3
        %2466 = vperm.xlu0 %2465, %v932
        %v2467 = vpop.permute.xlu0 %2466
        %2469 = vset.pattern.permute.xlu0 3
        %2470 = vperm.xlu0 %2469, %v933
        %v2471 = vpop.permute.xlu0 %2470
        %2473 = vset.pattern.permute.xlu0 3
        %2474 = vperm.xlu0 %2473, %v934
        %v2475 = vpop.permute.xlu0 %2474
        %2477 = vset.pattern.permute.xlu0 3
        %2478 = vperm.xlu0 %2477, %v935
        %v2479 = vpop.permute.xlu0 %2478
        %2481 = vset.pattern.permute.xlu0 3
        %2482 = vperm.xlu0 %2481, %v936
        %v2483 = vpop.permute.xlu0 %2482
        %2485 = vset.pattern.permute.xlu0 3
        %2486 = vperm.xlu0 %2485, %v937
        %v2487 = vpop.permute.xlu0 %2486
        %v2489 = vmul.f32 %v2329, %v2363
        %v2490 = vmul.f32 %v2330, %v2367
        %v2491 = vmul.f32 %v2331, %v2371
        %v2492 = vmul.f32 %v2332, %v2375
        %v2493 = vmul.f32 %v2333, %v2379
        %v2494 = vmul.f32 %v2334, %v2383
        %v2495 = vmul.f32 %v2335, %v2387
        %v2496 = vmul.f32 %v2336, %v2391
        %v2497 = vmul.f32 %v2337, %v2395
        %v2498 = vmul.f32 %v2338, %v2399
        %v2499 = vmul.f32 %v2339, %v2403
        %v2500 = vmul.f32 %v2340, %v2407
        %v2501 = vmul.f32 %v2341, %v2411
        %v2502 = vmul.f32 %v2342, %v2415
        %v2503 = vmul.f32 %v2343, %v2419
        %v2504 = vmul.f32 %v2344, %v2423
        %v2505 = vmul.f32 %v2345, %v2427
        %v2506 = vmul.f32 %v2346, %v2431
        %v2507 = vmul.f32 %v2347, %v2435
        %v2508 = vmul.f32 %v2348, %v2439
        %v2509 = vmul.f32 %v2349, %v2443
        %v2510 = vmul.f32 %v2350, %v2447
        %v2511 = vmul.f32 %v2351, %v2451
        %v2512 = vmul.f32 %v2352, %v2455
        %v2513 = vmul.f32 %v2353, %v2459
        %v2514 = vmul.f32 %v2354, %v2463
        %v2515 = vmul.f32 %v2355, %v2467
        %v2516 = vmul.f32 %v2356, %v2471
        %v2517 = vmul.f32 %v2357, %v2475
        %v2518 = vmul.f32 %v2358, %v2479
        %v2519 = vmul.f32 %v2359, %v2483
        %v2520 = vmul.f32 %v2360, %v2487
        %v2522 = vsel %vm1022, %v2489, 0
        %v2525 = vsel %vm1022, %v2490, 0
        %v2528 = vsel %vm1022, %v2491, 0
        %v2531 = vsel %vm1022, %v2492, 0
        %v2534 = vsel %vm1022, %v2493, 0
        %v2537 = vsel %vm1022, %v2494, 0
        %v2540 = vsel %vm1022, %v2495, 0
        %v2543 = vsel %vm1022, %v2496, 0
        %v2546 = vsel %vm1022, %v2497, 0
        %v2549 = vsel %vm1022, %v2498, 0
        %v2552 = vsel %vm1022, %v2499, 0
        %v2555 = vsel %vm1022, %v2500, 0
        %v2558 = vsel %vm1022, %v2501, 0
        %v2561 = vsel %vm1022, %v2502, 0
        %v2564 = vsel %vm1022, %v2503, 0
        %v2567 = vsel %vm1022, %v2504, 0
        %v2570 = vsel %vm1022, %v2505, 0
        %v2573 = vsel %vm1022, %v2506, 0
        %v2576 = vsel %vm1022, %v2507, 0
        %v2579 = vsel %vm1022, %v2508, 0
        %v2582 = vsel %vm1022, %v2509, 0
        %v2585 = vsel %vm1022, %v2510, 0
        %v2588 = vsel %vm1022, %v2511, 0
        %v2591 = vsel %vm1022, %v2512, 0
        %v2594 = vsel %vm1022, %v2513, 0
        %v2597 = vsel %vm1022, %v2514, 0
        %v2600 = vsel %vm1022, %v2515, 0
        %v2603 = vsel %vm1022, %v2516, 0
        %v2606 = vsel %vm1022, %v2517, 0
        %v2609 = vsel %vm1022, %v2518, 0
        %v2612 = vsel %vm1022, %v2519, 0
        %v2615 = vsel %vm1022, %v2520, 0
        %2617 = vmatpush.msra.mxu0 0.0
        %2618 = vmatpush.msra.mxu0 0.0
        %2619 = vmatpush.msra.mxu0 0.0
        %2620 = vmatpush.msra.mxu0 0.0
        %2621 = vmatpush.msra.mxu0 0.0
        %2622 = vmatpush.msra.mxu0 0.0
        %2623 = vmatpush.msra.mxu0 0.0
        %2624 = vmatpush.msra.mxu0 0.0
        %2625 = vmatpush.msra.mxu0 0.0
        %2626 = vmatpush.msra.mxu0 0.0
        %2627 = vmatpush.msra.mxu0 0.0
        %2628 = vmatpush.msra.mxu0 0.0
        %2629 = vmatpush.msra.mxu0 %v963
        %2630 = vmatpush.msra.mxu0 %v962
        %2631 = vmatpush.msra.mxu0 %v961
        %2632 = vmatpush.msra.mxu0 %v960
        %2633 = vmatmul.f32.gmra.mxu0 %v2522
        %v2634 = vpop.f32.mrf.mxu0
        %v2635 = vadd.f32 0.0, %v2634
        %2636 = vmatmul.f32.gmra.mxu0 %v2525
        %v2637 = vpop.f32.mrf.mxu0
        %v2638 = vadd.f32 0.0, %v2637
        %2639 = vmatmul.f32.gmra.mxu0 %v2528
        %v2640 = vpop.f32.mrf.mxu0
        %v2641 = vadd.f32 0.0, %v2640
        %2642 = vmatmul.f32.gmra.mxu0 %v2531
        %v2643 = vpop.f32.mrf.mxu0
        %v2644 = vadd.f32 0.0, %v2643
        %2645 = vmatmul.f32.gmra.mxu0 %v2534
        %v2646 = vpop.f32.mrf.mxu0
        %v2647 = vadd.f32 0.0, %v2646
        %2648 = vmatmul.f32.gmra.mxu0 %v2537
        %v2649 = vpop.f32.mrf.mxu0
        %v2650 = vadd.f32 0.0, %v2649
        %2651 = vmatmul.f32.gmra.mxu0 %v2540
        %v2652 = vpop.f32.mrf.mxu0
        %v2653 = vadd.f32 0.0, %v2652
        %2654 = vmatmul.f32.gmra.mxu0 %v2543
        %v2655 = vpop.f32.mrf.mxu0
        %v2656 = vadd.f32 0.0, %v2655
        %2657 = vmatmul.f32.gmra.mxu0 %v2546
        %v2658 = vpop.f32.mrf.mxu0
        %v2659 = vadd.f32 0.0, %v2658
        %2660 = vmatmul.f32.gmra.mxu0 %v2549
        %v2661 = vpop.f32.mrf.mxu0
        %v2662 = vadd.f32 0.0, %v2661
        %2663 = vmatmul.f32.gmra.mxu0 %v2552
        %v2664 = vpop.f32.mrf.mxu0
        %v2665 = vadd.f32 0.0, %v2664
        %2666 = vmatmul.f32.gmra.mxu0 %v2555
        %v2667 = vpop.f32.mrf.mxu0
        %v2668 = vadd.f32 0.0, %v2667
        %2669 = vmatmul.f32.gmra.mxu0 %v2558
        %v2670 = vpop.f32.mrf.mxu0
        %v2671 = vadd.f32 0.0, %v2670
        %2672 = vmatmul.f32.gmra.mxu0 %v2561
        %v2673 = vpop.f32.mrf.mxu0
        %v2674 = vadd.f32 0.0, %v2673
        %2675 = vmatmul.f32.gmra.mxu0 %v2564
        %v2676 = vpop.f32.mrf.mxu0
        %v2677 = vadd.f32 0.0, %v2676
        %2678 = vmatmul.f32.gmra.mxu0 %v2567
        %v2679 = vpop.f32.mrf.mxu0
        %v2680 = vadd.f32 0.0, %v2679
        %2681 = vmatmul.f32.gmra.mxu0 %v2570
        %v2682 = vpop.f32.mrf.mxu0
        %v2683 = vadd.f32 0.0, %v2682
        %2684 = vmatmul.f32.gmra.mxu0 %v2573
        %v2685 = vpop.f32.mrf.mxu0
        %v2686 = vadd.f32 0.0, %v2685
        %2687 = vmatmul.f32.gmra.mxu0 %v2576
        %v2688 = vpop.f32.mrf.mxu0
        %v2689 = vadd.f32 0.0, %v2688
        %2690 = vmatmul.f32.gmra.mxu0 %v2579
        %v2691 = vpop.f32.mrf.mxu0
        %v2692 = vadd.f32 0.0, %v2691
        %2693 = vmatmul.f32.gmra.mxu0 %v2582
        %v2694 = vpop.f32.mrf.mxu0
        %v2695 = vadd.f32 0.0, %v2694
        %2696 = vmatmul.f32.gmra.mxu0 %v2585
        %v2697 = vpop.f32.mrf.mxu0
        %v2698 = vadd.f32 0.0, %v2697
        %2699 = vmatmul.f32.gmra.mxu0 %v2588
        %v2700 = vpop.f32.mrf.mxu0
        %v2701 = vadd.f32 0.0, %v2700
        %2702 = vmatmul.f32.gmra.mxu0 %v2591
        %v2703 = vpop.f32.mrf.mxu0
        %v2704 = vadd.f32 0.0, %v2703
        %2705 = vmatmul.f32.gmra.mxu0 %v2594
        %v2706 = vpop.f32.mrf.mxu0
        %v2707 = vadd.f32 0.0, %v2706
        %2708 = vmatmul.f32.gmra.mxu0 %v2597
        %v2709 = vpop.f32.mrf.mxu0
        %v2710 = vadd.f32 0.0, %v2709
        %2711 = vmatmul.f32.gmra.mxu0 %v2600
        %v2712 = vpop.f32.mrf.mxu0
        %v2713 = vadd.f32 0.0, %v2712
        %2714 = vmatmul.f32.gmra.mxu0 %v2603
        %v2715 = vpop.f32.mrf.mxu0
        %v2716 = vadd.f32 0.0, %v2715
        %2717 = vmatmul.f32.gmra.mxu0 %v2606
        %v2718 = vpop.f32.mrf.mxu0
        %v2719 = vadd.f32 0.0, %v2718
        %2720 = vmatmul.f32.gmra.mxu0 %v2609
        %v2721 = vpop.f32.mrf.mxu0
        %v2722 = vadd.f32 0.0, %v2721
        %2723 = vmatmul.f32.gmra.mxu0 %v2612
        %v2724 = vpop.f32.mrf.mxu0
        %v2725 = vadd.f32 0.0, %v2724
        %2726 = vmatmul.f32.gmra.mxu0 %v2615
        %v2727 = vpop.f32.mrf.mxu0
        %v2728 = vadd.f32 0.0, %v2727
        %2729 = vdwg.mxu0
        %v2730 = vadd.f32 %v2297, %v2635
        %v2731 = vadd.f32 %v2298, %v2638
        %v2732 = vadd.f32 %v2299, %v2641
        %v2733 = vadd.f32 %v2300, %v2644
        %v2734 = vadd.f32 %v2301, %v2647
        %v2735 = vadd.f32 %v2302, %v2650
        %v2736 = vadd.f32 %v2303, %v2653
        %v2737 = vadd.f32 %v2304, %v2656
        %v2738 = vadd.f32 %v2305, %v2659
        %v2739 = vadd.f32 %v2306, %v2662
        %v2740 = vadd.f32 %v2307, %v2665
        %v2741 = vadd.f32 %v2308, %v2668
        %v2742 = vadd.f32 %v2309, %v2671
        %v2743 = vadd.f32 %v2310, %v2674
        %v2744 = vadd.f32 %v2311, %v2677
        %v2745 = vadd.f32 %v2312, %v2680
        %v2746 = vadd.f32 %v2313, %v2683
        %v2747 = vadd.f32 %v2314, %v2686
        %v2748 = vadd.f32 %v2315, %v2689
        %v2749 = vadd.f32 %v2316, %v2692
        %v2750 = vadd.f32 %v2317, %v2695
        %v2751 = vadd.f32 %v2318, %v2698
        %v2752 = vadd.f32 %v2319, %v2701
        %v2753 = vadd.f32 %v2320, %v2704
        %v2754 = vadd.f32 %v2321, %v2707
        %v2755 = vadd.f32 %v2322, %v2710
        %v2756 = vadd.f32 %v2323, %v2713
        %v2757 = vadd.f32 %v2324, %v2716
        %v2758 = vadd.f32 %v2325, %v2719
        %v2759 = vadd.f32 %v2326, %v2722
        %v2760 = vadd.f32 %v2327, %v2725
        %v2761 = vadd.f32 %v2328, %v2728
        %v2762 = vld [vmem:[#allocation2 + $0x11] sm:$0xff]
        %v2763 = vld [vmem:[#allocation2 + $0x19] sm:$0xff]
        %v2764 = vld [vmem:[#allocation2 + $0x21] sm:$0xff]
        %v2765 = vld [vmem:[#allocation2 + $0x29] sm:$0xff]
        %v2766 = vld [vmem:[#allocation2 + $0x31] sm:$0xff]
        %v2767 = vld [vmem:[#allocation2 + $0x39] sm:$0xff]
        %v2768 = vld [vmem:[#allocation2 + $0x41] sm:$0xff]
        %v2769 = vld [vmem:[#allocation2 + $0x49] sm:$0xff]
        %v2770 = vld [vmem:[#allocation2 + $0x51] sm:$0xff]
        %v2771 = vld [vmem:[#allocation2 + $0x59] sm:$0xff]
        %v2772 = vld [vmem:[#allocation2 + $0x61] sm:$0xff]
        %v2773 = vld [vmem:[#allocation2 + $0x69] sm:$0xff]
        %v2774 = vld [vmem:[#allocation2 + $0x71] sm:$0xff]
        %v2775 = vld [vmem:[#allocation2 + $0x79] sm:$0xff]
        %v2776 = vld [vmem:[#allocation2 + $0x81] sm:$0xff]
        %v2777 = vld [vmem:[#allocation2 + $0x89] sm:$0xff]
        %v2778 = vld [vmem:[#allocation2 + $0x91] sm:$0xff]
        %v2779 = vld [vmem:[#allocation2 + $0x99] sm:$0xff]
        %v2780 = vld [vmem:[#allocation2 + $0xa1] sm:$0xff]
        %v2781 = vld [vmem:[#allocation2 + $0xa9] sm:$0xff]
        %v2782 = vld [vmem:[#allocation2 + $0xb1] sm:$0xff]
        %v2783 = vld [vmem:[#allocation2 + $0xb9] sm:$0xff]
        %v2784 = vld [vmem:[#allocation2 + $0xc1] sm:$0xff]
        %v2785 = vld [vmem:[#allocation2 + $0xc9] sm:$0xff]
        %v2786 = vld [vmem:[#allocation2 + $0xd1] sm:$0xff]
        %v2787 = vld [vmem:[#allocation2 + $0xd9] sm:$0xff]
        %v2788 = vld [vmem:[#allocation2 + $0xe1] sm:$0xff]
        %v2789 = vld [vmem:[#allocation2 + $0xe9] sm:$0xff]
        %v2790 = vld [vmem:[#allocation2 + $0xf1] sm:$0xff]
        %v2791 = vld [vmem:[#allocation2 + $0xf9] sm:$0xff]
        %v2792 = vld [vmem:[#allocation2 + $0x101] sm:$0xff]
        %v2793 = vld [vmem:[#allocation2 + $0x109] sm:$0xff]
        %2794 = vset.pattern.permute.xlu0 4
        %2795 = vperm.xlu0 %2794, %v906
        %v2796 = vpop.permute.xlu0 %2795
        %2798 = vset.pattern.permute.xlu0 4
        %2799 = vperm.xlu0 %2798, %v907
        %v2800 = vpop.permute.xlu0 %2799
        %2802 = vset.pattern.permute.xlu0 4
        %2803 = vperm.xlu0 %2802, %v908
        %v2804 = vpop.permute.xlu0 %2803
        %2806 = vset.pattern.permute.xlu0 4
        %2807 = vperm.xlu0 %2806, %v909
        %v2808 = vpop.permute.xlu0 %2807
        %2810 = vset.pattern.permute.xlu0 4
        %2811 = vperm.xlu0 %2810, %v910
        %v2812 = vpop.permute.xlu0 %2811
        %2814 = vset.pattern.permute.xlu0 4
        %2815 = vperm.xlu0 %2814, %v911
        %v2816 = vpop.permute.xlu0 %2815
        %2818 = vset.pattern.permute.xlu0 4
        %2819 = vperm.xlu0 %2818, %v912
        %v2820 = vpop.permute.xlu0 %2819
        %2822 = vset.pattern.permute.xlu0 4
        %2823 = vperm.xlu0 %2822, %v913
        %v2824 = vpop.permute.xlu0 %2823
        %2826 = vset.pattern.permute.xlu0 4
        %2827 = vperm.xlu0 %2826, %v914
        %v2828 = vpop.permute.xlu0 %2827
        %2830 = vset.pattern.permute.xlu0 4
        %2831 = vperm.xlu0 %2830, %v915
        %v2832 = vpop.permute.xlu0 %2831
        %2834 = vset.pattern.permute.xlu0 4
        %2835 = vperm.xlu0 %2834, %v916
        %v2836 = vpop.permute.xlu0 %2835
        %2838 = vset.pattern.permute.xlu0 4
        %2839 = vperm.xlu0 %2838, %v917
        %v2840 = vpop.permute.xlu0 %2839
        %2842 = vset.pattern.permute.xlu0 4
        %2843 = vperm.xlu0 %2842, %v918
        %v2844 = vpop.permute.xlu0 %2843
        %2846 = vset.pattern.permute.xlu0 4
        %2847 = vperm.xlu0 %2846, %v919
        %v2848 = vpop.permute.xlu0 %2847
        %2850 = vset.pattern.permute.xlu0 4
        %2851 = vperm.xlu0 %2850, %v920
        %v2852 = vpop.permute.xlu0 %2851
        %2854 = vset.pattern.permute.xlu0 4
        %2855 = vperm.xlu0 %2854, %v921
        %v2856 = vpop.permute.xlu0 %2855
        %2858 = vset.pattern.permute.xlu0 4
        %2859 = vperm.xlu0 %2858, %v922
        %v2860 = vpop.permute.xlu0 %2859
        %2862 = vset.pattern.permute.xlu0 4
        %2863 = vperm.xlu0 %2862, %v923
        %v2864 = vpop.permute.xlu0 %2863
        %2866 = vset.pattern.permute.xlu0 4
        %2867 = vperm.xlu0 %2866, %v924
        %v2868 = vpop.permute.xlu0 %2867
        %2870 = vset.pattern.permute.xlu0 4
        %2871 = vperm.xlu0 %2870, %v925
        %v2872 = vpop.permute.xlu0 %2871
        %2874 = vset.pattern.permute.xlu0 4
        %2875 = vperm.xlu0 %2874, %v926
        %v2876 = vpop.permute.xlu0 %2875
        %2878 = vset.pattern.permute.xlu0 4
        %2879 = vperm.xlu0 %2878, %v927
        %v2880 = vpop.permute.xlu0 %2879
        %2882 = vset.pattern.permute.xlu0 4
        %2883 = vperm.xlu0 %2882, %v928
        %v2884 = vpop.permute.xlu0 %2883
        %2886 = vset.pattern.permute.xlu0 4
        %2887 = vperm.xlu0 %2886, %v929
        %v2888 = vpop.permute.xlu0 %2887
        %2890 = vset.pattern.permute.xlu0 4
        %2891 = vperm.xlu0 %2890, %v930
        %v2892 = vpop.permute.xlu0 %2891
        %2894 = vset.pattern.permute.xlu0 4
        %2895 = vperm.xlu0 %2894, %v931
        %v2896 = vpop.permute.xlu0 %2895
        %2898 = vset.pattern.permute.xlu0 4
        %2899 = vperm.xlu0 %2898, %v932
        %v2900 = vpop.permute.xlu0 %2899
        %2902 = vset.pattern.permute.xlu0 4
        %2903 = vperm.xlu0 %2902, %v933
        %v2904 = vpop.permute.xlu0 %2903
        %2906 = vset.pattern.permute.xlu0 4
        %2907 = vperm.xlu0 %2906, %v934
        %v2908 = vpop.permute.xlu0 %2907
        %2910 = vset.pattern.permute.xlu0 4
        %2911 = vperm.xlu0 %2910, %v935
        %v2912 = vpop.permute.xlu0 %2911
        %2914 = vset.pattern.permute.xlu0 4
        %2915 = vperm.xlu0 %2914, %v936
        %v2916 = vpop.permute.xlu0 %2915
        %2918 = vset.pattern.permute.xlu0 4
        %2919 = vperm.xlu0 %2918, %v937
        %v2920 = vpop.permute.xlu0 %2919
        %v2922 = vmul.f32 %v2762, %v2796
        %v2923 = vmul.f32 %v2763, %v2800
        %v2924 = vmul.f32 %v2764, %v2804
        %v2925 = vmul.f32 %v2765, %v2808
        %v2926 = vmul.f32 %v2766, %v2812
        %v2927 = vmul.f32 %v2767, %v2816
        %v2928 = vmul.f32 %v2768, %v2820
        %v2929 = vmul.f32 %v2769, %v2824
        %v2930 = vmul.f32 %v2770, %v2828
        %v2931 = vmul.f32 %v2771, %v2832
        %v2932 = vmul.f32 %v2772, %v2836
        %v2933 = vmul.f32 %v2773, %v2840
        %v2934 = vmul.f32 %v2774, %v2844
        %v2935 = vmul.f32 %v2775, %v2848
        %v2936 = vmul.f32 %v2776, %v2852
        %v2937 = vmul.f32 %v2777, %v2856
        %v2938 = vmul.f32 %v2778, %v2860
        %v2939 = vmul.f32 %v2779, %v2864
        %v2940 = vmul.f32 %v2780, %v2868
        %v2941 = vmul.f32 %v2781, %v2872
        %v2942 = vmul.f32 %v2782, %v2876
        %v2943 = vmul.f32 %v2783, %v2880
        %v2944 = vmul.f32 %v2784, %v2884
        %v2945 = vmul.f32 %v2785, %v2888
        %v2946 = vmul.f32 %v2786, %v2892
        %v2947 = vmul.f32 %v2787, %v2896
        %v2948 = vmul.f32 %v2788, %v2900
        %v2949 = vmul.f32 %v2789, %v2904
        %v2950 = vmul.f32 %v2790, %v2908
        %v2951 = vmul.f32 %v2791, %v2912
        %v2952 = vmul.f32 %v2792, %v2916
        %v2953 = vmul.f32 %v2793, %v2920
        %v2955 = vsel %vm1022, %v2922, 0
        %v2958 = vsel %vm1022, %v2923, 0
        %v2961 = vsel %vm1022, %v2924, 0
        %v2964 = vsel %vm1022, %v2925, 0
        %v2967 = vsel %vm1022, %v2926, 0
        %v2970 = vsel %vm1022, %v2927, 0
        %v2973 = vsel %vm1022, %v2928, 0
        %v2976 = vsel %vm1022, %v2929, 0
        %v2979 = vsel %vm1022, %v2930, 0
        %v2982 = vsel %vm1022, %v2931, 0
        %v2985 = vsel %vm1022, %v2932, 0
        %v2988 = vsel %vm1022, %v2933, 0
        %v2991 = vsel %vm1022, %v2934, 0
        %v2994 = vsel %vm1022, %v2935, 0
        %v2997 = vsel %vm1022, %v2936, 0
        %v3000 = vsel %vm1022, %v2937, 0
        %v3003 = vsel %vm1022, %v2938, 0
        %v3006 = vsel %vm1022, %v2939, 0
        %v3009 = vsel %vm1022, %v2940, 0
        %v3012 = vsel %vm1022, %v2941, 0
        %v3015 = vsel %vm1022, %v2942, 0
        %v3018 = vsel %vm1022, %v2943, 0
        %v3021 = vsel %vm1022, %v2944, 0
        %v3024 = vsel %vm1022, %v2945, 0
        %v3027 = vsel %vm1022, %v2946, 0
        %v3030 = vsel %vm1022, %v2947, 0
        %v3033 = vsel %vm1022, %v2948, 0
        %v3036 = vsel %vm1022, %v2949, 0
        %v3039 = vsel %vm1022, %v2950, 0
        %v3042 = vsel %vm1022, %v2951, 0
        %v3045 = vsel %vm1022, %v2952, 0
        %v3048 = vsel %vm1022, %v2953, 0
        %3050 = vmatpush.msra.mxu0 0.0
        %3051 = vmatpush.msra.mxu0 0.0
        %3052 = vmatpush.msra.mxu0 0.0
        %3053 = vmatpush.msra.mxu0 0.0
        %3054 = vmatpush.msra.mxu0 0.0
        %3055 = vmatpush.msra.mxu0 0.0
        %3056 = vmatpush.msra.mxu0 0.0
        %3057 = vmatpush.msra.mxu0 0.0
        %3058 = vmatpush.msra.mxu0 0.0
        %3059 = vmatpush.msra.mxu0 0.0
        %3060 = vmatpush.msra.mxu0 0.0
        %3061 = vmatpush.msra.mxu0 0.0
        %3062 = vmatpush.msra.mxu0 %v967
        %3063 = vmatpush.msra.mxu0 %v966
        %3064 = vmatpush.msra.mxu0 %v965
        %3065 = vmatpush.msra.mxu0 %v964
        %3066 = vmatmul.f32.gmra.mxu0 %v2955
        %v3067 = vpop.f32.mrf.mxu0
        %v3068 = vadd.f32 0.0, %v3067
        %3069 = vmatmul.f32.gmra.mxu0 %v2958
        %v3070 = vpop.f32.mrf.mxu0
        %v3071 = vadd.f32 0.0, %v3070
        %3072 = vmatmul.f32.gmra.mxu0 %v2961
        %v3073 = vpop.f32.mrf.mxu0
        %v3074 = vadd.f32 0.0, %v3073
        %3075 = vmatmul.f32.gmra.mxu0 %v2964
        %v3076 = vpop.f32.mrf.mxu0
        %v3077 = vadd.f32 0.0, %v3076
        %3078 = vmatmul.f32.gmra.mxu0 %v2967
        %v3079 = vpop.f32.mrf.mxu0
        %v3080 = vadd.f32 0.0, %v3079
        %3081 = vmatmul.f32.gmra.mxu0 %v2970
        %v3082 = vpop.f32.mrf.mxu0
        %v3083 = vadd.f32 0.0, %v3082
        %3084 = vmatmul.f32.gmra.mxu0 %v2973
        %v3085 = vpop.f32.mrf.mxu0
        %v3086 = vadd.f32 0.0, %v3085
        %3087 = vmatmul.f32.gmra.mxu0 %v2976
        %v3088 = vpop.f32.mrf.mxu0
        %v3089 = vadd.f32 0.0, %v3088
        %3090 = vmatmul.f32.gmra.mxu0 %v2979
        %v3091 = vpop.f32.mrf.mxu0
        %v3092 = vadd.f32 0.0, %v3091
        %3093 = vmatmul.f32.gmra.mxu0 %v2982
        %v3094 = vpop.f32.mrf.mxu0
        %v3095 = vadd.f32 0.0, %v3094
        %3096 = vmatmul.f32.gmra.mxu0 %v2985
        %v3097 = vpop.f32.mrf.mxu0
        %v3098 = vadd.f32 0.0, %v3097
        %3099 = vmatmul.f32.gmra.mxu0 %v2988
        %v3100 = vpop.f32.mrf.mxu0
        %v3101 = vadd.f32 0.0, %v3100
        %3102 = vmatmul.f32.gmra.mxu0 %v2991
        %v3103 = vpop.f32.mrf.mxu0
        %v3104 = vadd.f32 0.0, %v3103
        %3105 = vmatmul.f32.gmra.mxu0 %v2994
        %v3106 = vpop.f32.mrf.mxu0
        %v3107 = vadd.f32 0.0, %v3106
        %3108 = vmatmul.f32.gmra.mxu0 %v2997
        %v3109 = vpop.f32.mrf.mxu0
        %v3110 = vadd.f32 0.0, %v3109
        %3111 = vmatmul.f32.gmra.mxu0 %v3000
        %v3112 = vpop.f32.mrf.mxu0
        %v3113 = vadd.f32 0.0, %v3112
        %3114 = vmatmul.f32.gmra.mxu0 %v3003
        %v3115 = vpop.f32.mrf.mxu0
        %v3116 = vadd.f32 0.0, %v3115
        %3117 = vmatmul.f32.gmra.mxu0 %v3006
        %v3118 = vpop.f32.mrf.mxu0
        %v3119 = vadd.f32 0.0, %v3118
        %3120 = vmatmul.f32.gmra.mxu0 %v3009
        %v3121 = vpop.f32.mrf.mxu0
        %v3122 = vadd.f32 0.0, %v3121
        %3123 = vmatmul.f32.gmra.mxu0 %v3012
        %v3124 = vpop.f32.mrf.mxu0
        %v3125 = vadd.f32 0.0, %v3124
        %3126 = vmatmul.f32.gmra.mxu0 %v3015
        %v3127 = vpop.f32.mrf.mxu0
        %v3128 = vadd.f32 0.0, %v3127
        %3129 = vmatmul.f32.gmra.mxu0 %v3018
        %v3130 = vpop.f32.mrf.mxu0
        %v3131 = vadd.f32 0.0, %v3130
        %3132 = vmatmul.f32.gmra.mxu0 %v3021
        %v3133 = vpop.f32.mrf.mxu0
        %v3134 = vadd.f32 0.0, %v3133
        %3135 = vmatmul.f32.gmra.mxu0 %v3024
        %v3136 = vpop.f32.mrf.mxu0
        %v3137 = vadd.f32 0.0, %v3136
        %3138 = vmatmul.f32.gmra.mxu0 %v3027
        %v3139 = vpop.f32.mrf.mxu0
        %v3140 = vadd.f32 0.0, %v3139
        %3141 = vmatmul.f32.gmra.mxu0 %v3030
        %v3142 = vpop.f32.mrf.mxu0
        %v3143 = vadd.f32 0.0, %v3142
        %3144 = vmatmul.f32.gmra.mxu0 %v3033
        %v3145 = vpop.f32.mrf.mxu0
        %v3146 = vadd.f32 0.0, %v3145
        %3147 = vmatmul.f32.gmra.mxu0 %v3036
        %v3148 = vpop.f32.mrf.mxu0
        %v3149 = vadd.f32 0.0, %v3148
        %3150 = vmatmul.f32.gmra.mxu0 %v3039
        %v3151 = vpop.f32.mrf.mxu0
        %v3152 = vadd.f32 0.0, %v3151
        %3153 = vmatmul.f32.gmra.mxu0 %v3042
        %v3154 = vpop.f32.mrf.mxu0
        %v3155 = vadd.f32 0.0, %v3154
        %3156 = vmatmul.f32.gmra.mxu0 %v3045
        %v3157 = vpop.f32.mrf.mxu0
        %v3158 = vadd.f32 0.0, %v3157
        %3159 = vmatmul.f32.gmra.mxu0 %v3048
        %v3160 = vpop.f32.mrf.mxu0
        %v3161 = vadd.f32 0.0, %v3160
        %3162 = vdwg.mxu0
        %v3163 = vadd.f32 %v2730, %v3068
        %v3164 = vadd.f32 %v2731, %v3071
        %v3165 = vadd.f32 %v2732, %v3074
        %v3166 = vadd.f32 %v2733, %v3077
        %v3167 = vadd.f32 %v2734, %v3080
        %v3168 = vadd.f32 %v2735, %v3083
        %v3169 = vadd.f32 %v2736, %v3086
        %v3170 = vadd.f32 %v2737, %v3089
        %v3171 = vadd.f32 %v2738, %v3092
        %v3172 = vadd.f32 %v2739, %v3095
        %v3173 = vadd.f32 %v2740, %v3098
        %v3174 = vadd.f32 %v2741, %v3101
        %v3175 = vadd.f32 %v2742, %v3104
        %v3176 = vadd.f32 %v2743, %v3107
        %v3177 = vadd.f32 %v2744, %v3110
        %v3178 = vadd.f32 %v2745, %v3113
        %v3179 = vadd.f32 %v2746, %v3116
        %v3180 = vadd.f32 %v2747, %v3119
        %v3181 = vadd.f32 %v2748, %v3122
        %v3182 = vadd.f32 %v2749, %v3125
        %v3183 = vadd.f32 %v2750, %v3128
        %v3184 = vadd.f32 %v2751, %v3131
        %v3185 = vadd.f32 %v2752, %v3134
        %v3186 = vadd.f32 %v2753, %v3137
        %v3187 = vadd.f32 %v2754, %v3140
        %v3188 = vadd.f32 %v2755, %v3143
        %v3189 = vadd.f32 %v2756, %v3146
        %v3190 = vadd.f32 %v2757, %v3149
        %v3191 = vadd.f32 %v2758, %v3152
        %v3192 = vadd.f32 %v2759, %v3155
        %v3193 = vadd.f32 %v2760, %v3158
        %v3194 = vadd.f32 %v2761, %v3161
        %v3195 = vld [vmem:[#allocation2 + $0x12] sm:$0xff]
        %v3196 = vld [vmem:[#allocation2 + $0x1a] sm:$0xff]
        %v3197 = vld [vmem:[#allocation2 + $0x22] sm:$0xff]
        %v3198 = vld [vmem:[#allocation2 + $0x2a] sm:$0xff]
        %v3199 = vld [vmem:[#allocation2 + $0x32] sm:$0xff]
        %v3200 = vld [vmem:[#allocation2 + $0x3a] sm:$0xff]
        %v3201 = vld [vmem:[#allocation2 + $0x42] sm:$0xff]
        %v3202 = vld [vmem:[#allocation2 + $0x4a] sm:$0xff]
        %v3203 = vld [vmem:[#allocation2 + $0x52] sm:$0xff]
        %v3204 = vld [vmem:[#allocation2 + $0x5a] sm:$0xff]
        %v3205 = vld [vmem:[#allocation2 + $0x62] sm:$0xff]
        %v3206 = vld [vmem:[#allocation2 + $0x6a] sm:$0xff]
        %v3207 = vld [vmem:[#allocation2 + $0x72] sm:$0xff]
        %v3208 = vld [vmem:[#allocation2 + $0x7a] sm:$0xff]
        %v3209 = vld [vmem:[#allocation2 + $0x82] sm:$0xff]
        %v3210 = vld [vmem:[#allocation2 + $0x8a] sm:$0xff]
        %v3211 = vld [vmem:[#allocation2 + $0x92] sm:$0xff]
        %v3212 = vld [vmem:[#allocation2 + $0x9a] sm:$0xff]
        %v3213 = vld [vmem:[#allocation2 + $0xa2] sm:$0xff]
        %v3214 = vld [vmem:[#allocation2 + $0xaa] sm:$0xff]
        %v3215 = vld [vmem:[#allocation2 + $0xb2] sm:$0xff]
        %v3216 = vld [vmem:[#allocation2 + $0xba] sm:$0xff]
        %v3217 = vld [vmem:[#allocation2 + $0xc2] sm:$0xff]
        %v3218 = vld [vmem:[#allocation2 + $0xca] sm:$0xff]
        %v3219 = vld [vmem:[#allocation2 + $0xd2] sm:$0xff]
        %v3220 = vld [vmem:[#allocation2 + $0xda] sm:$0xff]
        %v3221 = vld [vmem:[#allocation2 + $0xe2] sm:$0xff]
        %v3222 = vld [vmem:[#allocation2 + $0xea] sm:$0xff]
        %v3223 = vld [vmem:[#allocation2 + $0xf2] sm:$0xff]
        %v3224 = vld [vmem:[#allocation2 + $0xfa] sm:$0xff]
        %v3225 = vld [vmem:[#allocation2 + $0x102] sm:$0xff]
        %v3226 = vld [vmem:[#allocation2 + $0x10a] sm:$0xff]
        %3227 = vset.pattern.permute.xlu0 5
        %3228 = vperm.xlu0 %3227, %v906
        %v3229 = vpop.permute.xlu0 %3228
        %3231 = vset.pattern.permute.xlu0 5
        %3232 = vperm.xlu0 %3231, %v907
        %v3233 = vpop.permute.xlu0 %3232
        %3235 = vset.pattern.permute.xlu0 5
        %3236 = vperm.xlu0 %3235, %v908
        %v3237 = vpop.permute.xlu0 %3236
        %3239 = vset.pattern.permute.xlu0 5
        %3240 = vperm.xlu0 %3239, %v909
        %v3241 = vpop.permute.xlu0 %3240
        %3243 = vset.pattern.permute.xlu0 5
        %3244 = vperm.xlu0 %3243, %v910
        %v3245 = vpop.permute.xlu0 %3244
        %3247 = vset.pattern.permute.xlu0 5
        %3248 = vperm.xlu0 %3247, %v911
        %v3249 = vpop.permute.xlu0 %3248
        %3251 = vset.pattern.permute.xlu0 5
        %3252 = vperm.xlu0 %3251, %v912
        %v3253 = vpop.permute.xlu0 %3252
        %3255 = vset.pattern.permute.xlu0 5
        %3256 = vperm.xlu0 %3255, %v913
        %v3257 = vpop.permute.xlu0 %3256
        %3259 = vset.pattern.permute.xlu0 5
        %3260 = vperm.xlu0 %3259, %v914
        %v3261 = vpop.permute.xlu0 %3260
        %3263 = vset.pattern.permute.xlu0 5
        %3264 = vperm.xlu0 %3263, %v915
        %v3265 = vpop.permute.xlu0 %3264
        %3267 = vset.pattern.permute.xlu0 5
        %3268 = vperm.xlu0 %3267, %v916
        %v3269 = vpop.permute.xlu0 %3268
        %3271 = vset.pattern.permute.xlu0 5
        %3272 = vperm.xlu0 %3271, %v917
        %v3273 = vpop.permute.xlu0 %3272
        %3275 = vset.pattern.permute.xlu0 5
        %3276 = vperm.xlu0 %3275, %v918
        %v3277 = vpop.permute.xlu0 %3276
        %3279 = vset.pattern.permute.xlu0 5
        %3280 = vperm.xlu0 %3279, %v919
        %v3281 = vpop.permute.xlu0 %3280
        %3283 = vset.pattern.permute.xlu0 5
        %3284 = vperm.xlu0 %3283, %v920
        %v3285 = vpop.permute.xlu0 %3284
        %3287 = vset.pattern.permute.xlu0 5
        %3288 = vperm.xlu0 %3287, %v921
        %v3289 = vpop.permute.xlu0 %3288
        %3291 = vset.pattern.permute.xlu0 5
        %3292 = vperm.xlu0 %3291, %v922
        %v3293 = vpop.permute.xlu0 %3292
        %3295 = vset.pattern.permute.xlu0 5
        %3296 = vperm.xlu0 %3295, %v923
        %v3297 = vpop.permute.xlu0 %3296
        %3299 = vset.pattern.permute.xlu0 5
        %3300 = vperm.xlu0 %3299, %v924
        %v3301 = vpop.permute.xlu0 %3300
        %3303 = vset.pattern.permute.xlu0 5
        %3304 = vperm.xlu0 %3303, %v925
        %v3305 = vpop.permute.xlu0 %3304
        %3307 = vset.pattern.permute.xlu0 5
        %3308 = vperm.xlu0 %3307, %v926
        %v3309 = vpop.permute.xlu0 %3308
        %3311 = vset.pattern.permute.xlu0 5
        %3312 = vperm.xlu0 %3311, %v927
        %v3313 = vpop.permute.xlu0 %3312
        %3315 = vset.pattern.permute.xlu0 5
        %3316 = vperm.xlu0 %3315, %v928
        %v3317 = vpop.permute.xlu0 %3316
        %3319 = vset.pattern.permute.xlu0 5
        %3320 = vperm.xlu0 %3319, %v929
        %v3321 = vpop.permute.xlu0 %3320
        %3323 = vset.pattern.permute.xlu0 5
        %3324 = vperm.xlu0 %3323, %v930
        %v3325 = vpop.permute.xlu0 %3324
        %3327 = vset.pattern.permute.xlu0 5
        %3328 = vperm.xlu0 %3327, %v931
        %v3329 = vpop.permute.xlu0 %3328
        %3331 = vset.pattern.permute.xlu0 5
        %3332 = vperm.xlu0 %3331, %v932
        %v3333 = vpop.permute.xlu0 %3332
        %3335 = vset.pattern.permute.xlu0 5
        %3336 = vperm.xlu0 %3335, %v933
        %v3337 = vpop.permute.xlu0 %3336
        %3339 = vset.pattern.permute.xlu0 5
        %3340 = vperm.xlu0 %3339, %v934
        %v3341 = vpop.permute.xlu0 %3340
        %3343 = vset.pattern.permute.xlu0 5
        %3344 = vperm.xlu0 %3343, %v935
        %v3345 = vpop.permute.xlu0 %3344
        %3347 = vset.pattern.permute.xlu0 5
        %3348 = vperm.xlu0 %3347, %v936
        %v3349 = vpop.permute.xlu0 %3348
        %3351 = vset.pattern.permute.xlu0 5
        %3352 = vperm.xlu0 %3351, %v937
        %v3353 = vpop.permute.xlu0 %3352
        %v3355 = vmul.f32 %v3195, %v3229
        %v3356 = vmul.f32 %v3196, %v3233
        %v3357 = vmul.f32 %v3197, %v3237
        %v3358 = vmul.f32 %v3198, %v3241
        %v3359 = vmul.f32 %v3199, %v3245
        %v3360 = vmul.f32 %v3200, %v3249
        %v3361 = vmul.f32 %v3201, %v3253
        %v3362 = vmul.f32 %v3202, %v3257
        %v3363 = vmul.f32 %v3203, %v3261
        %v3364 = vmul.f32 %v3204, %v3265
        %v3365 = vmul.f32 %v3205, %v3269
        %v3366 = vmul.f32 %v3206, %v3273
        %v3367 = vmul.f32 %v3207, %v3277
        %v3368 = vmul.f32 %v3208, %v3281
        %v3369 = vmul.f32 %v3209, %v3285
        %v3370 = vmul.f32 %v3210, %v3289
        %v3371 = vmul.f32 %v3211, %v3293
        %v3372 = vmul.f32 %v3212, %v3297
        %v3373 = vmul.f32 %v3213, %v3301
        %v3374 = vmul.f32 %v3214, %v3305
        %v3375 = vmul.f32 %v3215, %v3309
        %v3376 = vmul.f32 %v3216, %v3313
        %v3377 = vmul.f32 %v3217, %v3317
        %v3378 = vmul.f32 %v3218, %v3321
        %v3379 = vmul.f32 %v3219, %v3325
        %v3380 = vmul.f32 %v3220, %v3329
        %v3381 = vmul.f32 %v3221, %v3333
        %v3382 = vmul.f32 %v3222, %v3337
        %v3383 = vmul.f32 %v3223, %v3341
        %v3384 = vmul.f32 %v3224, %v3345
        %v3385 = vmul.f32 %v3225, %v3349
        %v3386 = vmul.f32 %v3226, %v3353
        %v3388 = vsel %vm1022, %v3355, 0
        %v3391 = vsel %vm1022, %v3356, 0
        %v3394 = vsel %vm1022, %v3357, 0
        %v3397 = vsel %vm1022, %v3358, 0
        %v3400 = vsel %vm1022, %v3359, 0
        %v3403 = vsel %vm1022, %v3360, 0
        %v3406 = vsel %vm1022, %v3361, 0
        %v3409 = vsel %vm1022, %v3362, 0
        %v3412 = vsel %vm1022, %v3363, 0
        %v3415 = vsel %vm1022, %v3364, 0
        %v3418 = vsel %vm1022, %v3365, 0
        %v3421 = vsel %vm1022, %v3366, 0
        %v3424 = vsel %vm1022, %v3367, 0
        %v3427 = vsel %vm1022, %v3368, 0
        %v3430 = vsel %vm1022, %v3369, 0
        %v3433 = vsel %vm1022, %v3370, 0
        %v3436 = vsel %vm1022, %v3371, 0
        %v3439 = vsel %vm1022, %v3372, 0
        %v3442 = vsel %vm1022, %v3373, 0
        %v3445 = vsel %vm1022, %v3374, 0
        %v3448 = vsel %vm1022, %v3375, 0
        %v3451 = vsel %vm1022, %v3376, 0
        %v3454 = vsel %vm1022, %v3377, 0
        %v3457 = vsel %vm1022, %v3378, 0
        %v3460 = vsel %vm1022, %v3379, 0
        %v3463 = vsel %vm1022, %v3380, 0
        %v3466 = vsel %vm1022, %v3381, 0
        %v3469 = vsel %vm1022, %v3382, 0
        %v3472 = vsel %vm1022, %v3383, 0
        %v3475 = vsel %vm1022, %v3384, 0
        %v3478 = vsel %vm1022, %v3385, 0
        %v3481 = vsel %vm1022, %v3386, 0
        %3483 = vmatpush.msra.mxu0 0.0
        %3484 = vmatpush.msra.mxu0 0.0
        %3485 = vmatpush.msra.mxu0 0.0
        %3486 = vmatpush.msra.mxu0 0.0
        %3487 = vmatpush.msra.mxu0 0.0
        %3488 = vmatpush.msra.mxu0 0.0
        %3489 = vmatpush.msra.mxu0 0.0
        %3490 = vmatpush.msra.mxu0 0.0
        %3491 = vmatpush.msra.mxu0 0.0
        %3492 = vmatpush.msra.mxu0 0.0
        %3493 = vmatpush.msra.mxu0 0.0
        %3494 = vmatpush.msra.mxu0 0.0
        %3495 = vmatpush.msra.mxu0 %v971
        %3496 = vmatpush.msra.mxu0 %v970
        %3497 = vmatpush.msra.mxu0 %v969
        %3498 = vmatpush.msra.mxu0 %v968
        %3499 = vmatmul.f32.gmra.mxu0 %v3388
        %v3500 = vpop.f32.mrf.mxu0
        %v3501 = vadd.f32 0.0, %v3500
        %3502 = vmatmul.f32.gmra.mxu0 %v3391
        %v3503 = vpop.f32.mrf.mxu0
        %v3504 = vadd.f32 0.0, %v3503
        %3505 = vmatmul.f32.gmra.mxu0 %v3394
        %v3506 = vpop.f32.mrf.mxu0
        %v3507 = vadd.f32 0.0, %v3506
        %3508 = vmatmul.f32.gmra.mxu0 %v3397
        %v3509 = vpop.f32.mrf.mxu0
        %v3510 = vadd.f32 0.0, %v3509
        %3511 = vmatmul.f32.gmra.mxu0 %v3400
        %v3512 = vpop.f32.mrf.mxu0
        %v3513 = vadd.f32 0.0, %v3512
        %3514 = vmatmul.f32.gmra.mxu0 %v3403
        %v3515 = vpop.f32.mrf.mxu0
        %v3516 = vadd.f32 0.0, %v3515
        %3517 = vmatmul.f32.gmra.mxu0 %v3406
        %v3518 = vpop.f32.mrf.mxu0
        %v3519 = vadd.f32 0.0, %v3518
        %3520 = vmatmul.f32.gmra.mxu0 %v3409
        %v3521 = vpop.f32.mrf.mxu0
        %v3522 = vadd.f32 0.0, %v3521
        %3523 = vmatmul.f32.gmra.mxu0 %v3412
        %v3524 = vpop.f32.mrf.mxu0
        %v3525 = vadd.f32 0.0, %v3524
        %3526 = vmatmul.f32.gmra.mxu0 %v3415
        %v3527 = vpop.f32.mrf.mxu0
        %v3528 = vadd.f32 0.0, %v3527
        %3529 = vmatmul.f32.gmra.mxu0 %v3418
        %v3530 = vpop.f32.mrf.mxu0
        %v3531 = vadd.f32 0.0, %v3530
        %3532 = vmatmul.f32.gmra.mxu0 %v3421
        %v3533 = vpop.f32.mrf.mxu0
        %v3534 = vadd.f32 0.0, %v3533
        %3535 = vmatmul.f32.gmra.mxu0 %v3424
        %v3536 = vpop.f32.mrf.mxu0
        %v3537 = vadd.f32 0.0, %v3536
        %3538 = vmatmul.f32.gmra.mxu0 %v3427
        %v3539 = vpop.f32.mrf.mxu0
        %v3540 = vadd.f32 0.0, %v3539
        %3541 = vmatmul.f32.gmra.mxu0 %v3430
        %v3542 = vpop.f32.mrf.mxu0
        %v3543 = vadd.f32 0.0, %v3542
        %3544 = vmatmul.f32.gmra.mxu0 %v3433
        %v3545 = vpop.f32.mrf.mxu0
        %v3546 = vadd.f32 0.0, %v3545
        %3547 = vmatmul.f32.gmra.mxu0 %v3436
        %v3548 = vpop.f32.mrf.mxu0
        %v3549 = vadd.f32 0.0, %v3548
        %3550 = vmatmul.f32.gmra.mxu0 %v3439
        %v3551 = vpop.f32.mrf.mxu0
        %v3552 = vadd.f32 0.0, %v3551
        %3553 = vmatmul.f32.gmra.mxu0 %v3442
        %v3554 = vpop.f32.mrf.mxu0
        %v3555 = vadd.f32 0.0, %v3554
        %3556 = vmatmul.f32.gmra.mxu0 %v3445
        %v3557 = vpop.f32.mrf.mxu0
        %v3558 = vadd.f32 0.0, %v3557
        %3559 = vmatmul.f32.gmra.mxu0 %v3448
        %v3560 = vpop.f32.mrf.mxu0
        %v3561 = vadd.f32 0.0, %v3560
        %3562 = vmatmul.f32.gmra.mxu0 %v3451
        %v3563 = vpop.f32.mrf.mxu0
        %v3564 = vadd.f32 0.0, %v3563
        %3565 = vmatmul.f32.gmra.mxu0 %v3454
        %v3566 = vpop.f32.mrf.mxu0
        %v3567 = vadd.f32 0.0, %v3566
        %3568 = vmatmul.f32.gmra.mxu0 %v3457
        %v3569 = vpop.f32.mrf.mxu0
        %v3570 = vadd.f32 0.0, %v3569
        %3571 = vmatmul.f32.gmra.mxu0 %v3460
        %v3572 = vpop.f32.mrf.mxu0
        %v3573 = vadd.f32 0.0, %v3572
        %3574 = vmatmul.f32.gmra.mxu0 %v3463
        %v3575 = vpop.f32.mrf.mxu0
        %v3576 = vadd.f32 0.0, %v3575
        %3577 = vmatmul.f32.gmra.mxu0 %v3466
        %v3578 = vpop.f32.mrf.mxu0
        %v3579 = vadd.f32 0.0, %v3578
        %3580 = vmatmul.f32.gmra.mxu0 %v3469
        %v3581 = vpop.f32.mrf.mxu0
        %v3582 = vadd.f32 0.0, %v3581
        %3583 = vmatmul.f32.gmra.mxu0 %v3472
        %v3584 = vpop.f32.mrf.mxu0
        %v3585 = vadd.f32 0.0, %v3584
        %3586 = vmatmul.f32.gmra.mxu0 %v3475
        %v3587 = vpop.f32.mrf.mxu0
        %v3588 = vadd.f32 0.0, %v3587
        %3589 = vmatmul.f32.gmra.mxu0 %v3478
        %v3590 = vpop.f32.mrf.mxu0
        %v3591 = vadd.f32 0.0, %v3590
        %3592 = vmatmul.f32.gmra.mxu0 %v3481
        %v3593 = vpop.f32.mrf.mxu0
        %v3594 = vadd.f32 0.0, %v3593
        %3595 = vdwg.mxu0
        %v3596 = vadd.f32 %v3163, %v3501
        %v3597 = vadd.f32 %v3164, %v3504
        %v3598 = vadd.f32 %v3165, %v3507
        %v3599 = vadd.f32 %v3166, %v3510
        %v3600 = vadd.f32 %v3167, %v3513
        %v3601 = vadd.f32 %v3168, %v3516
        %v3602 = vadd.f32 %v3169, %v3519
        %v3603 = vadd.f32 %v3170, %v3522
        %v3604 = vadd.f32 %v3171, %v3525
        %v3605 = vadd.f32 %v3172, %v3528
        %v3606 = vadd.f32 %v3173, %v3531
        %v3607 = vadd.f32 %v3174, %v3534
        %v3608 = vadd.f32 %v3175, %v3537
        %v3609 = vadd.f32 %v3176, %v3540
        %v3610 = vadd.f32 %v3177, %v3543
        %v3611 = vadd.f32 %v3178, %v3546
        %v3612 = vadd.f32 %v3179, %v3549
        %v3613 = vadd.f32 %v3180, %v3552
        %v3614 = vadd.f32 %v3181, %v3555
        %v3615 = vadd.f32 %v3182, %v3558
        %v3616 = vadd.f32 %v3183, %v3561
        %v3617 = vadd.f32 %v3184, %v3564
        %v3618 = vadd.f32 %v3185, %v3567
        %v3619 = vadd.f32 %v3186, %v3570
        %v3620 = vadd.f32 %v3187, %v3573
        %v3621 = vadd.f32 %v3188, %v3576
        %v3622 = vadd.f32 %v3189, %v3579
        %v3623 = vadd.f32 %v3190, %v3582
        %v3624 = vadd.f32 %v3191, %v3585
        %v3625 = vadd.f32 %v3192, %v3588
        %v3626 = vadd.f32 %v3193, %v3591
        %v3627 = vadd.f32 %v3194, %v3594
        %v3628 = vld [vmem:[#allocation2 + $0x20] sm:$0xff]
        %v3629 = vld [vmem:[#allocation2 + $0x28] sm:$0xff]
        %v3630 = vld [vmem:[#allocation2 + $0x30] sm:$0xff]
        %v3631 = vld [vmem:[#allocation2 + $0x38] sm:$0xff]
        %v3632 = vld [vmem:[#allocation2 + $0x40] sm:$0xff]
        %v3633 = vld [vmem:[#allocation2 + $0x48] sm:$0xff]
        %v3634 = vld [vmem:[#allocation2 + $0x50] sm:$0xff]
        %v3635 = vld [vmem:[#allocation2 + $0x58] sm:$0xff]
        %v3636 = vld [vmem:[#allocation2 + $0x60] sm:$0xff]
        %v3637 = vld [vmem:[#allocation2 + $0x68] sm:$0xff]
        %v3638 = vld [vmem:[#allocation2 + $0x70] sm:$0xff]
        %v3639 = vld [vmem:[#allocation2 + $0x78] sm:$0xff]
        %v3640 = vld [vmem:[#allocation2 + $0x80] sm:$0xff]
        %v3641 = vld [vmem:[#allocation2 + $0x88] sm:$0xff]
        %v3642 = vld [vmem:[#allocation2 + $0x90] sm:$0xff]
        %v3643 = vld [vmem:[#allocation2 + $0x98] sm:$0xff]
        %v3644 = vld [vmem:[#allocation2 + $0xa0] sm:$0xff]
        %v3645 = vld [vmem:[#allocation2 + $0xa8] sm:$0xff]
        %v3646 = vld [vmem:[#allocation2 + $0xb0] sm:$0xff]
        %v3647 = vld [vmem:[#allocation2 + $0xb8] sm:$0xff]
        %v3648 = vld [vmem:[#allocation2 + $0xc0] sm:$0xff]
        %v3649 = vld [vmem:[#allocation2 + $0xc8] sm:$0xff]
        %v3650 = vld [vmem:[#allocation2 + $0xd0] sm:$0xff]
        %v3651 = vld [vmem:[#allocation2 + $0xd8] sm:$0xff]
        %v3652 = vld [vmem:[#allocation2 + $0xe0] sm:$0xff]
        %v3653 = vld [vmem:[#allocation2 + $0xe8] sm:$0xff]
        %v3654 = vld [vmem:[#allocation2 + $0xf0] sm:$0xff]
        %v3655 = vld [vmem:[#allocation2 + $0xf8] sm:$0xff]
        %v3656 = vld [vmem:[#allocation2 + $0x100] sm:$0xff]
        %v3657 = vld [vmem:[#allocation2 + $0x108] sm:$0xff]
        %v3658 = vld [vmem:[#allocation2 + $0x110] sm:$0xff]
        %v3659 = vld [vmem:[#allocation2 + $0x118] sm:$0xff]
        %3660 = vset.pattern.permute.xlu0 6
        %3661 = vperm.xlu0 %3660, %v906
        %v3662 = vpop.permute.xlu0 %3661
        %3664 = vset.pattern.permute.xlu0 6
        %3665 = vperm.xlu0 %3664, %v907
        %v3666 = vpop.permute.xlu0 %3665
        %3668 = vset.pattern.permute.xlu0 6
        %3669 = vperm.xlu0 %3668, %v908
        %v3670 = vpop.permute.xlu0 %3669
        %3672 = vset.pattern.permute.xlu0 6
        %3673 = vperm.xlu0 %3672, %v909
        %v3674 = vpop.permute.xlu0 %3673
        %3676 = vset.pattern.permute.xlu0 6
        %3677 = vperm.xlu0 %3676, %v910
        %v3678 = vpop.permute.xlu0 %3677
        %3680 = vset.pattern.permute.xlu0 6
        %3681 = vperm.xlu0 %3680, %v911
        %v3682 = vpop.permute.xlu0 %3681
        %3684 = vset.pattern.permute.xlu0 6
        %3685 = vperm.xlu0 %3684, %v912
        %v3686 = vpop.permute.xlu0 %3685
        %3688 = vset.pattern.permute.xlu0 6
        %3689 = vperm.xlu0 %3688, %v913
        %v3690 = vpop.permute.xlu0 %3689
        %3692 = vset.pattern.permute.xlu0 6
        %3693 = vperm.xlu0 %3692, %v914
        %v3694 = vpop.permute.xlu0 %3693
        %3696 = vset.pattern.permute.xlu0 6
        %3697 = vperm.xlu0 %3696, %v915
        %v3698 = vpop.permute.xlu0 %3697
        %3700 = vset.pattern.permute.xlu0 6
        %3701 = vperm.xlu0 %3700, %v916
        %v3702 = vpop.permute.xlu0 %3701
        %3704 = vset.pattern.permute.xlu0 6
        %3705 = vperm.xlu0 %3704, %v917
        %v3706 = vpop.permute.xlu0 %3705
        %3708 = vset.pattern.permute.xlu0 6
        %3709 = vperm.xlu0 %3708, %v918
        %v3710 = vpop.permute.xlu0 %3709
        %3712 = vset.pattern.permute.xlu0 6
        %3713 = vperm.xlu0 %3712, %v919
        %v3714 = vpop.permute.xlu0 %3713
        %3716 = vset.pattern.permute.xlu0 6
        %3717 = vperm.xlu0 %3716, %v920
        %v3718 = vpop.permute.xlu0 %3717
        %3720 = vset.pattern.permute.xlu0 6
        %3721 = vperm.xlu0 %3720, %v921
        %v3722 = vpop.permute.xlu0 %3721
        %3724 = vset.pattern.permute.xlu0 6
        %3725 = vperm.xlu0 %3724, %v922
        %v3726 = vpop.permute.xlu0 %3725
        %3728 = vset.pattern.permute.xlu0 6
        %3729 = vperm.xlu0 %3728, %v923
        %v3730 = vpop.permute.xlu0 %3729
        %3732 = vset.pattern.permute.xlu0 6
        %3733 = vperm.xlu0 %3732, %v924
        %v3734 = vpop.permute.xlu0 %3733
        %3736 = vset.pattern.permute.xlu0 6
        %3737 = vperm.xlu0 %3736, %v925
        %v3738 = vpop.permute.xlu0 %3737
        %3740 = vset.pattern.permute.xlu0 6
        %3741 = vperm.xlu0 %3740, %v926
        %v3742 = vpop.permute.xlu0 %3741
        %3744 = vset.pattern.permute.xlu0 6
        %3745 = vperm.xlu0 %3744, %v927
        %v3746 = vpop.permute.xlu0 %3745
        %3748 = vset.pattern.permute.xlu0 6
        %3749 = vperm.xlu0 %3748, %v928
        %v3750 = vpop.permute.xlu0 %3749
        %3752 = vset.pattern.permute.xlu0 6
        %3753 = vperm.xlu0 %3752, %v929
        %v3754 = vpop.permute.xlu0 %3753
        %3756 = vset.pattern.permute.xlu0 6
        %3757 = vperm.xlu0 %3756, %v930
        %v3758 = vpop.permute.xlu0 %3757
        %3760 = vset.pattern.permute.xlu0 6
        %3761 = vperm.xlu0 %3760, %v931
        %v3762 = vpop.permute.xlu0 %3761
        %3764 = vset.pattern.permute.xlu0 6
        %3765 = vperm.xlu0 %3764, %v932
        %v3766 = vpop.permute.xlu0 %3765
        %3768 = vset.pattern.permute.xlu0 6
        %3769 = vperm.xlu0 %3768, %v933
        %v3770 = vpop.permute.xlu0 %3769
        %3772 = vset.pattern.permute.xlu0 6
        %3773 = vperm.xlu0 %3772, %v934
        %v3774 = vpop.permute.xlu0 %3773
        %3776 = vset.pattern.permute.xlu0 6
        %3777 = vperm.xlu0 %3776, %v935
        %v3778 = vpop.permute.xlu0 %3777
        %3780 = vset.pattern.permute.xlu0 6
        %3781 = vperm.xlu0 %3780, %v936
        %v3782 = vpop.permute.xlu0 %3781
        %3784 = vset.pattern.permute.xlu0 6
        %3785 = vperm.xlu0 %3784, %v937
        %v3786 = vpop.permute.xlu0 %3785
        %v3788 = vmul.f32 %v3628, %v3662
        %v3789 = vmul.f32 %v3629, %v3666
        %v3790 = vmul.f32 %v3630, %v3670
        %v3791 = vmul.f32 %v3631, %v3674
        %v3792 = vmul.f32 %v3632, %v3678
        %v3793 = vmul.f32 %v3633, %v3682
        %v3794 = vmul.f32 %v3634, %v3686
        %v3795 = vmul.f32 %v3635, %v3690
        %v3796 = vmul.f32 %v3636, %v3694
        %v3797 = vmul.f32 %v3637, %v3698
        %v3798 = vmul.f32 %v3638, %v3702
        %v3799 = vmul.f32 %v3639, %v3706
        %v3800 = vmul.f32 %v3640, %v3710
        %v3801 = vmul.f32 %v3641, %v3714
        %v3802 = vmul.f32 %v3642, %v3718
        %v3803 = vmul.f32 %v3643, %v3722
        %v3804 = vmul.f32 %v3644, %v3726
        %v3805 = vmul.f32 %v3645, %v3730
        %v3806 = vmul.f32 %v3646, %v3734
        %v3807 = vmul.f32 %v3647, %v3738
        %v3808 = vmul.f32 %v3648, %v3742
        %v3809 = vmul.f32 %v3649, %v3746
        %v3810 = vmul.f32 %v3650, %v3750
        %v3811 = vmul.f32 %v3651, %v3754
        %v3812 = vmul.f32 %v3652, %v3758
        %v3813 = vmul.f32 %v3653, %v3762
        %v3814 = vmul.f32 %v3654, %v3766
        %v3815 = vmul.f32 %v3655, %v3770
        %v3816 = vmul.f32 %v3656, %v3774
        %v3817 = vmul.f32 %v3657, %v3778
        %v3818 = vmul.f32 %v3658, %v3782
        %v3819 = vmul.f32 %v3659, %v3786
        %v3821 = vsel %vm1022, %v3788, 0
        %v3824 = vsel %vm1022, %v3789, 0
        %v3827 = vsel %vm1022, %v3790, 0
        %v3830 = vsel %vm1022, %v3791, 0
        %v3833 = vsel %vm1022, %v3792, 0
        %v3836 = vsel %vm1022, %v3793, 0
        %v3839 = vsel %vm1022, %v3794, 0
        %v3842 = vsel %vm1022, %v3795, 0
        %v3845 = vsel %vm1022, %v3796, 0
        %v3848 = vsel %vm1022, %v3797, 0
        %v3851 = vsel %vm1022, %v3798, 0
        %v3854 = vsel %vm1022, %v3799, 0
        %v3857 = vsel %vm1022, %v3800, 0
        %v3860 = vsel %vm1022, %v3801, 0
        %v3863 = vsel %vm1022, %v3802, 0
        %v3866 = vsel %vm1022, %v3803, 0
        %v3869 = vsel %vm1022, %v3804, 0
        %v3872 = vsel %vm1022, %v3805, 0
        %v3875 = vsel %vm1022, %v3806, 0
        %v3878 = vsel %vm1022, %v3807, 0
        %v3881 = vsel %vm1022, %v3808, 0
        %v3884 = vsel %vm1022, %v3809, 0
        %v3887 = vsel %vm1022, %v3810, 0
        %v3890 = vsel %vm1022, %v3811, 0
        %v3893 = vsel %vm1022, %v3812, 0
        %v3896 = vsel %vm1022, %v3813, 0
        %v3899 = vsel %vm1022, %v3814, 0
        %v3902 = vsel %vm1022, %v3815, 0
        %v3905 = vsel %vm1022, %v3816, 0
        %v3908 = vsel %vm1022, %v3817, 0
        %v3911 = vsel %vm1022, %v3818, 0
        %v3914 = vsel %vm1022, %v3819, 0
        %3916 = vmatpush.msra.mxu0 0.0
        %3917 = vmatpush.msra.mxu0 0.0
        %3918 = vmatpush.msra.mxu0 0.0
        %3919 = vmatpush.msra.mxu0 0.0
        %3920 = vmatpush.msra.mxu0 0.0
        %3921 = vmatpush.msra.mxu0 0.0
        %3922 = vmatpush.msra.mxu0 0.0
        %3923 = vmatpush.msra.mxu0 0.0
        %3924 = vmatpush.msra.mxu0 0.0
        %3925 = vmatpush.msra.mxu0 0.0
        %3926 = vmatpush.msra.mxu0 0.0
        %3927 = vmatpush.msra.mxu0 0.0
        %3928 = vmatpush.msra.mxu0 %v975
        %3929 = vmatpush.msra.mxu0 %v974
        %3930 = vmatpush.msra.mxu0 %v973
        %3931 = vmatpush.msra.mxu0 %v972
        %3932 = vmatmul.f32.gmra.mxu0 %v3821
        %v3933 = vpop.f32.mrf.mxu0
        %v3934 = vadd.f32 0.0, %v3933
        %3935 = vmatmul.f32.gmra.mxu0 %v3824
        %v3936 = vpop.f32.mrf.mxu0
        %v3937 = vadd.f32 0.0, %v3936
        %3938 = vmatmul.f32.gmra.mxu0 %v3827
        %v3939 = vpop.f32.mrf.mxu0
        %v3940 = vadd.f32 0.0, %v3939
        %3941 = vmatmul.f32.gmra.mxu0 %v3830
        %v3942 = vpop.f32.mrf.mxu0
        %v3943 = vadd.f32 0.0, %v3942
        %3944 = vmatmul.f32.gmra.mxu0 %v3833
        %v3945 = vpop.f32.mrf.mxu0
        %v3946 = vadd.f32 0.0, %v3945
        %3947 = vmatmul.f32.gmra.mxu0 %v3836
        %v3948 = vpop.f32.mrf.mxu0
        %v3949 = vadd.f32 0.0, %v3948
        %3950 = vmatmul.f32.gmra.mxu0 %v3839
        %v3951 = vpop.f32.mrf.mxu0
        %v3952 = vadd.f32 0.0, %v3951
        %3953 = vmatmul.f32.gmra.mxu0 %v3842
        %v3954 = vpop.f32.mrf.mxu0
        %v3955 = vadd.f32 0.0, %v3954
        %3956 = vmatmul.f32.gmra.mxu0 %v3845
        %v3957 = vpop.f32.mrf.mxu0
        %v3958 = vadd.f32 0.0, %v3957
        %3959 = vmatmul.f32.gmra.mxu0 %v3848
        %v3960 = vpop.f32.mrf.mxu0
        %v3961 = vadd.f32 0.0, %v3960
        %3962 = vmatmul.f32.gmra.mxu0 %v3851
        %v3963 = vpop.f32.mrf.mxu0
        %v3964 = vadd.f32 0.0, %v3963
        %3965 = vmatmul.f32.gmra.mxu0 %v3854
        %v3966 = vpop.f32.mrf.mxu0
        %v3967 = vadd.f32 0.0, %v3966
        %3968 = vmatmul.f32.gmra.mxu0 %v3857
        %v3969 = vpop.f32.mrf.mxu0
        %v3970 = vadd.f32 0.0, %v3969
        %3971 = vmatmul.f32.gmra.mxu0 %v3860
        %v3972 = vpop.f32.mrf.mxu0
        %v3973 = vadd.f32 0.0, %v3972
        %3974 = vmatmul.f32.gmra.mxu0 %v3863
        %v3975 = vpop.f32.mrf.mxu0
        %v3976 = vadd.f32 0.0, %v3975
        %3977 = vmatmul.f32.gmra.mxu0 %v3866
        %v3978 = vpop.f32.mrf.mxu0
        %v3979 = vadd.f32 0.0, %v3978
        %3980 = vmatmul.f32.gmra.mxu0 %v3869
        %v3981 = vpop.f32.mrf.mxu0
        %v3982 = vadd.f32 0.0, %v3981
        %3983 = vmatmul.f32.gmra.mxu0 %v3872
        %v3984 = vpop.f32.mrf.mxu0
        %v3985 = vadd.f32 0.0, %v3984
        %3986 = vmatmul.f32.gmra.mxu0 %v3875
        %v3987 = vpop.f32.mrf.mxu0
        %v3988 = vadd.f32 0.0, %v3987
        %3989 = vmatmul.f32.gmra.mxu0 %v3878
        %v3990 = vpop.f32.mrf.mxu0
        %v3991 = vadd.f32 0.0, %v3990
        %3992 = vmatmul.f32.gmra.mxu0 %v3881
        %v3993 = vpop.f32.mrf.mxu0
        %v3994 = vadd.f32 0.0, %v3993
        %3995 = vmatmul.f32.gmra.mxu0 %v3884
        %v3996 = vpop.f32.mrf.mxu0
        %v3997 = vadd.f32 0.0, %v3996
        %3998 = vmatmul.f32.gmra.mxu0 %v3887
        %v3999 = vpop.f32.mrf.mxu0
        %v4000 = vadd.f32 0.0, %v3999
        %4001 = vmatmul.f32.gmra.mxu0 %v3890
        %v4002 = vpop.f32.mrf.mxu0
        %v4003 = vadd.f32 0.0, %v4002
        %4004 = vmatmul.f32.gmra.mxu0 %v3893
        %v4005 = vpop.f32.mrf.mxu0
        %v4006 = vadd.f32 0.0, %v4005
        %4007 = vmatmul.f32.gmra.mxu0 %v3896
        %v4008 = vpop.f32.mrf.mxu0
        %v4009 = vadd.f32 0.0, %v4008
        %4010 = vmatmul.f32.gmra.mxu0 %v3899
        %v4011 = vpop.f32.mrf.mxu0
        %v4012 = vadd.f32 0.0, %v4011
        %4013 = vmatmul.f32.gmra.mxu0 %v3902
        %v4014 = vpop.f32.mrf.mxu0
        %v4015 = vadd.f32 0.0, %v4014
        %4016 = vmatmul.f32.gmra.mxu0 %v3905
        %v4017 = vpop.f32.mrf.mxu0
        %v4018 = vadd.f32 0.0, %v4017
        %4019 = vmatmul.f32.gmra.mxu0 %v3908
        %v4020 = vpop.f32.mrf.mxu0
        %v4021 = vadd.f32 0.0, %v4020
        %4022 = vmatmul.f32.gmra.mxu0 %v3911
        %v4023 = vpop.f32.mrf.mxu0
        %v4024 = vadd.f32 0.0, %v4023
        %4025 = vmatmul.f32.gmra.mxu0 %v3914
        %v4026 = vpop.f32.mrf.mxu0
        %v4027 = vadd.f32 0.0, %v4026
        %4028 = vdwg.mxu0
        %v4029 = vadd.f32 %v3596, %v3934
        %v4030 = vadd.f32 %v3597, %v3937
        %v4031 = vadd.f32 %v3598, %v3940
        %v4032 = vadd.f32 %v3599, %v3943
        %v4033 = vadd.f32 %v3600, %v3946
        %v4034 = vadd.f32 %v3601, %v3949
        %v4035 = vadd.f32 %v3602, %v3952
        %v4036 = vadd.f32 %v3603, %v3955
        %v4037 = vadd.f32 %v3604, %v3958
        %v4038 = vadd.f32 %v3605, %v3961
        %v4039 = vadd.f32 %v3606, %v3964
        %v4040 = vadd.f32 %v3607, %v3967
        %v4041 = vadd.f32 %v3608, %v3970
        %v4042 = vadd.f32 %v3609, %v3973
        %v4043 = vadd.f32 %v3610, %v3976
        %v4044 = vadd.f32 %v3611, %v3979
        %v4045 = vadd.f32 %v3612, %v3982
        %v4046 = vadd.f32 %v3613, %v3985
        %v4047 = vadd.f32 %v3614, %v3988
        %v4048 = vadd.f32 %v3615, %v3991
        %v4049 = vadd.f32 %v3616, %v3994
        %v4050 = vadd.f32 %v3617, %v3997
        %v4051 = vadd.f32 %v3618, %v4000
        %v4052 = vadd.f32 %v3619, %v4003
        %v4053 = vadd.f32 %v3620, %v4006
        %v4054 = vadd.f32 %v3621, %v4009
        %v4055 = vadd.f32 %v3622, %v4012
        %v4056 = vadd.f32 %v3623, %v4015
        %v4057 = vadd.f32 %v3624, %v4018
        %v4058 = vadd.f32 %v3625, %v4021
        %v4059 = vadd.f32 %v3626, %v4024
        %v4060 = vadd.f32 %v3627, %v4027
        %v4061 = vld [vmem:[#allocation2 + $0x21] sm:$0xff]
        %v4062 = vld [vmem:[#allocation2 + $0x29] sm:$0xff]
        %v4063 = vld [vmem:[#allocation2 + $0x31] sm:$0xff]
        %v4064 = vld [vmem:[#allocation2 + $0x39] sm:$0xff]
        %v4065 = vld [vmem:[#allocation2 + $0x41] sm:$0xff]
        %v4066 = vld [vmem:[#allocation2 + $0x49] sm:$0xff]
        %v4067 = vld [vmem:[#allocation2 + $0x51] sm:$0xff]
        %v4068 = vld [vmem:[#allocation2 + $0x59] sm:$0xff]
        %v4069 = vld [vmem:[#allocation2 + $0x61] sm:$0xff]
        %v4070 = vld [vmem:[#allocation2 + $0x69] sm:$0xff]
        %v4071 = vld [vmem:[#allocation2 + $0x71] sm:$0xff]
        %v4072 = vld [vmem:[#allocation2 + $0x79] sm:$0xff]
        %v4073 = vld [vmem:[#allocation2 + $0x81] sm:$0xff]
        %v4074 = vld [vmem:[#allocation2 + $0x89] sm:$0xff]
        %v4075 = vld [vmem:[#allocation2 + $0x91] sm:$0xff]
        %v4076 = vld [vmem:[#allocation2 + $0x99] sm:$0xff]
        %v4077 = vld [vmem:[#allocation2 + $0xa1] sm:$0xff]
        %v4078 = vld [vmem:[#allocation2 + $0xa9] sm:$0xff]
        %v4079 = vld [vmem:[#allocation2 + $0xb1] sm:$0xff]
        %v4080 = vld [vmem:[#allocation2 + $0xb9] sm:$0xff]
        %v4081 = vld [vmem:[#allocation2 + $0xc1] sm:$0xff]
        %v4082 = vld [vmem:[#allocation2 + $0xc9] sm:$0xff]
        %v4083 = vld [vmem:[#allocation2 + $0xd1] sm:$0xff]
        %v4084 = vld [vmem:[#allocation2 + $0xd9] sm:$0xff]
        %v4085 = vld [vmem:[#allocation2 + $0xe1] sm:$0xff]
        %v4086 = vld [vmem:[#allocation2 + $0xe9] sm:$0xff]
        %v4087 = vld [vmem:[#allocation2 + $0xf1] sm:$0xff]
        %v4088 = vld [vmem:[#allocation2 + $0xf9] sm:$0xff]
        %v4089 = vld [vmem:[#allocation2 + $0x101] sm:$0xff]
        %v4090 = vld [vmem:[#allocation2 + $0x109] sm:$0xff]
        %v4091 = vld [vmem:[#allocation2 + $0x111] sm:$0xff]
        %v4092 = vld [vmem:[#allocation2 + $0x119] sm:$0xff]
        %4093 = vset.pattern.permute.xlu0 7
        %4094 = vperm.xlu0 %4093, %v906
        %v4095 = vpop.permute.xlu0 %4094
        %4097 = vset.pattern.permute.xlu0 7
        %4098 = vperm.xlu0 %4097, %v907
        %v4099 = vpop.permute.xlu0 %4098
        %4101 = vset.pattern.permute.xlu0 7
        %4102 = vperm.xlu0 %4101, %v908
        %v4103 = vpop.permute.xlu0 %4102
        %4105 = vset.pattern.permute.xlu0 7
        %4106 = vperm.xlu0 %4105, %v909
        %v4107 = vpop.permute.xlu0 %4106
        %4109 = vset.pattern.permute.xlu0 7
        %4110 = vperm.xlu0 %4109, %v910
        %v4111 = vpop.permute.xlu0 %4110
        %4113 = vset.pattern.permute.xlu0 7
        %4114 = vperm.xlu0 %4113, %v911
        %v4115 = vpop.permute.xlu0 %4114
        %4117 = vset.pattern.permute.xlu0 7
        %4118 = vperm.xlu0 %4117, %v912
        %v4119 = vpop.permute.xlu0 %4118
        %4121 = vset.pattern.permute.xlu0 7
        %4122 = vperm.xlu0 %4121, %v913
        %v4123 = vpop.permute.xlu0 %4122
        %4125 = vset.pattern.permute.xlu0 7
        %4126 = vperm.xlu0 %4125, %v914
        %v4127 = vpop.permute.xlu0 %4126
        %4129 = vset.pattern.permute.xlu0 7
        %4130 = vperm.xlu0 %4129, %v915
        %v4131 = vpop.permute.xlu0 %4130
        %4133 = vset.pattern.permute.xlu0 7
        %4134 = vperm.xlu0 %4133, %v916
        %v4135 = vpop.permute.xlu0 %4134
        %4137 = vset.pattern.permute.xlu0 7
        %4138 = vperm.xlu0 %4137, %v917
        %v4139 = vpop.permute.xlu0 %4138
        %4141 = vset.pattern.permute.xlu0 7
        %4142 = vperm.xlu0 %4141, %v918
        %v4143 = vpop.permute.xlu0 %4142
        %4145 = vset.pattern.permute.xlu0 7
        %4146 = vperm.xlu0 %4145, %v919
        %v4147 = vpop.permute.xlu0 %4146
        %4149 = vset.pattern.permute.xlu0 7
        %4150 = vperm.xlu0 %4149, %v920
        %v4151 = vpop.permute.xlu0 %4150
        %4153 = vset.pattern.permute.xlu0 7
        %4154 = vperm.xlu0 %4153, %v921
        %v4155 = vpop.permute.xlu0 %4154
        %4157 = vset.pattern.permute.xlu0 7
        %4158 = vperm.xlu0 %4157, %v922
        %v4159 = vpop.permute.xlu0 %4158
        %4161 = vset.pattern.permute.xlu0 7
        %4162 = vperm.xlu0 %4161, %v923
        %v4163 = vpop.permute.xlu0 %4162
        %4165 = vset.pattern.permute.xlu0 7
        %4166 = vperm.xlu0 %4165, %v924
        %v4167 = vpop.permute.xlu0 %4166
        %4169 = vset.pattern.permute.xlu0 7
        %4170 = vperm.xlu0 %4169, %v925
        %v4171 = vpop.permute.xlu0 %4170
        %4173 = vset.pattern.permute.xlu0 7
        %4174 = vperm.xlu0 %4173, %v926
        %v4175 = vpop.permute.xlu0 %4174
        %4177 = vset.pattern.permute.xlu0 7
        %4178 = vperm.xlu0 %4177, %v927
        %v4179 = vpop.permute.xlu0 %4178
        %4181 = vset.pattern.permute.xlu0 7
        %4182 = vperm.xlu0 %4181, %v928
        %v4183 = vpop.permute.xlu0 %4182
        %4185 = vset.pattern.permute.xlu0 7
        %4186 = vperm.xlu0 %4185, %v929
        %v4187 = vpop.permute.xlu0 %4186
        %4189 = vset.pattern.permute.xlu0 7
        %4190 = vperm.xlu0 %4189, %v930
        %v4191 = vpop.permute.xlu0 %4190
        %4193 = vset.pattern.permute.xlu0 7
        %4194 = vperm.xlu0 %4193, %v931
        %v4195 = vpop.permute.xlu0 %4194
        %4197 = vset.pattern.permute.xlu0 7
        %4198 = vperm.xlu0 %4197, %v932
        %v4199 = vpop.permute.xlu0 %4198
        %4201 = vset.pattern.permute.xlu0 7
        %4202 = vperm.xlu0 %4201, %v933
        %v4203 = vpop.permute.xlu0 %4202
        %4205 = vset.pattern.permute.xlu0 7
        %4206 = vperm.xlu0 %4205, %v934
        %v4207 = vpop.permute.xlu0 %4206
        %4209 = vset.pattern.permute.xlu0 7
        %4210 = vperm.xlu0 %4209, %v935
        %v4211 = vpop.permute.xlu0 %4210
        %4213 = vset.pattern.permute.xlu0 7
        %4214 = vperm.xlu0 %4213, %v936
        %v4215 = vpop.permute.xlu0 %4214
        %4217 = vset.pattern.permute.xlu0 7
        %4218 = vperm.xlu0 %4217, %v937
        %v4219 = vpop.permute.xlu0 %4218
        %v4221 = vmul.f32 %v4061, %v4095
        %v4222 = vmul.f32 %v4062, %v4099
        %v4223 = vmul.f32 %v4063, %v4103
        %v4224 = vmul.f32 %v4064, %v4107
        %v4225 = vmul.f32 %v4065, %v4111
        %v4226 = vmul.f32 %v4066, %v4115
        %v4227 = vmul.f32 %v4067, %v4119
        %v4228 = vmul.f32 %v4068, %v4123
        %v4229 = vmul.f32 %v4069, %v4127
        %v4230 = vmul.f32 %v4070, %v4131
        %v4231 = vmul.f32 %v4071, %v4135
        %v4232 = vmul.f32 %v4072, %v4139
        %v4233 = vmul.f32 %v4073, %v4143
        %v4234 = vmul.f32 %v4074, %v4147
        %v4235 = vmul.f32 %v4075, %v4151
        %v4236 = vmul.f32 %v4076, %v4155
        %v4237 = vmul.f32 %v4077, %v4159
        %v4238 = vmul.f32 %v4078, %v4163
        %v4239 = vmul.f32 %v4079, %v4167
        %v4240 = vmul.f32 %v4080, %v4171
        %v4241 = vmul.f32 %v4081, %v4175
        %v4242 = vmul.f32 %v4082, %v4179
        %v4243 = vmul.f32 %v4083, %v4183
        %v4244 = vmul.f32 %v4084, %v4187
        %v4245 = vmul.f32 %v4085, %v4191
        %v4246 = vmul.f32 %v4086, %v4195
        %v4247 = vmul.f32 %v4087, %v4199
        %v4248 = vmul.f32 %v4088, %v4203
        %v4249 = vmul.f32 %v4089, %v4207
        %v4250 = vmul.f32 %v4090, %v4211
        %v4251 = vmul.f32 %v4091, %v4215
        %v4252 = vmul.f32 %v4092, %v4219
        %v4254 = vsel %vm1022, %v4221, 0
        %v4257 = vsel %vm1022, %v4222, 0
        %v4260 = vsel %vm1022, %v4223, 0
        %v4263 = vsel %vm1022, %v4224, 0
        %v4266 = vsel %vm1022, %v4225, 0
        %v4269 = vsel %vm1022, %v4226, 0
        %v4272 = vsel %vm1022, %v4227, 0
        %v4275 = vsel %vm1022, %v4228, 0
        %v4278 = vsel %vm1022, %v4229, 0
        %v4281 = vsel %vm1022, %v4230, 0
        %v4284 = vsel %vm1022, %v4231, 0
        %v4287 = vsel %vm1022, %v4232, 0
        %v4290 = vsel %vm1022, %v4233, 0
        %v4293 = vsel %vm1022, %v4234, 0
        %v4296 = vsel %vm1022, %v4235, 0
        %v4299 = vsel %vm1022, %v4236, 0
        %v4302 = vsel %vm1022, %v4237, 0
        %v4305 = vsel %vm1022, %v4238, 0
        %v4308 = vsel %vm1022, %v4239, 0
        %v4311 = vsel %vm1022, %v4240, 0
        %v4314 = vsel %vm1022, %v4241, 0
        %v4317 = vsel %vm1022, %v4242, 0
        %v4320 = vsel %vm1022, %v4243, 0
        %v4323 = vsel %vm1022, %v4244, 0
        %v4326 = vsel %vm1022, %v4245, 0
        %v4329 = vsel %vm1022, %v4246, 0
        %v4332 = vsel %vm1022, %v4247, 0
        %v4335 = vsel %vm1022, %v4248, 0
        %v4338 = vsel %vm1022, %v4249, 0
        %v4341 = vsel %vm1022, %v4250, 0
        %v4344 = vsel %vm1022, %v4251, 0
        %v4347 = vsel %vm1022, %v4252, 0
        %4349 = vmatpush.msra.mxu0 0.0
        %4350 = vmatpush.msra.mxu0 0.0
        %4351 = vmatpush.msra.mxu0 0.0
        %4352 = vmatpush.msra.mxu0 0.0
        %4353 = vmatpush.msra.mxu0 0.0
        %4354 = vmatpush.msra.mxu0 0.0
        %4355 = vmatpush.msra.mxu0 0.0
        %4356 = vmatpush.msra.mxu0 0.0
        %4357 = vmatpush.msra.mxu0 0.0
        %4358 = vmatpush.msra.mxu0 0.0
        %4359 = vmatpush.msra.mxu0 0.0
        %4360 = vmatpush.msra.mxu0 0.0
        %4361 = vmatpush.msra.mxu0 %v979
        %4362 = vmatpush.msra.mxu0 %v978
        %4363 = vmatpush.msra.mxu0 %v977
        %4364 = vmatpush.msra.mxu0 %v976
        %4365 = vmatmul.f32.gmra.mxu0 %v4254
        %v4366 = vpop.f32.mrf.mxu0
        %v4367 = vadd.f32 0.0, %v4366
        %4368 = vmatmul.f32.gmra.mxu0 %v4257
        %v4369 = vpop.f32.mrf.mxu0
        %v4370 = vadd.f32 0.0, %v4369
        %4371 = vmatmul.f32.gmra.mxu0 %v4260
        %v4372 = vpop.f32.mrf.mxu0
        %v4373 = vadd.f32 0.0, %v4372
        %4374 = vmatmul.f32.gmra.mxu0 %v4263
        %v4375 = vpop.f32.mrf.mxu0
        %v4376 = vadd.f32 0.0, %v4375
        %4377 = vmatmul.f32.gmra.mxu0 %v4266
        %v4378 = vpop.f32.mrf.mxu0
        %v4379 = vadd.f32 0.0, %v4378
        %4380 = vmatmul.f32.gmra.mxu0 %v4269
        %v4381 = vpop.f32.mrf.mxu0
        %v4382 = vadd.f32 0.0, %v4381
        %4383 = vmatmul.f32.gmra.mxu0 %v4272
        %v4384 = vpop.f32.mrf.mxu0
        %v4385 = vadd.f32 0.0, %v4384
        %4386 = vmatmul.f32.gmra.mxu0 %v4275
        %v4387 = vpop.f32.mrf.mxu0
        %v4388 = vadd.f32 0.0, %v4387
        %4389 = vmatmul.f32.gmra.mxu0 %v4278
        %v4390 = vpop.f32.mrf.mxu0
        %v4391 = vadd.f32 0.0, %v4390
        %4392 = vmatmul.f32.gmra.mxu0 %v4281
        %v4393 = vpop.f32.mrf.mxu0
        %v4394 = vadd.f32 0.0, %v4393
        %4395 = vmatmul.f32.gmra.mxu0 %v4284
        %v4396 = vpop.f32.mrf.mxu0
        %v4397 = vadd.f32 0.0, %v4396
        %4398 = vmatmul.f32.gmra.mxu0 %v4287
        %v4399 = vpop.f32.mrf.mxu0
        %v4400 = vadd.f32 0.0, %v4399
        %4401 = vmatmul.f32.gmra.mxu0 %v4290
        %v4402 = vpop.f32.mrf.mxu0
        %v4403 = vadd.f32 0.0, %v4402
        %4404 = vmatmul.f32.gmra.mxu0 %v4293
        %v4405 = vpop.f32.mrf.mxu0
        %v4406 = vadd.f32 0.0, %v4405
        %4407 = vmatmul.f32.gmra.mxu0 %v4296
        %v4408 = vpop.f32.mrf.mxu0
        %v4409 = vadd.f32 0.0, %v4408
        %4410 = vmatmul.f32.gmra.mxu0 %v4299
        %v4411 = vpop.f32.mrf.mxu0
        %v4412 = vadd.f32 0.0, %v4411
        %4413 = vmatmul.f32.gmra.mxu0 %v4302
        %v4414 = vpop.f32.mrf.mxu0
        %v4415 = vadd.f32 0.0, %v4414
        %4416 = vmatmul.f32.gmra.mxu0 %v4305
        %v4417 = vpop.f32.mrf.mxu0
        %v4418 = vadd.f32 0.0, %v4417
        %4419 = vmatmul.f32.gmra.mxu0 %v4308
        %v4420 = vpop.f32.mrf.mxu0
        %v4421 = vadd.f32 0.0, %v4420
        %4422 = vmatmul.f32.gmra.mxu0 %v4311
        %v4423 = vpop.f32.mrf.mxu0
        %v4424 = vadd.f32 0.0, %v4423
        %4425 = vmatmul.f32.gmra.mxu0 %v4314
        %v4426 = vpop.f32.mrf.mxu0
        %v4427 = vadd.f32 0.0, %v4426
        %4428 = vmatmul.f32.gmra.mxu0 %v4317
        %v4429 = vpop.f32.mrf.mxu0
        %v4430 = vadd.f32 0.0, %v4429
        %4431 = vmatmul.f32.gmra.mxu0 %v4320
        %v4432 = vpop.f32.mrf.mxu0
        %v4433 = vadd.f32 0.0, %v4432
        %4434 = vmatmul.f32.gmra.mxu0 %v4323
        %v4435 = vpop.f32.mrf.mxu0
        %v4436 = vadd.f32 0.0, %v4435
        %4437 = vmatmul.f32.gmra.mxu0 %v4326
        %v4438 = vpop.f32.mrf.mxu0
        %v4439 = vadd.f32 0.0, %v4438
        %4440 = vmatmul.f32.gmra.mxu0 %v4329
        %v4441 = vpop.f32.mrf.mxu0
        %v4442 = vadd.f32 0.0, %v4441
        %4443 = vmatmul.f32.gmra.mxu0 %v4332
        %v4444 = vpop.f32.mrf.mxu0
        %v4445 = vadd.f32 0.0, %v4444
        %4446 = vmatmul.f32.gmra.mxu0 %v4335
        %v4447 = vpop.f32.mrf.mxu0
        %v4448 = vadd.f32 0.0, %v4447
        %4449 = vmatmul.f32.gmra.mxu0 %v4338
        %v4450 = vpop.f32.mrf.mxu0
        %v4451 = vadd.f32 0.0, %v4450
        %4452 = vmatmul.f32.gmra.mxu0 %v4341
        %v4453 = vpop.f32.mrf.mxu0
        %v4454 = vadd.f32 0.0, %v4453
        %4455 = vmatmul.f32.gmra.mxu0 %v4344
        %v4456 = vpop.f32.mrf.mxu0
        %v4457 = vadd.f32 0.0, %v4456
        %4458 = vmatmul.f32.gmra.mxu0 %v4347
        %v4459 = vpop.f32.mrf.mxu0
        %v4460 = vadd.f32 0.0, %v4459
        %4461 = vdwg.mxu0
        %v4462 = vadd.f32 %v4029, %v4367
        %v4463 = vadd.f32 %v4030, %v4370
        %v4464 = vadd.f32 %v4031, %v4373
        %v4465 = vadd.f32 %v4032, %v4376
        %v4466 = vadd.f32 %v4033, %v4379
        %v4467 = vadd.f32 %v4034, %v4382
        %v4468 = vadd.f32 %v4035, %v4385
        %v4469 = vadd.f32 %v4036, %v4388
        %v4470 = vadd.f32 %v4037, %v4391
        %v4471 = vadd.f32 %v4038, %v4394
        %v4472 = vadd.f32 %v4039, %v4397
        %v4473 = vadd.f32 %v4040, %v4400
        %v4474 = vadd.f32 %v4041, %v4403
        %v4475 = vadd.f32 %v4042, %v4406
        %v4476 = vadd.f32 %v4043, %v4409
        %v4477 = vadd.f32 %v4044, %v4412
        %v4478 = vadd.f32 %v4045, %v4415
        %v4479 = vadd.f32 %v4046, %v4418
        %v4480 = vadd.f32 %v4047, %v4421
        %v4481 = vadd.f32 %v4048, %v4424
        %v4482 = vadd.f32 %v4049, %v4427
        %v4483 = vadd.f32 %v4050, %v4430
        %v4484 = vadd.f32 %v4051, %v4433
        %v4485 = vadd.f32 %v4052, %v4436
        %v4486 = vadd.f32 %v4053, %v4439
        %v4487 = vadd.f32 %v4054, %v4442
        %v4488 = vadd.f32 %v4055, %v4445
        %v4489 = vadd.f32 %v4056, %v4448
        %v4490 = vadd.f32 %v4057, %v4451
        %v4491 = vadd.f32 %v4058, %v4454
        %v4492 = vadd.f32 %v4059, %v4457
        %v4493 = vadd.f32 %v4060, %v4460
        %v4494 = vld [vmem:[#allocation2 + $0x22] sm:$0xff]
        %v4495 = vld [vmem:[#allocation2 + $0x2a] sm:$0xff]
        %v4496 = vld [vmem:[#allocation2 + $0x32] sm:$0xff]
        %v4497 = vld [vmem:[#allocation2 + $0x3a] sm:$0xff]
        %v4498 = vld [vmem:[#allocation2 + $0x42] sm:$0xff]
        %v4499 = vld [vmem:[#allocation2 + $0x4a] sm:$0xff]
        %v4500 = vld [vmem:[#allocation2 + $0x52] sm:$0xff]
        %v4501 = vld [vmem:[#allocation2 + $0x5a] sm:$0xff]
        %v4502 = vld [vmem:[#allocation2 + $0x62] sm:$0xff]
        %v4503 = vld [vmem:[#allocation2 + $0x6a] sm:$0xff]
        %v4504 = vld [vmem:[#allocation2 + $0x72] sm:$0xff]
        %v4505 = vld [vmem:[#allocation2 + $0x7a] sm:$0xff]
        %v4506 = vld [vmem:[#allocation2 + $0x82] sm:$0xff]
        %v4507 = vld [vmem:[#allocation2 + $0x8a] sm:$0xff]
        %v4508 = vld [vmem:[#allocation2 + $0x92] sm:$0xff]
        %v4509 = vld [vmem:[#allocation2 + $0x9a] sm:$0xff]
        %v4510 = vld [vmem:[#allocation2 + $0xa2] sm:$0xff]
        %v4511 = vld [vmem:[#allocation2 + $0xaa] sm:$0xff]
        %v4512 = vld [vmem:[#allocation2 + $0xb2] sm:$0xff]
        %v4513 = vld [vmem:[#allocation2 + $0xba] sm:$0xff]
        %v4514 = vld [vmem:[#allocation2 + $0xc2] sm:$0xff]
        %v4515 = vld [vmem:[#allocation2 + $0xca] sm:$0xff]
        %v4516 = vld [vmem:[#allocation2 + $0xd2] sm:$0xff]
        %v4517 = vld [vmem:[#allocation2 + $0xda] sm:$0xff]
        %v4518 = vld [vmem:[#allocation2 + $0xe2] sm:$0xff]
        %v4519 = vld [vmem:[#allocation2 + $0xea] sm:$0xff]
        %v4520 = vld [vmem:[#allocation2 + $0xf2] sm:$0xff]
        %v4521 = vld [vmem:[#allocation2 + $0xfa] sm:$0xff]
        %v4522 = vld [vmem:[#allocation2 + $0x102] sm:$0xff]
        %v4523 = vld [vmem:[#allocation2 + $0x10a] sm:$0xff]
        %v4524 = vld [vmem:[#allocation2 + $0x112] sm:$0xff]
        %v4525 = vld [vmem:[#allocation2 + $0x11a] sm:$0xff]
        %4526 = vset.pattern.permute.xlu0 8
        %4527 = vperm.xlu0 %4526, %v906
        %v4528 = vpop.permute.xlu0 %4527
        %4530 = vset.pattern.permute.xlu0 8
        %4531 = vperm.xlu0 %4530, %v907
        %v4532 = vpop.permute.xlu0 %4531
        %4534 = vset.pattern.permute.xlu0 8
        %4535 = vperm.xlu0 %4534, %v908
        %v4536 = vpop.permute.xlu0 %4535
        %4538 = vset.pattern.permute.xlu0 8
        %4539 = vperm.xlu0 %4538, %v909
        %v4540 = vpop.permute.xlu0 %4539
        %4542 = vset.pattern.permute.xlu0 8
        %4543 = vperm.xlu0 %4542, %v910
        %v4544 = vpop.permute.xlu0 %4543
        %4546 = vset.pattern.permute.xlu0 8
        %4547 = vperm.xlu0 %4546, %v911
        %v4548 = vpop.permute.xlu0 %4547
        %4550 = vset.pattern.permute.xlu0 8
        %4551 = vperm.xlu0 %4550, %v912
        %v4552 = vpop.permute.xlu0 %4551
        %4554 = vset.pattern.permute.xlu0 8
        %4555 = vperm.xlu0 %4554, %v913
        %v4556 = vpop.permute.xlu0 %4555
        %4558 = vset.pattern.permute.xlu0 8
        %4559 = vperm.xlu0 %4558, %v914
        %v4560 = vpop.permute.xlu0 %4559
        %4562 = vset.pattern.permute.xlu0 8
        %4563 = vperm.xlu0 %4562, %v915
        %v4564 = vpop.permute.xlu0 %4563
        %4566 = vset.pattern.permute.xlu0 8
        %4567 = vperm.xlu0 %4566, %v916
        %v4568 = vpop.permute.xlu0 %4567
        %4570 = vset.pattern.permute.xlu0 8
        %4571 = vperm.xlu0 %4570, %v917
        %v4572 = vpop.permute.xlu0 %4571
        %4574 = vset.pattern.permute.xlu0 8
        %4575 = vperm.xlu0 %4574, %v918
        %v4576 = vpop.permute.xlu0 %4575
        %4578 = vset.pattern.permute.xlu0 8
        %4579 = vperm.xlu0 %4578, %v919
        %v4580 = vpop.permute.xlu0 %4579
        %4582 = vset.pattern.permute.xlu0 8
        %4583 = vperm.xlu0 %4582, %v920
        %v4584 = vpop.permute.xlu0 %4583
        %4586 = vset.pattern.permute.xlu0 8
        %4587 = vperm.xlu0 %4586, %v921
        %v4588 = vpop.permute.xlu0 %4587
        %4590 = vset.pattern.permute.xlu0 8
        %4591 = vperm.xlu0 %4590, %v922
        %v4592 = vpop.permute.xlu0 %4591
        %4594 = vset.pattern.permute.xlu0 8
        %4595 = vperm.xlu0 %4594, %v923
        %v4596 = vpop.permute.xlu0 %4595
        %4598 = vset.pattern.permute.xlu0 8
        %4599 = vperm.xlu0 %4598, %v924
        %v4600 = vpop.permute.xlu0 %4599
        %4602 = vset.pattern.permute.xlu0 8
        %4603 = vperm.xlu0 %4602, %v925
        %v4604 = vpop.permute.xlu0 %4603
        %4606 = vset.pattern.permute.xlu0 8
        %4607 = vperm.xlu0 %4606, %v926
        %v4608 = vpop.permute.xlu0 %4607
        %4610 = vset.pattern.permute.xlu0 8
        %4611 = vperm.xlu0 %4610, %v927
        %v4612 = vpop.permute.xlu0 %4611
        %4614 = vset.pattern.permute.xlu0 8
        %4615 = vperm.xlu0 %4614, %v928
        %v4616 = vpop.permute.xlu0 %4615
        %4618 = vset.pattern.permute.xlu0 8
        %4619 = vperm.xlu0 %4618, %v929
        %v4620 = vpop.permute.xlu0 %4619
        %4622 = vset.pattern.permute.xlu0 8
        %4623 = vperm.xlu0 %4622, %v930
        %v4624 = vpop.permute.xlu0 %4623
        %4626 = vset.pattern.permute.xlu0 8
        %4627 = vperm.xlu0 %4626, %v931
        %v4628 = vpop.permute.xlu0 %4627
        %4630 = vset.pattern.permute.xlu0 8
        %4631 = vperm.xlu0 %4630, %v932
        %v4632 = vpop.permute.xlu0 %4631
        %4634 = vset.pattern.permute.xlu0 8
        %4635 = vperm.xlu0 %4634, %v933
        %v4636 = vpop.permute.xlu0 %4635
        %4638 = vset.pattern.permute.xlu0 8
        %4639 = vperm.xlu0 %4638, %v934
        %v4640 = vpop.permute.xlu0 %4639
        %4642 = vset.pattern.permute.xlu0 8
        %4643 = vperm.xlu0 %4642, %v935
        %v4644 = vpop.permute.xlu0 %4643
        %4646 = vset.pattern.permute.xlu0 8
        %4647 = vperm.xlu0 %4646, %v936
        %v4648 = vpop.permute.xlu0 %4647
        %4650 = vset.pattern.permute.xlu0 8
        %4651 = vperm.xlu0 %4650, %v937
        %v4652 = vpop.permute.xlu0 %4651
        %v4654 = vmul.f32 %v4494, %v4528
        %v4655 = vmul.f32 %v4495, %v4532
        %v4656 = vmul.f32 %v4496, %v4536
        %v4657 = vmul.f32 %v4497, %v4540
        %v4658 = vmul.f32 %v4498, %v4544
        %v4659 = vmul.f32 %v4499, %v4548
        %v4660 = vmul.f32 %v4500, %v4552
        %v4661 = vmul.f32 %v4501, %v4556
        %v4662 = vmul.f32 %v4502, %v4560
        %v4663 = vmul.f32 %v4503, %v4564
        %v4664 = vmul.f32 %v4504, %v4568
        %v4665 = vmul.f32 %v4505, %v4572
        %v4666 = vmul.f32 %v4506, %v4576
        %v4667 = vmul.f32 %v4507, %v4580
        %v4668 = vmul.f32 %v4508, %v4584
        %v4669 = vmul.f32 %v4509, %v4588
        %v4670 = vmul.f32 %v4510, %v4592
        %v4671 = vmul.f32 %v4511, %v4596
        %v4672 = vmul.f32 %v4512, %v4600
        %v4673 = vmul.f32 %v4513, %v4604
        %v4674 = vmul.f32 %v4514, %v4608
        %v4675 = vmul.f32 %v4515, %v4612
        %v4676 = vmul.f32 %v4516, %v4616
        %v4677 = vmul.f32 %v4517, %v4620
        %v4678 = vmul.f32 %v4518, %v4624
        %v4679 = vmul.f32 %v4519, %v4628
        %v4680 = vmul.f32 %v4520, %v4632
        %v4681 = vmul.f32 %v4521, %v4636
        %v4682 = vmul.f32 %v4522, %v4640
        %v4683 = vmul.f32 %v4523, %v4644
        %v4684 = vmul.f32 %v4524, %v4648
        %v4685 = vmul.f32 %v4525, %v4652
        %v4687 = vsel %vm1022, %v4654, 0
        %v4690 = vsel %vm1022, %v4655, 0
        %v4693 = vsel %vm1022, %v4656, 0
        %v4696 = vsel %vm1022, %v4657, 0
        %v4699 = vsel %vm1022, %v4658, 0
        %v4702 = vsel %vm1022, %v4659, 0
        %v4705 = vsel %vm1022, %v4660, 0
        %v4708 = vsel %vm1022, %v4661, 0
        %v4711 = vsel %vm1022, %v4662, 0
        %v4714 = vsel %vm1022, %v4663, 0
        %v4717 = vsel %vm1022, %v4664, 0
        %v4720 = vsel %vm1022, %v4665, 0
        %v4723 = vsel %vm1022, %v4666, 0
        %v4726 = vsel %vm1022, %v4667, 0
        %v4729 = vsel %vm1022, %v4668, 0
        %v4732 = vsel %vm1022, %v4669, 0
        %v4735 = vsel %vm1022, %v4670, 0
        %v4738 = vsel %vm1022, %v4671, 0
        %v4741 = vsel %vm1022, %v4672, 0
        %v4744 = vsel %vm1022, %v4673, 0
        %v4747 = vsel %vm1022, %v4674, 0
        %v4750 = vsel %vm1022, %v4675, 0
        %v4753 = vsel %vm1022, %v4676, 0
        %v4756 = vsel %vm1022, %v4677, 0
        %v4759 = vsel %vm1022, %v4678, 0
        %v4762 = vsel %vm1022, %v4679, 0
        %v4765 = vsel %vm1022, %v4680, 0
        %v4768 = vsel %vm1022, %v4681, 0
        %v4771 = vsel %vm1022, %v4682, 0
        %v4774 = vsel %vm1022, %v4683, 0
        %v4777 = vsel %vm1022, %v4684, 0
        %v4780 = vsel %vm1022, %v4685, 0
        %4782 = vmatpush.msra.mxu0 0.0
        %4783 = vmatpush.msra.mxu0 0.0
        %4784 = vmatpush.msra.mxu0 0.0
        %4785 = vmatpush.msra.mxu0 0.0
        %4786 = vmatpush.msra.mxu0 0.0
        %4787 = vmatpush.msra.mxu0 0.0
        %4788 = vmatpush.msra.mxu0 0.0
        %4789 = vmatpush.msra.mxu0 0.0
        %4790 = vmatpush.msra.mxu0 0.0
        %4791 = vmatpush.msra.mxu0 0.0
        %4792 = vmatpush.msra.mxu0 0.0
        %4793 = vmatpush.msra.mxu0 0.0
        %4794 = vmatpush.msra.mxu0 %v983
        %4795 = vmatpush.msra.mxu0 %v982
        %4796 = vmatpush.msra.mxu0 %v981
        %4797 = vmatpush.msra.mxu0 %v980
        %4798 = vmatmul.f32.gmra.mxu0 %v4687
        %v4799 = vpop.f32.mrf.mxu0
        %v4800 = vadd.f32 0.0, %v4799
        %4801 = vmatmul.f32.gmra.mxu0 %v4690
        %v4802 = vpop.f32.mrf.mxu0
        %v4803 = vadd.f32 0.0, %v4802
        %4804 = vmatmul.f32.gmra.mxu0 %v4693
        %v4805 = vpop.f32.mrf.mxu0
        %v4806 = vadd.f32 0.0, %v4805
        %4807 = vmatmul.f32.gmra.mxu0 %v4696
        %v4808 = vpop.f32.mrf.mxu0
        %v4809 = vadd.f32 0.0, %v4808
        %4810 = vmatmul.f32.gmra.mxu0 %v4699
        %v4811 = vpop.f32.mrf.mxu0
        %v4812 = vadd.f32 0.0, %v4811
        %4813 = vmatmul.f32.gmra.mxu0 %v4702
        %v4814 = vpop.f32.mrf.mxu0
        %v4815 = vadd.f32 0.0, %v4814
        %4816 = vmatmul.f32.gmra.mxu0 %v4705
        %v4817 = vpop.f32.mrf.mxu0
        %v4818 = vadd.f32 0.0, %v4817
        %4819 = vmatmul.f32.gmra.mxu0 %v4708
        %v4820 = vpop.f32.mrf.mxu0
        %v4821 = vadd.f32 0.0, %v4820
        %4822 = vmatmul.f32.gmra.mxu0 %v4711
        %v4823 = vpop.f32.mrf.mxu0
        %v4824 = vadd.f32 0.0, %v4823
        %4825 = vmatmul.f32.gmra.mxu0 %v4714
        %v4826 = vpop.f32.mrf.mxu0
        %v4827 = vadd.f32 0.0, %v4826
        %4828 = vmatmul.f32.gmra.mxu0 %v4717
        %v4829 = vpop.f32.mrf.mxu0
        %v4830 = vadd.f32 0.0, %v4829
        %4831 = vmatmul.f32.gmra.mxu0 %v4720
        %v4832 = vpop.f32.mrf.mxu0
        %v4833 = vadd.f32 0.0, %v4832
        %4834 = vmatmul.f32.gmra.mxu0 %v4723
        %v4835 = vpop.f32.mrf.mxu0
        %v4836 = vadd.f32 0.0, %v4835
        %4837 = vmatmul.f32.gmra.mxu0 %v4726
        %v4838 = vpop.f32.mrf.mxu0
        %v4839 = vadd.f32 0.0, %v4838
        %4840 = vmatmul.f32.gmra.mxu0 %v4729
        %v4841 = vpop.f32.mrf.mxu0
        %v4842 = vadd.f32 0.0, %v4841
        %4843 = vmatmul.f32.gmra.mxu0 %v4732
        %v4844 = vpop.f32.mrf.mxu0
        %v4845 = vadd.f32 0.0, %v4844
        %4846 = vmatmul.f32.gmra.mxu0 %v4735
        %v4847 = vpop.f32.mrf.mxu0
        %v4848 = vadd.f32 0.0, %v4847
        %4849 = vmatmul.f32.gmra.mxu0 %v4738
        %v4850 = vpop.f32.mrf.mxu0
        %v4851 = vadd.f32 0.0, %v4850
        %4852 = vmatmul.f32.gmra.mxu0 %v4741
        %v4853 = vpop.f32.mrf.mxu0
        %v4854 = vadd.f32 0.0, %v4853
        %4855 = vmatmul.f32.gmra.mxu0 %v4744
        %v4856 = vpop.f32.mrf.mxu0
        %v4857 = vadd.f32 0.0, %v4856
        %4858 = vmatmul.f32.gmra.mxu0 %v4747
        %v4859 = vpop.f32.mrf.mxu0
        %v4860 = vadd.f32 0.0, %v4859
        %4861 = vmatmul.f32.gmra.mxu0 %v4750
        %v4862 = vpop.f32.mrf.mxu0
        %v4863 = vadd.f32 0.0, %v4862
        %4864 = vmatmul.f32.gmra.mxu0 %v4753
        %v4865 = vpop.f32.mrf.mxu0
        %v4866 = vadd.f32 0.0, %v4865
        %4867 = vmatmul.f32.gmra.mxu0 %v4756
        %v4868 = vpop.f32.mrf.mxu0
        %v4869 = vadd.f32 0.0, %v4868
        %4870 = vmatmul.f32.gmra.mxu0 %v4759
        %v4871 = vpop.f32.mrf.mxu0
        %v4872 = vadd.f32 0.0, %v4871
        %4873 = vmatmul.f32.gmra.mxu0 %v4762
        %v4874 = vpop.f32.mrf.mxu0
        %v4875 = vadd.f32 0.0, %v4874
        %4876 = vmatmul.f32.gmra.mxu0 %v4765
        %v4877 = vpop.f32.mrf.mxu0
        %v4878 = vadd.f32 0.0, %v4877
        %4879 = vmatmul.f32.gmra.mxu0 %v4768
        %v4880 = vpop.f32.mrf.mxu0
        %v4881 = vadd.f32 0.0, %v4880
        %4882 = vmatmul.f32.gmra.mxu0 %v4771
        %v4883 = vpop.f32.mrf.mxu0
        %v4884 = vadd.f32 0.0, %v4883
        %4885 = vmatmul.f32.gmra.mxu0 %v4774
        %v4886 = vpop.f32.mrf.mxu0
        %v4887 = vadd.f32 0.0, %v4886
        %4888 = vmatmul.f32.gmra.mxu0 %v4777
        %v4889 = vpop.f32.mrf.mxu0
        %v4890 = vadd.f32 0.0, %v4889
        %4891 = vmatmul.f32.gmra.mxu0 %v4780
        %v4892 = vpop.f32.mrf.mxu0
        %v4893 = vadd.f32 0.0, %v4892
        %4894 = vdwg.mxu0
        %v4895 = vadd.f32 %v4462, %v4800
        %v4896 = vadd.f32 %v4463, %v4803
        %v4897 = vadd.f32 %v4464, %v4806
        %v4898 = vadd.f32 %v4465, %v4809
        %v4899 = vadd.f32 %v4466, %v4812
        %v4900 = vadd.f32 %v4467, %v4815
        %v4901 = vadd.f32 %v4468, %v4818
        %v4902 = vadd.f32 %v4469, %v4821
        %v4903 = vadd.f32 %v4470, %v4824
        %v4904 = vadd.f32 %v4471, %v4827
        %v4905 = vadd.f32 %v4472, %v4830
        %v4906 = vadd.f32 %v4473, %v4833
        %v4907 = vadd.f32 %v4474, %v4836
        %v4908 = vadd.f32 %v4475, %v4839
        %v4909 = vadd.f32 %v4476, %v4842
        %v4910 = vadd.f32 %v4477, %v4845
        %v4911 = vadd.f32 %v4478, %v4848
        %v4912 = vadd.f32 %v4479, %v4851
        %v4913 = vadd.f32 %v4480, %v4854
        %v4914 = vadd.f32 %v4481, %v4857
        %v4915 = vadd.f32 %v4482, %v4860
        %v4916 = vadd.f32 %v4483, %v4863
        %v4917 = vadd.f32 %v4484, %v4866
        %v4918 = vadd.f32 %v4485, %v4869
        %v4919 = vadd.f32 %v4486, %v4872
        %v4920 = vadd.f32 %v4487, %v4875
        %v4921 = vadd.f32 %v4488, %v4878
        %v4922 = vadd.f32 %v4489, %v4881
        %v4923 = vadd.f32 %v4490, %v4884
        %v4924 = vadd.f32 %v4491, %v4887
        %v4925 = vadd.f32 %v4492, %v4890
        %v4926 = vadd.f32 %v4493, %v4893
        %v4928 = vperm.slane %v984, 0
        %v4930 = vadd.f32 %v4895, %v4928
        %v4931 = vadd.f32 %v4896, %v4928
        %v4932 = vadd.f32 %v4897, %v4928
        %v4933 = vadd.f32 %v4898, %v4928
        %v4934 = vadd.f32 %v4899, %v4928
        %v4935 = vadd.f32 %v4900, %v4928
        %v4936 = vadd.f32 %v4901, %v4928
        %v4937 = vadd.f32 %v4902, %v4928
        %v4938 = vadd.f32 %v4903, %v4928
        %v4939 = vadd.f32 %v4904, %v4928
        %v4940 = vadd.f32 %v4905, %v4928
        %v4941 = vadd.f32 %v4906, %v4928
        %v4942 = vadd.f32 %v4907, %v4928
        %v4943 = vadd.f32 %v4908, %v4928
        %v4944 = vadd.f32 %v4909, %v4928
        %v4945 = vadd.f32 %v4910, %v4928
        %v4946 = vadd.f32 %v4911, %v4928
        %v4947 = vadd.f32 %v4912, %v4928
        %v4948 = vadd.f32 %v4913, %v4928
        %v4949 = vadd.f32 %v4914, %v4928
        %v4950 = vadd.f32 %v4915, %v4928
        %v4951 = vadd.f32 %v4916, %v4928
        %v4952 = vadd.f32 %v4917, %v4928
        %v4953 = vadd.f32 %v4918, %v4928
        %v4954 = vadd.f32 %v4919, %v4928
        %v4955 = vadd.f32 %v4920, %v4928
        %v4956 = vadd.f32 %v4921, %v4928
        %v4957 = vadd.f32 %v4922, %v4928
        %v4958 = vadd.f32 %v4923, %v4928
        %v4959 = vadd.f32 %v4924, %v4928
        %v4960 = vadd.f32 %v4925, %v4928
        %v4961 = vadd.f32 %v4926, %v4928
        %vm4962 = vcmp.ge.f32.partialorder %v4930, 0.0
        %vm4963 = vcmp.ge.f32.partialorder %v4931, 0.0
        %vm4964 = vcmp.ge.f32.partialorder %v4932, 0.0
        %vm4965 = vcmp.ge.f32.partialorder %v4933, 0.0
        %vm4966 = vcmp.ge.f32.partialorder %v4934, 0.0
        %vm4967 = vcmp.ge.f32.partialorder %v4935, 0.0
        %vm4968 = vcmp.ge.f32.partialorder %v4936, 0.0
        %vm4969 = vcmp.ge.f32.partialorder %v4937, 0.0
        %vm4970 = vcmp.ge.f32.partialorder %v4938, 0.0
        %vm4971 = vcmp.ge.f32.partialorder %v4939, 0.0
        %vm4972 = vcmp.ge.f32.partialorder %v4940, 0.0
        %vm4973 = vcmp.ge.f32.partialorder %v4941, 0.0
        %vm4974 = vcmp.ge.f32.partialorder %v4942, 0.0
        %vm4975 = vcmp.ge.f32.partialorder %v4943, 0.0
        %vm4976 = vcmp.ge.f32.partialorder %v4944, 0.0
        %vm4977 = vcmp.ge.f32.partialorder %v4945, 0.0
        %vm4978 = vcmp.ge.f32.partialorder %v4946, 0.0
        %vm4979 = vcmp.ge.f32.partialorder %v4947, 0.0
        %vm4980 = vcmp.ge.f32.partialorder %v4948, 0.0
        %vm4981 = vcmp.ge.f32.partialorder %v4949, 0.0
        %vm4982 = vcmp.ge.f32.partialorder %v4950, 0.0
        %vm4983 = vcmp.ge.f32.partialorder %v4951, 0.0
        %vm4984 = vcmp.ge.f32.partialorder %v4952, 0.0
        %vm4985 = vcmp.ge.f32.partialorder %v4953, 0.0
        %vm4986 = vcmp.ge.f32.partialorder %v4954, 0.0
        %vm4987 = vcmp.ge.f32.partialorder %v4955, 0.0
        %vm4988 = vcmp.ge.f32.partialorder %v4956, 0.0
        %vm4989 = vcmp.ge.f32.partialorder %v4957, 0.0
        %vm4990 = vcmp.ge.f32.partialorder %v4958, 0.0
        %vm4991 = vcmp.ge.f32.partialorder %v4959, 0.0
        %vm4992 = vcmp.ge.f32.partialorder %v4960, 0.0
        %vm4993 = vcmp.ge.f32.partialorder %v4961, 0.0
        %v4994 = vmul.f32 %v4930, 0.01
        %v4995 = vmul.f32 %v4931, 0.01
        %v4996 = vmul.f32 %v4932, 0.01
        %v4997 = vmul.f32 %v4933, 0.01
        %v4998 = vmul.f32 %v4934, 0.01
        %v4999 = vmul.f32 %v4935, 0.01
        %v5000 = vmul.f32 %v4936, 0.01
        %v5001 = vmul.f32 %v4937, 0.01
        %v5002 = vmul.f32 %v4938, 0.01
        %v5003 = vmul.f32 %v4939, 0.01
        %v5004 = vmul.f32 %v4940, 0.01
        %v5005 = vmul.f32 %v4941, 0.01
        %v5006 = vmul.f32 %v4942, 0.01
        %v5007 = vmul.f32 %v4943, 0.01
        %v5008 = vmul.f32 %v4944, 0.01
        %v5009 = vmul.f32 %v4945, 0.01
        %v5010 = vmul.f32 %v4946, 0.01
        %v5011 = vmul.f32 %v4947, 0.01
        %v5012 = vmul.f32 %v4948, 0.01
        %v5013 = vmul.f32 %v4949, 0.01
        %v5014 = vmul.f32 %v4950, 0.01
        %v5015 = vmul.f32 %v4951, 0.01
        %v5016 = vmul.f32 %v4952, 0.01
        %v5017 = vmul.f32 %v4953, 0.01
        %v5018 = vmul.f32 %v4954, 0.01
        %v5019 = vmul.f32 %v4955, 0.01
        %v5020 = vmul.f32 %v4956, 0.01
        %v5021 = vmul.f32 %v4957, 0.01
        %v5022 = vmul.f32 %v4958, 0.01
        %v5023 = vmul.f32 %v4959, 0.01
        %v5024 = vmul.f32 %v4960, 0.01
        %v5025 = vmul.f32 %v4961, 0.01
        %v5026 = vsel %vm4962, %v4930, %v4994
        %v5027 = vsel %vm4963, %v4931, %v4995
        %v5028 = vsel %vm4964, %v4932, %v4996
        %v5029 = vsel %vm4965, %v4933, %v4997
        %v5030 = vsel %vm4966, %v4934, %v4998
        %v5031 = vsel %vm4967, %v4935, %v4999
        %v5032 = vsel %vm4968, %v4936, %v5000
        %v5033 = vsel %vm4969, %v4937, %v5001
        %v5034 = vsel %vm4970, %v4938, %v5002
        %v5035 = vsel %vm4971, %v4939, %v5003
        %v5036 = vsel %vm4972, %v4940, %v5004
        %v5037 = vsel %vm4973, %v4941, %v5005
        %v5038 = vsel %vm4974, %v4942, %v5006
        %v5039 = vsel %vm4975, %v4943, %v5007
        %v5040 = vsel %vm4976, %v4944, %v5008
        %v5041 = vsel %vm4977, %v4945, %v5009
        %v5042 = vsel %vm4978, %v4946, %v5010
        %v5043 = vsel %vm4979, %v4947, %v5011
        %v5044 = vsel %vm4980, %v4948, %v5012
        %v5045 = vsel %vm4981, %v4949, %v5013
        %v5046 = vsel %vm4982, %v4950, %v5014
        %v5047 = vsel %vm4983, %v4951, %v5015
        %v5048 = vsel %vm4984, %v4952, %v5016
        %v5049 = vsel %vm4985, %v4953, %v5017
        %v5050 = vsel %vm4986, %v4954, %v5018
        %v5051 = vsel %vm4987, %v4955, %v5019
        %v5052 = vsel %vm4988, %v4956, %v5020
        %v5053 = vsel %vm4989, %v4957, %v5021
        %v5054 = vsel %vm4990, %v4958, %v5022
        %v5055 = vsel %vm4991, %v4959, %v5023
        %v5056 = vsel %vm4992, %v4960, %v5024
        %v5057 = vsel %vm4993, %v4961, %v5025
        %5090 = vrot.lane.b32.xlu0 %v4895, 96
        %v5091 = vpop.permute.xlu0 %5090
        %5092 = vrot.lane.b32.xlu0 %v4896, 96
        %v5093 = vpop.permute.xlu0 %5092
        %5094 = vrot.lane.b32.xlu0 %v4897, 96
        %v5095 = vpop.permute.xlu0 %5094
        %5096 = vrot.lane.b32.xlu0 %v4898, 96
        %v5097 = vpop.permute.xlu0 %5096
        %5098 = vrot.lane.b32.xlu0 %v4899, 96
        %v5099 = vpop.permute.xlu0 %5098
        %5100 = vrot.lane.b32.xlu0 %v4900, 96
        %v5101 = vpop.permute.xlu0 %5100
        %5102 = vrot.lane.b32.xlu0 %v4901, 96
        %v5103 = vpop.permute.xlu0 %5102
        %5104 = vrot.lane.b32.xlu0 %v4902, 96
        %v5105 = vpop.permute.xlu0 %5104
        %5106 = vrot.lane.b32.xlu0 %v4903, 96
        %v5107 = vpop.permute.xlu0 %5106
        %5108 = vrot.lane.b32.xlu0 %v4904, 96
        %v5109 = vpop.permute.xlu0 %5108
        %5110 = vrot.lane.b32.xlu0 %v4905, 96
        %v5111 = vpop.permute.xlu0 %5110
        %5112 = vrot.lane.b32.xlu0 %v4906, 96
        %v5113 = vpop.permute.xlu0 %5112
        %5114 = vrot.lane.b32.xlu0 %v4907, 96
        %v5115 = vpop.permute.xlu0 %5114
        %5116 = vrot.lane.b32.xlu0 %v4908, 96
        %v5117 = vpop.permute.xlu0 %5116
        %5118 = vrot.lane.b32.xlu0 %v4909, 96
        %v5119 = vpop.permute.xlu0 %5118
        %5120 = vrot.lane.b32.xlu0 %v4910, 96
        %v5121 = vpop.permute.xlu0 %5120
        %5122 = vrot.lane.b32.xlu0 %v4911, 96
        %v5123 = vpop.permute.xlu0 %5122
        %5124 = vrot.lane.b32.xlu0 %v4912, 96
        %v5125 = vpop.permute.xlu0 %5124
        %5126 = vrot.lane.b32.xlu0 %v4913, 96
        %v5127 = vpop.permute.xlu0 %5126
        %5128 = vrot.lane.b32.xlu0 %v4914, 96
        %v5129 = vpop.permute.xlu0 %5128
        %5130 = vrot.lane.b32.xlu0 %v4915, 96
        %v5131 = vpop.permute.xlu0 %5130
        %5132 = vrot.lane.b32.xlu0 %v4916, 96
        %v5133 = vpop.permute.xlu0 %5132
        %5134 = vrot.lane.b32.xlu0 %v4917, 96
        %v5135 = vpop.permute.xlu0 %5134
        %5136 = vrot.lane.b32.xlu0 %v4918, 96
        %v5137 = vpop.permute.xlu0 %5136
        %5138 = vrot.lane.b32.xlu0 %v4919, 96
        %v5139 = vpop.permute.xlu0 %5138
        %5140 = vrot.lane.b32.xlu0 %v4920, 96
        %v5141 = vpop.permute.xlu0 %5140
        %5142 = vrot.lane.b32.xlu0 %v4921, 96
        %v5143 = vpop.permute.xlu0 %5142
        %5144 = vrot.lane.b32.xlu0 %v4922, 96
        %v5145 = vpop.permute.xlu0 %5144
        %5146 = vrot.lane.b32.xlu0 %v4923, 96
        %v5147 = vpop.permute.xlu0 %5146
        %5148 = vrot.lane.b32.xlu0 %v4924, 96
        %v5149 = vpop.permute.xlu0 %5148
        %5150 = vrot.lane.b32.xlu0 %v4925, 96
        %v5151 = vpop.permute.xlu0 %5150
        %5152 = vrot.lane.b32.xlu0 %v4926, 96
        %v5153 = vpop.permute.xlu0 %5152
        %5186 = vrot.lane.b32.xlu0 %v4928, 96
        %v5187 = vpop.permute.xlu0 %5186
        %5189 = vmatpush.msra.mxu0 %v5121
        %5190 = vmatpush.msra.mxu0 %v5119
        %5191 = vmatpush.msra.mxu0 %v5117
        %5192 = vmatpush.msra.mxu0 %v5115
        %5193 = vmatpush.msra.mxu0 %v5113
        %5194 = vmatpush.msra.mxu0 %v5111
        %5195 = vmatpush.msra.mxu0 %v5109
        %5196 = vmatpush.msra.mxu0 %v5107
        %5197 = vmatpush.msra.mxu0 %v5105
        %5198 = vmatpush.msra.mxu0 %v5103
        %5199 = vmatpush.msra.mxu0 %v5101
        %5200 = vmatpush.msra.mxu0 %v5099
        %5201 = vmatpush.msra.mxu0 %v5097
        %5202 = vmatpush.msra.mxu0 %v5095
        %5203 = vmatpush.msra.mxu0 %v5093
        %5204 = vmatpush.msra.mxu0 %v5091
        %5205 = vmatmul.f32.gmra.mxu0 %v938
        %v5206 = vpop.f32.mrf.mxu0
        %v5207 = vadd.f32 %v5187, %v5206
        %5208 = vmatmul.f32.gmra.mxu0 %v940
        %v5209 = vpop.f32.mrf.mxu0
        %v5210 = vadd.f32 %v5187, %v5209
        %5211 = vmatmul.f32.gmra.mxu0 %v942
        %v5212 = vpop.f32.mrf.mxu0
        %v5213 = vadd.f32 %v5187, %v5212
        %5214 = vmatmul.f32.gmra.mxu0 %v944
        %v5215 = vpop.f32.mrf.mxu0
        %v5216 = vadd.f32 %v5187, %v5215
        %5217 = vmatmul.f32.gmra.mxu0 %v946
        %v5218 = vpop.f32.mrf.mxu0
        %v5219 = vadd.f32 %v5187, %v5218
        %5220 = vdwg.mxu0
        %5221 = vmatpush.msra.mxu0 %v5153
        %5222 = vmatpush.msra.mxu0 %v5151
        %5223 = vmatpush.msra.mxu0 %v5149
        %5224 = vmatpush.msra.mxu0 %v5147
        %5225 = vmatpush.msra.mxu0 %v5145
        %5226 = vmatpush.msra.mxu0 %v5143
        %5227 = vmatpush.msra.mxu0 %v5141
        %5228 = vmatpush.msra.mxu0 %v5139
        %5229 = vmatpush.msra.mxu0 %v5137
        %5230 = vmatpush.msra.mxu0 %v5135
        %5231 = vmatpush.msra.mxu0 %v5133
        %5232 = vmatpush.msra.mxu0 %v5131
        %5233 = vmatpush.msra.mxu0 %v5129
        %5234 = vmatpush.msra.mxu0 %v5127
        %5235 = vmatpush.msra.mxu0 %v5125
        %5236 = vmatpush.msra.mxu0 %v5123
        %5237 = vmatmul.f32.gmra.mxu0 %v939
        %v5238 = vpop.f32.mrf.mxu0
        %v5239 = vadd.f32 %v5207, %v5238
        %5240 = vmatmul.f32.gmra.mxu0 %v941
        %v5241 = vpop.f32.mrf.mxu0
        %v5242 = vadd.f32 %v5210, %v5241
        %5243 = vmatmul.f32.gmra.mxu0 %v943
        %v5244 = vpop.f32.mrf.mxu0
        %v5245 = vadd.f32 %v5213, %v5244
        %5246 = vmatmul.f32.gmra.mxu0 %v945
        %v5247 = vpop.f32.mrf.mxu0
        %v5248 = vadd.f32 %v5216, %v5247
        %5249 = vmatmul.f32.gmra.mxu0 %v947
        %v5250 = vpop.f32.mrf.mxu0
        %v5251 = vadd.f32 %v5219, %v5250
        %5252 = vdwg.mxu0
        %5253 = vst.msk [vmem:[#allocation2 + $0x11] sm:$0xff] %vm1022, %v5026
        %5254 = vst.msk [vmem:[#allocation2 + $0x19] sm:$0xff] %vm1022, %v5027
        %5255 = vst.msk [vmem:[#allocation2 + $0x21] sm:$0xff] %vm1022, %v5028
        %5256 = vst.msk [vmem:[#allocation2 + $0x29] sm:$0xff] %vm1022, %v5029
        %5257 = vst.msk [vmem:[#allocation2 + $0x31] sm:$0xff] %vm1022, %v5030
        %5258 = vst.msk [vmem:[#allocation2 + $0x39] sm:$0xff] %vm1022, %v5031
        %5259 = vst.msk [vmem:[#allocation2 + $0x41] sm:$0xff] %vm1022, %v5032
        %5260 = vst.msk [vmem:[#allocation2 + $0x49] sm:$0xff] %vm1022, %v5033
        %5261 = vst.msk [vmem:[#allocation2 + $0x51] sm:$0xff] %vm1022, %v5034
        %5262 = vst.msk [vmem:[#allocation2 + $0x59] sm:$0xff] %vm1022, %v5035
        %5263 = vst.msk [vmem:[#allocation2 + $0x61] sm:$0xff] %vm1022, %v5036
        %5264 = vst.msk [vmem:[#allocation2 + $0x69] sm:$0xff] %vm1022, %v5037
        %5265 = vst.msk [vmem:[#allocation2 + $0x71] sm:$0xff] %vm1022, %v5038
        %5266 = vst.msk [vmem:[#allocation2 + $0x79] sm:$0xff] %vm1022, %v5039
        %5267 = vst.msk [vmem:[#allocation2 + $0x81] sm:$0xff] %vm1022, %v5040
        %5268 = vst.msk [vmem:[#allocation2 + $0x89] sm:$0xff] %vm1022, %v5041
        %5269 = vst.msk [vmem:[#allocation2 + $0x91] sm:$0xff] %vm1022, %v5042
        %5270 = vst.msk [vmem:[#allocation2 + $0x99] sm:$0xff] %vm1022, %v5043
        %5271 = vst.msk [vmem:[#allocation2 + $0xa1] sm:$0xff] %vm1022, %v5044
        %5272 = vst.msk [vmem:[#allocation2 + $0xa9] sm:$0xff] %vm1022, %v5045
        %5273 = vst.msk [vmem:[#allocation2 + $0xb1] sm:$0xff] %vm1022, %v5046
        %5274 = vst.msk [vmem:[#allocation2 + $0xb9] sm:$0xff] %vm1022, %v5047
        %5275 = vst.msk [vmem:[#allocation2 + $0xc1] sm:$0xff] %vm1022, %v5048
        %5276 = vst.msk [vmem:[#allocation2 + $0xc9] sm:$0xff] %vm1022, %v5049
        %5277 = vst.msk [vmem:[#allocation2 + $0xd1] sm:$0xff] %vm1022, %v5050
        %5278 = vst.msk [vmem:[#allocation2 + $0xd9] sm:$0xff] %vm1022, %v5051
        %5279 = vst.msk [vmem:[#allocation2 + $0xe1] sm:$0xff] %vm1022, %v5052
        %5280 = vst.msk [vmem:[#allocation2 + $0xe9] sm:$0xff] %vm1022, %v5053
        %5281 = vst.msk [vmem:[#allocation2 + $0xf1] sm:$0xff] %vm1022, %v5054
        %5282 = vst.msk [vmem:[#allocation2 + $0xf9] sm:$0xff] %vm1022, %v5055
        %5283 = vst.msk [vmem:[#allocation2 + $0x101] sm:$0xff] %vm1022, %v5056
        %5284 = vst.msk [vmem:[#allocation2 + $0x109] sm:$0xff] %vm1022, %v5057
        %v5285 = vld [vmem:[#allocation2] sm:$0xff]
        %v5286 = vld [vmem:[#allocation2 + $0x8] sm:$0xff]
        %v5287 = vld [vmem:[#allocation2 + $0x10] sm:$0xff]
        %v5288 = vld [vmem:[#allocation2 + $0x18] sm:$0xff]
        %v5289 = vld [vmem:[#allocation2 + $0x20] sm:$0xff]
        %v5290 = vld [vmem:[#allocation2 + $0x28] sm:$0xff]
        %v5291 = vld [vmem:[#allocation2 + $0x30] sm:$0xff]
        %v5292 = vld [vmem:[#allocation2 + $0x38] sm:$0xff]
        %v5293 = vld [vmem:[#allocation2 + $0x40] sm:$0xff]
        %v5294 = vld [vmem:[#allocation2 + $0x48] sm:$0xff]
        %v5295 = vld [vmem:[#allocation2 + $0x50] sm:$0xff]
        %v5296 = vld [vmem:[#allocation2 + $0x58] sm:$0xff]
        %v5297 = vld [vmem:[#allocation2 + $0x60] sm:$0xff]
        %v5298 = vld [vmem:[#allocation2 + $0x68] sm:$0xff]
        %v5299 = vld [vmem:[#allocation2 + $0x70] sm:$0xff]
        %v5300 = vld [vmem:[#allocation2 + $0x78] sm:$0xff]
        %v5301 = vld [vmem:[#allocation2 + $0x80] sm:$0xff]
        %v5302 = vld [vmem:[#allocation2 + $0x88] sm:$0xff]
        %v5303 = vld [vmem:[#allocation2 + $0x90] sm:$0xff]
        %v5304 = vld [vmem:[#allocation2 + $0x98] sm:$0xff]
        %v5305 = vld [vmem:[#allocation2 + $0xa0] sm:$0xff]
        %v5306 = vld [vmem:[#allocation2 + $0xa8] sm:$0xff]
        %v5307 = vld [vmem:[#allocation2 + $0xb0] sm:$0xff]
        %v5308 = vld [vmem:[#allocation2 + $0xb8] sm:$0xff]
        %v5309 = vld [vmem:[#allocation2 + $0xc0] sm:$0xff]
        %v5310 = vld [vmem:[#allocation2 + $0xc8] sm:$0xff]
        %v5311 = vld [vmem:[#allocation2 + $0xd0] sm:$0xff]
        %v5312 = vld [vmem:[#allocation2 + $0xd8] sm:$0xff]
        %v5313 = vld [vmem:[#allocation2 + $0xe0] sm:$0xff]
        %v5314 = vld [vmem:[#allocation2 + $0xe8] sm:$0xff]
        %v5315 = vld [vmem:[#allocation2 + $0xf0] sm:$0xff]
        %v5316 = vld [vmem:[#allocation2 + $0xf8] sm:$0xff]
        %v5317 = vmul.f32 %v5285, %v1097
        %v5318 = vmul.f32 %v5286, %v1102
        %v5319 = vmul.f32 %v5287, %v1107
        %v5320 = vmul.f32 %v5288, %v1112
        %v5321 = vmul.f32 %v5289, %v1117
        %v5322 = vmul.f32 %v5290, %v1122
        %v5323 = vmul.f32 %v5291, %v1127
        %v5324 = vmul.f32 %v5292, %v1132
        %v5325 = vmul.f32 %v5293, %v1137
        %v5326 = vmul.f32 %v5294, %v1142
        %v5327 = vmul.f32 %v5295, %v1147
        %v5328 = vmul.f32 %v5296, %v1152
        %v5329 = vmul.f32 %v5297, %v1157
        %v5330 = vmul.f32 %v5298, %v1162
        %v5331 = vmul.f32 %v5299, %v1167
        %v5332 = vmul.f32 %v5300, %v1172
        %v5333 = vmul.f32 %v5301, %v1177
        %v5334 = vmul.f32 %v5302, %v1182
        %v5335 = vmul.f32 %v5303, %v1187
        %v5336 = vmul.f32 %v5304, %v1192
        %v5337 = vmul.f32 %v5305, %v1197
        %v5338 = vmul.f32 %v5306, %v1202
        %v5339 = vmul.f32 %v5307, %v1207
        %v5340 = vmul.f32 %v5308, %v1212
        %v5341 = vmul.f32 %v5309, %v1217
        %v5342 = vmul.f32 %v5310, %v1222
        %v5343 = vmul.f32 %v5311, %v1227
        %v5344 = vmul.f32 %v5312, %v1232
        %v5345 = vmul.f32 %v5313, %v1237
        %v5346 = vmul.f32 %v5314, %v1242
        %v5347 = vmul.f32 %v5315, %v1247
        %v5348 = vmul.f32 %v5316, %v1252
        %v5349 = vld [vmem:[#allocation2 + $0x1] sm:$0xff]
        %v5350 = vld [vmem:[#allocation2 + $0x9] sm:$0xff]
        %v5351 = vld [vmem:[#allocation2 + $0x11] sm:$0xff]
        %v5352 = vld [vmem:[#allocation2 + $0x19] sm:$0xff]
        %v5353 = vld [vmem:[#allocation2 + $0x21] sm:$0xff]
        %v5354 = vld [vmem:[#allocation2 + $0x29] sm:$0xff]
        %v5355 = vld [vmem:[#allocation2 + $0x31] sm:$0xff]
        %v5356 = vld [vmem:[#allocation2 + $0x39] sm:$0xff]
        %v5357 = vld [vmem:[#allocation2 + $0x41] sm:$0xff]
        %v5358 = vld [vmem:[#allocation2 + $0x49] sm:$0xff]
        %v5359 = vld [vmem:[#allocation2 + $0x51] sm:$0xff]
        %v5360 = vld [vmem:[#allocation2 + $0x59] sm:$0xff]
        %v5361 = vld [vmem:[#allocation2 + $0x61] sm:$0xff]
        %v5362 = vld [vmem:[#allocation2 + $0x69] sm:$0xff]
        %v5363 = vld [vmem:[#allocation2 + $0x71] sm:$0xff]
        %v5364 = vld [vmem:[#allocation2 + $0x79] sm:$0xff]
        %v5365 = vld [vmem:[#allocation2 + $0x81] sm:$0xff]
        %v5366 = vld [vmem:[#allocation2 + $0x89] sm:$0xff]
        %v5367 = vld [vmem:[#allocation2 + $0x91] sm:$0xff]
        %v5368 = vld [vmem:[#allocation2 + $0x99] sm:$0xff]
        %v5369 = vld [vmem:[#allocation2 + $0xa1] sm:$0xff]
        %v5370 = vld [vmem:[#allocation2 + $0xa9] sm:$0xff]
        %v5371 = vld [vmem:[#allocation2 + $0xb1] sm:$0xff]
        %v5372 = vld [vmem:[#allocation2 + $0xb9] sm:$0xff]
        %v5373 = vld [vmem:[#allocation2 + $0xc1] sm:$0xff]
        %v5374 = vld [vmem:[#allocation2 + $0xc9] sm:$0xff]
        %v5375 = vld [vmem:[#allocation2 + $0xd1] sm:$0xff]
        %v5376 = vld [vmem:[#allocation2 + $0xd9] sm:$0xff]
        %v5377 = vld [vmem:[#allocation2 + $0xe1] sm:$0xff]
        %v5378 = vld [vmem:[#allocation2 + $0xe9] sm:$0xff]
        %v5379 = vld [vmem:[#allocation2 + $0xf1] sm:$0xff]
        %v5380 = vld [vmem:[#allocation2 + $0xf9] sm:$0xff]
        %v5381 = vmul.f32 %v5349, %v1320
        %v5382 = vmul.f32 %v5350, %v1324
        %v5383 = vmul.f32 %v5351, %v1328
        %v5384 = vmul.f32 %v5352, %v1332
        %v5385 = vmul.f32 %v5353, %v1336
        %v5386 = vmul.f32 %v5354, %v1340
        %v5387 = vmul.f32 %v5355, %v1344
        %v5388 = vmul.f32 %v5356, %v1348
        %v5389 = vmul.f32 %v5357, %v1352
        %v5390 = vmul.f32 %v5358, %v1356
        %v5391 = vmul.f32 %v5359, %v1360
        %v5392 = vmul.f32 %v5360, %v1364
        %v5393 = vmul.f32 %v5361, %v1368
        %v5394 = vmul.f32 %v5362, %v1372
        %v5395 = vmul.f32 %v5363, %v1376
        %v5396 = vmul.f32 %v5364, %v1380
        %v5397 = vmul.f32 %v5365, %v1384
        %v5398 = vmul.f32 %v5366, %v1388
        %v5399 = vmul.f32 %v5367, %v1392
        %v5400 = vmul.f32 %v5368, %v1396
        %v5401 = vmul.f32 %v5369, %v1400
        %v5402 = vmul.f32 %v5370, %v1404
        %v5403 = vmul.f32 %v5371, %v1408
        %v5404 = vmul.f32 %v5372, %v1412
        %v5405 = vmul.f32 %v5373, %v1416
        %v5406 = vmul.f32 %v5374, %v1420
        %v5407 = vmul.f32 %v5375, %v1424
        %v5408 = vmul.f32 %v5376, %v1428
        %v5409 = vmul.f32 %v5377, %v1432
        %v5410 = vmul.f32 %v5378, %v1436
        %v5411 = vmul.f32 %v5379, %v1440
        %v5412 = vmul.f32 %v5380, %v1444
        %v5414 = vsel %vm1022, %v5381, 0
        %v5417 = vsel %vm1022, %v5382, 0
        %v5420 = vsel %vm1022, %v5383, 0
        %v5423 = vsel %vm1022, %v5384, 0
        %v5426 = vsel %vm1022, %v5385, 0
        %v5429 = vsel %vm1022, %v5386, 0
        %v5432 = vsel %vm1022, %v5387, 0
        %v5435 = vsel %vm1022, %v5388, 0
        %v5438 = vsel %vm1022, %v5389, 0
        %v5441 = vsel %vm1022, %v5390, 0
        %v5444 = vsel %vm1022, %v5391, 0
        %v5447 = vsel %vm1022, %v5392, 0
        %v5450 = vsel %vm1022, %v5393, 0
        %v5453 = vsel %vm1022, %v5394, 0
        %v5456 = vsel %vm1022, %v5395, 0
        %v5459 = vsel %vm1022, %v5396, 0
        %v5462 = vsel %vm1022, %v5397, 0
        %v5465 = vsel %vm1022, %v5398, 0
        %v5468 = vsel %vm1022, %v5399, 0
        %v5471 = vsel %vm1022, %v5400, 0
        %v5474 = vsel %vm1022, %v5401, 0
        %v5477 = vsel %vm1022, %v5402, 0
        %v5480 = vsel %vm1022, %v5403, 0
        %v5483 = vsel %vm1022, %v5404, 0
        %v5486 = vsel %vm1022, %v5405, 0
        %v5489 = vsel %vm1022, %v5406, 0
        %v5492 = vsel %vm1022, %v5407, 0
        %v5495 = vsel %vm1022, %v5408, 0
        %v5498 = vsel %vm1022, %v5409, 0
        %v5501 = vsel %vm1022, %v5410, 0
        %v5504 = vsel %vm1022, %v5411, 0
        %v5507 = vsel %vm1022, %v5412, 0
        %5509 = vmatpush.msra.mxu0 0.0
        %5510 = vmatpush.msra.mxu0 0.0
        %5511 = vmatpush.msra.mxu0 0.0
        %5512 = vmatpush.msra.mxu0 0.0
        %5513 = vmatpush.msra.mxu0 0.0
        %5514 = vmatpush.msra.mxu0 0.0
        %5515 = vmatpush.msra.mxu0 0.0
        %5516 = vmatpush.msra.mxu0 0.0
        %5517 = vmatpush.msra.mxu0 0.0
        %5518 = vmatpush.msra.mxu0 0.0
        %5519 = vmatpush.msra.mxu0 0.0
        %5520 = vmatpush.msra.mxu0 0.0
        %5521 = vmatpush.msra.mxu0 %v992
        %5522 = vmatpush.msra.mxu0 %v991
        %5523 = vmatpush.msra.mxu0 %v990
        %5524 = vmatpush.msra.mxu0 %v989
        %5525 = vmatmul.f32.gmra.mxu0 %v5414
        %v5526 = vpop.f32.mrf.mxu0
        %v5527 = vadd.f32 0.0, %v5526
        %5528 = vmatmul.f32.gmra.mxu0 %v5417
        %v5529 = vpop.f32.mrf.mxu0
        %v5530 = vadd.f32 0.0, %v5529
        %5531 = vmatmul.f32.gmra.mxu0 %v5420
        %v5532 = vpop.f32.mrf.mxu0
        %v5533 = vadd.f32 0.0, %v5532
        %5534 = vmatmul.f32.gmra.mxu0 %v5423
        %v5535 = vpop.f32.mrf.mxu0
        %v5536 = vadd.f32 0.0, %v5535
        %5537 = vmatmul.f32.gmra.mxu0 %v5426
        %v5538 = vpop.f32.mrf.mxu0
        %v5539 = vadd.f32 0.0, %v5538
        %5540 = vmatmul.f32.gmra.mxu0 %v5429
        %v5541 = vpop.f32.mrf.mxu0
        %v5542 = vadd.f32 0.0, %v5541
        %5543 = vmatmul.f32.gmra.mxu0 %v5432
        %v5544 = vpop.f32.mrf.mxu0
        %v5545 = vadd.f32 0.0, %v5544
        %5546 = vmatmul.f32.gmra.mxu0 %v5435
        %v5547 = vpop.f32.mrf.mxu0
        %v5548 = vadd.f32 0.0, %v5547
        %5549 = vmatmul.f32.gmra.mxu0 %v5438
        %v5550 = vpop.f32.mrf.mxu0
        %v5551 = vadd.f32 0.0, %v5550
        %5552 = vmatmul.f32.gmra.mxu0 %v5441
        %v5553 = vpop.f32.mrf.mxu0
        %v5554 = vadd.f32 0.0, %v5553
        %5555 = vmatmul.f32.gmra.mxu0 %v5444
        %v5556 = vpop.f32.mrf.mxu0
        %v5557 = vadd.f32 0.0, %v5556
        %5558 = vmatmul.f32.gmra.mxu0 %v5447
        %v5559 = vpop.f32.mrf.mxu0
        %v5560 = vadd.f32 0.0, %v5559
        %5561 = vmatmul.f32.gmra.mxu0 %v5450
        %v5562 = vpop.f32.mrf.mxu0
        %v5563 = vadd.f32 0.0, %v5562
        %5564 = vmatmul.f32.gmra.mxu0 %v5453
        %v5565 = vpop.f32.mrf.mxu0
        %v5566 = vadd.f32 0.0, %v5565
        %5567 = vmatmul.f32.gmra.mxu0 %v5456
        %v5568 = vpop.f32.mrf.mxu0
        %v5569 = vadd.f32 0.0, %v5568
        %5570 = vmatmul.f32.gmra.mxu0 %v5459
        %v5571 = vpop.f32.mrf.mxu0
        %v5572 = vadd.f32 0.0, %v5571
        %5573 = vmatmul.f32.gmra.mxu0 %v5462
        %v5574 = vpop.f32.mrf.mxu0
        %v5575 = vadd.f32 0.0, %v5574
        %5576 = vmatmul.f32.gmra.mxu0 %v5465
        %v5577 = vpop.f32.mrf.mxu0
        %v5578 = vadd.f32 0.0, %v5577
        %5579 = vmatmul.f32.gmra.mxu0 %v5468
        %v5580 = vpop.f32.mrf.mxu0
        %v5581 = vadd.f32 0.0, %v5580
        %5582 = vmatmul.f32.gmra.mxu0 %v5471
        %v5583 = vpop.f32.mrf.mxu0
        %v5584 = vadd.f32 0.0, %v5583
        %5585 = vmatmul.f32.gmra.mxu0 %v5474
        %v5586 = vpop.f32.mrf.mxu0
        %v5587 = vadd.f32 0.0, %v5586
        %5588 = vmatmul.f32.gmra.mxu0 %v5477
        %v5589 = vpop.f32.mrf.mxu0
        %v5590 = vadd.f32 0.0, %v5589
        %5591 = vmatmul.f32.gmra.mxu0 %v5480
        %v5592 = vpop.f32.mrf.mxu0
        %v5593 = vadd.f32 0.0, %v5592
        %5594 = vmatmul.f32.gmra.mxu0 %v5483
        %v5595 = vpop.f32.mrf.mxu0
        %v5596 = vadd.f32 0.0, %v5595
        %5597 = vmatmul.f32.gmra.mxu0 %v5486
        %v5598 = vpop.f32.mrf.mxu0
        %v5599 = vadd.f32 0.0, %v5598
        %5600 = vmatmul.f32.gmra.mxu0 %v5489
        %v5601 = vpop.f32.mrf.mxu0
        %v5602 = vadd.f32 0.0, %v5601
        %5603 = vmatmul.f32.gmra.mxu0 %v5492
        %v5604 = vpop.f32.mrf.mxu0
        %v5605 = vadd.f32 0.0, %v5604
        %5606 = vmatmul.f32.gmra.mxu0 %v5495
        %v5607 = vpop.f32.mrf.mxu0
        %v5608 = vadd.f32 0.0, %v5607
        %5609 = vmatmul.f32.gmra.mxu0 %v5498
        %v5610 = vpop.f32.mrf.mxu0
        %v5611 = vadd.f32 0.0, %v5610
        %5612 = vmatmul.f32.gmra.mxu0 %v5501
        %v5613 = vpop.f32.mrf.mxu0
        %v5614 = vadd.f32 0.0, %v5613
        %5615 = vmatmul.f32.gmra.mxu0 %v5504
        %v5616 = vpop.f32.mrf.mxu0
        %v5617 = vadd.f32 0.0, %v5616
        %5618 = vmatmul.f32.gmra.mxu0 %v5507
        %v5619 = vpop.f32.mrf.mxu0
        %v5620 = vadd.f32 0.0, %v5619
        %5621 = vdwg.mxu0
        %v5623 = vsel %vm1022, %v5317, 0
        %v5626 = vsel %vm1022, %v5318, 0
        %v5629 = vsel %vm1022, %v5319, 0
        %v5632 = vsel %vm1022, %v5320, 0
        %v5635 = vsel %vm1022, %v5321, 0
        %v5638 = vsel %vm1022, %v5322, 0
        %v5641 = vsel %vm1022, %v5323, 0
        %v5644 = vsel %vm1022, %v5324, 0
        %v5647 = vsel %vm1022, %v5325, 0
        %v5650 = vsel %vm1022, %v5326, 0
        %v5653 = vsel %vm1022, %v5327, 0
        %v5656 = vsel %vm1022, %v5328, 0
        %v5659 = vsel %vm1022, %v5329, 0
        %v5662 = vsel %vm1022, %v5330, 0
        %v5665 = vsel %vm1022, %v5331, 0
        %v5668 = vsel %vm1022, %v5332, 0
        %v5671 = vsel %vm1022, %v5333, 0
        %v5674 = vsel %vm1022, %v5334, 0
        %v5677 = vsel %vm1022, %v5335, 0
        %v5680 = vsel %vm1022, %v5336, 0
        %v5683 = vsel %vm1022, %v5337, 0
        %v5686 = vsel %vm1022, %v5338, 0
        %v5689 = vsel %vm1022, %v5339, 0
        %v5692 = vsel %vm1022, %v5340, 0
        %v5695 = vsel %vm1022, %v5341, 0
        %v5698 = vsel %vm1022, %v5342, 0
        %v5701 = vsel %vm1022, %v5343, 0
        %v5704 = vsel %vm1022, %v5344, 0
        %v5707 = vsel %vm1022, %v5345, 0
        %v5710 = vsel %vm1022, %v5346, 0
        %v5713 = vsel %vm1022, %v5347, 0
        %v5716 = vsel %vm1022, %v5348, 0
        %5718 = vmatpush.msra.mxu0 0.0
        %5719 = vmatpush.msra.mxu0 0.0
        %5720 = vmatpush.msra.mxu0 0.0
        %5721 = vmatpush.msra.mxu0 0.0
        %5722 = vmatpush.msra.mxu0 0.0
        %5723 = vmatpush.msra.mxu0 0.0
        %5724 = vmatpush.msra.mxu0 0.0
        %5725 = vmatpush.msra.mxu0 0.0
        %5726 = vmatpush.msra.mxu0 0.0
        %5727 = vmatpush.msra.mxu0 0.0
        %5728 = vmatpush.msra.mxu0 0.0
        %5729 = vmatpush.msra.mxu0 0.0
        %5730 = vmatpush.msra.mxu0 %v988
        %5731 = vmatpush.msra.mxu0 %v987
        %5732 = vmatpush.msra.mxu0 %v986
        %5733 = vmatpush.msra.mxu0 %v985
        %5734 = vmatmul.f32.gmra.mxu0 %v5623
        %v5735 = vpop.f32.mrf.mxu0
        %v5736 = vadd.f32 %v5527, %v5735
        %5737 = vmatmul.f32.gmra.mxu0 %v5626
        %v5738 = vpop.f32.mrf.mxu0
        %v5739 = vadd.f32 %v5530, %v5738
        %5740 = vmatmul.f32.gmra.mxu0 %v5629
        %v5741 = vpop.f32.mrf.mxu0
        %v5742 = vadd.f32 %v5533, %v5741
        %5743 = vmatmul.f32.gmra.mxu0 %v5632
        %v5744 = vpop.f32.mrf.mxu0
        %v5745 = vadd.f32 %v5536, %v5744
        %5746 = vmatmul.f32.gmra.mxu0 %v5635
        %v5747 = vpop.f32.mrf.mxu0
        %v5748 = vadd.f32 %v5539, %v5747
        %5749 = vmatmul.f32.gmra.mxu0 %v5638
        %v5750 = vpop.f32.mrf.mxu0
        %v5751 = vadd.f32 %v5542, %v5750
        %5752 = vmatmul.f32.gmra.mxu0 %v5641
        %v5753 = vpop.f32.mrf.mxu0
        %v5754 = vadd.f32 %v5545, %v5753
        %5755 = vmatmul.f32.gmra.mxu0 %v5644
        %v5756 = vpop.f32.mrf.mxu0
        %v5757 = vadd.f32 %v5548, %v5756
        %5758 = vmatmul.f32.gmra.mxu0 %v5647
        %v5759 = vpop.f32.mrf.mxu0
        %v5760 = vadd.f32 %v5551, %v5759
        %5761 = vmatmul.f32.gmra.mxu0 %v5650
        %v5762 = vpop.f32.mrf.mxu0
        %v5763 = vadd.f32 %v5554, %v5762
        %5764 = vmatmul.f32.gmra.mxu0 %v5653
        %v5765 = vpop.f32.mrf.mxu0
        %v5766 = vadd.f32 %v5557, %v5765
        %5767 = vmatmul.f32.gmra.mxu0 %v5656
        %v5768 = vpop.f32.mrf.mxu0
        %v5769 = vadd.f32 %v5560, %v5768
        %5770 = vmatmul.f32.gmra.mxu0 %v5659
        %v5771 = vpop.f32.mrf.mxu0
        %v5772 = vadd.f32 %v5563, %v5771
        %5773 = vmatmul.f32.gmra.mxu0 %v5662
        %v5774 = vpop.f32.mrf.mxu0
        %v5775 = vadd.f32 %v5566, %v5774
        %5776 = vmatmul.f32.gmra.mxu0 %v5665
        %v5777 = vpop.f32.mrf.mxu0
        %v5778 = vadd.f32 %v5569, %v5777
        %5779 = vmatmul.f32.gmra.mxu0 %v5668
        %v5780 = vpop.f32.mrf.mxu0
        %v5781 = vadd.f32 %v5572, %v5780
        %5782 = vmatmul.f32.gmra.mxu0 %v5671
        %v5783 = vpop.f32.mrf.mxu0
        %v5784 = vadd.f32 %v5575, %v5783
        %5785 = vmatmul.f32.gmra.mxu0 %v5674
        %v5786 = vpop.f32.mrf.mxu0
        %v5787 = vadd.f32 %v5578, %v5786
        %5788 = vmatmul.f32.gmra.mxu0 %v5677
        %v5789 = vpop.f32.mrf.mxu0
        %v5790 = vadd.f32 %v5581, %v5789
        %5791 = vmatmul.f32.gmra.mxu0 %v5680
        %v5792 = vpop.f32.mrf.mxu0
        %v5793 = vadd.f32 %v5584, %v5792
        %5794 = vmatmul.f32.gmra.mxu0 %v5683
        %v5795 = vpop.f32.mrf.mxu0
        %v5796 = vadd.f32 %v5587, %v5795
        %5797 = vmatmul.f32.gmra.mxu0 %v5686
        %v5798 = vpop.f32.mrf.mxu0
        %v5799 = vadd.f32 %v5590, %v5798
        %5800 = vmatmul.f32.gmra.mxu0 %v5689
        %v5801 = vpop.f32.mrf.mxu0
        %v5802 = vadd.f32 %v5593, %v5801
        %5803 = vmatmul.f32.gmra.mxu0 %v5692
        %v5804 = vpop.f32.mrf.mxu0
        %v5805 = vadd.f32 %v5596, %v5804
        %5806 = vmatmul.f32.gmra.mxu0 %v5695
        %v5807 = vpop.f32.mrf.mxu0
        %v5808 = vadd.f32 %v5599, %v5807
        %5809 = vmatmul.f32.gmra.mxu0 %v5698
        %v5810 = vpop.f32.mrf.mxu0
        %v5811 = vadd.f32 %v5602, %v5810
        %5812 = vmatmul.f32.gmra.mxu0 %v5701
        %v5813 = vpop.f32.mrf.mxu0
        %v5814 = vadd.f32 %v5605, %v5813
        %5815 = vmatmul.f32.gmra.mxu0 %v5704
        %v5816 = vpop.f32.mrf.mxu0
        %v5817 = vadd.f32 %v5608, %v5816
        %5818 = vmatmul.f32.gmra.mxu0 %v5707
        %v5819 = vpop.f32.mrf.mxu0
        %v5820 = vadd.f32 %v5611, %v5819
        %5821 = vmatmul.f32.gmra.mxu0 %v5710
        %v5822 = vpop.f32.mrf.mxu0
        %v5823 = vadd.f32 %v5614, %v5822
        %5824 = vmatmul.f32.gmra.mxu0 %v5713
        %v5825 = vpop.f32.mrf.mxu0
        %v5826 = vadd.f32 %v5617, %v5825
        %5827 = vmatmul.f32.gmra.mxu0 %v5716
        %v5828 = vpop.f32.mrf.mxu0
        %v5829 = vadd.f32 %v5620, %v5828
        %5830 = vdwg.mxu0
        %v5831 = vld [vmem:[#allocation2 + $0x2] sm:$0xff]
        %v5832 = vld [vmem:[#allocation2 + $0xa] sm:$0xff]
        %v5833 = vld [vmem:[#allocation2 + $0x12] sm:$0xff]
        %v5834 = vld [vmem:[#allocation2 + $0x1a] sm:$0xff]
        %v5835 = vld [vmem:[#allocation2 + $0x22] sm:$0xff]
        %v5836 = vld [vmem:[#allocation2 + $0x2a] sm:$0xff]
        %v5837 = vld [vmem:[#allocation2 + $0x32] sm:$0xff]
        %v5838 = vld [vmem:[#allocation2 + $0x3a] sm:$0xff]
        %v5839 = vld [vmem:[#allocation2 + $0x42] sm:$0xff]
        %v5840 = vld [vmem:[#allocation2 + $0x4a] sm:$0xff]
        %v5841 = vld [vmem:[#allocation2 + $0x52] sm:$0xff]
        %v5842 = vld [vmem:[#allocation2 + $0x5a] sm:$0xff]
        %v5843 = vld [vmem:[#allocation2 + $0x62] sm:$0xff]
        %v5844 = vld [vmem:[#allocation2 + $0x6a] sm:$0xff]
        %v5845 = vld [vmem:[#allocation2 + $0x72] sm:$0xff]
        %v5846 = vld [vmem:[#allocation2 + $0x7a] sm:$0xff]
        %v5847 = vld [vmem:[#allocation2 + $0x82] sm:$0xff]
        %v5848 = vld [vmem:[#allocation2 + $0x8a] sm:$0xff]
        %v5849 = vld [vmem:[#allocation2 + $0x92] sm:$0xff]
        %v5850 = vld [vmem:[#allocation2 + $0x9a] sm:$0xff]
        %v5851 = vld [vmem:[#allocation2 + $0xa2] sm:$0xff]
        %v5852 = vld [vmem:[#allocation2 + $0xaa] sm:$0xff]
        %v5853 = vld [vmem:[#allocation2 + $0xb2] sm:$0xff]
        %v5854 = vld [vmem:[#allocation2 + $0xba] sm:$0xff]
        %v5855 = vld [vmem:[#allocation2 + $0xc2] sm:$0xff]
        %v5856 = vld [vmem:[#allocation2 + $0xca] sm:$0xff]
        %v5857 = vld [vmem:[#allocation2 + $0xd2] sm:$0xff]
        %v5858 = vld [vmem:[#allocation2 + $0xda] sm:$0xff]
        %v5859 = vld [vmem:[#allocation2 + $0xe2] sm:$0xff]
        %v5860 = vld [vmem:[#allocation2 + $0xea] sm:$0xff]
        %v5861 = vld [vmem:[#allocation2 + $0xf2] sm:$0xff]
        %v5862 = vld [vmem:[#allocation2 + $0xfa] sm:$0xff]
        %v5863 = vmul.f32 %v5831, %v1930
        %v5864 = vmul.f32 %v5832, %v1934
        %v5865 = vmul.f32 %v5833, %v1938
        %v5866 = vmul.f32 %v5834, %v1942
        %v5867 = vmul.f32 %v5835, %v1946
        %v5868 = vmul.f32 %v5836, %v1950
        %v5869 = vmul.f32 %v5837, %v1954
        %v5870 = vmul.f32 %v5838, %v1958
        %v5871 = vmul.f32 %v5839, %v1962
        %v5872 = vmul.f32 %v5840, %v1966
        %v5873 = vmul.f32 %v5841, %v1970
        %v5874 = vmul.f32 %v5842, %v1974
        %v5875 = vmul.f32 %v5843, %v1978
        %v5876 = vmul.f32 %v5844, %v1982
        %v5877 = vmul.f32 %v5845, %v1986
        %v5878 = vmul.f32 %v5846, %v1990
        %v5879 = vmul.f32 %v5847, %v1994
        %v5880 = vmul.f32 %v5848, %v1998
        %v5881 = vmul.f32 %v5849, %v2002
        %v5882 = vmul.f32 %v5850, %v2006
        %v5883 = vmul.f32 %v5851, %v2010
        %v5884 = vmul.f32 %v5852, %v2014
        %v5885 = vmul.f32 %v5853, %v2018
        %v5886 = vmul.f32 %v5854, %v2022
        %v5887 = vmul.f32 %v5855, %v2026
        %v5888 = vmul.f32 %v5856, %v2030
        %v5889 = vmul.f32 %v5857, %v2034
        %v5890 = vmul.f32 %v5858, %v2038
        %v5891 = vmul.f32 %v5859, %v2042
        %v5892 = vmul.f32 %v5860, %v2046
        %v5893 = vmul.f32 %v5861, %v2050
        %v5894 = vmul.f32 %v5862, %v2054
        %v5896 = vsel %vm1022, %v5863, 0
        %v5899 = vsel %vm1022, %v5864, 0
        %v5902 = vsel %vm1022, %v5865, 0
        %v5905 = vsel %vm1022, %v5866, 0
        %v5908 = vsel %vm1022, %v5867, 0
        %v5911 = vsel %vm1022, %v5868, 0
        %v5914 = vsel %vm1022, %v5869, 0
        %v5917 = vsel %vm1022, %v5870, 0
        %v5920 = vsel %vm1022, %v5871, 0
        %v5923 = vsel %vm1022, %v5872, 0
        %v5926 = vsel %vm1022, %v5873, 0
        %v5929 = vsel %vm1022, %v5874, 0
        %v5932 = vsel %vm1022, %v5875, 0
        %v5935 = vsel %vm1022, %v5876, 0
        %v5938 = vsel %vm1022, %v5877, 0
        %v5941 = vsel %vm1022, %v5878, 0
        %v5944 = vsel %vm1022, %v5879, 0
        %v5947 = vsel %vm1022, %v5880, 0
        %v5950 = vsel %vm1022, %v5881, 0
        %v5953 = vsel %vm1022, %v5882, 0
        %v5956 = vsel %vm1022, %v5883, 0
        %v5959 = vsel %vm1022, %v5884, 0
        %v5962 = vsel %vm1022, %v5885, 0
        %v5965 = vsel %vm1022, %v5886, 0
        %v5968 = vsel %vm1022, %v5887, 0
        %v5971 = vsel %vm1022, %v5888, 0
        %v5974 = vsel %vm1022, %v5889, 0
        %v5977 = vsel %vm1022, %v5890, 0
        %v5980 = vsel %vm1022, %v5891, 0
        %v5983 = vsel %vm1022, %v5892, 0
        %v5986 = vsel %vm1022, %v5893, 0
        %v5989 = vsel %vm1022, %v5894, 0
        %5991 = vmatpush.msra.mxu0 0.0
        %5992 = vmatpush.msra.mxu0 0.0
        %5993 = vmatpush.msra.mxu0 0.0
        %5994 = vmatpush.msra.mxu0 0.0
        %5995 = vmatpush.msra.mxu0 0.0
        %5996 = vmatpush.msra.mxu0 0.0
        %5997 = vmatpush.msra.mxu0 0.0
        %5998 = vmatpush.msra.mxu0 0.0
        %5999 = vmatpush.msra.mxu0 0.0
        %6000 = vmatpush.msra.mxu0 0.0
        %6001 = vmatpush.msra.mxu0 0.0
        %6002 = vmatpush.msra.mxu0 0.0
        %6003 = vmatpush.msra.mxu0 %v996
        %6004 = vmatpush.msra.mxu0 %v995
        %6005 = vmatpush.msra.mxu0 %v994
        %6006 = vmatpush.msra.mxu0 %v993
        %6007 = vmatmul.f32.gmra.mxu0 %v5896
        %v6008 = vpop.f32.mrf.mxu0
        %v6009 = vadd.f32 0.0, %v6008
        %6010 = vmatmul.f32.gmra.mxu0 %v5899
        %v6011 = vpop.f32.mrf.mxu0
        %v6012 = vadd.f32 0.0, %v6011
        %6013 = vmatmul.f32.gmra.mxu0 %v5902
        %v6014 = vpop.f32.mrf.mxu0
        %v6015 = vadd.f32 0.0, %v6014
        %6016 = vmatmul.f32.gmra.mxu0 %v5905
        %v6017 = vpop.f32.mrf.mxu0
        %v6018 = vadd.f32 0.0, %v6017
        %6019 = vmatmul.f32.gmra.mxu0 %v5908
        %v6020 = vpop.f32.mrf.mxu0
        %v6021 = vadd.f32 0.0, %v6020
        %6022 = vmatmul.f32.gmra.mxu0 %v5911
        %v6023 = vpop.f32.mrf.mxu0
        %v6024 = vadd.f32 0.0, %v6023
        %6025 = vmatmul.f32.gmra.mxu0 %v5914
        %v6026 = vpop.f32.mrf.mxu0
        %v6027 = vadd.f32 0.0, %v6026
        %6028 = vmatmul.f32.gmra.mxu0 %v5917
        %v6029 = vpop.f32.mrf.mxu0
        %v6030 = vadd.f32 0.0, %v6029
        %6031 = vmatmul.f32.gmra.mxu0 %v5920
        %v6032 = vpop.f32.mrf.mxu0
        %v6033 = vadd.f32 0.0, %v6032
        %6034 = vmatmul.f32.gmra.mxu0 %v5923
        %v6035 = vpop.f32.mrf.mxu0
        %v6036 = vadd.f32 0.0, %v6035
        %6037 = vmatmul.f32.gmra.mxu0 %v5926
        %v6038 = vpop.f32.mrf.mxu0
        %v6039 = vadd.f32 0.0, %v6038
        %6040 = vmatmul.f32.gmra.mxu0 %v5929
        %v6041 = vpop.f32.mrf.mxu0
        %v6042 = vadd.f32 0.0, %v6041
        %6043 = vmatmul.f32.gmra.mxu0 %v5932
        %v6044 = vpop.f32.mrf.mxu0
        %v6045 = vadd.f32 0.0, %v6044
        %6046 = vmatmul.f32.gmra.mxu0 %v5935
        %v6047 = vpop.f32.mrf.mxu0
        %v6048 = vadd.f32 0.0, %v6047
        %6049 = vmatmul.f32.gmra.mxu0 %v5938
        %v6050 = vpop.f32.mrf.mxu0
        %v6051 = vadd.f32 0.0, %v6050
        %6052 = vmatmul.f32.gmra.mxu0 %v5941
        %v6053 = vpop.f32.mrf.mxu0
        %v6054 = vadd.f32 0.0, %v6053
        %6055 = vmatmul.f32.gmra.mxu0 %v5944
        %v6056 = vpop.f32.mrf.mxu0
        %v6057 = vadd.f32 0.0, %v6056
        %6058 = vmatmul.f32.gmra.mxu0 %v5947
        %v6059 = vpop.f32.mrf.mxu0
        %v6060 = vadd.f32 0.0, %v6059
        %6061 = vmatmul.f32.gmra.mxu0 %v5950
        %v6062 = vpop.f32.mrf.mxu0
        %v6063 = vadd.f32 0.0, %v6062
        %6064 = vmatmul.f32.gmra.mxu0 %v5953
        %v6065 = vpop.f32.mrf.mxu0
        %v6066 = vadd.f32 0.0, %v6065
        %6067 = vmatmul.f32.gmra.mxu0 %v5956
        %v6068 = vpop.f32.mrf.mxu0
        %v6069 = vadd.f32 0.0, %v6068
        %6070 = vmatmul.f32.gmra.mxu0 %v5959
        %v6071 = vpop.f32.mrf.mxu0
        %v6072 = vadd.f32 0.0, %v6071
        %6073 = vmatmul.f32.gmra.mxu0 %v5962
        %v6074 = vpop.f32.mrf.mxu0
        %v6075 = vadd.f32 0.0, %v6074
        %6076 = vmatmul.f32.gmra.mxu0 %v5965
        %v6077 = vpop.f32.mrf.mxu0
        %v6078 = vadd.f32 0.0, %v6077
        %6079 = vmatmul.f32.gmra.mxu0 %v5968
        %v6080 = vpop.f32.mrf.mxu0
        %v6081 = vadd.f32 0.0, %v6080
        %6082 = vmatmul.f32.gmra.mxu0 %v5971
        %v6083 = vpop.f32.mrf.mxu0
        %v6084 = vadd.f32 0.0, %v6083
        %6085 = vmatmul.f32.gmra.mxu0 %v5974
        %v6086 = vpop.f32.mrf.mxu0
        %v6087 = vadd.f32 0.0, %v6086
        %6088 = vmatmul.f32.gmra.mxu0 %v5977
        %v6089 = vpop.f32.mrf.mxu0
        %v6090 = vadd.f32 0.0, %v6089
        %6091 = vmatmul.f32.gmra.mxu0 %v5980
        %v6092 = vpop.f32.mrf.mxu0
        %v6093 = vadd.f32 0.0, %v6092
        %6094 = vmatmul.f32.gmra.mxu0 %v5983
        %v6095 = vpop.f32.mrf.mxu0
        %v6096 = vadd.f32 0.0, %v6095
        %6097 = vmatmul.f32.gmra.mxu0 %v5986
        %v6098 = vpop.f32.mrf.mxu0
        %v6099 = vadd.f32 0.0, %v6098
        %6100 = vmatmul.f32.gmra.mxu0 %v5989
        %v6101 = vpop.f32.mrf.mxu0
        %v6102 = vadd.f32 0.0, %v6101
        %6103 = vdwg.mxu0
        %v6104 = vadd.f32 %v5736, %v6009
        %v6105 = vadd.f32 %v5739, %v6012
        %v6106 = vadd.f32 %v5742, %v6015
        %v6107 = vadd.f32 %v5745, %v6018
        %v6108 = vadd.f32 %v5748, %v6021
        %v6109 = vadd.f32 %v5751, %v6024
        %v6110 = vadd.f32 %v5754, %v6027
        %v6111 = vadd.f32 %v5757, %v6030
        %v6112 = vadd.f32 %v5760, %v6033
        %v6113 = vadd.f32 %v5763, %v6036
        %v6114 = vadd.f32 %v5766, %v6039
        %v6115 = vadd.f32 %v5769, %v6042
        %v6116 = vadd.f32 %v5772, %v6045
        %v6117 = vadd.f32 %v5775, %v6048
        %v6118 = vadd.f32 %v5778, %v6051
        %v6119 = vadd.f32 %v5781, %v6054
        %v6120 = vadd.f32 %v5784, %v6057
        %v6121 = vadd.f32 %v5787, %v6060
        %v6122 = vadd.f32 %v5790, %v6063
        %v6123 = vadd.f32 %v5793, %v6066
        %v6124 = vadd.f32 %v5796, %v6069
        %v6125 = vadd.f32 %v5799, %v6072
        %v6126 = vadd.f32 %v5802, %v6075
        %v6127 = vadd.f32 %v5805, %v6078
        %v6128 = vadd.f32 %v5808, %v6081
        %v6129 = vadd.f32 %v5811, %v6084
        %v6130 = vadd.f32 %v5814, %v6087
        %v6131 = vadd.f32 %v5817, %v6090
        %v6132 = vadd.f32 %v5820, %v6093
        %v6133 = vadd.f32 %v5823, %v6096
        %v6134 = vadd.f32 %v5826, %v6099
        %v6135 = vadd.f32 %v5829, %v6102
        %v6136 = vld [vmem:[#allocation2 + $0x10] sm:$0xff]
        %v6137 = vld [vmem:[#allocation2 + $0x18] sm:$0xff]
        %v6138 = vld [vmem:[#allocation2 + $0x20] sm:$0xff]
        %v6139 = vld [vmem:[#allocation2 + $0x28] sm:$0xff]
        %v6140 = vld [vmem:[#allocation2 + $0x30] sm:$0xff]
        %v6141 = vld [vmem:[#allocation2 + $0x38] sm:$0xff]
        %v6142 = vld [vmem:[#allocation2 + $0x40] sm:$0xff]
        %v6143 = vld [vmem:[#allocation2 + $0x48] sm:$0xff]
        %v6144 = vld [vmem:[#allocation2 + $0x50] sm:$0xff]
        %v6145 = vld [vmem:[#allocation2 + $0x58] sm:$0xff]
        %v6146 = vld [vmem:[#allocation2 + $0x60] sm:$0xff]
        %v6147 = vld [vmem:[#allocation2 + $0x68] sm:$0xff]
        %v6148 = vld [vmem:[#allocation2 + $0x70] sm:$0xff]
        %v6149 = vld [vmem:[#allocation2 + $0x78] sm:$0xff]
        %v6150 = vld [vmem:[#allocation2 + $0x80] sm:$0xff]
        %v6151 = vld [vmem:[#allocation2 + $0x88] sm:$0xff]
        %v6152 = vld [vmem:[#allocation2 + $0x90] sm:$0xff]
        %v6153 = vld [vmem:[#allocation2 + $0x98] sm:$0xff]
        %v6154 = vld [vmem:[#allocation2 + $0xa0] sm:$0xff]
        %v6155 = vld [vmem:[#allocation2 + $0xa8] sm:$0xff]
        %v6156 = vld [vmem:[#allocation2 + $0xb0] sm:$0xff]
        %v6157 = vld [vmem:[#allocation2 + $0xb8] sm:$0xff]
        %v6158 = vld [vmem:[#allocation2 + $0xc0] sm:$0xff]
        %v6159 = vld [vmem:[#allocation2 + $0xc8] sm:$0xff]
        %v6160 = vld [vmem:[#allocation2 + $0xd0] sm:$0xff]
        %v6161 = vld [vmem:[#allocation2 + $0xd8] sm:$0xff]
        %v6162 = vld [vmem:[#allocation2 + $0xe0] sm:$0xff]
        %v6163 = vld [vmem:[#allocation2 + $0xe8] sm:$0xff]
        %v6164 = vld [vmem:[#allocation2 + $0xf0] sm:$0xff]
        %v6165 = vld [vmem:[#allocation2 + $0xf8] sm:$0xff]
        %v6166 = vld [vmem:[#allocation2 + $0x100] sm:$0xff]
        %v6167 = vld [vmem:[#allocation2 + $0x108] sm:$0xff]
        %v6168 = vmul.f32 %v6136, %v2363
        %v6169 = vmul.f32 %v6137, %v2367
        %v6170 = vmul.f32 %v6138, %v2371
        %v6171 = vmul.f32 %v6139, %v2375
        %v6172 = vmul.f32 %v6140, %v2379
        %v6173 = vmul.f32 %v6141, %v2383
        %v6174 = vmul.f32 %v6142, %v2387
        %v6175 = vmul.f32 %v6143, %v2391
        %v6176 = vmul.f32 %v6144, %v2395
        %v6177 = vmul.f32 %v6145, %v2399
        %v6178 = vmul.f32 %v6146, %v2403
        %v6179 = vmul.f32 %v6147, %v2407
        %v6180 = vmul.f32 %v6148, %v2411
        %v6181 = vmul.f32 %v6149, %v2415
        %v6182 = vmul.f32 %v6150, %v2419
        %v6183 = vmul.f32 %v6151, %v2423
        %v6184 = vmul.f32 %v6152, %v2427
        %v6185 = vmul.f32 %v6153, %v2431
        %v6186 = vmul.f32 %v6154, %v2435
        %v6187 = vmul.f32 %v6155, %v2439
        %v6188 = vmul.f32 %v6156, %v2443
        %v6189 = vmul.f32 %v6157, %v2447
        %v6190 = vmul.f32 %v6158, %v2451
        %v6191 = vmul.f32 %v6159, %v2455
        %v6192 = vmul.f32 %v6160, %v2459
        %v6193 = vmul.f32 %v6161, %v2463
        %v6194 = vmul.f32 %v6162, %v2467
        %v6195 = vmul.f32 %v6163, %v2471
        %v6196 = vmul.f32 %v6164, %v2475
        %v6197 = vmul.f32 %v6165, %v2479
        %v6198 = vmul.f32 %v6166, %v2483
        %v6199 = vmul.f32 %v6167, %v2487
        %v6201 = vsel %vm1022, %v6168, 0
        %v6204 = vsel %vm1022, %v6169, 0
        %v6207 = vsel %vm1022, %v6170, 0
        %v6210 = vsel %vm1022, %v6171, 0
        %v6213 = vsel %vm1022, %v6172, 0
        %v6216 = vsel %vm1022, %v6173, 0
        %v6219 = vsel %vm1022, %v6174, 0
        %v6222 = vsel %vm1022, %v6175, 0
        %v6225 = vsel %vm1022, %v6176, 0
        %v6228 = vsel %vm1022, %v6177, 0
        %v6231 = vsel %vm1022, %v6178, 0
        %v6234 = vsel %vm1022, %v6179, 0
        %v6237 = vsel %vm1022, %v6180, 0
        %v6240 = vsel %vm1022, %v6181, 0
        %v6243 = vsel %vm1022, %v6182, 0
        %v6246 = vsel %vm1022, %v6183, 0
        %v6249 = vsel %vm1022, %v6184, 0
        %v6252 = vsel %vm1022, %v6185, 0
        %v6255 = vsel %vm1022, %v6186, 0
        %v6258 = vsel %vm1022, %v6187, 0
        %v6261 = vsel %vm1022, %v6188, 0
        %v6264 = vsel %vm1022, %v6189, 0
        %v6267 = vsel %vm1022, %v6190, 0
        %v6270 = vsel %vm1022, %v6191, 0
        %v6273 = vsel %vm1022, %v6192, 0
        %v6276 = vsel %vm1022, %v6193, 0
        %v6279 = vsel %vm1022, %v6194, 0
        %v6282 = vsel %vm1022, %v6195, 0
        %v6285 = vsel %vm1022, %v6196, 0
        %v6288 = vsel %vm1022, %v6197, 0
        %v6291 = vsel %vm1022, %v6198, 0
        %v6294 = vsel %vm1022, %v6199, 0
        %6296 = vmatpush.msra.mxu0 0.0
        %6297 = vmatpush.msra.mxu0 0.0
        %6298 = vmatpush.msra.mxu0 0.0
        %6299 = vmatpush.msra.mxu0 0.0
        %6300 = vmatpush.msra.mxu0 0.0
        %6301 = vmatpush.msra.mxu0 0.0
        %6302 = vmatpush.msra.mxu0 0.0
        %6303 = vmatpush.msra.mxu0 0.0
        %6304 = vmatpush.msra.mxu0 0.0
        %6305 = vmatpush.msra.mxu0 0.0
        %6306 = vmatpush.msra.mxu0 0.0
        %6307 = vmatpush.msra.mxu0 0.0
        %6308 = vmatpush.msra.mxu0 %v1000
        %6309 = vmatpush.msra.mxu0 %v999
        %6310 = vmatpush.msra.mxu0 %v998
        %6311 = vmatpush.msra.mxu0 %v997
        %6312 = vmatmul.f32.gmra.mxu0 %v6201
        %v6313 = vpop.f32.mrf.mxu0
        %v6314 = vadd.f32 0.0, %v6313
        %6315 = vmatmul.f32.gmra.mxu0 %v6204
        %v6316 = vpop.f32.mrf.mxu0
        %v6317 = vadd.f32 0.0, %v6316
        %6318 = vmatmul.f32.gmra.mxu0 %v6207
        %v6319 = vpop.f32.mrf.mxu0
        %v6320 = vadd.f32 0.0, %v6319
        %6321 = vmatmul.f32.gmra.mxu0 %v6210
        %v6322 = vpop.f32.mrf.mxu0
        %v6323 = vadd.f32 0.0, %v6322
        %6324 = vmatmul.f32.gmra.mxu0 %v6213
        %v6325 = vpop.f32.mrf.mxu0
        %v6326 = vadd.f32 0.0, %v6325
        %6327 = vmatmul.f32.gmra.mxu0 %v6216
        %v6328 = vpop.f32.mrf.mxu0
        %v6329 = vadd.f32 0.0, %v6328
        %6330 = vmatmul.f32.gmra.mxu0 %v6219
        %v6331 = vpop.f32.mrf.mxu0
        %v6332 = vadd.f32 0.0, %v6331
        %6333 = vmatmul.f32.gmra.mxu0 %v6222
        %v6334 = vpop.f32.mrf.mxu0
        %v6335 = vadd.f32 0.0, %v6334
        %6336 = vmatmul.f32.gmra.mxu0 %v6225
        %v6337 = vpop.f32.mrf.mxu0
        %v6338 = vadd.f32 0.0, %v6337
        %6339 = vmatmul.f32.gmra.mxu0 %v6228
        %v6340 = vpop.f32.mrf.mxu0
        %v6341 = vadd.f32 0.0, %v6340
        %6342 = vmatmul.f32.gmra.mxu0 %v6231
        %v6343 = vpop.f32.mrf.mxu0
        %v6344 = vadd.f32 0.0, %v6343
        %6345 = vmatmul.f32.gmra.mxu0 %v6234
        %v6346 = vpop.f32.mrf.mxu0
        %v6347 = vadd.f32 0.0, %v6346
        %6348 = vmatmul.f32.gmra.mxu0 %v6237
        %v6349 = vpop.f32.mrf.mxu0
        %v6350 = vadd.f32 0.0, %v6349
        %6351 = vmatmul.f32.gmra.mxu0 %v6240
        %v6352 = vpop.f32.mrf.mxu0
        %v6353 = vadd.f32 0.0, %v6352
        %6354 = vmatmul.f32.gmra.mxu0 %v6243
        %v6355 = vpop.f32.mrf.mxu0
        %v6356 = vadd.f32 0.0, %v6355
        %6357 = vmatmul.f32.gmra.mxu0 %v6246
        %v6358 = vpop.f32.mrf.mxu0
        %v6359 = vadd.f32 0.0, %v6358
        %6360 = vmatmul.f32.gmra.mxu0 %v6249
        %v6361 = vpop.f32.mrf.mxu0
        %v6362 = vadd.f32 0.0, %v6361
        %6363 = vmatmul.f32.gmra.mxu0 %v6252
        %v6364 = vpop.f32.mrf.mxu0
        %v6365 = vadd.f32 0.0, %v6364
        %6366 = vmatmul.f32.gmra.mxu0 %v6255
        %v6367 = vpop.f32.mrf.mxu0
        %v6368 = vadd.f32 0.0, %v6367
        %6369 = vmatmul.f32.gmra.mxu0 %v6258
        %v6370 = vpop.f32.mrf.mxu0
        %v6371 = vadd.f32 0.0, %v6370
        %6372 = vmatmul.f32.gmra.mxu0 %v6261
        %v6373 = vpop.f32.mrf.mxu0
        %v6374 = vadd.f32 0.0, %v6373
        %6375 = vmatmul.f32.gmra.mxu0 %v6264
        %v6376 = vpop.f32.mrf.mxu0
        %v6377 = vadd.f32 0.0, %v6376
        %6378 = vmatmul.f32.gmra.mxu0 %v6267
        %v6379 = vpop.f32.mrf.mxu0
        %v6380 = vadd.f32 0.0, %v6379
        %6381 = vmatmul.f32.gmra.mxu0 %v6270
        %v6382 = vpop.f32.mrf.mxu0
        %v6383 = vadd.f32 0.0, %v6382
        %6384 = vmatmul.f32.gmra.mxu0 %v6273
        %v6385 = vpop.f32.mrf.mxu0
        %v6386 = vadd.f32 0.0, %v6385
        %6387 = vmatmul.f32.gmra.mxu0 %v6276
        %v6388 = vpop.f32.mrf.mxu0
        %v6389 = vadd.f32 0.0, %v6388
        %6390 = vmatmul.f32.gmra.mxu0 %v6279
        %v6391 = vpop.f32.mrf.mxu0
        %v6392 = vadd.f32 0.0, %v6391
        %6393 = vmatmul.f32.gmra.mxu0 %v6282
        %v6394 = vpop.f32.mrf.mxu0
        %v6395 = vadd.f32 0.0, %v6394
        %6396 = vmatmul.f32.gmra.mxu0 %v6285
        %v6397 = vpop.f32.mrf.mxu0
        %v6398 = vadd.f32 0.0, %v6397
        %6399 = vmatmul.f32.gmra.mxu0 %v6288
        %v6400 = vpop.f32.mrf.mxu0
        %v6401 = vadd.f32 0.0, %v6400
        %6402 = vmatmul.f32.gmra.mxu0 %v6291
        %v6403 = vpop.f32.mrf.mxu0
        %v6404 = vadd.f32 0.0, %v6403
        %6405 = vmatmul.f32.gmra.mxu0 %v6294
        %v6406 = vpop.f32.mrf.mxu0
        %v6407 = vadd.f32 0.0, %v6406
        %6408 = vdwg.mxu0
        %v6409 = vadd.f32 %v6104, %v6314
        %v6410 = vadd.f32 %v6105, %v6317
        %v6411 = vadd.f32 %v6106, %v6320
        %v6412 = vadd.f32 %v6107, %v6323
        %v6413 = vadd.f32 %v6108, %v6326
        %v6414 = vadd.f32 %v6109, %v6329
        %v6415 = vadd.f32 %v6110, %v6332
        %v6416 = vadd.f32 %v6111, %v6335
        %v6417 = vadd.f32 %v6112, %v6338
        %v6418 = vadd.f32 %v6113, %v6341
        %v6419 = vadd.f32 %v6114, %v6344
        %v6420 = vadd.f32 %v6115, %v6347
        %v6421 = vadd.f32 %v6116, %v6350
        %v6422 = vadd.f32 %v6117, %v6353
        %v6423 = vadd.f32 %v6118, %v6356
        %v6424 = vadd.f32 %v6119, %v6359
        %v6425 = vadd.f32 %v6120, %v6362
        %v6426 = vadd.f32 %v6121, %v6365
        %v6427 = vadd.f32 %v6122, %v6368
        %v6428 = vadd.f32 %v6123, %v6371
        %v6429 = vadd.f32 %v6124, %v6374
        %v6430 = vadd.f32 %v6125, %v6377
        %v6431 = vadd.f32 %v6126, %v6380
        %v6432 = vadd.f32 %v6127, %v6383
        %v6433 = vadd.f32 %v6128, %v6386
        %v6434 = vadd.f32 %v6129, %v6389
        %v6435 = vadd.f32 %v6130, %v6392
        %v6436 = vadd.f32 %v6131, %v6395
        %v6437 = vadd.f32 %v6132, %v6398
        %v6438 = vadd.f32 %v6133, %v6401
        %v6439 = vadd.f32 %v6134, %v6404
        %v6440 = vadd.f32 %v6135, %v6407
        %v6441 = vld [vmem:[#allocation2 + $0x11] sm:$0xff]
        %v6442 = vld [vmem:[#allocation2 + $0x19] sm:$0xff]
        %v6443 = vld [vmem:[#allocation2 + $0x21] sm:$0xff]
        %v6444 = vld [vmem:[#allocation2 + $0x29] sm:$0xff]
        %v6445 = vld [vmem:[#allocation2 + $0x31] sm:$0xff]
        %v6446 = vld [vmem:[#allocation2 + $0x39] sm:$0xff]
        %v6447 = vld [vmem:[#allocation2 + $0x41] sm:$0xff]
        %v6448 = vld [vmem:[#allocation2 + $0x49] sm:$0xff]
        %v6449 = vld [vmem:[#allocation2 + $0x51] sm:$0xff]
        %v6450 = vld [vmem:[#allocation2 + $0x59] sm:$0xff]
        %v6451 = vld [vmem:[#allocation2 + $0x61] sm:$0xff]
        %v6452 = vld [vmem:[#allocation2 + $0x69] sm:$0xff]
        %v6453 = vld [vmem:[#allocation2 + $0x71] sm:$0xff]
        %v6454 = vld [vmem:[#allocation2 + $0x79] sm:$0xff]
        %v6455 = vld [vmem:[#allocation2 + $0x81] sm:$0xff]
        %v6456 = vld [vmem:[#allocation2 + $0x89] sm:$0xff]
        %v6457 = vld [vmem:[#allocation2 + $0x91] sm:$0xff]
        %v6458 = vld [vmem:[#allocation2 + $0x99] sm:$0xff]
        %v6459 = vld [vmem:[#allocation2 + $0xa1] sm:$0xff]
        %v6460 = vld [vmem:[#allocation2 + $0xa9] sm:$0xff]
        %v6461 = vld [vmem:[#allocation2 + $0xb1] sm:$0xff]
        %v6462 = vld [vmem:[#allocation2 + $0xb9] sm:$0xff]
        %v6463 = vld [vmem:[#allocation2 + $0xc1] sm:$0xff]
        %v6464 = vld [vmem:[#allocation2 + $0xc9] sm:$0xff]
        %v6465 = vld [vmem:[#allocation2 + $0xd1] sm:$0xff]
        %v6466 = vld [vmem:[#allocation2 + $0xd9] sm:$0xff]
        %v6467 = vld [vmem:[#allocation2 + $0xe1] sm:$0xff]
        %v6468 = vld [vmem:[#allocation2 + $0xe9] sm:$0xff]
        %v6469 = vld [vmem:[#allocation2 + $0xf1] sm:$0xff]
        %v6470 = vld [vmem:[#allocation2 + $0xf9] sm:$0xff]
        %v6471 = vld [vmem:[#allocation2 + $0x101] sm:$0xff]
        %v6472 = vld [vmem:[#allocation2 + $0x109] sm:$0xff]
        %v6473 = vmul.f32 %v6441, %v2796
        %v6474 = vmul.f32 %v6442, %v2800
        %v6475 = vmul.f32 %v6443, %v2804
        %v6476 = vmul.f32 %v6444, %v2808
        %v6477 = vmul.f32 %v6445, %v2812
        %v6478 = vmul.f32 %v6446, %v2816
        %v6479 = vmul.f32 %v6447, %v2820
        %v6480 = vmul.f32 %v6448, %v2824
        %v6481 = vmul.f32 %v6449, %v2828
        %v6482 = vmul.f32 %v6450, %v2832
        %v6483 = vmul.f32 %v6451, %v2836
        %v6484 = vmul.f32 %v6452, %v2840
        %v6485 = vmul.f32 %v6453, %v2844
        %v6486 = vmul.f32 %v6454, %v2848
        %v6487 = vmul.f32 %v6455, %v2852
        %v6488 = vmul.f32 %v6456, %v2856
        %v6489 = vmul.f32 %v6457, %v2860
        %v6490 = vmul.f32 %v6458, %v2864
        %v6491 = vmul.f32 %v6459, %v2868
        %v6492 = vmul.f32 %v6460, %v2872
        %v6493 = vmul.f32 %v6461, %v2876
        %v6494 = vmul.f32 %v6462, %v2880
        %v6495 = vmul.f32 %v6463, %v2884
        %v6496 = vmul.f32 %v6464, %v2888
        %v6497 = vmul.f32 %v6465, %v2892
        %v6498 = vmul.f32 %v6466, %v2896
        %v6499 = vmul.f32 %v6467, %v2900
        %v6500 = vmul.f32 %v6468, %v2904
        %v6501 = vmul.f32 %v6469, %v2908
        %v6502 = vmul.f32 %v6470, %v2912
        %v6503 = vmul.f32 %v6471, %v2916
        %v6504 = vmul.f32 %v6472, %v2920
        %v6506 = vsel %vm1022, %v6473, 0
        %v6509 = vsel %vm1022, %v6474, 0
        %v6512 = vsel %vm1022, %v6475, 0
        %v6515 = vsel %vm1022, %v6476, 0
        %v6518 = vsel %vm1022, %v6477, 0
        %v6521 = vsel %vm1022, %v6478, 0
        %v6524 = vsel %vm1022, %v6479, 0
        %v6527 = vsel %vm1022, %v6480, 0
        %v6530 = vsel %vm1022, %v6481, 0
        %v6533 = vsel %vm1022, %v6482, 0
        %v6536 = vsel %vm1022, %v6483, 0
        %v6539 = vsel %vm1022, %v6484, 0
        %v6542 = vsel %vm1022, %v6485, 0
        %v6545 = vsel %vm1022, %v6486, 0
        %v6548 = vsel %vm1022, %v6487, 0
        %v6551 = vsel %vm1022, %v6488, 0
        %v6554 = vsel %vm1022, %v6489, 0
        %v6557 = vsel %vm1022, %v6490, 0
        %v6560 = vsel %vm1022, %v6491, 0
        %v6563 = vsel %vm1022, %v6492, 0
        %v6566 = vsel %vm1022, %v6493, 0
        %v6569 = vsel %vm1022, %v6494, 0
        %v6572 = vsel %vm1022, %v6495, 0
        %v6575 = vsel %vm1022, %v6496, 0
        %v6578 = vsel %vm1022, %v6497, 0
        %v6581 = vsel %vm1022, %v6498, 0
        %v6584 = vsel %vm1022, %v6499, 0
        %v6587 = vsel %vm1022, %v6500, 0
        %v6590 = vsel %vm1022, %v6501, 0
        %v6593 = vsel %vm1022, %v6502, 0
        %v6596 = vsel %vm1022, %v6503, 0
        %v6599 = vsel %vm1022, %v6504, 0
        %6601 = vmatpush.msra.mxu0 0.0
        %6602 = vmatpush.msra.mxu0 0.0
        %6603 = vmatpush.msra.mxu0 0.0
        %6604 = vmatpush.msra.mxu0 0.0
        %6605 = vmatpush.msra.mxu0 0.0
        %6606 = vmatpush.msra.mxu0 0.0
        %6607 = vmatpush.msra.mxu0 0.0
        %6608 = vmatpush.msra.mxu0 0.0
        %6609 = vmatpush.msra.mxu0 0.0
        %6610 = vmatpush.msra.mxu0 0.0
        %6611 = vmatpush.msra.mxu0 0.0
        %6612 = vmatpush.msra.mxu0 0.0
        %6613 = vmatpush.msra.mxu0 %v1004
        %6614 = vmatpush.msra.mxu0 %v1003
        %6615 = vmatpush.msra.mxu0 %v1002
        %6616 = vmatpush.msra.mxu0 %v1001
        %6617 = vmatmul.f32.gmra.mxu0 %v6506
        %v6618 = vpop.f32.mrf.mxu0
        %v6619 = vadd.f32 0.0, %v6618
        %6620 = vmatmul.f32.gmra.mxu0 %v6509
        %v6621 = vpop.f32.mrf.mxu0
        %v6622 = vadd.f32 0.0, %v6621
        %6623 = vmatmul.f32.gmra.mxu0 %v6512
        %v6624 = vpop.f32.mrf.mxu0
        %v6625 = vadd.f32 0.0, %v6624
        %6626 = vmatmul.f32.gmra.mxu0 %v6515
        %v6627 = vpop.f32.mrf.mxu0
        %v6628 = vadd.f32 0.0, %v6627
        %6629 = vmatmul.f32.gmra.mxu0 %v6518
        %v6630 = vpop.f32.mrf.mxu0
        %v6631 = vadd.f32 0.0, %v6630
        %6632 = vmatmul.f32.gmra.mxu0 %v6521
        %v6633 = vpop.f32.mrf.mxu0
        %v6634 = vadd.f32 0.0, %v6633
        %6635 = vmatmul.f32.gmra.mxu0 %v6524
        %v6636 = vpop.f32.mrf.mxu0
        %v6637 = vadd.f32 0.0, %v6636
        %6638 = vmatmul.f32.gmra.mxu0 %v6527
        %v6639 = vpop.f32.mrf.mxu0
        %v6640 = vadd.f32 0.0, %v6639
        %6641 = vmatmul.f32.gmra.mxu0 %v6530
        %v6642 = vpop.f32.mrf.mxu0
        %v6643 = vadd.f32 0.0, %v6642
        %6644 = vmatmul.f32.gmra.mxu0 %v6533
        %v6645 = vpop.f32.mrf.mxu0
        %v6646 = vadd.f32 0.0, %v6645
        %6647 = vmatmul.f32.gmra.mxu0 %v6536
        %v6648 = vpop.f32.mrf.mxu0
        %v6649 = vadd.f32 0.0, %v6648
        %6650 = vmatmul.f32.gmra.mxu0 %v6539
        %v6651 = vpop.f32.mrf.mxu0
        %v6652 = vadd.f32 0.0, %v6651
        %6653 = vmatmul.f32.gmra.mxu0 %v6542
        %v6654 = vpop.f32.mrf.mxu0
        %v6655 = vadd.f32 0.0, %v6654
        %6656 = vmatmul.f32.gmra.mxu0 %v6545
        %v6657 = vpop.f32.mrf.mxu0
        %v6658 = vadd.f32 0.0, %v6657
        %6659 = vmatmul.f32.gmra.mxu0 %v6548
        %v6660 = vpop.f32.mrf.mxu0
        %v6661 = vadd.f32 0.0, %v6660
        %6662 = vmatmul.f32.gmra.mxu0 %v6551
        %v6663 = vpop.f32.mrf.mxu0
        %v6664 = vadd.f32 0.0, %v6663
        %6665 = vmatmul.f32.gmra.mxu0 %v6554
        %v6666 = vpop.f32.mrf.mxu0
        %v6667 = vadd.f32 0.0, %v6666
        %6668 = vmatmul.f32.gmra.mxu0 %v6557
        %v6669 = vpop.f32.mrf.mxu0
        %v6670 = vadd.f32 0.0, %v6669
        %6671 = vmatmul.f32.gmra.mxu0 %v6560
        %v6672 = vpop.f32.mrf.mxu0
        %v6673 = vadd.f32 0.0, %v6672
        %6674 = vmatmul.f32.gmra.mxu0 %v6563
        %v6675 = vpop.f32.mrf.mxu0
        %v6676 = vadd.f32 0.0, %v6675
        %6677 = vmatmul.f32.gmra.mxu0 %v6566
        %v6678 = vpop.f32.mrf.mxu0
        %v6679 = vadd.f32 0.0, %v6678
        %6680 = vmatmul.f32.gmra.mxu0 %v6569
        %v6681 = vpop.f32.mrf.mxu0
        %v6682 = vadd.f32 0.0, %v6681
        %6683 = vmatmul.f32.gmra.mxu0 %v6572
        %v6684 = vpop.f32.mrf.mxu0
        %v6685 = vadd.f32 0.0, %v6684
        %6686 = vmatmul.f32.gmra.mxu0 %v6575
        %v6687 = vpop.f32.mrf.mxu0
        %v6688 = vadd.f32 0.0, %v6687
        %6689 = vmatmul.f32.gmra.mxu0 %v6578
        %v6690 = vpop.f32.mrf.mxu0
        %v6691 = vadd.f32 0.0, %v6690
        %6692 = vmatmul.f32.gmra.mxu0 %v6581
        %v6693 = vpop.f32.mrf.mxu0
        %v6694 = vadd.f32 0.0, %v6693
        %6695 = vmatmul.f32.gmra.mxu0 %v6584
        %v6696 = vpop.f32.mrf.mxu0
        %v6697 = vadd.f32 0.0, %v6696
        %6698 = vmatmul.f32.gmra.mxu0 %v6587
        %v6699 = vpop.f32.mrf.mxu0
        %v6700 = vadd.f32 0.0, %v6699
        %6701 = vmatmul.f32.gmra.mxu0 %v6590
        %v6702 = vpop.f32.mrf.mxu0
        %v6703 = vadd.f32 0.0, %v6702
        %6704 = vmatmul.f32.gmra.mxu0 %v6593
        %v6705 = vpop.f32.mrf.mxu0
        %v6706 = vadd.f32 0.0, %v6705
        %6707 = vmatmul.f32.gmra.mxu0 %v6596
        %v6708 = vpop.f32.mrf.mxu0
        %v6709 = vadd.f32 0.0, %v6708
        %6710 = vmatmul.f32.gmra.mxu0 %v6599
        %v6711 = vpop.f32.mrf.mxu0
        %v6712 = vadd.f32 0.0, %v6711
        %6713 = vdwg.mxu0
        %v6714 = vadd.f32 %v6409, %v6619
        %v6715 = vadd.f32 %v6410, %v6622
        %v6716 = vadd.f32 %v6411, %v6625
        %v6717 = vadd.f32 %v6412, %v6628
        %v6718 = vadd.f32 %v6413, %v6631
        %v6719 = vadd.f32 %v6414, %v6634
        %v6720 = vadd.f32 %v6415, %v6637
        %v6721 = vadd.f32 %v6416, %v6640
        %v6722 = vadd.f32 %v6417, %v6643
        %v6723 = vadd.f32 %v6418, %v6646
        %v6724 = vadd.f32 %v6419, %v6649
        %v6725 = vadd.f32 %v6420, %v6652
        %v6726 = vadd.f32 %v6421, %v6655
        %v6727 = vadd.f32 %v6422, %v6658
        %v6728 = vadd.f32 %v6423, %v6661
        %v6729 = vadd.f32 %v6424, %v6664
        %v6730 = vadd.f32 %v6425, %v6667
        %v6731 = vadd.f32 %v6426, %v6670
        %v6732 = vadd.f32 %v6427, %v6673
        %v6733 = vadd.f32 %v6428, %v6676
        %v6734 = vadd.f32 %v6429, %v6679
        %v6735 = vadd.f32 %v6430, %v6682
        %v6736 = vadd.f32 %v6431, %v6685
        %v6737 = vadd.f32 %v6432, %v6688
        %v6738 = vadd.f32 %v6433, %v6691
        %v6739 = vadd.f32 %v6434, %v6694
        %v6740 = vadd.f32 %v6435, %v6697
        %v6741 = vadd.f32 %v6436, %v6700
        %v6742 = vadd.f32 %v6437, %v6703
        %v6743 = vadd.f32 %v6438, %v6706
        %v6744 = vadd.f32 %v6439, %v6709
        %v6745 = vadd.f32 %v6440, %v6712
        %v6746 = vld [vmem:[#allocation2 + $0x12] sm:$0xff]
        %v6747 = vld [vmem:[#allocation2 + $0x1a] sm:$0xff]
        %v6748 = vld [vmem:[#allocation2 + $0x22] sm:$0xff]
        %v6749 = vld [vmem:[#allocation2 + $0x2a] sm:$0xff]
        %v6750 = vld [vmem:[#allocation2 + $0x32] sm:$0xff]
        %v6751 = vld [vmem:[#allocation2 + $0x3a] sm:$0xff]
        %v6752 = vld [vmem:[#allocation2 + $0x42] sm:$0xff]
        %v6753 = vld [vmem:[#allocation2 + $0x4a] sm:$0xff]
        %v6754 = vld [vmem:[#allocation2 + $0x52] sm:$0xff]
        %v6755 = vld [vmem:[#allocation2 + $0x5a] sm:$0xff]
        %v6756 = vld [vmem:[#allocation2 + $0x62] sm:$0xff]
        %v6757 = vld [vmem:[#allocation2 + $0x6a] sm:$0xff]
        %v6758 = vld [vmem:[#allocation2 + $0x72] sm:$0xff]
        %v6759 = vld [vmem:[#allocation2 + $0x7a] sm:$0xff]
        %v6760 = vld [vmem:[#allocation2 + $0x82] sm:$0xff]
        %v6761 = vld [vmem:[#allocation2 + $0x8a] sm:$0xff]
        %v6762 = vld [vmem:[#allocation2 + $0x92] sm:$0xff]
        %v6763 = vld [vmem:[#allocation2 + $0x9a] sm:$0xff]
        %v6764 = vld [vmem:[#allocation2 + $0xa2] sm:$0xff]
        %v6765 = vld [vmem:[#allocation2 + $0xaa] sm:$0xff]
        %v6766 = vld [vmem:[#allocation2 + $0xb2] sm:$0xff]
        %v6767 = vld [vmem:[#allocation2 + $0xba] sm:$0xff]
        %v6768 = vld [vmem:[#allocation2 + $0xc2] sm:$0xff]
        %v6769 = vld [vmem:[#allocation2 + $0xca] sm:$0xff]
        %v6770 = vld [vmem:[#allocation2 + $0xd2] sm:$0xff]
        %v6771 = vld [vmem:[#allocation2 + $0xda] sm:$0xff]
        %v6772 = vld [vmem:[#allocation2 + $0xe2] sm:$0xff]
        %v6773 = vld [vmem:[#allocation2 + $0xea] sm:$0xff]
        %v6774 = vld [vmem:[#allocation2 + $0xf2] sm:$0xff]
        %v6775 = vld [vmem:[#allocation2 + $0xfa] sm:$0xff]
        %v6776 = vld [vmem:[#allocation2 + $0x102] sm:$0xff]
        %v6777 = vld [vmem:[#allocation2 + $0x10a] sm:$0xff]
        %v6778 = vmul.f32 %v6746, %v3229
        %v6779 = vmul.f32 %v6747, %v3233
        %v6780 = vmul.f32 %v6748, %v3237
        %v6781 = vmul.f32 %v6749, %v3241
        %v6782 = vmul.f32 %v6750, %v3245
        %v6783 = vmul.f32 %v6751, %v3249
        %v6784 = vmul.f32 %v6752, %v3253
        %v6785 = vmul.f32 %v6753, %v3257
        %v6786 = vmul.f32 %v6754, %v3261
        %v6787 = vmul.f32 %v6755, %v3265
        %v6788 = vmul.f32 %v6756, %v3269
        %v6789 = vmul.f32 %v6757, %v3273
        %v6790 = vmul.f32 %v6758, %v3277
        %v6791 = vmul.f32 %v6759, %v3281
        %v6792 = vmul.f32 %v6760, %v3285
        %v6793 = vmul.f32 %v6761, %v3289
        %v6794 = vmul.f32 %v6762, %v3293
        %v6795 = vmul.f32 %v6763, %v3297
        %v6796 = vmul.f32 %v6764, %v3301
        %v6797 = vmul.f32 %v6765, %v3305
        %v6798 = vmul.f32 %v6766, %v3309
        %v6799 = vmul.f32 %v6767, %v3313
        %v6800 = vmul.f32 %v6768, %v3317
        %v6801 = vmul.f32 %v6769, %v3321
        %v6802 = vmul.f32 %v6770, %v3325
        %v6803 = vmul.f32 %v6771, %v3329
        %v6804 = vmul.f32 %v6772, %v3333
        %v6805 = vmul.f32 %v6773, %v3337
        %v6806 = vmul.f32 %v6774, %v3341
        %v6807 = vmul.f32 %v6775, %v3345
        %v6808 = vmul.f32 %v6776, %v3349
        %v6809 = vmul.f32 %v6777, %v3353
        %v6811 = vsel %vm1022, %v6778, 0
        %v6814 = vsel %vm1022, %v6779, 0
        %v6817 = vsel %vm1022, %v6780, 0
        %v6820 = vsel %vm1022, %v6781, 0
        %v6823 = vsel %vm1022, %v6782, 0
        %v6826 = vsel %vm1022, %v6783, 0
        %v6829 = vsel %vm1022, %v6784, 0
        %v6832 = vsel %vm1022, %v6785, 0
        %v6835 = vsel %vm1022, %v6786, 0
        %v6838 = vsel %vm1022, %v6787, 0
        %v6841 = vsel %vm1022, %v6788, 0
        %v6844 = vsel %vm1022, %v6789, 0
        %v6847 = vsel %vm1022, %v6790, 0
        %v6850 = vsel %vm1022, %v6791, 0
        %v6853 = vsel %vm1022, %v6792, 0
        %v6856 = vsel %vm1022, %v6793, 0
        %v6859 = vsel %vm1022, %v6794, 0
        %v6862 = vsel %vm1022, %v6795, 0
        %v6865 = vsel %vm1022, %v6796, 0
        %v6868 = vsel %vm1022, %v6797, 0
        %v6871 = vsel %vm1022, %v6798, 0
        %v6874 = vsel %vm1022, %v6799, 0
        %v6877 = vsel %vm1022, %v6800, 0
        %v6880 = vsel %vm1022, %v6801, 0
        %v6883 = vsel %vm1022, %v6802, 0
        %v6886 = vsel %vm1022, %v6803, 0
        %v6889 = vsel %vm1022, %v6804, 0
        %v6892 = vsel %vm1022, %v6805, 0
        %v6895 = vsel %vm1022, %v6806, 0
        %v6898 = vsel %vm1022, %v6807, 0
        %v6901 = vsel %vm1022, %v6808, 0
        %v6904 = vsel %vm1022, %v6809, 0
        %6906 = vmatpush.msra.mxu0 0.0
        %6907 = vmatpush.msra.mxu0 0.0
        %6908 = vmatpush.msra.mxu0 0.0
        %6909 = vmatpush.msra.mxu0 0.0
        %6910 = vmatpush.msra.mxu0 0.0
        %6911 = vmatpush.msra.mxu0 0.0
        %6912 = vmatpush.msra.mxu0 0.0
        %6913 = vmatpush.msra.mxu0 0.0
        %6914 = vmatpush.msra.mxu0 0.0
        %6915 = vmatpush.msra.mxu0 0.0
        %6916 = vmatpush.msra.mxu0 0.0
        %6917 = vmatpush.msra.mxu0 0.0
        %6918 = vmatpush.msra.mxu0 %v1008
        %6919 = vmatpush.msra.mxu0 %v1007
        %6920 = vmatpush.msra.mxu0 %v1006
        %6921 = vmatpush.msra.mxu0 %v1005
        %6922 = vmatmul.f32.gmra.mxu0 %v6811
        %v6923 = vpop.f32.mrf.mxu0
        %v6924 = vadd.f32 0.0, %v6923
        %6925 = vmatmul.f32.gmra.mxu0 %v6814
        %v6926 = vpop.f32.mrf.mxu0
        %v6927 = vadd.f32 0.0, %v6926
        %6928 = vmatmul.f32.gmra.mxu0 %v6817
        %v6929 = vpop.f32.mrf.mxu0
        %v6930 = vadd.f32 0.0, %v6929
        %6931 = vmatmul.f32.gmra.mxu0 %v6820
        %v6932 = vpop.f32.mrf.mxu0
        %v6933 = vadd.f32 0.0, %v6932
        %6934 = vmatmul.f32.gmra.mxu0 %v6823
        %v6935 = vpop.f32.mrf.mxu0
        %v6936 = vadd.f32 0.0, %v6935
        %6937 = vmatmul.f32.gmra.mxu0 %v6826
        %v6938 = vpop.f32.mrf.mxu0
        %v6939 = vadd.f32 0.0, %v6938
        %6940 = vmatmul.f32.gmra.mxu0 %v6829
        %v6941 = vpop.f32.mrf.mxu0
        %v6942 = vadd.f32 0.0, %v6941
        %6943 = vmatmul.f32.gmra.mxu0 %v6832
        %v6944 = vpop.f32.mrf.mxu0
        %v6945 = vadd.f32 0.0, %v6944
        %6946 = vmatmul.f32.gmra.mxu0 %v6835
        %v6947 = vpop.f32.mrf.mxu0
        %v6948 = vadd.f32 0.0, %v6947
        %6949 = vmatmul.f32.gmra.mxu0 %v6838
        %v6950 = vpop.f32.mrf.mxu0
        %v6951 = vadd.f32 0.0, %v6950
        %6952 = vmatmul.f32.gmra.mxu0 %v6841
        %v6953 = vpop.f32.mrf.mxu0
        %v6954 = vadd.f32 0.0, %v6953
        %6955 = vmatmul.f32.gmra.mxu0 %v6844
        %v6956 = vpop.f32.mrf.mxu0
        %v6957 = vadd.f32 0.0, %v6956
        %6958 = vmatmul.f32.gmra.mxu0 %v6847
        %v6959 = vpop.f32.mrf.mxu0
        %v6960 = vadd.f32 0.0, %v6959
        %6961 = vmatmul.f32.gmra.mxu0 %v6850
        %v6962 = vpop.f32.mrf.mxu0
        %v6963 = vadd.f32 0.0, %v6962
        %6964 = vmatmul.f32.gmra.mxu0 %v6853
        %v6965 = vpop.f32.mrf.mxu0
        %v6966 = vadd.f32 0.0, %v6965
        %6967 = vmatmul.f32.gmra.mxu0 %v6856
        %v6968 = vpop.f32.mrf.mxu0
        %v6969 = vadd.f32 0.0, %v6968
        %6970 = vmatmul.f32.gmra.mxu0 %v6859
        %v6971 = vpop.f32.mrf.mxu0
        %v6972 = vadd.f32 0.0, %v6971
        %6973 = vmatmul.f32.gmra.mxu0 %v6862
        %v6974 = vpop.f32.mrf.mxu0
        %v6975 = vadd.f32 0.0, %v6974
        %6976 = vmatmul.f32.gmra.mxu0 %v6865
        %v6977 = vpop.f32.mrf.mxu0
        %v6978 = vadd.f32 0.0, %v6977
        %6979 = vmatmul.f32.gmra.mxu0 %v6868
        %v6980 = vpop.f32.mrf.mxu0
        %v6981 = vadd.f32 0.0, %v6980
        %6982 = vmatmul.f32.gmra.mxu0 %v6871
        %v6983 = vpop.f32.mrf.mxu0
        %v6984 = vadd.f32 0.0, %v6983
        %6985 = vmatmul.f32.gmra.mxu0 %v6874
        %v6986 = vpop.f32.mrf.mxu0
        %v6987 = vadd.f32 0.0, %v6986
        %6988 = vmatmul.f32.gmra.mxu0 %v6877
        %v6989 = vpop.f32.mrf.mxu0
        %v6990 = vadd.f32 0.0, %v6989
        %6991 = vmatmul.f32.gmra.mxu0 %v6880
        %v6992 = vpop.f32.mrf.mxu0
        %v6993 = vadd.f32 0.0, %v6992
        %6994 = vmatmul.f32.gmra.mxu0 %v6883
        %v6995 = vpop.f32.mrf.mxu0
        %v6996 = vadd.f32 0.0, %v6995
        %6997 = vmatmul.f32.gmra.mxu0 %v6886
        %v6998 = vpop.f32.mrf.mxu0
        %v6999 = vadd.f32 0.0, %v6998
        %7000 = vmatmul.f32.gmra.mxu0 %v6889
        %v7001 = vpop.f32.mrf.mxu0
        %v7002 = vadd.f32 0.0, %v7001
        %7003 = vmatmul.f32.gmra.mxu0 %v6892
        %v7004 = vpop.f32.mrf.mxu0
        %v7005 = vadd.f32 0.0, %v7004
        %7006 = vmatmul.f32.gmra.mxu0 %v6895
        %v7007 = vpop.f32.mrf.mxu0
        %v7008 = vadd.f32 0.0, %v7007
        %7009 = vmatmul.f32.gmra.mxu0 %v6898
        %v7010 = vpop.f32.mrf.mxu0
        %v7011 = vadd.f32 0.0, %v7010
        %7012 = vmatmul.f32.gmra.mxu0 %v6901
        %v7013 = vpop.f32.mrf.mxu0
        %v7014 = vadd.f32 0.0, %v7013
        %7015 = vmatmul.f32.gmra.mxu0 %v6904
        %v7016 = vpop.f32.mrf.mxu0
        %v7017 = vadd.f32 0.0, %v7016
        %7018 = vdwg.mxu0
        %v7019 = vadd.f32 %v6714, %v6924
        %v7020 = vadd.f32 %v6715, %v6927
        %v7021 = vadd.f32 %v6716, %v6930
        %v7022 = vadd.f32 %v6717, %v6933
        %v7023 = vadd.f32 %v6718, %v6936
        %v7024 = vadd.f32 %v6719, %v6939
        %v7025 = vadd.f32 %v6720, %v6942
        %v7026 = vadd.f32 %v6721, %v6945
        %v7027 = vadd.f32 %v6722, %v6948
        %v7028 = vadd.f32 %v6723, %v6951
        %v7029 = vadd.f32 %v6724, %v6954
        %v7030 = vadd.f32 %v6725, %v6957
        %v7031 = vadd.f32 %v6726, %v6960
        %v7032 = vadd.f32 %v6727, %v6963
        %v7033 = vadd.f32 %v6728, %v6966
        %v7034 = vadd.f32 %v6729, %v6969
        %v7035 = vadd.f32 %v6730, %v6972
        %v7036 = vadd.f32 %v6731, %v6975
        %v7037 = vadd.f32 %v6732, %v6978
        %v7038 = vadd.f32 %v6733, %v6981
        %v7039 = vadd.f32 %v6734, %v6984
        %v7040 = vadd.f32 %v6735, %v6987
        %v7041 = vadd.f32 %v6736, %v6990
        %v7042 = vadd.f32 %v6737, %v6993
        %v7043 = vadd.f32 %v6738, %v6996
        %v7044 = vadd.f32 %v6739, %v6999
        %v7045 = vadd.f32 %v6740, %v7002
        %v7046 = vadd.f32 %v6741, %v7005
        %v7047 = vadd.f32 %v6742, %v7008
        %v7048 = vadd.f32 %v6743, %v7011
        %v7049 = vadd.f32 %v6744, %v7014
        %v7050 = vadd.f32 %v6745, %v7017
        %v7051 = vld [vmem:[#allocation2 + $0x20] sm:$0xff]
        %v7052 = vld [vmem:[#allocation2 + $0x28] sm:$0xff]
        %v7053 = vld [vmem:[#allocation2 + $0x30] sm:$0xff]
        %v7054 = vld [vmem:[#allocation2 + $0x38] sm:$0xff]
        %v7055 = vld [vmem:[#allocation2 + $0x40] sm:$0xff]
        %v7056 = vld [vmem:[#allocation2 + $0x48] sm:$0xff]
        %v7057 = vld [vmem:[#allocation2 + $0x50] sm:$0xff]
        %v7058 = vld [vmem:[#allocation2 + $0x58] sm:$0xff]
        %v7059 = vld [vmem:[#allocation2 + $0x60] sm:$0xff]
        %v7060 = vld [vmem:[#allocation2 + $0x68] sm:$0xff]
        %v7061 = vld [vmem:[#allocation2 + $0x70] sm:$0xff]
        %v7062 = vld [vmem:[#allocation2 + $0x78] sm:$0xff]
        %v7063 = vld [vmem:[#allocation2 + $0x80] sm:$0xff]
        %v7064 = vld [vmem:[#allocation2 + $0x88] sm:$0xff]
        %v7065 = vld [vmem:[#allocation2 + $0x90] sm:$0xff]
        %v7066 = vld [vmem:[#allocation2 + $0x98] sm:$0xff]
        %v7067 = vld [vmem:[#allocation2 + $0xa0] sm:$0xff]
        %v7068 = vld [vmem:[#allocation2 + $0xa8] sm:$0xff]
        %v7069 = vld [vmem:[#allocation2 + $0xb0] sm:$0xff]
        %v7070 = vld [vmem:[#allocation2 + $0xb8] sm:$0xff]
        %v7071 = vld [vmem:[#allocation2 + $0xc0] sm:$0xff]
        %v7072 = vld [vmem:[#allocation2 + $0xc8] sm:$0xff]
        %v7073 = vld [vmem:[#allocation2 + $0xd0] sm:$0xff]
        %v7074 = vld [vmem:[#allocation2 + $0xd8] sm:$0xff]
        %v7075 = vld [vmem:[#allocation2 + $0xe0] sm:$0xff]
        %v7076 = vld [vmem:[#allocation2 + $0xe8] sm:$0xff]
        %v7077 = vld [vmem:[#allocation2 + $0xf0] sm:$0xff]
        %v7078 = vld [vmem:[#allocation2 + $0xf8] sm:$0xff]
        %v7079 = vld [vmem:[#allocation2 + $0x100] sm:$0xff]
        %v7080 = vld [vmem:[#allocation2 + $0x108] sm:$0xff]
        %v7081 = vld [vmem:[#allocation2 + $0x110] sm:$0xff]
        %v7082 = vld [vmem:[#allocation2 + $0x118] sm:$0xff]
        %v7083 = vmul.f32 %v7051, %v3662
        %v7084 = vmul.f32 %v7052, %v3666
        %v7085 = vmul.f32 %v7053, %v3670
        %v7086 = vmul.f32 %v7054, %v3674
        %v7087 = vmul.f32 %v7055, %v3678
        %v7088 = vmul.f32 %v7056, %v3682
        %v7089 = vmul.f32 %v7057, %v3686
        %v7090 = vmul.f32 %v7058, %v3690
        %v7091 = vmul.f32 %v7059, %v3694
        %v7092 = vmul.f32 %v7060, %v3698
        %v7093 = vmul.f32 %v7061, %v3702
        %v7094 = vmul.f32 %v7062, %v3706
        %v7095 = vmul.f32 %v7063, %v3710
        %v7096 = vmul.f32 %v7064, %v3714
        %v7097 = vmul.f32 %v7065, %v3718
        %v7098 = vmul.f32 %v7066, %v3722
        %v7099 = vmul.f32 %v7067, %v3726
        %v7100 = vmul.f32 %v7068, %v3730
        %v7101 = vmul.f32 %v7069, %v3734
        %v7102 = vmul.f32 %v7070, %v3738
        %v7103 = vmul.f32 %v7071, %v3742
        %v7104 = vmul.f32 %v7072, %v3746
        %v7105 = vmul.f32 %v7073, %v3750
        %v7106 = vmul.f32 %v7074, %v3754
        %v7107 = vmul.f32 %v7075, %v3758
        %v7108 = vmul.f32 %v7076, %v3762
        %v7109 = vmul.f32 %v7077, %v3766
        %v7110 = vmul.f32 %v7078, %v3770
        %v7111 = vmul.f32 %v7079, %v3774
        %v7112 = vmul.f32 %v7080, %v3778
        %v7113 = vmul.f32 %v7081, %v3782
        %v7114 = vmul.f32 %v7082, %v3786
        %v7116 = vsel %vm1022, %v7083, 0
        %v7119 = vsel %vm1022, %v7084, 0
        %v7122 = vsel %vm1022, %v7085, 0
        %v7125 = vsel %vm1022, %v7086, 0
        %v7128 = vsel %vm1022, %v7087, 0
        %v7131 = vsel %vm1022, %v7088, 0
        %v7134 = vsel %vm1022, %v7089, 0
        %v7137 = vsel %vm1022, %v7090, 0
        %v7140 = vsel %vm1022, %v7091, 0
        %v7143 = vsel %vm1022, %v7092, 0
        %v7146 = vsel %vm1022, %v7093, 0
        %v7149 = vsel %vm1022, %v7094, 0
        %v7152 = vsel %vm1022, %v7095, 0
        %v7155 = vsel %vm1022, %v7096, 0
        %v7158 = vsel %vm1022, %v7097, 0
        %v7161 = vsel %vm1022, %v7098, 0
        %v7164 = vsel %vm1022, %v7099, 0
        %v7167 = vsel %vm1022, %v7100, 0
        %v7170 = vsel %vm1022, %v7101, 0
        %v7173 = vsel %vm1022, %v7102, 0
        %v7176 = vsel %vm1022, %v7103, 0
        %v7179 = vsel %vm1022, %v7104, 0
        %v7182 = vsel %vm1022, %v7105, 0
        %v7185 = vsel %vm1022, %v7106, 0
        %v7188 = vsel %vm1022, %v7107, 0
        %v7191 = vsel %vm1022, %v7108, 0
        %v7194 = vsel %vm1022, %v7109, 0
        %v7197 = vsel %vm1022, %v7110, 0
        %v7200 = vsel %vm1022, %v7111, 0
        %v7203 = vsel %vm1022, %v7112, 0
        %v7206 = vsel %vm1022, %v7113, 0
        %v7209 = vsel %vm1022, %v7114, 0
        %7211 = vmatpush.msra.mxu0 0.0
        %7212 = vmatpush.msra.mxu0 0.0
        %7213 = vmatpush.msra.mxu0 0.0
        %7214 = vmatpush.msra.mxu0 0.0
        %7215 = vmatpush.msra.mxu0 0.0
        %7216 = vmatpush.msra.mxu0 0.0
        %7217 = vmatpush.msra.mxu0 0.0
        %7218 = vmatpush.msra.mxu0 0.0
        %7219 = vmatpush.msra.mxu0 0.0
        %7220 = vmatpush.msra.mxu0 0.0
        %7221 = vmatpush.msra.mxu0 0.0
        %7222 = vmatpush.msra.mxu0 0.0
        %7223 = vmatpush.msra.mxu0 %v1012
        %7224 = vmatpush.msra.mxu0 %v1011
        %7225 = vmatpush.msra.mxu0 %v1010
        %7226 = vmatpush.msra.mxu0 %v1009
        %7227 = vmatmul.f32.gmra.mxu0 %v7116
        %v7228 = vpop.f32.mrf.mxu0
        %v7229 = vadd.f32 0.0, %v7228
        %7230 = vmatmul.f32.gmra.mxu0 %v7119
        %v7231 = vpop.f32.mrf.mxu0
        %v7232 = vadd.f32 0.0, %v7231
        %7233 = vmatmul.f32.gmra.mxu0 %v7122
        %v7234 = vpop.f32.mrf.mxu0
        %v7235 = vadd.f32 0.0, %v7234
        %7236 = vmatmul.f32.gmra.mxu0 %v7125
        %v7237 = vpop.f32.mrf.mxu0
        %v7238 = vadd.f32 0.0, %v7237
        %7239 = vmatmul.f32.gmra.mxu0 %v7128
        %v7240 = vpop.f32.mrf.mxu0
        %v7241 = vadd.f32 0.0, %v7240
        %7242 = vmatmul.f32.gmra.mxu0 %v7131
        %v7243 = vpop.f32.mrf.mxu0
        %v7244 = vadd.f32 0.0, %v7243
        %7245 = vmatmul.f32.gmra.mxu0 %v7134
        %v7246 = vpop.f32.mrf.mxu0
        %v7247 = vadd.f32 0.0, %v7246
        %7248 = vmatmul.f32.gmra.mxu0 %v7137
        %v7249 = vpop.f32.mrf.mxu0
        %v7250 = vadd.f32 0.0, %v7249
        %7251 = vmatmul.f32.gmra.mxu0 %v7140
        %v7252 = vpop.f32.mrf.mxu0
        %v7253 = vadd.f32 0.0, %v7252
        %7254 = vmatmul.f32.gmra.mxu0 %v7143
        %v7255 = vpop.f32.mrf.mxu0
        %v7256 = vadd.f32 0.0, %v7255
        %7257 = vmatmul.f32.gmra.mxu0 %v7146
        %v7258 = vpop.f32.mrf.mxu0
        %v7259 = vadd.f32 0.0, %v7258
        %7260 = vmatmul.f32.gmra.mxu0 %v7149
        %v7261 = vpop.f32.mrf.mxu0
        %v7262 = vadd.f32 0.0, %v7261
        %7263 = vmatmul.f32.gmra.mxu0 %v7152
        %v7264 = vpop.f32.mrf.mxu0
        %v7265 = vadd.f32 0.0, %v7264
        %7266 = vmatmul.f32.gmra.mxu0 %v7155
        %v7267 = vpop.f32.mrf.mxu0
        %v7268 = vadd.f32 0.0, %v7267
        %7269 = vmatmul.f32.gmra.mxu0 %v7158
        %v7270 = vpop.f32.mrf.mxu0
        %v7271 = vadd.f32 0.0, %v7270
        %7272 = vmatmul.f32.gmra.mxu0 %v7161
        %v7273 = vpop.f32.mrf.mxu0
        %v7274 = vadd.f32 0.0, %v7273
        %7275 = vmatmul.f32.gmra.mxu0 %v7164
        %v7276 = vpop.f32.mrf.mxu0
        %v7277 = vadd.f32 0.0, %v7276
        %7278 = vmatmul.f32.gmra.mxu0 %v7167
        %v7279 = vpop.f32.mrf.mxu0
        %v7280 = vadd.f32 0.0, %v7279
        %7281 = vmatmul.f32.gmra.mxu0 %v7170
        %v7282 = vpop.f32.mrf.mxu0
        %v7283 = vadd.f32 0.0, %v7282
        %7284 = vmatmul.f32.gmra.mxu0 %v7173
        %v7285 = vpop.f32.mrf.mxu0
        %v7286 = vadd.f32 0.0, %v7285
        %7287 = vmatmul.f32.gmra.mxu0 %v7176
        %v7288 = vpop.f32.mrf.mxu0
        %v7289 = vadd.f32 0.0, %v7288
        %7290 = vmatmul.f32.gmra.mxu0 %v7179
        %v7291 = vpop.f32.mrf.mxu0
        %v7292 = vadd.f32 0.0, %v7291
        %7293 = vmatmul.f32.gmra.mxu0 %v7182
        %v7294 = vpop.f32.mrf.mxu0
        %v7295 = vadd.f32 0.0, %v7294
        %7296 = vmatmul.f32.gmra.mxu0 %v7185
        %v7297 = vpop.f32.mrf.mxu0
        %v7298 = vadd.f32 0.0, %v7297
        %7299 = vmatmul.f32.gmra.mxu0 %v7188
        %v7300 = vpop.f32.mrf.mxu0
        %v7301 = vadd.f32 0.0, %v7300
        %7302 = vmatmul.f32.gmra.mxu0 %v7191
        %v7303 = vpop.f32.mrf.mxu0
        %v7304 = vadd.f32 0.0, %v7303
        %7305 = vmatmul.f32.gmra.mxu0 %v7194
        %v7306 = vpop.f32.mrf.mxu0
        %v7307 = vadd.f32 0.0, %v7306
        %7308 = vmatmul.f32.gmra.mxu0 %v7197
        %v7309 = vpop.f32.mrf.mxu0
        %v7310 = vadd.f32 0.0, %v7309
        %7311 = vmatmul.f32.gmra.mxu0 %v7200
        %v7312 = vpop.f32.mrf.mxu0
        %v7313 = vadd.f32 0.0, %v7312
        %7314 = vmatmul.f32.gmra.mxu0 %v7203
        %v7315 = vpop.f32.mrf.mxu0
        %v7316 = vadd.f32 0.0, %v7315
        %7317 = vmatmul.f32.gmra.mxu0 %v7206
        %v7318 = vpop.f32.mrf.mxu0
        %v7319 = vadd.f32 0.0, %v7318
        %7320 = vmatmul.f32.gmra.mxu0 %v7209
        %v7321 = vpop.f32.mrf.mxu0
        %v7322 = vadd.f32 0.0, %v7321
        %7323 = vdwg.mxu0
        %v7324 = vadd.f32 %v7019, %v7229
        %v7325 = vadd.f32 %v7020, %v7232
        %v7326 = vadd.f32 %v7021, %v7235
        %v7327 = vadd.f32 %v7022, %v7238
        %v7328 = vadd.f32 %v7023, %v7241
        %v7329 = vadd.f32 %v7024, %v7244
        %v7330 = vadd.f32 %v7025, %v7247
        %v7331 = vadd.f32 %v7026, %v7250
        %v7332 = vadd.f32 %v7027, %v7253
        %v7333 = vadd.f32 %v7028, %v7256
        %v7334 = vadd.f32 %v7029, %v7259
        %v7335 = vadd.f32 %v7030, %v7262
        %v7336 = vadd.f32 %v7031, %v7265
        %v7337 = vadd.f32 %v7032, %v7268
        %v7338 = vadd.f32 %v7033, %v7271
        %v7339 = vadd.f32 %v7034, %v7274
        %v7340 = vadd.f32 %v7035, %v7277
        %v7341 = vadd.f32 %v7036, %v7280
        %v7342 = vadd.f32 %v7037, %v7283
        %v7343 = vadd.f32 %v7038, %v7286
        %v7344 = vadd.f32 %v7039, %v7289
        %v7345 = vadd.f32 %v7040, %v7292
        %v7346 = vadd.f32 %v7041, %v7295
        %v7347 = vadd.f32 %v7042, %v7298
        %v7348 = vadd.f32 %v7043, %v7301
        %v7349 = vadd.f32 %v7044, %v7304
        %v7350 = vadd.f32 %v7045, %v7307
        %v7351 = vadd.f32 %v7046, %v7310
        %v7352 = vadd.f32 %v7047, %v7313
        %v7353 = vadd.f32 %v7048, %v7316
        %v7354 = vadd.f32 %v7049, %v7319
        %v7355 = vadd.f32 %v7050, %v7322
        %v7356 = vld [vmem:[#allocation2 + $0x21] sm:$0xff]
        %v7357 = vld [vmem:[#allocation2 + $0x29] sm:$0xff]
        %v7358 = vld [vmem:[#allocation2 + $0x31] sm:$0xff]
        %v7359 = vld [vmem:[#allocation2 + $0x39] sm:$0xff]
        %v7360 = vld [vmem:[#allocation2 + $0x41] sm:$0xff]
        %v7361 = vld [vmem:[#allocation2 + $0x49] sm:$0xff]
        %v7362 = vld [vmem:[#allocation2 + $0x51] sm:$0xff]
        %v7363 = vld [vmem:[#allocation2 + $0x59] sm:$0xff]
        %v7364 = vld [vmem:[#allocation2 + $0x61] sm:$0xff]
        %v7365 = vld [vmem:[#allocation2 + $0x69] sm:$0xff]
        %v7366 = vld [vmem:[#allocation2 + $0x71] sm:$0xff]
        %v7367 = vld [vmem:[#allocation2 + $0x79] sm:$0xff]
        %v7368 = vld [vmem:[#allocation2 + $0x81] sm:$0xff]
        %v7369 = vld [vmem:[#allocation2 + $0x89] sm:$0xff]
        %v7370 = vld [vmem:[#allocation2 + $0x91] sm:$0xff]
        %v7371 = vld [vmem:[#allocation2 + $0x99] sm:$0xff]
        %v7372 = vld [vmem:[#allocation2 + $0xa1] sm:$0xff]
        %v7373 = vld [vmem:[#allocation2 + $0xa9] sm:$0xff]
        %v7374 = vld [vmem:[#allocation2 + $0xb1] sm:$0xff]
        %v7375 = vld [vmem:[#allocation2 + $0xb9] sm:$0xff]
        %v7376 = vld [vmem:[#allocation2 + $0xc1] sm:$0xff]
        %v7377 = vld [vmem:[#allocation2 + $0xc9] sm:$0xff]
        %v7378 = vld [vmem:[#allocation2 + $0xd1] sm:$0xff]
        %v7379 = vld [vmem:[#allocation2 + $0xd9] sm:$0xff]
        %v7380 = vld [vmem:[#allocation2 + $0xe1] sm:$0xff]
        %v7381 = vld [vmem:[#allocation2 + $0xe9] sm:$0xff]
        %v7382 = vld [vmem:[#allocation2 + $0xf1] sm:$0xff]
        %v7383 = vld [vmem:[#allocation2 + $0xf9] sm:$0xff]
        %v7384 = vld [vmem:[#allocation2 + $0x101] sm:$0xff]
        %v7385 = vld [vmem:[#allocation2 + $0x109] sm:$0xff]
        %v7386 = vld [vmem:[#allocation2 + $0x111] sm:$0xff]
        %v7387 = vld [vmem:[#allocation2 + $0x119] sm:$0xff]
        %v7388 = vmul.f32 %v7356, %v4095
        %v7389 = vmul.f32 %v7357, %v4099
        %v7390 = vmul.f32 %v7358, %v4103
        %v7391 = vmul.f32 %v7359, %v4107
        %v7392 = vmul.f32 %v7360, %v4111
        %v7393 = vmul.f32 %v7361, %v4115
        %v7394 = vmul.f32 %v7362, %v4119
        %v7395 = vmul.f32 %v7363, %v4123
        %v7396 = vmul.f32 %v7364, %v4127
        %v7397 = vmul.f32 %v7365, %v4131
        %v7398 = vmul.f32 %v7366, %v4135
        %v7399 = vmul.f32 %v7367, %v4139
        %v7400 = vmul.f32 %v7368, %v4143
        %v7401 = vmul.f32 %v7369, %v4147
        %v7402 = vmul.f32 %v7370, %v4151
        %v7403 = vmul.f32 %v7371, %v4155
        %v7404 = vmul.f32 %v7372, %v4159
        %v7405 = vmul.f32 %v7373, %v4163
        %v7406 = vmul.f32 %v7374, %v4167
        %v7407 = vmul.f32 %v7375, %v4171
        %v7408 = vmul.f32 %v7376, %v4175
        %v7409 = vmul.f32 %v7377, %v4179
        %v7410 = vmul.f32 %v7378, %v4183
        %v7411 = vmul.f32 %v7379, %v4187
        %v7412 = vmul.f32 %v7380, %v4191
        %v7413 = vmul.f32 %v7381, %v4195
        %v7414 = vmul.f32 %v7382, %v4199
        %v7415 = vmul.f32 %v7383, %v4203
        %v7416 = vmul.f32 %v7384, %v4207
        %v7417 = vmul.f32 %v7385, %v4211
        %v7418 = vmul.f32 %v7386, %v4215
        %v7419 = vmul.f32 %v7387, %v4219
        %v7421 = vsel %vm1022, %v7388, 0
        %v7424 = vsel %vm1022, %v7389, 0
        %v7427 = vsel %vm1022, %v7390, 0
        %v7430 = vsel %vm1022, %v7391, 0
        %v7433 = vsel %vm1022, %v7392, 0
        %v7436 = vsel %vm1022, %v7393, 0
        %v7439 = vsel %vm1022, %v7394, 0
        %v7442 = vsel %vm1022, %v7395, 0
        %v7445 = vsel %vm1022, %v7396, 0
        %v7448 = vsel %vm1022, %v7397, 0
        %v7451 = vsel %vm1022, %v7398, 0
        %v7454 = vsel %vm1022, %v7399, 0
        %v7457 = vsel %vm1022, %v7400, 0
        %v7460 = vsel %vm1022, %v7401, 0
        %v7463 = vsel %vm1022, %v7402, 0
        %v7466 = vsel %vm1022, %v7403, 0
        %v7469 = vsel %vm1022, %v7404, 0
        %v7472 = vsel %vm1022, %v7405, 0
        %v7475 = vsel %vm1022, %v7406, 0
        %v7478 = vsel %vm1022, %v7407, 0
        %v7481 = vsel %vm1022, %v7408, 0
        %v7484 = vsel %vm1022, %v7409, 0
        %v7487 = vsel %vm1022, %v7410, 0
        %v7490 = vsel %vm1022, %v7411, 0
        %v7493 = vsel %vm1022, %v7412, 0
        %v7496 = vsel %vm1022, %v7413, 0
        %v7499 = vsel %vm1022, %v7414, 0
        %v7502 = vsel %vm1022, %v7415, 0
        %v7505 = vsel %vm1022, %v7416, 0
        %v7508 = vsel %vm1022, %v7417, 0
        %v7511 = vsel %vm1022, %v7418, 0
        %v7514 = vsel %vm1022, %v7419, 0
        %7516 = vmatpush.msra.mxu0 0.0
        %7517 = vmatpush.msra.mxu0 0.0
        %7518 = vmatpush.msra.mxu0 0.0
        %7519 = vmatpush.msra.mxu0 0.0
        %7520 = vmatpush.msra.mxu0 0.0
        %7521 = vmatpush.msra.mxu0 0.0
        %7522 = vmatpush.msra.mxu0 0.0
        %7523 = vmatpush.msra.mxu0 0.0
        %7524 = vmatpush.msra.mxu0 0.0
        %7525 = vmatpush.msra.mxu0 0.0
        %7526 = vmatpush.msra.mxu0 0.0
        %7527 = vmatpush.msra.mxu0 0.0
        %7528 = vmatpush.msra.mxu0 %v1016
        %7529 = vmatpush.msra.mxu0 %v1015
        %7530 = vmatpush.msra.mxu0 %v1014
        %7531 = vmatpush.msra.mxu0 %v1013
        %7532 = vmatmul.f32.gmra.mxu0 %v7421
        %v7533 = vpop.f32.mrf.mxu0
        %v7534 = vadd.f32 0.0, %v7533
        %7535 = vmatmul.f32.gmra.mxu0 %v7424
        %v7536 = vpop.f32.mrf.mxu0
        %v7537 = vadd.f32 0.0, %v7536
        %7538 = vmatmul.f32.gmra.mxu0 %v7427
        %v7539 = vpop.f32.mrf.mxu0
        %v7540 = vadd.f32 0.0, %v7539
        %7541 = vmatmul.f32.gmra.mxu0 %v7430
        %v7542 = vpop.f32.mrf.mxu0
        %v7543 = vadd.f32 0.0, %v7542
        %7544 = vmatmul.f32.gmra.mxu0 %v7433
        %v7545 = vpop.f32.mrf.mxu0
        %v7546 = vadd.f32 0.0, %v7545
        %7547 = vmatmul.f32.gmra.mxu0 %v7436
        %v7548 = vpop.f32.mrf.mxu0
        %v7549 = vadd.f32 0.0, %v7548
        %7550 = vmatmul.f32.gmra.mxu0 %v7439
        %v7551 = vpop.f32.mrf.mxu0
        %v7552 = vadd.f32 0.0, %v7551
        %7553 = vmatmul.f32.gmra.mxu0 %v7442
        %v7554 = vpop.f32.mrf.mxu0
        %v7555 = vadd.f32 0.0, %v7554
        %7556 = vmatmul.f32.gmra.mxu0 %v7445
        %v7557 = vpop.f32.mrf.mxu0
        %v7558 = vadd.f32 0.0, %v7557
        %7559 = vmatmul.f32.gmra.mxu0 %v7448
        %v7560 = vpop.f32.mrf.mxu0
        %v7561 = vadd.f32 0.0, %v7560
        %7562 = vmatmul.f32.gmra.mxu0 %v7451
        %v7563 = vpop.f32.mrf.mxu0
        %v7564 = vadd.f32 0.0, %v7563
        %7565 = vmatmul.f32.gmra.mxu0 %v7454
        %v7566 = vpop.f32.mrf.mxu0
        %v7567 = vadd.f32 0.0, %v7566
        %7568 = vmatmul.f32.gmra.mxu0 %v7457
        %v7569 = vpop.f32.mrf.mxu0
        %v7570 = vadd.f32 0.0, %v7569
        %7571 = vmatmul.f32.gmra.mxu0 %v7460
        %v7572 = vpop.f32.mrf.mxu0
        %v7573 = vadd.f32 0.0, %v7572
        %7574 = vmatmul.f32.gmra.mxu0 %v7463
        %v7575 = vpop.f32.mrf.mxu0
        %v7576 = vadd.f32 0.0, %v7575
        %7577 = vmatmul.f32.gmra.mxu0 %v7466
        %v7578 = vpop.f32.mrf.mxu0
        %v7579 = vadd.f32 0.0, %v7578
        %7580 = vmatmul.f32.gmra.mxu0 %v7469
        %v7581 = vpop.f32.mrf.mxu0
        %v7582 = vadd.f32 0.0, %v7581
        %7583 = vmatmul.f32.gmra.mxu0 %v7472
        %v7584 = vpop.f32.mrf.mxu0
        %v7585 = vadd.f32 0.0, %v7584
        %7586 = vmatmul.f32.gmra.mxu0 %v7475
        %v7587 = vpop.f32.mrf.mxu0
        %v7588 = vadd.f32 0.0, %v7587
        %7589 = vmatmul.f32.gmra.mxu0 %v7478
        %v7590 = vpop.f32.mrf.mxu0
        %v7591 = vadd.f32 0.0, %v7590
        %7592 = vmatmul.f32.gmra.mxu0 %v7481
        %v7593 = vpop.f32.mrf.mxu0
        %v7594 = vadd.f32 0.0, %v7593
        %7595 = vmatmul.f32.gmra.mxu0 %v7484
        %v7596 = vpop.f32.mrf.mxu0
        %v7597 = vadd.f32 0.0, %v7596
        %7598 = vmatmul.f32.gmra.mxu0 %v7487
        %v7599 = vpop.f32.mrf.mxu0
        %v7600 = vadd.f32 0.0, %v7599
        %7601 = vmatmul.f32.gmra.mxu0 %v7490
        %v7602 = vpop.f32.mrf.mxu0
        %v7603 = vadd.f32 0.0, %v7602
        %7604 = vmatmul.f32.gmra.mxu0 %v7493
        %v7605 = vpop.f32.mrf.mxu0
        %v7606 = vadd.f32 0.0, %v7605
        %7607 = vmatmul.f32.gmra.mxu0 %v7496
        %v7608 = vpop.f32.mrf.mxu0
        %v7609 = vadd.f32 0.0, %v7608
        %7610 = vmatmul.f32.gmra.mxu0 %v7499
        %v7611 = vpop.f32.mrf.mxu0
        %v7612 = vadd.f32 0.0, %v7611
        %7613 = vmatmul.f32.gmra.mxu0 %v7502
        %v7614 = vpop.f32.mrf.mxu0
        %v7615 = vadd.f32 0.0, %v7614
        %7616 = vmatmul.f32.gmra.mxu0 %v7505
        %v7617 = vpop.f32.mrf.mxu0
        %v7618 = vadd.f32 0.0, %v7617
        %7619 = vmatmul.f32.gmra.mxu0 %v7508
        %v7620 = vpop.f32.mrf.mxu0
        %v7621 = vadd.f32 0.0, %v7620
        %7622 = vmatmul.f32.gmra.mxu0 %v7511
        %v7623 = vpop.f32.mrf.mxu0
        %v7624 = vadd.f32 0.0, %v7623
        %7625 = vmatmul.f32.gmra.mxu0 %v7514
        %v7626 = vpop.f32.mrf.mxu0
        %v7627 = vadd.f32 0.0, %v7626
        %7628 = vdwg.mxu0
        %v7629 = vadd.f32 %v7324, %v7534
        %v7630 = vadd.f32 %v7325, %v7537
        %v7631 = vadd.f32 %v7326, %v7540
        %v7632 = vadd.f32 %v7327, %v7543
        %v7633 = vadd.f32 %v7328, %v7546
        %v7634 = vadd.f32 %v7329, %v7549
        %v7635 = vadd.f32 %v7330, %v7552
        %v7636 = vadd.f32 %v7331, %v7555
        %v7637 = vadd.f32 %v7332, %v7558
        %v7638 = vadd.f32 %v7333, %v7561
        %v7639 = vadd.f32 %v7334, %v7564
        %v7640 = vadd.f32 %v7335, %v7567
        %v7641 = vadd.f32 %v7336, %v7570
        %v7642 = vadd.f32 %v7337, %v7573
        %v7643 = vadd.f32 %v7338, %v7576
        %v7644 = vadd.f32 %v7339, %v7579
        %v7645 = vadd.f32 %v7340, %v7582
        %v7646 = vadd.f32 %v7341, %v7585
        %v7647 = vadd.f32 %v7342, %v7588
        %v7648 = vadd.f32 %v7343, %v7591
        %v7649 = vadd.f32 %v7344, %v7594
        %v7650 = vadd.f32 %v7345, %v7597
        %v7651 = vadd.f32 %v7346, %v7600
        %v7652 = vadd.f32 %v7347, %v7603
        %v7653 = vadd.f32 %v7348, %v7606
        %v7654 = vadd.f32 %v7349, %v7609
        %v7655 = vadd.f32 %v7350, %v7612
        %v7656 = vadd.f32 %v7351, %v7615
        %v7657 = vadd.f32 %v7352, %v7618
        %v7658 = vadd.f32 %v7353, %v7621
        %v7659 = vadd.f32 %v7354, %v7624
        %v7660 = vadd.f32 %v7355, %v7627
        %v7661 = vld [vmem:[#allocation2 + $0x22] sm:$0xff]
        %v7662 = vld [vmem:[#allocation2 + $0x2a] sm:$0xff]
        %v7663 = vld [vmem:[#allocation2 + $0x32] sm:$0xff]
        %v7664 = vld [vmem:[#allocation2 + $0x3a] sm:$0xff]
        %v7665 = vld [vmem:[#allocation2 + $0x42] sm:$0xff]
        %v7666 = vld [vmem:[#allocation2 + $0x4a] sm:$0xff]
        %v7667 = vld [vmem:[#allocation2 + $0x52] sm:$0xff]
        %v7668 = vld [vmem:[#allocation2 + $0x5a] sm:$0xff]
        %v7669 = vld [vmem:[#allocation2 + $0x62] sm:$0xff]
        %v7670 = vld [vmem:[#allocation2 + $0x6a] sm:$0xff]
        %v7671 = vld [vmem:[#allocation2 + $0x72] sm:$0xff]
        %v7672 = vld [vmem:[#allocation2 + $0x7a] sm:$0xff]
        %v7673 = vld [vmem:[#allocation2 + $0x82] sm:$0xff]
        %v7674 = vld [vmem:[#allocation2 + $0x8a] sm:$0xff]
        %v7675 = vld [vmem:[#allocation2 + $0x92] sm:$0xff]
        %v7676 = vld [vmem:[#allocation2 + $0x9a] sm:$0xff]
        %v7677 = vld [vmem:[#allocation2 + $0xa2] sm:$0xff]
        %v7678 = vld [vmem:[#allocation2 + $0xaa] sm:$0xff]
        %v7679 = vld [vmem:[#allocation2 + $0xb2] sm:$0xff]
        %v7680 = vld [vmem:[#allocation2 + $0xba] sm:$0xff]
        %v7681 = vld [vmem:[#allocation2 + $0xc2] sm:$0xff]
        %v7682 = vld [vmem:[#allocation2 + $0xca] sm:$0xff]
        %v7683 = vld [vmem:[#allocation2 + $0xd2] sm:$0xff]
        %v7684 = vld [vmem:[#allocation2 + $0xda] sm:$0xff]
        %v7685 = vld [vmem:[#allocation2 + $0xe2] sm:$0xff]
        %v7686 = vld [vmem:[#allocation2 + $0xea] sm:$0xff]
        %v7687 = vld [vmem:[#allocation2 + $0xf2] sm:$0xff]
        %v7688 = vld [vmem:[#allocation2 + $0xfa] sm:$0xff]
        %v7689 = vld [vmem:[#allocation2 + $0x102] sm:$0xff]
        %v7690 = vld [vmem:[#allocation2 + $0x10a] sm:$0xff]
        %v7691 = vld [vmem:[#allocation2 + $0x112] sm:$0xff]
        %v7692 = vld [vmem:[#allocation2 + $0x11a] sm:$0xff]
        %v7693 = vmul.f32 %v7661, %v4528
        %v7694 = vmul.f32 %v7662, %v4532
        %v7695 = vmul.f32 %v7663, %v4536
        %v7696 = vmul.f32 %v7664, %v4540
        %v7697 = vmul.f32 %v7665, %v4544
        %v7698 = vmul.f32 %v7666, %v4548
        %v7699 = vmul.f32 %v7667, %v4552
        %v7700 = vmul.f32 %v7668, %v4556
        %v7701 = vmul.f32 %v7669, %v4560
        %v7702 = vmul.f32 %v7670, %v4564
        %v7703 = vmul.f32 %v7671, %v4568
        %v7704 = vmul.f32 %v7672, %v4572
        %v7705 = vmul.f32 %v7673, %v4576
        %v7706 = vmul.f32 %v7674, %v4580
        %v7707 = vmul.f32 %v7675, %v4584
        %v7708 = vmul.f32 %v7676, %v4588
        %v7709 = vmul.f32 %v7677, %v4592
        %v7710 = vmul.f32 %v7678, %v4596
        %v7711 = vmul.f32 %v7679, %v4600
        %v7712 = vmul.f32 %v7680, %v4604
        %v7713 = vmul.f32 %v7681, %v4608
        %v7714 = vmul.f32 %v7682, %v4612
        %v7715 = vmul.f32 %v7683, %v4616
        %v7716 = vmul.f32 %v7684, %v4620
        %v7717 = vmul.f32 %v7685, %v4624
        %v7718 = vmul.f32 %v7686, %v4628
        %v7719 = vmul.f32 %v7687, %v4632
        %v7720 = vmul.f32 %v7688, %v4636
        %v7721 = vmul.f32 %v7689, %v4640
        %v7722 = vmul.f32 %v7690, %v4644
        %v7723 = vmul.f32 %v7691, %v4648
        %v7724 = vmul.f32 %v7692, %v4652
        %v7726 = vsel %vm1022, %v7693, 0
        %v7729 = vsel %vm1022, %v7694, 0
        %v7732 = vsel %vm1022, %v7695, 0
        %v7735 = vsel %vm1022, %v7696, 0
        %v7738 = vsel %vm1022, %v7697, 0
        %v7741 = vsel %vm1022, %v7698, 0
        %v7744 = vsel %vm1022, %v7699, 0
        %v7747 = vsel %vm1022, %v7700, 0
        %v7750 = vsel %vm1022, %v7701, 0
        %v7753 = vsel %vm1022, %v7702, 0
        %v7756 = vsel %vm1022, %v7703, 0
        %v7759 = vsel %vm1022, %v7704, 0
        %v7762 = vsel %vm1022, %v7705, 0
        %v7765 = vsel %vm1022, %v7706, 0
        %v7768 = vsel %vm1022, %v7707, 0
        %v7771 = vsel %vm1022, %v7708, 0
        %v7774 = vsel %vm1022, %v7709, 0
        %v7777 = vsel %vm1022, %v7710, 0
        %v7780 = vsel %vm1022, %v7711, 0
        %v7783 = vsel %vm1022, %v7712, 0
        %v7786 = vsel %vm1022, %v7713, 0
        %v7789 = vsel %vm1022, %v7714, 0
        %v7792 = vsel %vm1022, %v7715, 0
        %v7795 = vsel %vm1022, %v7716, 0
        %v7798 = vsel %vm1022, %v7717, 0
        %v7801 = vsel %vm1022, %v7718, 0
        %v7804 = vsel %vm1022, %v7719, 0
        %v7807 = vsel %vm1022, %v7720, 0
        %v7810 = vsel %vm1022, %v7721, 0
        %v7813 = vsel %vm1022, %v7722, 0
        %v7816 = vsel %vm1022, %v7723, 0
        %v7819 = vsel %vm1022, %v7724, 0
        %7821 = vmatpush.msra.mxu0 0.0
        %7822 = vmatpush.msra.mxu0 0.0
        %7823 = vmatpush.msra.mxu0 0.0
        %7824 = vmatpush.msra.mxu0 0.0
        %7825 = vmatpush.msra.mxu0 0.0
        %7826 = vmatpush.msra.mxu0 0.0
        %7827 = vmatpush.msra.mxu0 0.0
        %7828 = vmatpush.msra.mxu0 0.0
        %7829 = vmatpush.msra.mxu0 0.0
        %7830 = vmatpush.msra.mxu0 0.0
        %7831 = vmatpush.msra.mxu0 0.0
        %7832 = vmatpush.msra.mxu0 0.0
        %7833 = vmatpush.msra.mxu0 %v1020
        %7834 = vmatpush.msra.mxu0 %v1019
        %7835 = vmatpush.msra.mxu0 %v1018
        %7836 = vmatpush.msra.mxu0 %v1017
        %7837 = vmatmul.f32.gmra.mxu0 %v7726
        %v7838 = vpop.f32.mrf.mxu0
        %v7839 = vadd.f32 0.0, %v7838
        %7840 = vmatmul.f32.gmra.mxu0 %v7729
        %v7841 = vpop.f32.mrf.mxu0
        %v7842 = vadd.f32 0.0, %v7841
        %7843 = vmatmul.f32.gmra.mxu0 %v7732
        %v7844 = vpop.f32.mrf.mxu0
        %v7845 = vadd.f32 0.0, %v7844
        %7846 = vmatmul.f32.gmra.mxu0 %v7735
        %v7847 = vpop.f32.mrf.mxu0
        %v7848 = vadd.f32 0.0, %v7847
        %7849 = vmatmul.f32.gmra.mxu0 %v7738
        %v7850 = vpop.f32.mrf.mxu0
        %v7851 = vadd.f32 0.0, %v7850
        %7852 = vmatmul.f32.gmra.mxu0 %v7741
        %v7853 = vpop.f32.mrf.mxu0
        %v7854 = vadd.f32 0.0, %v7853
        %7855 = vmatmul.f32.gmra.mxu0 %v7744
        %v7856 = vpop.f32.mrf.mxu0
        %v7857 = vadd.f32 0.0, %v7856
        %7858 = vmatmul.f32.gmra.mxu0 %v7747
        %v7859 = vpop.f32.mrf.mxu0
        %v7860 = vadd.f32 0.0, %v7859
        %7861 = vmatmul.f32.gmra.mxu0 %v7750
        %v7862 = vpop.f32.mrf.mxu0
        %v7863 = vadd.f32 0.0, %v7862
        %7864 = vmatmul.f32.gmra.mxu0 %v7753
        %v7865 = vpop.f32.mrf.mxu0
        %v7866 = vadd.f32 0.0, %v7865
        %7867 = vmatmul.f32.gmra.mxu0 %v7756
        %v7868 = vpop.f32.mrf.mxu0
        %v7869 = vadd.f32 0.0, %v7868
        %7870 = vmatmul.f32.gmra.mxu0 %v7759
        %v7871 = vpop.f32.mrf.mxu0
        %v7872 = vadd.f32 0.0, %v7871
        %7873 = vmatmul.f32.gmra.mxu0 %v7762
        %v7874 = vpop.f32.mrf.mxu0
        %v7875 = vadd.f32 0.0, %v7874
        %7876 = vmatmul.f32.gmra.mxu0 %v7765
        %v7877 = vpop.f32.mrf.mxu0
        %v7878 = vadd.f32 0.0, %v7877
        %7879 = vmatmul.f32.gmra.mxu0 %v7768
        %v7880 = vpop.f32.mrf.mxu0
        %v7881 = vadd.f32 0.0, %v7880
        %7882 = vmatmul.f32.gmra.mxu0 %v7771
        %v7883 = vpop.f32.mrf.mxu0
        %v7884 = vadd.f32 0.0, %v7883
        %7885 = vmatmul.f32.gmra.mxu0 %v7774
        %v7886 = vpop.f32.mrf.mxu0
        %v7887 = vadd.f32 0.0, %v7886
        %7888 = vmatmul.f32.gmra.mxu0 %v7777
        %v7889 = vpop.f32.mrf.mxu0
        %v7890 = vadd.f32 0.0, %v7889
        %7891 = vmatmul.f32.gmra.mxu0 %v7780
        %v7892 = vpop.f32.mrf.mxu0
        %v7893 = vadd.f32 0.0, %v7892
        %7894 = vmatmul.f32.gmra.mxu0 %v7783
        %v7895 = vpop.f32.mrf.mxu0
        %v7896 = vadd.f32 0.0, %v7895
        %7897 = vmatmul.f32.gmra.mxu0 %v7786
        %v7898 = vpop.f32.mrf.mxu0
        %v7899 = vadd.f32 0.0, %v7898
        %7900 = vmatmul.f32.gmra.mxu0 %v7789
        %v7901 = vpop.f32.mrf.mxu0
        %v7902 = vadd.f32 0.0, %v7901
        %7903 = vmatmul.f32.gmra.mxu0 %v7792
        %v7904 = vpop.f32.mrf.mxu0
        %v7905 = vadd.f32 0.0, %v7904
        %7906 = vmatmul.f32.gmra.mxu0 %v7795
        %v7907 = vpop.f32.mrf.mxu0
        %v7908 = vadd.f32 0.0, %v7907
        %7909 = vmatmul.f32.gmra.mxu0 %v7798
        %v7910 = vpop.f32.mrf.mxu0
        %v7911 = vadd.f32 0.0, %v7910
        %7912 = vmatmul.f32.gmra.mxu0 %v7801
        %v7913 = vpop.f32.mrf.mxu0
        %v7914 = vadd.f32 0.0, %v7913
        %7915 = vmatmul.f32.gmra.mxu0 %v7804
        %v7916 = vpop.f32.mrf.mxu0
        %v7917 = vadd.f32 0.0, %v7916
        %7918 = vmatmul.f32.gmra.mxu0 %v7807
        %v7919 = vpop.f32.mrf.mxu0
        %v7920 = vadd.f32 0.0, %v7919
        %7921 = vmatmul.f32.gmra.mxu0 %v7810
        %v7922 = vpop.f32.mrf.mxu0
        %v7923 = vadd.f32 0.0, %v7922
        %7924 = vmatmul.f32.gmra.mxu0 %v7813
        %v7925 = vpop.f32.mrf.mxu0
        %v7926 = vadd.f32 0.0, %v7925
        %7927 = vmatmul.f32.gmra.mxu0 %v7816
        %v7928 = vpop.f32.mrf.mxu0
        %v7929 = vadd.f32 0.0, %v7928
        %7930 = vmatmul.f32.gmra.mxu0 %v7819
        %v7931 = vpop.f32.mrf.mxu0
        %v7932 = vadd.f32 0.0, %v7931
        %7933 = vdwg.mxu0
        %v7934 = vadd.f32 %v7629, %v7839
        %v7935 = vadd.f32 %v7630, %v7842
        %v7936 = vadd.f32 %v7631, %v7845
        %v7937 = vadd.f32 %v7632, %v7848
        %v7938 = vadd.f32 %v7633, %v7851
        %v7939 = vadd.f32 %v7634, %v7854
        %v7940 = vadd.f32 %v7635, %v7857
        %v7941 = vadd.f32 %v7636, %v7860
        %v7942 = vadd.f32 %v7637, %v7863
        %v7943 = vadd.f32 %v7638, %v7866
        %v7944 = vadd.f32 %v7639, %v7869
        %v7945 = vadd.f32 %v7640, %v7872
        %v7946 = vadd.f32 %v7641, %v7875
        %v7947 = vadd.f32 %v7642, %v7878
        %v7948 = vadd.f32 %v7643, %v7881
        %v7949 = vadd.f32 %v7644, %v7884
        %v7950 = vadd.f32 %v7645, %v7887
        %v7951 = vadd.f32 %v7646, %v7890
        %v7952 = vadd.f32 %v7647, %v7893
        %v7953 = vadd.f32 %v7648, %v7896
        %v7954 = vadd.f32 %v7649, %v7899
        %v7955 = vadd.f32 %v7650, %v7902
        %v7956 = vadd.f32 %v7651, %v7905
        %v7957 = vadd.f32 %v7652, %v7908
        %v7958 = vadd.f32 %v7653, %v7911
        %v7959 = vadd.f32 %v7654, %v7914
        %v7960 = vadd.f32 %v7655, %v7917
        %v7961 = vadd.f32 %v7656, %v7920
        %v7962 = vadd.f32 %v7657, %v7923
        %v7963 = vadd.f32 %v7658, %v7926
        %v7964 = vadd.f32 %v7659, %v7929
        %v7965 = vadd.f32 %v7660, %v7932
        %v7967 = vperm.slane %v1021, 0
        %7969 = vmatpush.msra.mxu0 %v7949
        %7970 = vmatpush.msra.mxu0 %v7948
        %7971 = vmatpush.msra.mxu0 %v7947
        %7972 = vmatpush.msra.mxu0 %v7946
        %7973 = vmatpush.msra.mxu0 %v7945
        %7974 = vmatpush.msra.mxu0 %v7944
        %7975 = vmatpush.msra.mxu0 %v7943
        %7976 = vmatpush.msra.mxu0 %v7942
        %7977 = vmatpush.msra.mxu0 %v7941
        %7978 = vmatpush.msra.mxu0 %v7940
        %7979 = vmatpush.msra.mxu0 %v7939
        %7980 = vmatpush.msra.mxu0 %v7938
        %7981 = vmatpush.msra.mxu0 %v7937
        %7982 = vmatpush.msra.mxu0 %v7936
        %7983 = vmatpush.msra.mxu0 %v7935
        %7984 = vmatpush.msra.mxu0 %v7934
        %7985 = vmatmul.f32.gmra.mxu0 %v938
        %v7986 = vpop.f32.mrf.mxu0
        %v7987 = vadd.f32 %v7967, %v7986
        %7988 = vmatmul.f32.gmra.mxu0 %v940
        %v7989 = vpop.f32.mrf.mxu0
        %v7990 = vadd.f32 %v7967, %v7989
        %7991 = vmatmul.f32.gmra.mxu0 %v942
        %v7992 = vpop.f32.mrf.mxu0
        %v7993 = vadd.f32 %v7967, %v7992
        %7994 = vmatmul.f32.gmra.mxu0 %v944
        %v7995 = vpop.f32.mrf.mxu0
        %v7996 = vadd.f32 %v7967, %v7995
        %7997 = vmatmul.f32.gmra.mxu0 %v946
        %v7998 = vpop.f32.mrf.mxu0
        %v7999 = vadd.f32 %v7967, %v7998
        %8000 = vdwg.mxu0
        %8001 = vmatpush.msra.mxu0 %v7965
        %8002 = vmatpush.msra.mxu0 %v7964
        %8003 = vmatpush.msra.mxu0 %v7963
        %8004 = vmatpush.msra.mxu0 %v7962
        %8005 = vmatpush.msra.mxu0 %v7961
        %8006 = vmatpush.msra.mxu0 %v7960
        %8007 = vmatpush.msra.mxu0 %v7959
        %8008 = vmatpush.msra.mxu0 %v7958
        %8009 = vmatpush.msra.mxu0 %v7957
        %8010 = vmatpush.msra.mxu0 %v7956
        %8011 = vmatpush.msra.mxu0 %v7955
        %8012 = vmatpush.msra.mxu0 %v7954
        %8013 = vmatpush.msra.mxu0 %v7953
        %8014 = vmatpush.msra.mxu0 %v7952
        %8015 = vmatpush.msra.mxu0 %v7951
        %8016 = vmatpush.msra.mxu0 %v7950
        %8017 = vmatmul.f32.gmra.mxu0 %v939
        %v8018 = vpop.f32.mrf.mxu0
        %v8019 = vadd.f32 %v7987, %v8018
        %8020 = vmatmul.f32.gmra.mxu0 %v941
        %v8021 = vpop.f32.mrf.mxu0
        %v8022 = vadd.f32 %v7990, %v8021
        %8023 = vmatmul.f32.gmra.mxu0 %v943
        %v8024 = vpop.f32.mrf.mxu0
        %v8025 = vadd.f32 %v7993, %v8024
        %8026 = vmatmul.f32.gmra.mxu0 %v945
        %v8027 = vpop.f32.mrf.mxu0
        %v8028 = vadd.f32 %v7996, %v8027
        %8029 = vmatmul.f32.gmra.mxu0 %v947
        %v8030 = vpop.f32.mrf.mxu0
        %v8031 = vadd.f32 %v7999, %v8030
        %8032 = vdwg.mxu0
        %v8033 = vadd.f32 %v8019, %v5239
        %v8034 = vadd.f32 %v8022, %v5242
        %v8035 = vadd.f32 %v8025, %v5245
        %v8036 = vadd.f32 %v8028, %v5248
        %v8037 = vadd.f32 %v8031, %v5251
        %v8038 = vld [vmem:[%s2] sm:$0xff]
        %v8039 = vld [vmem:[%s2 + $0x8] sm:$0xff]
        %v8040 = vld [vmem:[%s2 + $0x10] sm:$0xff]
        %v8041 = vld [vmem:[%s2 + $0x18] sm:$0xff]
        %v8042 = vld [vmem:[%s2 + $0x20] sm:$0xf]
        %v8043 = vld [vmem:[%s5] sm:$0xf]
        %s8044 = scalar_lea.vmem %s9, 288
        %v8045 = vld [vmem:[%s8044] sm:$0xff]
        %v8046 = vld [vmem:[%s8044 + $0x8] sm:$0xff]
        %v8047 = vld [vmem:[%s8044 + $0x10] sm:$0xff]
        %v8048 = vld [vmem:[%s8044 + $0x18] sm:$0xff]
        %v8049 = vld [vmem:[%s8044 + $0x20] sm:$0xff]
        %v8050 = vld [vmem:[%s8044 + $0x28] sm:$0xff]
        %v8051 = vld [vmem:[%s8044 + $0x30] sm:$0xff]
        %v8052 = vld [vmem:[%s8044 + $0x38] sm:$0xff]
        %v8053 = vld [vmem:[%s8044 + $0x40] sm:$0xff]
        %v8054 = vld [vmem:[%s8044 + $0x48] sm:$0xff]
        %v8055 = vld [vmem:[%s8044 + $0x50] sm:$0xff]
        %v8056 = vld [vmem:[%s8044 + $0x58] sm:$0xff]
        %v8057 = vld [vmem:[%s8044 + $0x60] sm:$0xff]
        %v8058 = vld [vmem:[%s8044 + $0x68] sm:$0xff]
        %v8059 = vld [vmem:[%s8044 + $0x70] sm:$0xff]
        %v8060 = vld [vmem:[%s8044 + $0x78] sm:$0xff]
        %v8061 = vld [vmem:[%s8044 + $0x80] sm:$0xff]
        %v8062 = vld [vmem:[%s8044 + $0x88] sm:$0xff]
        %v8063 = vld [vmem:[%s8044 + $0x90] sm:$0xff]
        %v8064 = vld [vmem:[%s8044 + $0x98] sm:$0xff]
        %v8065 = vld [vmem:[%s8044 + $0xa0] sm:$0xff]
        %v8066 = vld [vmem:[%s8044 + $0xa8] sm:$0xff]
        %v8067 = vld [vmem:[%s8044 + $0xb0] sm:$0xff]
        %v8068 = vld [vmem:[%s8044 + $0xb8] sm:$0xff]
        %v8069 = vld [vmem:[%s8044 + $0xc0] sm:$0xff]
        %v8070 = vld [vmem:[%s8044 + $0xc8] sm:$0xff]
        %v8071 = vld [vmem:[%s8044 + $0xd0] sm:$0xff]
        %v8072 = vld [vmem:[%s8044 + $0xd8] sm:$0xff]
        %v8073 = vld [vmem:[%s8044 + $0xe0] sm:$0xff]
        %v8074 = vld [vmem:[%s8044 + $0xe8] sm:$0xff]
        %v8075 = vld [vmem:[%s8044 + $0xf0] sm:$0xff]
        %v8076 = vld [vmem:[%s8044 + $0xf8] sm:$0xff]
        %v8077 = vld [vmem:[%s8044 + $0x100] sm:$0xff]
        %v8078 = vld [vmem:[%s8044 + $0x108] sm:$0xff]
        %v8079 = vld [vmem:[%s8044 + $0x110] sm:$0xff]
        %v8080 = vld [vmem:[%s8044 + $0x118] sm:$0xff]
        %s8081 = scalar_lea.vmem %s10, 1
        %v8082 = vld [vmem:[%s8081] sm:$0x1]
        %s8083 = scalar_lea.vmem %s11, 288
        %v8084 = vld [vmem:[%s8083] sm:$0xff]
        %v8085 = vld [vmem:[%s8083 + $0x8] sm:$0xff]
        %v8086 = vld [vmem:[%s8083 + $0x10] sm:$0xff]
        %v8087 = vld [vmem:[%s8083 + $0x18] sm:$0xff]
        %v8088 = vld [vmem:[%s8083 + $0x20] sm:$0xff]
        %v8089 = vld [vmem:[%s8083 + $0x28] sm:$0xff]
        %v8090 = vld [vmem:[%s8083 + $0x30] sm:$0xff]
        %v8091 = vld [vmem:[%s8083 + $0x38] sm:$0xff]
        %v8092 = vld [vmem:[%s8083 + $0x40] sm:$0xff]
        %v8093 = vld [vmem:[%s8083 + $0x48] sm:$0xff]
        %v8094 = vld [vmem:[%s8083 + $0x50] sm:$0xff]
        %v8095 = vld [vmem:[%s8083 + $0x58] sm:$0xff]
        %v8096 = vld [vmem:[%s8083 + $0x60] sm:$0xff]
        %v8097 = vld [vmem:[%s8083 + $0x68] sm:$0xff]
        %v8098 = vld [vmem:[%s8083 + $0x70] sm:$0xff]
        %v8099 = vld [vmem:[%s8083 + $0x78] sm:$0xff]
        %v8100 = vld [vmem:[%s8083 + $0x80] sm:$0xff]
        %v8101 = vld [vmem:[%s8083 + $0x88] sm:$0xff]
        %v8102 = vld [vmem:[%s8083 + $0x90] sm:$0xff]
        %v8103 = vld [vmem:[%s8083 + $0x98] sm:$0xff]
        %v8104 = vld [vmem:[%s8083 + $0xa0] sm:$0xff]
        %v8105 = vld [vmem:[%s8083 + $0xa8] sm:$0xff]
        %v8106 = vld [vmem:[%s8083 + $0xb0] sm:$0xff]
        %v8107 = vld [vmem:[%s8083 + $0xb8] sm:$0xff]
        %v8108 = vld [vmem:[%s8083 + $0xc0] sm:$0xff]
        %v8109 = vld [vmem:[%s8083 + $0xc8] sm:$0xff]
        %v8110 = vld [vmem:[%s8083 + $0xd0] sm:$0xff]
        %v8111 = vld [vmem:[%s8083 + $0xd8] sm:$0xff]
        %v8112 = vld [vmem:[%s8083 + $0xe0] sm:$0xff]
        %v8113 = vld [vmem:[%s8083 + $0xe8] sm:$0xff]
        %v8114 = vld [vmem:[%s8083 + $0xf0] sm:$0xff]
        %v8115 = vld [vmem:[%s8083 + $0xf8] sm:$0xff]
        %v8116 = vld [vmem:[%s8083 + $0x100] sm:$0xff]
        %v8117 = vld [vmem:[%s8083 + $0x108] sm:$0xff]
        %v8118 = vld [vmem:[%s8083 + $0x110] sm:$0xff]
        %v8119 = vld [vmem:[%s8083 + $0x118] sm:$0xff]
        %s8120 = scalar_lea.vmem %s12, 1
        %v8121 = vld [vmem:[%s8120] sm:$0x1]
        %vm8122 = vcmask 260096
        %8123 = vst.msk [vmem:[#allocation3] sm:$0x7f] %vm8122, 0.0
        %8124 = vst.msk [vmem:[#allocation3 + $0x2b] sm:$0x7f] %vm8122, 0.0
        %8125 = vst.msk [vmem:[#allocation3 + $0x7] sm:$0xff] %vm1022, %v8033
        %8126 = vst.msk [vmem:[#allocation3 + $0xf] sm:$0xff] %vm1022, %v8034
        %8127 = vst.msk [vmem:[#allocation3 + $0x17] sm:$0xff] %vm1022, %v8035
        %8128 = vst.msk [vmem:[#allocation3 + $0x1f] sm:$0xff] %vm1022, %v8036
        %vm8129 = vcmask 257024
        %8130 = vst.msk [vmem:[#allocation3 + $0x27] sm:$0xf] %vm8129, %v8037
        %v8131 = vld [vmem:[#allocation3] sm:$0xff]
        %v8132 = vld [vmem:[#allocation3 + $0x8] sm:$0xff]
        %v8133 = vld [vmem:[#allocation3 + $0x10] sm:$0xff]
        %v8134 = vld [vmem:[#allocation3 + $0x18] sm:$0xff]
        %v8135 = vld [vmem:[#allocation3 + $0x20] sm:$0xf]
        %8137 = vset.pattern.permute.xlu0 0
        %8138 = vperm.xlu0 %8137, %v8038
        %v8139 = vpop.permute.xlu0 %8138
        %8142 = vset.pattern.permute.xlu0 0
        %8143 = vperm.xlu0 %8142, %v8039
        %v8144 = vpop.permute.xlu0 %8143
        %8147 = vset.pattern.permute.xlu0 0
        %8148 = vperm.xlu0 %8147, %v8040
        %v8149 = vpop.permute.xlu0 %8148
        %8152 = vset.pattern.permute.xlu0 0
        %8153 = vperm.xlu0 %8152, %v8041
        %v8154 = vpop.permute.xlu0 %8153
        %8157 = vset.pattern.permute.xlu0 0
        %8158 = vperm.xlu0 %8157, %v8042
        %v8159 = vpop.permute.xlu0 %8158
        %v8161 = vmul.f32 %v8131, %v8139
        %v8162 = vmul.f32 %v8132, %v8144
        %v8163 = vmul.f32 %v8133, %v8149
        %v8164 = vmul.f32 %v8134, %v8154
        %v8165 = vmul.f32 %v8135, %v8159
        %v8166 = vld [vmem:[#allocation3 + $0x1] sm:$0xff]
        %v8167 = vld [vmem:[#allocation3 + $0x9] sm:$0xff]
        %v8168 = vld [vmem:[#allocation3 + $0x11] sm:$0xff]
        %v8169 = vld [vmem:[#allocation3 + $0x19] sm:$0xff]
        %v8170 = vld [vmem:[#allocation3 + $0x21] sm:$0xf]
        %8171 = vset.pattern.permute.xlu0 1
        %8172 = vperm.xlu0 %8171, %v8038
        %v8173 = vpop.permute.xlu0 %8172
        %8175 = vset.pattern.permute.xlu0 1
        %8176 = vperm.xlu0 %8175, %v8039
        %v8177 = vpop.permute.xlu0 %8176
        %8179 = vset.pattern.permute.xlu0 1
        %8180 = vperm.xlu0 %8179, %v8040
        %v8181 = vpop.permute.xlu0 %8180
        %8183 = vset.pattern.permute.xlu0 1
        %8184 = vperm.xlu0 %8183, %v8041
        %v8185 = vpop.permute.xlu0 %8184
        %8187 = vset.pattern.permute.xlu0 1
        %8188 = vperm.xlu0 %8187, %v8042
        %v8189 = vpop.permute.xlu0 %8188
        %v8191 = vmul.f32 %v8166, %v8173
        %v8192 = vmul.f32 %v8167, %v8177
        %v8193 = vmul.f32 %v8168, %v8181
        %v8194 = vmul.f32 %v8169, %v8185
        %v8195 = vmul.f32 %v8170, %v8189
        %v8197 = vsel %vm1022, %v8191, 0
        %v8200 = vsel %vm1022, %v8192, 0
        %v8203 = vsel %vm1022, %v8193, 0
        %v8206 = vsel %vm1022, %v8194, 0
        %v8209 = vsel %vm1022, %v8195, 0
        %8211 = vmatpush.msra.mxu0 0.0
        %8212 = vmatpush.msra.mxu0 0.0
        %8213 = vmatpush.msra.mxu0 0.0
        %8214 = vmatpush.msra.mxu0 0.0
        %8215 = vmatpush.msra.mxu0 0.0
        %8216 = vmatpush.msra.mxu0 0.0
        %8217 = vmatpush.msra.mxu0 0.0
        %8218 = vmatpush.msra.mxu0 0.0
        %8219 = vmatpush.msra.mxu0 0.0
        %8220 = vmatpush.msra.mxu0 0.0
        %8221 = vmatpush.msra.mxu0 0.0
        %8222 = vmatpush.msra.mxu0 0.0
        %8223 = vmatpush.msra.mxu0 %v8052
        %8224 = vmatpush.msra.mxu0 %v8051
        %8225 = vmatpush.msra.mxu0 %v8050
        %8226 = vmatpush.msra.mxu0 %v8049
        %8227 = vmatmul.f32.gmra.mxu0 %v8197
        %v8228 = vpop.f32.mrf.mxu0
        %v8229 = vadd.f32 0.0, %v8228
        %8230 = vmatmul.f32.gmra.mxu0 %v8200
        %v8231 = vpop.f32.mrf.mxu0
        %v8232 = vadd.f32 0.0, %v8231
        %8233 = vmatmul.f32.gmra.mxu0 %v8203
        %v8234 = vpop.f32.mrf.mxu0
        %v8235 = vadd.f32 0.0, %v8234
        %8236 = vmatmul.f32.gmra.mxu0 %v8206
        %v8237 = vpop.f32.mrf.mxu0
        %v8238 = vadd.f32 0.0, %v8237
        %8239 = vmatmul.f32.gmra.mxu0 %v8209
        %v8240 = vpop.f32.mrf.mxu0
        %v8241 = vadd.f32 0.0, %v8240
        %8242 = vdwg.mxu0
        %v8244 = vsel %vm1022, %v8161, 0
        %v8247 = vsel %vm1022, %v8162, 0
        %v8250 = vsel %vm1022, %v8163, 0
        %v8253 = vsel %vm1022, %v8164, 0
        %v8256 = vsel %vm1022, %v8165, 0
        %8258 = vmatpush.msra.mxu0 0.0
        %8259 = vmatpush.msra.mxu0 0.0
        %8260 = vmatpush.msra.mxu0 0.0
        %8261 = vmatpush.msra.mxu0 0.0
        %8262 = vmatpush.msra.mxu0 0.0
        %8263 = vmatpush.msra.mxu0 0.0
        %8264 = vmatpush.msra.mxu0 0.0
        %8265 = vmatpush.msra.mxu0 0.0
        %8266 = vmatpush.msra.mxu0 0.0
        %8267 = vmatpush.msra.mxu0 0.0
        %8268 = vmatpush.msra.mxu0 0.0
        %8269 = vmatpush.msra.mxu0 0.0
        %8270 = vmatpush.msra.mxu0 %v8048
        %8271 = vmatpush.msra.mxu0 %v8047
        %8272 = vmatpush.msra.mxu0 %v8046
        %8273 = vmatpush.msra.mxu0 %v8045
        %8274 = vmatmul.f32.gmra.mxu0 %v8244
        %v8275 = vpop.f32.mrf.mxu0
        %v8276 = vadd.f32 %v8229, %v8275
        %8277 = vmatmul.f32.gmra.mxu0 %v8247
        %v8278 = vpop.f32.mrf.mxu0
        %v8279 = vadd.f32 %v8232, %v8278
        %8280 = vmatmul.f32.gmra.mxu0 %v8250
        %v8281 = vpop.f32.mrf.mxu0
        %v8282 = vadd.f32 %v8235, %v8281
        %8283 = vmatmul.f32.gmra.mxu0 %v8253
        %v8284 = vpop.f32.mrf.mxu0
        %v8285 = vadd.f32 %v8238, %v8284
        %8286 = vmatmul.f32.gmra.mxu0 %v8256
        %v8287 = vpop.f32.mrf.mxu0
        %v8288 = vadd.f32 %v8241, %v8287
        %8289 = vdwg.mxu0
        %v8290 = vld [vmem:[#allocation3 + $0x2] sm:$0xff]
        %v8291 = vld [vmem:[#allocation3 + $0xa] sm:$0xff]
        %v8292 = vld [vmem:[#allocation3 + $0x12] sm:$0xff]
        %v8293 = vld [vmem:[#allocation3 + $0x1a] sm:$0xff]
        %v8294 = vld [vmem:[#allocation3 + $0x22] sm:$0xf]
        %8295 = vset.pattern.permute.xlu0 2
        %8296 = vperm.xlu0 %8295, %v8038
        %v8297 = vpop.permute.xlu0 %8296
        %8299 = vset.pattern.permute.xlu0 2
        %8300 = vperm.xlu0 %8299, %v8039
        %v8301 = vpop.permute.xlu0 %8300
        %8303 = vset.pattern.permute.xlu0 2
        %8304 = vperm.xlu0 %8303, %v8040
        %v8305 = vpop.permute.xlu0 %8304
        %8307 = vset.pattern.permute.xlu0 2
        %8308 = vperm.xlu0 %8307, %v8041
        %v8309 = vpop.permute.xlu0 %8308
        %8311 = vset.pattern.permute.xlu0 2
        %8312 = vperm.xlu0 %8311, %v8042
        %v8313 = vpop.permute.xlu0 %8312
        %v8315 = vmul.f32 %v8290, %v8297
        %v8316 = vmul.f32 %v8291, %v8301
        %v8317 = vmul.f32 %v8292, %v8305
        %v8318 = vmul.f32 %v8293, %v8309
        %v8319 = vmul.f32 %v8294, %v8313
        %v8321 = vsel %vm1022, %v8315, 0
        %v8324 = vsel %vm1022, %v8316, 0
        %v8327 = vsel %vm1022, %v8317, 0
        %v8330 = vsel %vm1022, %v8318, 0
        %v8333 = vsel %vm1022, %v8319, 0
        %8335 = vmatpush.msra.mxu0 0.0
        %8336 = vmatpush.msra.mxu0 0.0
        %8337 = vmatpush.msra.mxu0 0.0
        %8338 = vmatpush.msra.mxu0 0.0
        %8339 = vmatpush.msra.mxu0 0.0
        %8340 = vmatpush.msra.mxu0 0.0
        %8341 = vmatpush.msra.mxu0 0.0
        %8342 = vmatpush.msra.mxu0 0.0
        %8343 = vmatpush.msra.mxu0 0.0
        %8344 = vmatpush.msra.mxu0 0.0
        %8345 = vmatpush.msra.mxu0 0.0
        %8346 = vmatpush.msra.mxu0 0.0
        %8347 = vmatpush.msra.mxu0 %v8056
        %8348 = vmatpush.msra.mxu0 %v8055
        %8349 = vmatpush.msra.mxu0 %v8054
        %8350 = vmatpush.msra.mxu0 %v8053
        %8351 = vmatmul.f32.gmra.mxu0 %v8321
        %v8352 = vpop.f32.mrf.mxu0
        %v8353 = vadd.f32 0.0, %v8352
        %8354 = vmatmul.f32.gmra.mxu0 %v8324
        %v8355 = vpop.f32.mrf.mxu0
        %v8356 = vadd.f32 0.0, %v8355
        %8357 = vmatmul.f32.gmra.mxu0 %v8327
        %v8358 = vpop.f32.mrf.mxu0
        %v8359 = vadd.f32 0.0, %v8358
        %8360 = vmatmul.f32.gmra.mxu0 %v8330
        %v8361 = vpop.f32.mrf.mxu0
        %v8362 = vadd.f32 0.0, %v8361
        %8363 = vmatmul.f32.gmra.mxu0 %v8333
        %v8364 = vpop.f32.mrf.mxu0
        %v8365 = vadd.f32 0.0, %v8364
        %8366 = vdwg.mxu0
        %v8367 = vadd.f32 %v8276, %v8353
        %v8368 = vadd.f32 %v8279, %v8356
        %v8369 = vadd.f32 %v8282, %v8359
        %v8370 = vadd.f32 %v8285, %v8362
        %v8371 = vadd.f32 %v8288, %v8365
        %v8372 = vld [vmem:[#allocation3 + $0x6] sm:$0xff]
        %v8373 = vld [vmem:[#allocation3 + $0xe] sm:$0xff]
        %v8374 = vld [vmem:[#allocation3 + $0x16] sm:$0xff]
        %v8375 = vld [vmem:[#allocation3 + $0x1e] sm:$0xff]
        %v8376 = vld [vmem:[#allocation3 + $0x26] sm:$0xf]
        %8377 = vset.pattern.permute.xlu0 3
        %8378 = vperm.xlu0 %8377, %v8038
        %v8379 = vpop.permute.xlu0 %8378
        %8381 = vset.pattern.permute.xlu0 3
        %8382 = vperm.xlu0 %8381, %v8039
        %v8383 = vpop.permute.xlu0 %8382
        %8385 = vset.pattern.permute.xlu0 3
        %8386 = vperm.xlu0 %8385, %v8040
        %v8387 = vpop.permute.xlu0 %8386
        %8389 = vset.pattern.permute.xlu0 3
        %8390 = vperm.xlu0 %8389, %v8041
        %v8391 = vpop.permute.xlu0 %8390
        %8393 = vset.pattern.permute.xlu0 3
        %8394 = vperm.xlu0 %8393, %v8042
        %v8395 = vpop.permute.xlu0 %8394
        %v8397 = vmul.f32 %v8372, %v8379
        %v8398 = vmul.f32 %v8373, %v8383
        %v8399 = vmul.f32 %v8374, %v8387
        %v8400 = vmul.f32 %v8375, %v8391
        %v8401 = vmul.f32 %v8376, %v8395
        %v8403 = vsel %vm1022, %v8397, 0
        %v8406 = vsel %vm1022, %v8398, 0
        %v8409 = vsel %vm1022, %v8399, 0
        %v8412 = vsel %vm1022, %v8400, 0
        %v8415 = vsel %vm1022, %v8401, 0
        %8417 = vmatpush.msra.mxu0 0.0
        %8418 = vmatpush.msra.mxu0 0.0
        %8419 = vmatpush.msra.mxu0 0.0
        %8420 = vmatpush.msra.mxu0 0.0
        %8421 = vmatpush.msra.mxu0 0.0
        %8422 = vmatpush.msra.mxu0 0.0
        %8423 = vmatpush.msra.mxu0 0.0
        %8424 = vmatpush.msra.mxu0 0.0
        %8425 = vmatpush.msra.mxu0 0.0
        %8426 = vmatpush.msra.mxu0 0.0
        %8427 = vmatpush.msra.mxu0 0.0
        %8428 = vmatpush.msra.mxu0 0.0
        %8429 = vmatpush.msra.mxu0 %v8060
        %8430 = vmatpush.msra.mxu0 %v8059
        %8431 = vmatpush.msra.mxu0 %v8058
        %8432 = vmatpush.msra.mxu0 %v8057
        %8433 = vmatmul.f32.gmra.mxu0 %v8403
        %v8434 = vpop.f32.mrf.mxu0
        %v8435 = vadd.f32 0.0, %v8434
        %8436 = vmatmul.f32.gmra.mxu0 %v8406
        %v8437 = vpop.f32.mrf.mxu0
        %v8438 = vadd.f32 0.0, %v8437
        %8439 = vmatmul.f32.gmra.mxu0 %v8409
        %v8440 = vpop.f32.mrf.mxu0
        %v8441 = vadd.f32 0.0, %v8440
        %8442 = vmatmul.f32.gmra.mxu0 %v8412
        %v8443 = vpop.f32.mrf.mxu0
        %v8444 = vadd.f32 0.0, %v8443
        %8445 = vmatmul.f32.gmra.mxu0 %v8415
        %v8446 = vpop.f32.mrf.mxu0
        %v8447 = vadd.f32 0.0, %v8446
        %8448 = vdwg.mxu0
        %v8449 = vadd.f32 %v8367, %v8435
        %v8450 = vadd.f32 %v8368, %v8438
        %v8451 = vadd.f32 %v8369, %v8441
        %v8452 = vadd.f32 %v8370, %v8444
        %v8453 = vadd.f32 %v8371, %v8447
        %v8454 = vld [vmem:[#allocation3 + $0x7] sm:$0xff]
        %v8455 = vld [vmem:[#allocation3 + $0xf] sm:$0xff]
        %v8456 = vld [vmem:[#allocation3 + $0x17] sm:$0xff]
        %v8457 = vld [vmem:[#allocation3 + $0x1f] sm:$0xff]
        %v8458 = vld [vmem:[#allocation3 + $0x27] sm:$0xf]
        %8459 = vset.pattern.permute.xlu0 4
        %8460 = vperm.xlu0 %8459, %v8038
        %v8461 = vpop.permute.xlu0 %8460
        %8463 = vset.pattern.permute.xlu0 4
        %8464 = vperm.xlu0 %8463, %v8039
        %v8465 = vpop.permute.xlu0 %8464
        %8467 = vset.pattern.permute.xlu0 4
        %8468 = vperm.xlu0 %8467, %v8040
        %v8469 = vpop.permute.xlu0 %8468
        %8471 = vset.pattern.permute.xlu0 4
        %8472 = vperm.xlu0 %8471, %v8041
        %v8473 = vpop.permute.xlu0 %8472
        %8475 = vset.pattern.permute.xlu0 4
        %8476 = vperm.xlu0 %8475, %v8042
        %v8477 = vpop.permute.xlu0 %8476
        %v8479 = vmul.f32 %v8454, %v8461
        %v8480 = vmul.f32 %v8455, %v8465
        %v8481 = vmul.f32 %v8456, %v8469
        %v8482 = vmul.f32 %v8457, %v8473
        %v8483 = vmul.f32 %v8458, %v8477
        %v8485 = vsel %vm1022, %v8479, 0
        %v8488 = vsel %vm1022, %v8480, 0
        %v8491 = vsel %vm1022, %v8481, 0
        %v8494 = vsel %vm1022, %v8482, 0
        %v8497 = vsel %vm1022, %v8483, 0
        %8499 = vmatpush.msra.mxu0 0.0
        %8500 = vmatpush.msra.mxu0 0.0
        %8501 = vmatpush.msra.mxu0 0.0
        %8502 = vmatpush.msra.mxu0 0.0
        %8503 = vmatpush.msra.mxu0 0.0
        %8504 = vmatpush.msra.mxu0 0.0
        %8505 = vmatpush.msra.mxu0 0.0
        %8506 = vmatpush.msra.mxu0 0.0
        %8507 = vmatpush.msra.mxu0 0.0
        %8508 = vmatpush.msra.mxu0 0.0
        %8509 = vmatpush.msra.mxu0 0.0
        %8510 = vmatpush.msra.mxu0 0.0
        %8511 = vmatpush.msra.mxu0 %v8064
        %8512 = vmatpush.msra.mxu0 %v8063
        %8513 = vmatpush.msra.mxu0 %v8062
        %8514 = vmatpush.msra.mxu0 %v8061
        %8515 = vmatmul.f32.gmra.mxu0 %v8485
        %v8516 = vpop.f32.mrf.mxu0
        %v8517 = vadd.f32 0.0, %v8516
        %8518 = vmatmul.f32.gmra.mxu0 %v8488
        %v8519 = vpop.f32.mrf.mxu0
        %v8520 = vadd.f32 0.0, %v8519
        %8521 = vmatmul.f32.gmra.mxu0 %v8491
        %v8522 = vpop.f32.mrf.mxu0
        %v8523 = vadd.f32 0.0, %v8522
        %8524 = vmatmul.f32.gmra.mxu0 %v8494
        %v8525 = vpop.f32.mrf.mxu0
        %v8526 = vadd.f32 0.0, %v8525
        %8527 = vmatmul.f32.gmra.mxu0 %v8497
        %v8528 = vpop.f32.mrf.mxu0
        %v8529 = vadd.f32 0.0, %v8528
        %8530 = vdwg.mxu0
        %v8531 = vadd.f32 %v8449, %v8517
        %v8532 = vadd.f32 %v8450, %v8520
        %v8533 = vadd.f32 %v8451, %v8523
        %v8534 = vadd.f32 %v8452, %v8526
        %v8535 = vadd.f32 %v8453, %v8529
        %v8536 = vld [vmem:[#allocation3 + $0x8] sm:$0xff]
        %v8537 = vld [vmem:[#allocation3 + $0x10] sm:$0xff]
        %v8538 = vld [vmem:[#allocation3 + $0x18] sm:$0xff]
        %v8539 = vld [vmem:[#allocation3 + $0x20] sm:$0xff]
        %v8540 = vld [vmem:[#allocation3 + $0x28] sm:$0xf]
        %8541 = vset.pattern.permute.xlu0 5
        %8542 = vperm.xlu0 %8541, %v8038
        %v8543 = vpop.permute.xlu0 %8542
        %8545 = vset.pattern.permute.xlu0 5
        %8546 = vperm.xlu0 %8545, %v8039
        %v8547 = vpop.permute.xlu0 %8546
        %8549 = vset.pattern.permute.xlu0 5
        %8550 = vperm.xlu0 %8549, %v8040
        %v8551 = vpop.permute.xlu0 %8550
        %8553 = vset.pattern.permute.xlu0 5
        %8554 = vperm.xlu0 %8553, %v8041
        %v8555 = vpop.permute.xlu0 %8554
        %8557 = vset.pattern.permute.xlu0 5
        %8558 = vperm.xlu0 %8557, %v8042
        %v8559 = vpop.permute.xlu0 %8558
        %v8561 = vmul.f32 %v8536, %v8543
        %v8562 = vmul.f32 %v8537, %v8547
        %v8563 = vmul.f32 %v8538, %v8551
        %v8564 = vmul.f32 %v8539, %v8555
        %v8565 = vmul.f32 %v8540, %v8559
        %v8567 = vsel %vm1022, %v8561, 0
        %v8570 = vsel %vm1022, %v8562, 0
        %v8573 = vsel %vm1022, %v8563, 0
        %v8576 = vsel %vm1022, %v8564, 0
        %v8579 = vsel %vm1022, %v8565, 0
        %8581 = vmatpush.msra.mxu0 0.0
        %8582 = vmatpush.msra.mxu0 0.0
        %8583 = vmatpush.msra.mxu0 0.0
        %8584 = vmatpush.msra.mxu0 0.0
        %8585 = vmatpush.msra.mxu0 0.0
        %8586 = vmatpush.msra.mxu0 0.0
        %8587 = vmatpush.msra.mxu0 0.0
        %8588 = vmatpush.msra.mxu0 0.0
        %8589 = vmatpush.msra.mxu0 0.0
        %8590 = vmatpush.msra.mxu0 0.0
        %8591 = vmatpush.msra.mxu0 0.0
        %8592 = vmatpush.msra.mxu0 0.0
        %8593 = vmatpush.msra.mxu0 %v8068
        %8594 = vmatpush.msra.mxu0 %v8067
        %8595 = vmatpush.msra.mxu0 %v8066
        %8596 = vmatpush.msra.mxu0 %v8065
        %8597 = vmatmul.f32.gmra.mxu0 %v8567
        %v8598 = vpop.f32.mrf.mxu0
        %v8599 = vadd.f32 0.0, %v8598
        %8600 = vmatmul.f32.gmra.mxu0 %v8570
        %v8601 = vpop.f32.mrf.mxu0
        %v8602 = vadd.f32 0.0, %v8601
        %8603 = vmatmul.f32.gmra.mxu0 %v8573
        %v8604 = vpop.f32.mrf.mxu0
        %v8605 = vadd.f32 0.0, %v8604
        %8606 = vmatmul.f32.gmra.mxu0 %v8576
        %v8607 = vpop.f32.mrf.mxu0
        %v8608 = vadd.f32 0.0, %v8607
        %8609 = vmatmul.f32.gmra.mxu0 %v8579
        %v8610 = vpop.f32.mrf.mxu0
        %v8611 = vadd.f32 0.0, %v8610
        %8612 = vdwg.mxu0
        %v8613 = vadd.f32 %v8531, %v8599
        %v8614 = vadd.f32 %v8532, %v8602
        %v8615 = vadd.f32 %v8533, %v8605
        %v8616 = vadd.f32 %v8534, %v8608
        %v8617 = vadd.f32 %v8535, %v8611
        %v8618 = vld [vmem:[#allocation3 + $0xc] sm:$0xff]
        %v8619 = vld [vmem:[#allocation3 + $0x14] sm:$0xff]
        %v8620 = vld [vmem:[#allocation3 + $0x1c] sm:$0xff]
        %v8621 = vld [vmem:[#allocation3 + $0x24] sm:$0xff]
        %v8622 = vld [vmem:[#allocation3 + $0x2c] sm:$0xf]
        %8623 = vset.pattern.permute.xlu0 6
        %8624 = vperm.xlu0 %8623, %v8038
        %v8625 = vpop.permute.xlu0 %8624
        %8627 = vset.pattern.permute.xlu0 6
        %8628 = vperm.xlu0 %8627, %v8039
        %v8629 = vpop.permute.xlu0 %8628
        %8631 = vset.pattern.permute.xlu0 6
        %8632 = vperm.xlu0 %8631, %v8040
        %v8633 = vpop.permute.xlu0 %8632
        %8635 = vset.pattern.permute.xlu0 6
        %8636 = vperm.xlu0 %8635, %v8041
        %v8637 = vpop.permute.xlu0 %8636
        %8639 = vset.pattern.permute.xlu0 6
        %8640 = vperm.xlu0 %8639, %v8042
        %v8641 = vpop.permute.xlu0 %8640
        %v8643 = vmul.f32 %v8618, %v8625
        %v8644 = vmul.f32 %v8619, %v8629
        %v8645 = vmul.f32 %v8620, %v8633
        %v8646 = vmul.f32 %v8621, %v8637
        %v8647 = vmul.f32 %v8622, %v8641
        %v8649 = vsel %vm1022, %v8643, 0
        %v8652 = vsel %vm1022, %v8644, 0
        %v8655 = vsel %vm1022, %v8645, 0
        %v8658 = vsel %vm1022, %v8646, 0
        %v8661 = vsel %vm1022, %v8647, 0
        %8663 = vmatpush.msra.mxu0 0.0
        %8664 = vmatpush.msra.mxu0 0.0
        %8665 = vmatpush.msra.mxu0 0.0
        %8666 = vmatpush.msra.mxu0 0.0
        %8667 = vmatpush.msra.mxu0 0.0
        %8668 = vmatpush.msra.mxu0 0.0
        %8669 = vmatpush.msra.mxu0 0.0
        %8670 = vmatpush.msra.mxu0 0.0
        %8671 = vmatpush.msra.mxu0 0.0
        %8672 = vmatpush.msra.mxu0 0.0
        %8673 = vmatpush.msra.mxu0 0.0
        %8674 = vmatpush.msra.mxu0 0.0
        %8675 = vmatpush.msra.mxu0 %v8072
        %8676 = vmatpush.msra.mxu0 %v8071
        %8677 = vmatpush.msra.mxu0 %v8070
        %8678 = vmatpush.msra.mxu0 %v8069
        %8679 = vmatmul.f32.gmra.mxu0 %v8649
        %v8680 = vpop.f32.mrf.mxu0
        %v8681 = vadd.f32 0.0, %v8680
        %8682 = vmatmul.f32.gmra.mxu0 %v8652
        %v8683 = vpop.f32.mrf.mxu0
        %v8684 = vadd.f32 0.0, %v8683
        %8685 = vmatmul.f32.gmra.mxu0 %v8655
        %v8686 = vpop.f32.mrf.mxu0
        %v8687 = vadd.f32 0.0, %v8686
        %8688 = vmatmul.f32.gmra.mxu0 %v8658
        %v8689 = vpop.f32.mrf.mxu0
        %v8690 = vadd.f32 0.0, %v8689
        %8691 = vmatmul.f32.gmra.mxu0 %v8661
        %v8692 = vpop.f32.mrf.mxu0
        %v8693 = vadd.f32 0.0, %v8692
        %8694 = vdwg.mxu0
        %v8695 = vadd.f32 %v8613, %v8681
        %v8696 = vadd.f32 %v8614, %v8684
        %v8697 = vadd.f32 %v8615, %v8687
        %v8698 = vadd.f32 %v8616, %v8690
        %v8699 = vadd.f32 %v8617, %v8693
        %v8700 = vld [vmem:[#allocation3 + $0xd] sm:$0xff]
        %v8701 = vld [vmem:[#allocation3 + $0x15] sm:$0xff]
        %v8702 = vld [vmem:[#allocation3 + $0x1d] sm:$0xff]
        %v8703 = vld [vmem:[#allocation3 + $0x25] sm:$0xff]
        %v8704 = vld [vmem:[#allocation3 + $0x2d] sm:$0xf]
        %8705 = vset.pattern.permute.xlu0 7
        %8706 = vperm.xlu0 %8705, %v8038
        %v8707 = vpop.permute.xlu0 %8706
        %8709 = vset.pattern.permute.xlu0 7
        %8710 = vperm.xlu0 %8709, %v8039
        %v8711 = vpop.permute.xlu0 %8710
        %8713 = vset.pattern.permute.xlu0 7
        %8714 = vperm.xlu0 %8713, %v8040
        %v8715 = vpop.permute.xlu0 %8714
        %8717 = vset.pattern.permute.xlu0 7
        %8718 = vperm.xlu0 %8717, %v8041
        %v8719 = vpop.permute.xlu0 %8718
        %8721 = vset.pattern.permute.xlu0 7
        %8722 = vperm.xlu0 %8721, %v8042
        %v8723 = vpop.permute.xlu0 %8722
        %v8725 = vmul.f32 %v8700, %v8707
        %v8726 = vmul.f32 %v8701, %v8711
        %v8727 = vmul.f32 %v8702, %v8715
        %v8728 = vmul.f32 %v8703, %v8719
        %v8729 = vmul.f32 %v8704, %v8723
        %v8731 = vsel %vm1022, %v8725, 0
        %v8734 = vsel %vm1022, %v8726, 0
        %v8737 = vsel %vm1022, %v8727, 0
        %v8740 = vsel %vm1022, %v8728, 0
        %v8743 = vsel %vm1022, %v8729, 0
        %8745 = vmatpush.msra.mxu0 0.0
        %8746 = vmatpush.msra.mxu0 0.0
        %8747 = vmatpush.msra.mxu0 0.0
        %8748 = vmatpush.msra.mxu0 0.0
        %8749 = vmatpush.msra.mxu0 0.0
        %8750 = vmatpush.msra.mxu0 0.0
        %8751 = vmatpush.msra.mxu0 0.0
        %8752 = vmatpush.msra.mxu0 0.0
        %8753 = vmatpush.msra.mxu0 0.0
        %8754 = vmatpush.msra.mxu0 0.0
        %8755 = vmatpush.msra.mxu0 0.0
        %8756 = vmatpush.msra.mxu0 0.0
        %8757 = vmatpush.msra.mxu0 %v8076
        %8758 = vmatpush.msra.mxu0 %v8075
        %8759 = vmatpush.msra.mxu0 %v8074
        %8760 = vmatpush.msra.mxu0 %v8073
        %8761 = vmatmul.f32.gmra.mxu0 %v8731
        %v8762 = vpop.f32.mrf.mxu0
        %v8763 = vadd.f32 0.0, %v8762
        %8764 = vmatmul.f32.gmra.mxu0 %v8734
        %v8765 = vpop.f32.mrf.mxu0
        %v8766 = vadd.f32 0.0, %v8765
        %8767 = vmatmul.f32.gmra.mxu0 %v8737
        %v8768 = vpop.f32.mrf.mxu0
        %v8769 = vadd.f32 0.0, %v8768
        %8770 = vmatmul.f32.gmra.mxu0 %v8740
        %v8771 = vpop.f32.mrf.mxu0
        %v8772 = vadd.f32 0.0, %v8771
        %8773 = vmatmul.f32.gmra.mxu0 %v8743
        %v8774 = vpop.f32.mrf.mxu0
        %v8775 = vadd.f32 0.0, %v8774
        %8776 = vdwg.mxu0
        %v8777 = vadd.f32 %v8695, %v8763
        %v8778 = vadd.f32 %v8696, %v8766
        %v8779 = vadd.f32 %v8697, %v8769
        %v8780 = vadd.f32 %v8698, %v8772
        %v8781 = vadd.f32 %v8699, %v8775
        %v8782 = vld [vmem:[#allocation3 + $0xe] sm:$0xff]
        %v8783 = vld [vmem:[#allocation3 + $0x16] sm:$0xff]
        %v8784 = vld [vmem:[#allocation3 + $0x1e] sm:$0xff]
        %v8785 = vld [vmem:[#allocation3 + $0x26] sm:$0xff]
        %v8786 = vld [vmem:[#allocation3 + $0x2e] sm:$0xf]
        %8787 = vset.pattern.permute.xlu0 8
        %8788 = vperm.xlu0 %8787, %v8038
        %v8789 = vpop.permute.xlu0 %8788
        %8791 = vset.pattern.permute.xlu0 8
        %8792 = vperm.xlu0 %8791, %v8039
        %v8793 = vpop.permute.xlu0 %8792
        %8795 = vset.pattern.permute.xlu0 8
        %8796 = vperm.xlu0 %8795, %v8040
        %v8797 = vpop.permute.xlu0 %8796
        %8799 = vset.pattern.permute.xlu0 8
        %8800 = vperm.xlu0 %8799, %v8041
        %v8801 = vpop.permute.xlu0 %8800
        %8803 = vset.pattern.permute.xlu0 8
        %8804 = vperm.xlu0 %8803, %v8042
        %v8805 = vpop.permute.xlu0 %8804
        %v8807 = vmul.f32 %v8782, %v8789
        %v8808 = vmul.f32 %v8783, %v8793
        %v8809 = vmul.f32 %v8784, %v8797
        %v8810 = vmul.f32 %v8785, %v8801
        %v8811 = vmul.f32 %v8786, %v8805
        %v8813 = vsel %vm1022, %v8807, 0
        %v8816 = vsel %vm1022, %v8808, 0
        %v8819 = vsel %vm1022, %v8809, 0
        %v8822 = vsel %vm1022, %v8810, 0
        %v8825 = vsel %vm1022, %v8811, 0
        %8827 = vmatpush.msra.mxu0 0.0
        %8828 = vmatpush.msra.mxu0 0.0
        %8829 = vmatpush.msra.mxu0 0.0
        %8830 = vmatpush.msra.mxu0 0.0
        %8831 = vmatpush.msra.mxu0 0.0
        %8832 = vmatpush.msra.mxu0 0.0
        %8833 = vmatpush.msra.mxu0 0.0
        %8834 = vmatpush.msra.mxu0 0.0
        %8835 = vmatpush.msra.mxu0 0.0
        %8836 = vmatpush.msra.mxu0 0.0
        %8837 = vmatpush.msra.mxu0 0.0
        %8838 = vmatpush.msra.mxu0 0.0
        %8839 = vmatpush.msra.mxu0 %v8080
        %8840 = vmatpush.msra.mxu0 %v8079
        %8841 = vmatpush.msra.mxu0 %v8078
        %8842 = vmatpush.msra.mxu0 %v8077
        %8843 = vmatmul.f32.gmra.mxu0 %v8813
        %v8844 = vpop.f32.mrf.mxu0
        %v8845 = vadd.f32 0.0, %v8844
        %8846 = vmatmul.f32.gmra.mxu0 %v8816
        %v8847 = vpop.f32.mrf.mxu0
        %v8848 = vadd.f32 0.0, %v8847
        %8849 = vmatmul.f32.gmra.mxu0 %v8819
        %v8850 = vpop.f32.mrf.mxu0
        %v8851 = vadd.f32 0.0, %v8850
        %8852 = vmatmul.f32.gmra.mxu0 %v8822
        %v8853 = vpop.f32.mrf.mxu0
        %v8854 = vadd.f32 0.0, %v8853
        %8855 = vmatmul.f32.gmra.mxu0 %v8825
        %v8856 = vpop.f32.mrf.mxu0
        %v8857 = vadd.f32 0.0, %v8856
        %8858 = vdwg.mxu0
        %v8859 = vadd.f32 %v8777, %v8845
        %v8860 = vadd.f32 %v8778, %v8848
        %v8861 = vadd.f32 %v8779, %v8851
        %v8862 = vadd.f32 %v8780, %v8854
        %v8863 = vadd.f32 %v8781, %v8857
        %v8865 = vperm.slane %v8082, 0
        %v8867 = vadd.f32 %v8859, %v8865
        %v8868 = vadd.f32 %v8860, %v8865
        %v8869 = vadd.f32 %v8861, %v8865
        %v8870 = vadd.f32 %v8862, %v8865
        %v8871 = vadd.f32 %v8863, %v8865
        %vm8872 = vcmp.ge.f32.partialorder %v8867, 0.0
        %vm8873 = vcmp.ge.f32.partialorder %v8868, 0.0
        %vm8874 = vcmp.ge.f32.partialorder %v8869, 0.0
        %vm8875 = vcmp.ge.f32.partialorder %v8870, 0.0
        %vm8876 = vcmp.ge.f32.partialorder %v8871, 0.0
        %v8877 = vmul.f32 %v8867, 0.01
        %v8878 = vmul.f32 %v8868, 0.01
        %v8879 = vmul.f32 %v8869, 0.01
        %v8880 = vmul.f32 %v8870, 0.01
        %v8881 = vmul.f32 %v8871, 0.01
        %v8882 = vsel %vm8872, %v8867, %v8877
        %v8883 = vsel %vm8873, %v8868, %v8878
        %v8884 = vsel %vm8874, %v8869, %v8879
        %v8885 = vsel %vm8875, %v8870, %v8880
        %v8886 = vsel %vm8876, %v8871, %v8881
        %8892 = vrot.lane.b32.xlu0 %v8859, 96
        %v8893 = vpop.permute.xlu0 %8892
        %8894 = vrot.lane.b32.xlu0 %v8860, 96
        %v8895 = vpop.permute.xlu0 %8894
        %8896 = vrot.lane.b32.xlu0 %v8861, 96
        %v8897 = vpop.permute.xlu0 %8896
        %8898 = vrot.lane.b32.xlu0 %v8862, 96
        %v8899 = vpop.permute.xlu0 %8898
        %8900 = vrot.lane.b32.xlu0 %v8863, 96
        %v8901 = vpop.permute.xlu0 %8900
        %8906 = vrot.lane.b32.xlu0 %v8865, 96
        %v8907 = vpop.permute.xlu0 %8906
        %vm8909 = vcmask 293888
        %v8911 = vsel %vm8909, %v8043, 0
        %vm8913 = vcmask 1043456
        %v8914 = vsel %vm8913, %v8901, 0
        %8916 = vmatpush.msra.mxu0 0.0
        %8917 = vmatpush.msra.mxu0 0.0
        %8918 = vmatpush.msra.mxu0 0.0
        %8919 = vmatpush.msra.mxu0 0.0
        %8920 = vmatpush.msra.mxu0 0.0
        %8921 = vmatpush.msra.mxu0 0.0
        %8922 = vmatpush.msra.mxu0 0.0
        %8923 = vmatpush.msra.mxu0 0.0
        %8924 = vmatpush.msra.mxu0 0.0
        %8925 = vmatpush.msra.mxu0 0.0
        %8926 = vmatpush.msra.mxu0 0.0
        %8927 = vmatpush.msra.mxu0 %v8914
        %8928 = vmatpush.msra.mxu0 %v8899
        %8929 = vmatpush.msra.mxu0 %v8897
        %8930 = vmatpush.msra.mxu0 %v8895
        %8931 = vmatpush.msra.mxu0 %v8893
        %8932 = vmatmul.f32.gmra.mxu0 %v8911
        %v8933 = vpop.f32.mrf.mxu0
        %v8934 = vadd.f32 %v8907, %v8933
        %8935 = vdwg.mxu0
        %8936 = vst.msk [vmem:[#allocation3 + $0x7] sm:$0xff] %vm1022, %v8882
        %8937 = vst.msk [vmem:[#allocation3 + $0xf] sm:$0xff] %vm1022, %v8883
        %8938 = vst.msk [vmem:[#allocation3 + $0x17] sm:$0xff] %vm1022, %v8884
        %8939 = vst.msk [vmem:[#allocation3 + $0x1f] sm:$0xff] %vm1022, %v8885
        %8940 = vst.msk [vmem:[#allocation3 + $0x27] sm:$0xf] %vm8129, %v8886
        %v8941 = vld [vmem:[#allocation3] sm:$0xff]
        %v8942 = vld [vmem:[#allocation3 + $0x8] sm:$0xff]
        %v8943 = vld [vmem:[#allocation3 + $0x10] sm:$0xff]
        %v8944 = vld [vmem:[#allocation3 + $0x18] sm:$0xff]
        %v8945 = vld [vmem:[#allocation3 + $0x20] sm:$0xf]
        %v8946 = vmul.f32 %v8941, %v8139
        %v8947 = vmul.f32 %v8942, %v8144
        %v8948 = vmul.f32 %v8943, %v8149
        %v8949 = vmul.f32 %v8944, %v8154
        %v8950 = vmul.f32 %v8945, %v8159
        %v8951 = vld [vmem:[#allocation3 + $0x1] sm:$0xff]
        %v8952 = vld [vmem:[#allocation3 + $0x9] sm:$0xff]
        %v8953 = vld [vmem:[#allocation3 + $0x11] sm:$0xff]
        %v8954 = vld [vmem:[#allocation3 + $0x19] sm:$0xff]
        %v8955 = vld [vmem:[#allocation3 + $0x21] sm:$0xf]
        %v8956 = vmul.f32 %v8951, %v8173
        %v8957 = vmul.f32 %v8952, %v8177
        %v8958 = vmul.f32 %v8953, %v8181
        %v8959 = vmul.f32 %v8954, %v8185
        %v8960 = vmul.f32 %v8955, %v8189
        %v8962 = vsel %vm1022, %v8956, 0
        %v8965 = vsel %vm1022, %v8957, 0
        %v8968 = vsel %vm1022, %v8958, 0
        %v8971 = vsel %vm1022, %v8959, 0
        %v8974 = vsel %vm1022, %v8960, 0
        %8976 = vmatpush.msra.mxu0 0.0
        %8977 = vmatpush.msra.mxu0 0.0
        %8978 = vmatpush.msra.mxu0 0.0
        %8979 = vmatpush.msra.mxu0 0.0
        %8980 = vmatpush.msra.mxu0 0.0
        %8981 = vmatpush.msra.mxu0 0.0
        %8982 = vmatpush.msra.mxu0 0.0
        %8983 = vmatpush.msra.mxu0 0.0
        %8984 = vmatpush.msra.mxu0 0.0
        %8985 = vmatpush.msra.mxu0 0.0
        %8986 = vmatpush.msra.mxu0 0.0
        %8987 = vmatpush.msra.mxu0 0.0
        %8988 = vmatpush.msra.mxu0 %v8091
        %8989 = vmatpush.msra.mxu0 %v8090
        %8990 = vmatpush.msra.mxu0 %v8089
        %8991 = vmatpush.msra.mxu0 %v8088
        %8992 = vmatmul.f32.gmra.mxu0 %v8962
        %v8993 = vpop.f32.mrf.mxu0
        %v8994 = vadd.f32 0.0, %v8993
        %8995 = vmatmul.f32.gmra.mxu0 %v8965
        %v8996 = vpop.f32.mrf.mxu0
        %v8997 = vadd.f32 0.0, %v8996
        %8998 = vmatmul.f32.gmra.mxu0 %v8968
        %v8999 = vpop.f32.mrf.mxu0
        %v9000 = vadd.f32 0.0, %v8999
        %9001 = vmatmul.f32.gmra.mxu0 %v8971
        %v9002 = vpop.f32.mrf.mxu0
        %v9003 = vadd.f32 0.0, %v9002
        %9004 = vmatmul.f32.gmra.mxu0 %v8974
        %v9005 = vpop.f32.mrf.mxu0
        %v9006 = vadd.f32 0.0, %v9005
        %9007 = vdwg.mxu0
        %v9009 = vsel %vm1022, %v8946, 0
        %v9012 = vsel %vm1022, %v8947, 0
        %v9015 = vsel %vm1022, %v8948, 0
        %v9018 = vsel %vm1022, %v8949, 0
        %v9021 = vsel %vm1022, %v8950, 0
        %9023 = vmatpush.msra.mxu0 0.0
        %9024 = vmatpush.msra.mxu0 0.0
        %9025 = vmatpush.msra.mxu0 0.0
        %9026 = vmatpush.msra.mxu0 0.0
        %9027 = vmatpush.msra.mxu0 0.0
        %9028 = vmatpush.msra.mxu0 0.0
        %9029 = vmatpush.msra.mxu0 0.0
        %9030 = vmatpush.msra.mxu0 0.0
        %9031 = vmatpush.msra.mxu0 0.0
        %9032 = vmatpush.msra.mxu0 0.0
        %9033 = vmatpush.msra.mxu0 0.0
        %9034 = vmatpush.msra.mxu0 0.0
        %9035 = vmatpush.msra.mxu0 %v8087
        %9036 = vmatpush.msra.mxu0 %v8086
        %9037 = vmatpush.msra.mxu0 %v8085
        %9038 = vmatpush.msra.mxu0 %v8084
        %9039 = vmatmul.f32.gmra.mxu0 %v9009
        %v9040 = vpop.f32.mrf.mxu0
        %v9041 = vadd.f32 %v8994, %v9040
        %9042 = vmatmul.f32.gmra.mxu0 %v9012
        %v9043 = vpop.f32.mrf.mxu0
        %v9044 = vadd.f32 %v8997, %v9043
        %9045 = vmatmul.f32.gmra.mxu0 %v9015
        %v9046 = vpop.f32.mrf.mxu0
        %v9047 = vadd.f32 %v9000, %v9046
        %9048 = vmatmul.f32.gmra.mxu0 %v9018
        %v9049 = vpop.f32.mrf.mxu0
        %v9050 = vadd.f32 %v9003, %v9049
        %9051 = vmatmul.f32.gmra.mxu0 %v9021
        %v9052 = vpop.f32.mrf.mxu0
        %v9053 = vadd.f32 %v9006, %v9052
        %9054 = vdwg.mxu0
        %v9055 = vld [vmem:[#allocation3 + $0x2] sm:$0xff]
        %v9056 = vld [vmem:[#allocation3 + $0xa] sm:$0xff]
        %v9057 = vld [vmem:[#allocation3 + $0x12] sm:$0xff]
        %v9058 = vld [vmem:[#allocation3 + $0x1a] sm:$0xff]
        %v9059 = vld [vmem:[#allocation3 + $0x22] sm:$0xf]
        %v9060 = vmul.f32 %v9055, %v8297
        %v9061 = vmul.f32 %v9056, %v8301
        %v9062 = vmul.f32 %v9057, %v8305
        %v9063 = vmul.f32 %v9058, %v8309
        %v9064 = vmul.f32 %v9059, %v8313
        %v9066 = vsel %vm1022, %v9060, 0
        %v9069 = vsel %vm1022, %v9061, 0
        %v9072 = vsel %vm1022, %v9062, 0
        %v9075 = vsel %vm1022, %v9063, 0
        %v9078 = vsel %vm1022, %v9064, 0
        %9080 = vmatpush.msra.mxu0 0.0
        %9081 = vmatpush.msra.mxu0 0.0
        %9082 = vmatpush.msra.mxu0 0.0
        %9083 = vmatpush.msra.mxu0 0.0
        %9084 = vmatpush.msra.mxu0 0.0
        %9085 = vmatpush.msra.mxu0 0.0
        %9086 = vmatpush.msra.mxu0 0.0
        %9087 = vmatpush.msra.mxu0 0.0
        %9088 = vmatpush.msra.mxu0 0.0
        %9089 = vmatpush.msra.mxu0 0.0
        %9090 = vmatpush.msra.mxu0 0.0
        %9091 = vmatpush.msra.mxu0 0.0
        %9092 = vmatpush.msra.mxu0 %v8095
        %9093 = vmatpush.msra.mxu0 %v8094
        %9094 = vmatpush.msra.mxu0 %v8093
        %9095 = vmatpush.msra.mxu0 %v8092
        %9096 = vmatmul.f32.gmra.mxu0 %v9066
        %v9097 = vpop.f32.mrf.mxu0
        %v9098 = vadd.f32 0.0, %v9097
        %9099 = vmatmul.f32.gmra.mxu0 %v9069
        %v9100 = vpop.f32.mrf.mxu0
        %v9101 = vadd.f32 0.0, %v9100
        %9102 = vmatmul.f32.gmra.mxu0 %v9072
        %v9103 = vpop.f32.mrf.mxu0
        %v9104 = vadd.f32 0.0, %v9103
        %9105 = vmatmul.f32.gmra.mxu0 %v9075
        %v9106 = vpop.f32.mrf.mxu0
        %v9107 = vadd.f32 0.0, %v9106
        %9108 = vmatmul.f32.gmra.mxu0 %v9078
        %v9109 = vpop.f32.mrf.mxu0
        %v9110 = vadd.f32 0.0, %v9109
        %9111 = vdwg.mxu0
        %v9112 = vadd.f32 %v9041, %v9098
        %v9113 = vadd.f32 %v9044, %v9101
        %v9114 = vadd.f32 %v9047, %v9104
        %v9115 = vadd.f32 %v9050, %v9107
        %v9116 = vadd.f32 %v9053, %v9110
        %v9117 = vld [vmem:[#allocation3 + $0x6] sm:$0xff]
        %v9118 = vld [vmem:[#allocation3 + $0xe] sm:$0xff]
        %v9119 = vld [vmem:[#allocation3 + $0x16] sm:$0xff]
        %v9120 = vld [vmem:[#allocation3 + $0x1e] sm:$0xff]
        %v9121 = vld [vmem:[#allocation3 + $0x26] sm:$0xf]
        %v9122 = vmul.f32 %v9117, %v8379
        %v9123 = vmul.f32 %v9118, %v8383
        %v9124 = vmul.f32 %v9119, %v8387
        %v9125 = vmul.f32 %v9120, %v8391
        %v9126 = vmul.f32 %v9121, %v8395
        %v9128 = vsel %vm1022, %v9122, 0
        %v9131 = vsel %vm1022, %v9123, 0
        %v9134 = vsel %vm1022, %v9124, 0
        %v9137 = vsel %vm1022, %v9125, 0
        %v9140 = vsel %vm1022, %v9126, 0
        %9142 = vmatpush.msra.mxu0 0.0
        %9143 = vmatpush.msra.mxu0 0.0
        %9144 = vmatpush.msra.mxu0 0.0
        %9145 = vmatpush.msra.mxu0 0.0
        %9146 = vmatpush.msra.mxu0 0.0
        %9147 = vmatpush.msra.mxu0 0.0
        %9148 = vmatpush.msra.mxu0 0.0
        %9149 = vmatpush.msra.mxu0 0.0
        %9150 = vmatpush.msra.mxu0 0.0
        %9151 = vmatpush.msra.mxu0 0.0
        %9152 = vmatpush.msra.mxu0 0.0
        %9153 = vmatpush.msra.mxu0 0.0
        %9154 = vmatpush.msra.mxu0 %v8099
        %9155 = vmatpush.msra.mxu0 %v8098
        %9156 = vmatpush.msra.mxu0 %v8097
        %9157 = vmatpush.msra.mxu0 %v8096
        %9158 = vmatmul.f32.gmra.mxu0 %v9128
        %v9159 = vpop.f32.mrf.mxu0
        %v9160 = vadd.f32 0.0, %v9159
        %9161 = vmatmul.f32.gmra.mxu0 %v9131
        %v9162 = vpop.f32.mrf.mxu0
        %v9163 = vadd.f32 0.0, %v9162
        %9164 = vmatmul.f32.gmra.mxu0 %v9134
        %v9165 = vpop.f32.mrf.mxu0
        %v9166 = vadd.f32 0.0, %v9165
        %9167 = vmatmul.f32.gmra.mxu0 %v9137
        %v9168 = vpop.f32.mrf.mxu0
        %v9169 = vadd.f32 0.0, %v9168
        %9170 = vmatmul.f32.gmra.mxu0 %v9140
        %v9171 = vpop.f32.mrf.mxu0
        %v9172 = vadd.f32 0.0, %v9171
        %9173 = vdwg.mxu0
        %v9174 = vadd.f32 %v9112, %v9160
        %v9175 = vadd.f32 %v9113, %v9163
        %v9176 = vadd.f32 %v9114, %v9166
        %v9177 = vadd.f32 %v9115, %v9169
        %v9178 = vadd.f32 %v9116, %v9172
        %v9179 = vld [vmem:[#allocation3 + $0x7] sm:$0xff]
        %v9180 = vld [vmem:[#allocation3 + $0xf] sm:$0xff]
        %v9181 = vld [vmem:[#allocation3 + $0x17] sm:$0xff]
        %v9182 = vld [vmem:[#allocation3 + $0x1f] sm:$0xff]
        %v9183 = vld [vmem:[#allocation3 + $0x27] sm:$0xf]
        %v9184 = vmul.f32 %v9179, %v8461
        %v9185 = vmul.f32 %v9180, %v8465
        %v9186 = vmul.f32 %v9181, %v8469
        %v9187 = vmul.f32 %v9182, %v8473
        %v9188 = vmul.f32 %v9183, %v8477
        %v9190 = vsel %vm1022, %v9184, 0
        %v9193 = vsel %vm1022, %v9185, 0
        %v9196 = vsel %vm1022, %v9186, 0
        %v9199 = vsel %vm1022, %v9187, 0
        %v9202 = vsel %vm1022, %v9188, 0
        %9204 = vmatpush.msra.mxu0 0.0
        %9205 = vmatpush.msra.mxu0 0.0
        %9206 = vmatpush.msra.mxu0 0.0
        %9207 = vmatpush.msra.mxu0 0.0
        %9208 = vmatpush.msra.mxu0 0.0
        %9209 = vmatpush.msra.mxu0 0.0
        %9210 = vmatpush.msra.mxu0 0.0
        %9211 = vmatpush.msra.mxu0 0.0
        %9212 = vmatpush.msra.mxu0 0.0
        %9213 = vmatpush.msra.mxu0 0.0
        %9214 = vmatpush.msra.mxu0 0.0
        %9215 = vmatpush.msra.mxu0 0.0
        %9216 = vmatpush.msra.mxu0 %v8103
        %9217 = vmatpush.msra.mxu0 %v8102
        %9218 = vmatpush.msra.mxu0 %v8101
        %9219 = vmatpush.msra.mxu0 %v8100
        %9220 = vmatmul.f32.gmra.mxu0 %v9190
        %v9221 = vpop.f32.mrf.mxu0
        %v9222 = vadd.f32 0.0, %v9221
        %9223 = vmatmul.f32.gmra.mxu0 %v9193
        %v9224 = vpop.f32.mrf.mxu0
        %v9225 = vadd.f32 0.0, %v9224
        %9226 = vmatmul.f32.gmra.mxu0 %v9196
        %v9227 = vpop.f32.mrf.mxu0
        %v9228 = vadd.f32 0.0, %v9227
        %9229 = vmatmul.f32.gmra.mxu0 %v9199
        %v9230 = vpop.f32.mrf.mxu0
        %v9231 = vadd.f32 0.0, %v9230
        %9232 = vmatmul.f32.gmra.mxu0 %v9202
        %v9233 = vpop.f32.mrf.mxu0
        %v9234 = vadd.f32 0.0, %v9233
        %9235 = vdwg.mxu0
        %v9236 = vadd.f32 %v9174, %v9222
        %v9237 = vadd.f32 %v9175, %v9225
        %v9238 = vadd.f32 %v9176, %v9228
        %v9239 = vadd.f32 %v9177, %v9231
        %v9240 = vadd.f32 %v9178, %v9234
        %v9241 = vld [vmem:[#allocation3 + $0x8] sm:$0xff]
        %v9242 = vld [vmem:[#allocation3 + $0x10] sm:$0xff]
        %v9243 = vld [vmem:[#allocation3 + $0x18] sm:$0xff]
        %v9244 = vld [vmem:[#allocation3 + $0x20] sm:$0xff]
        %v9245 = vld [vmem:[#allocation3 + $0x28] sm:$0xf]
        %v9246 = vmul.f32 %v9241, %v8543
        %v9247 = vmul.f32 %v9242, %v8547
        %v9248 = vmul.f32 %v9243, %v8551
        %v9249 = vmul.f32 %v9244, %v8555
        %v9250 = vmul.f32 %v9245, %v8559
        %v9252 = vsel %vm1022, %v9246, 0
        %v9255 = vsel %vm1022, %v9247, 0
        %v9258 = vsel %vm1022, %v9248, 0
        %v9261 = vsel %vm1022, %v9249, 0
        %v9264 = vsel %vm1022, %v9250, 0
        %9266 = vmatpush.msra.mxu0 0.0
        %9267 = vmatpush.msra.mxu0 0.0
        %9268 = vmatpush.msra.mxu0 0.0
        %9269 = vmatpush.msra.mxu0 0.0
        %9270 = vmatpush.msra.mxu0 0.0
        %9271 = vmatpush.msra.mxu0 0.0
        %9272 = vmatpush.msra.mxu0 0.0
        %9273 = vmatpush.msra.mxu0 0.0
        %9274 = vmatpush.msra.mxu0 0.0
        %9275 = vmatpush.msra.mxu0 0.0
        %9276 = vmatpush.msra.mxu0 0.0
        %9277 = vmatpush.msra.mxu0 0.0
        %9278 = vmatpush.msra.mxu0 %v8107
        %9279 = vmatpush.msra.mxu0 %v8106
        %9280 = vmatpush.msra.mxu0 %v8105
        %9281 = vmatpush.msra.mxu0 %v8104
        %9282 = vmatmul.f32.gmra.mxu0 %v9252
        %v9283 = vpop.f32.mrf.mxu0
        %v9284 = vadd.f32 0.0, %v9283
        %9285 = vmatmul.f32.gmra.mxu0 %v9255
        %v9286 = vpop.f32.mrf.mxu0
        %v9287 = vadd.f32 0.0, %v9286
        %9288 = vmatmul.f32.gmra.mxu0 %v9258
        %v9289 = vpop.f32.mrf.mxu0
        %v9290 = vadd.f32 0.0, %v9289
        %9291 = vmatmul.f32.gmra.mxu0 %v9261
        %v9292 = vpop.f32.mrf.mxu0
        %v9293 = vadd.f32 0.0, %v9292
        %9294 = vmatmul.f32.gmra.mxu0 %v9264
        %v9295 = vpop.f32.mrf.mxu0
        %v9296 = vadd.f32 0.0, %v9295
        %9297 = vdwg.mxu0
        %v9298 = vadd.f32 %v9236, %v9284
        %v9299 = vadd.f32 %v9237, %v9287
        %v9300 = vadd.f32 %v9238, %v9290
        %v9301 = vadd.f32 %v9239, %v9293
        %v9302 = vadd.f32 %v9240, %v9296
        %v9303 = vld [vmem:[#allocation3 + $0xc] sm:$0xff]
        %v9304 = vld [vmem:[#allocation3 + $0x14] sm:$0xff]
        %v9305 = vld [vmem:[#allocation3 + $0x1c] sm:$0xff]
        %v9306 = vld [vmem:[#allocation3 + $0x24] sm:$0xff]
        %v9307 = vld [vmem:[#allocation3 + $0x2c] sm:$0xf]
        %v9308 = vmul.f32 %v9303, %v8625
        %v9309 = vmul.f32 %v9304, %v8629
        %v9310 = vmul.f32 %v9305, %v8633
        %v9311 = vmul.f32 %v9306, %v8637
        %v9312 = vmul.f32 %v9307, %v8641
        %v9314 = vsel %vm1022, %v9308, 0
        %v9317 = vsel %vm1022, %v9309, 0
        %v9320 = vsel %vm1022, %v9310, 0
        %v9323 = vsel %vm1022, %v9311, 0
        %v9326 = vsel %vm1022, %v9312, 0
        %9328 = vmatpush.msra.mxu0 0.0
        %9329 = vmatpush.msra.mxu0 0.0
        %9330 = vmatpush.msra.mxu0 0.0
        %9331 = vmatpush.msra.mxu0 0.0
        %9332 = vmatpush.msra.mxu0 0.0
        %9333 = vmatpush.msra.mxu0 0.0
        %9334 = vmatpush.msra.mxu0 0.0
        %9335 = vmatpush.msra.mxu0 0.0
        %9336 = vmatpush.msra.mxu0 0.0
        %9337 = vmatpush.msra.mxu0 0.0
        %9338 = vmatpush.msra.mxu0 0.0
        %9339 = vmatpush.msra.mxu0 0.0
        %9340 = vmatpush.msra.mxu0 %v8111
        %9341 = vmatpush.msra.mxu0 %v8110
        %9342 = vmatpush.msra.mxu0 %v8109
        %9343 = vmatpush.msra.mxu0 %v8108
        %9344 = vmatmul.f32.gmra.mxu0 %v9314
        %v9345 = vpop.f32.mrf.mxu0
        %v9346 = vadd.f32 0.0, %v9345
        %9347 = vmatmul.f32.gmra.mxu0 %v9317
        %v9348 = vpop.f32.mrf.mxu0
        %v9349 = vadd.f32 0.0, %v9348
        %9350 = vmatmul.f32.gmra.mxu0 %v9320
        %v9351 = vpop.f32.mrf.mxu0
        %v9352 = vadd.f32 0.0, %v9351
        %9353 = vmatmul.f32.gmra.mxu0 %v9323
        %v9354 = vpop.f32.mrf.mxu0
        %v9355 = vadd.f32 0.0, %v9354
        %9356 = vmatmul.f32.gmra.mxu0 %v9326
        %v9357 = vpop.f32.mrf.mxu0
        %v9358 = vadd.f32 0.0, %v9357
        %9359 = vdwg.mxu0
        %v9360 = vadd.f32 %v9298, %v9346
        %v9361 = vadd.f32 %v9299, %v9349
        %v9362 = vadd.f32 %v9300, %v9352
        %v9363 = vadd.f32 %v9301, %v9355
        %v9364 = vadd.f32 %v9302, %v9358
        %v9365 = vld [vmem:[#allocation3 + $0xd] sm:$0xff]
        %v9366 = vld [vmem:[#allocation3 + $0x15] sm:$0xff]
        %v9367 = vld [vmem:[#allocation3 + $0x1d] sm:$0xff]
        %v9368 = vld [vmem:[#allocation3 + $0x25] sm:$0xff]
        %v9369 = vld [vmem:[#allocation3 + $0x2d] sm:$0xf]
        %v9370 = vmul.f32 %v9365, %v8707
        %v9371 = vmul.f32 %v9366, %v8711
        %v9372 = vmul.f32 %v9367, %v8715
        %v9373 = vmul.f32 %v9368, %v8719
        %v9374 = vmul.f32 %v9369, %v8723
        %v9376 = vsel %vm1022, %v9370, 0
        %v9379 = vsel %vm1022, %v9371, 0
        %v9382 = vsel %vm1022, %v9372, 0
        %v9385 = vsel %vm1022, %v9373, 0
        %v9388 = vsel %vm1022, %v9374, 0
        %9390 = vmatpush.msra.mxu0 0.0
        %9391 = vmatpush.msra.mxu0 0.0
        %9392 = vmatpush.msra.mxu0 0.0
        %9393 = vmatpush.msra.mxu0 0.0
        %9394 = vmatpush.msra.mxu0 0.0
        %9395 = vmatpush.msra.mxu0 0.0
        %9396 = vmatpush.msra.mxu0 0.0
        %9397 = vmatpush.msra.mxu0 0.0
        %9398 = vmatpush.msra.mxu0 0.0
        %9399 = vmatpush.msra.mxu0 0.0
        %9400 = vmatpush.msra.mxu0 0.0
        %9401 = vmatpush.msra.mxu0 0.0
        %9402 = vmatpush.msra.mxu0 %v8115
        %9403 = vmatpush.msra.mxu0 %v8114
        %9404 = vmatpush.msra.mxu0 %v8113
        %9405 = vmatpush.msra.mxu0 %v8112
        %9406 = vmatmul.f32.gmra.mxu0 %v9376
        %v9407 = vpop.f32.mrf.mxu0
        %v9408 = vadd.f32 0.0, %v9407
        %9409 = vmatmul.f32.gmra.mxu0 %v9379
        %v9410 = vpop.f32.mrf.mxu0
        %v9411 = vadd.f32 0.0, %v9410
        %9412 = vmatmul.f32.gmra.mxu0 %v9382
        %v9413 = vpop.f32.mrf.mxu0
        %v9414 = vadd.f32 0.0, %v9413
        %9415 = vmatmul.f32.gmra.mxu0 %v9385
        %v9416 = vpop.f32.mrf.mxu0
        %v9417 = vadd.f32 0.0, %v9416
        %9418 = vmatmul.f32.gmra.mxu0 %v9388
        %v9419 = vpop.f32.mrf.mxu0
        %v9420 = vadd.f32 0.0, %v9419
        %9421 = vdwg.mxu0
        %v9422 = vadd.f32 %v9360, %v9408
        %v9423 = vadd.f32 %v9361, %v9411
        %v9424 = vadd.f32 %v9362, %v9414
        %v9425 = vadd.f32 %v9363, %v9417
        %v9426 = vadd.f32 %v9364, %v9420
        %v9427 = vld [vmem:[#allocation3 + $0xe] sm:$0xff]
        %v9428 = vld [vmem:[#allocation3 + $0x16] sm:$0xff]
        %v9429 = vld [vmem:[#allocation3 + $0x1e] sm:$0xff]
        %v9430 = vld [vmem:[#allocation3 + $0x26] sm:$0xff]
        %v9431 = vld [vmem:[#allocation3 + $0x2e] sm:$0xf]
        %v9432 = vmul.f32 %v9427, %v8789
        %v9433 = vmul.f32 %v9428, %v8793
        %v9434 = vmul.f32 %v9429, %v8797
        %v9435 = vmul.f32 %v9430, %v8801
        %v9436 = vmul.f32 %v9431, %v8805
        %v9438 = vsel %vm1022, %v9432, 0
        %v9441 = vsel %vm1022, %v9433, 0
        %v9444 = vsel %vm1022, %v9434, 0
        %v9447 = vsel %vm1022, %v9435, 0
        %v9450 = vsel %vm1022, %v9436, 0
        %9452 = vmatpush.msra.mxu0 0.0
        %9453 = vmatpush.msra.mxu0 0.0
        %9454 = vmatpush.msra.mxu0 0.0
        %9455 = vmatpush.msra.mxu0 0.0
        %9456 = vmatpush.msra.mxu0 0.0
        %9457 = vmatpush.msra.mxu0 0.0
        %9458 = vmatpush.msra.mxu0 0.0
        %9459 = vmatpush.msra.mxu0 0.0
        %9460 = vmatpush.msra.mxu0 0.0
        %9461 = vmatpush.msra.mxu0 0.0
        %9462 = vmatpush.msra.mxu0 0.0
        %9463 = vmatpush.msra.mxu0 0.0
        %9464 = vmatpush.msra.mxu0 %v8119
        %9465 = vmatpush.msra.mxu0 %v8118
        %9466 = vmatpush.msra.mxu0 %v8117
        %9467 = vmatpush.msra.mxu0 %v8116
        %9468 = vmatmul.f32.gmra.mxu0 %v9438
        %v9469 = vpop.f32.mrf.mxu0
        %v9470 = vadd.f32 0.0, %v9469
        %9471 = vmatmul.f32.gmra.mxu0 %v9441
        %v9472 = vpop.f32.mrf.mxu0
        %v9473 = vadd.f32 0.0, %v9472
        %9474 = vmatmul.f32.gmra.mxu0 %v9444
        %v9475 = vpop.f32.mrf.mxu0
        %v9476 = vadd.f32 0.0, %v9475
        %9477 = vmatmul.f32.gmra.mxu0 %v9447
        %v9478 = vpop.f32.mrf.mxu0
        %v9479 = vadd.f32 0.0, %v9478
        %9480 = vmatmul.f32.gmra.mxu0 %v9450
        %v9481 = vpop.f32.mrf.mxu0
        %v9482 = vadd.f32 0.0, %v9481
        %9483 = vdwg.mxu0
        %v9484 = vadd.f32 %v9422, %v9470
        %v9485 = vadd.f32 %v9423, %v9473
        %v9486 = vadd.f32 %v9424, %v9476
        %v9487 = vadd.f32 %v9425, %v9479
        %v9488 = vadd.f32 %v9426, %v9482
        %v9490 = vperm.slane %v8121, 0
        %v9493 = vsel %vm8913, %v9488, 0
        %9495 = vmatpush.msra.mxu0 0.0
        %9496 = vmatpush.msra.mxu0 0.0
        %9497 = vmatpush.msra.mxu0 0.0
        %9498 = vmatpush.msra.mxu0 0.0
        %9499 = vmatpush.msra.mxu0 0.0
        %9500 = vmatpush.msra.mxu0 0.0
        %9501 = vmatpush.msra.mxu0 0.0
        %9502 = vmatpush.msra.mxu0 0.0
        %9503 = vmatpush.msra.mxu0 0.0
        %9504 = vmatpush.msra.mxu0 0.0
        %9505 = vmatpush.msra.mxu0 0.0
        %9506 = vmatpush.msra.mxu0 %v9493
        %9507 = vmatpush.msra.mxu0 %v9487
        %9508 = vmatpush.msra.mxu0 %v9486
        %9509 = vmatpush.msra.mxu0 %v9485
        %9510 = vmatpush.msra.mxu0 %v9484
        %9511 = vmatmul.f32.gmra.mxu0 %v8911
        %v9512 = vpop.f32.mrf.mxu0
        %v9513 = vadd.f32 %v9490, %v9512
        %9514 = vdwg.mxu0
        %v9515 = vadd.f32 %v9513, %v8934
        %v9516 = vld [vmem:[%s3] sm:$0xf]
        %v9517 = vld [vmem:[%s6] sm:$0x1]
        %s9518 = scalar_lea.vmem %s9, 576
        %v9519 = vld [vmem:[%s9518] sm:$0xff]
        %v9520 = vld [vmem:[%s9518 + $0x8] sm:$0xff]
        %v9521 = vld [vmem:[%s9518 + $0x10] sm:$0xff]
        %v9522 = vld [vmem:[%s9518 + $0x18] sm:$0xff]
        %v9523 = vld [vmem:[%s9518 + $0x20] sm:$0xff]
        %v9524 = vld [vmem:[%s9518 + $0x28] sm:$0xff]
        %v9525 = vld [vmem:[%s9518 + $0x30] sm:$0xff]
        %v9526 = vld [vmem:[%s9518 + $0x38] sm:$0xff]
        %v9527 = vld [vmem:[%s9518 + $0x40] sm:$0xff]
        %v9528 = vld [vmem:[%s9518 + $0x48] sm:$0xff]
        %v9529 = vld [vmem:[%s9518 + $0x50] sm:$0xff]
        %v9530 = vld [vmem:[%s9518 + $0x58] sm:$0xff]
        %v9531 = vld [vmem:[%s9518 + $0x60] sm:$0xff]
        %v9532 = vld [vmem:[%s9518 + $0x68] sm:$0xff]
        %v9533 = vld [vmem:[%s9518 + $0x70] sm:$0xff]
        %v9534 = vld [vmem:[%s9518 + $0x78] sm:$0xff]
        %v9535 = vld [vmem:[%s9518 + $0x80] sm:$0xff]
        %v9536 = vld [vmem:[%s9518 + $0x88] sm:$0xff]
        %v9537 = vld [vmem:[%s9518 + $0x90] sm:$0xff]
        %v9538 = vld [vmem:[%s9518 + $0x98] sm:$0xff]
        %v9539 = vld [vmem:[%s9518 + $0xa0] sm:$0xff]
        %v9540 = vld [vmem:[%s9518 + $0xa8] sm:$0xff]
        %v9541 = vld [vmem:[%s9518 + $0xb0] sm:$0xff]
        %v9542 = vld [vmem:[%s9518 + $0xb8] sm:$0xff]
        %v9543 = vld [vmem:[%s9518 + $0xc0] sm:$0xff]
        %v9544 = vld [vmem:[%s9518 + $0xc8] sm:$0xff]
        %v9545 = vld [vmem:[%s9518 + $0xd0] sm:$0xff]
        %v9546 = vld [vmem:[%s9518 + $0xd8] sm:$0xff]
        %v9547 = vld [vmem:[%s9518 + $0xe0] sm:$0xff]
        %v9548 = vld [vmem:[%s9518 + $0xe8] sm:$0xff]
        %v9549 = vld [vmem:[%s9518 + $0xf0] sm:$0xff]
        %v9550 = vld [vmem:[%s9518 + $0xf8] sm:$0xff]
        %v9551 = vld [vmem:[%s9518 + $0x100] sm:$0xff]
        %v9552 = vld [vmem:[%s9518 + $0x108] sm:$0xff]
        %v9553 = vld [vmem:[%s9518 + $0x110] sm:$0xff]
        %v9554 = vld [vmem:[%s9518 + $0x118] sm:$0xff]
        %s9555 = scalar_lea.vmem %s10, 2
        %v9556 = vld [vmem:[%s9555] sm:$0x1]
        %s9557 = scalar_lea.vmem %s11, 576
        %v9558 = vld [vmem:[%s9557] sm:$0xff]
        %v9559 = vld [vmem:[%s9557 + $0x8] sm:$0xff]
        %v9560 = vld [vmem:[%s9557 + $0x10] sm:$0xff]
        %v9561 = vld [vmem:[%s9557 + $0x18] sm:$0xff]
        %v9562 = vld [vmem:[%s9557 + $0x20] sm:$0xff]
        %v9563 = vld [vmem:[%s9557 + $0x28] sm:$0xff]
        %v9564 = vld [vmem:[%s9557 + $0x30] sm:$0xff]
        %v9565 = vld [vmem:[%s9557 + $0x38] sm:$0xff]
        %v9566 = vld [vmem:[%s9557 + $0x40] sm:$0xff]
        %v9567 = vld [vmem:[%s9557 + $0x48] sm:$0xff]
        %v9568 = vld [vmem:[%s9557 + $0x50] sm:$0xff]
        %v9569 = vld [vmem:[%s9557 + $0x58] sm:$0xff]
        %v9570 = vld [vmem:[%s9557 + $0x60] sm:$0xff]
        %v9571 = vld [vmem:[%s9557 + $0x68] sm:$0xff]
        %v9572 = vld [vmem:[%s9557 + $0x70] sm:$0xff]
        %v9573 = vld [vmem:[%s9557 + $0x78] sm:$0xff]
        %v9574 = vld [vmem:[%s9557 + $0x80] sm:$0xff]
        %v9575 = vld [vmem:[%s9557 + $0x88] sm:$0xff]
        %v9576 = vld [vmem:[%s9557 + $0x90] sm:$0xff]
        %v9577 = vld [vmem:[%s9557 + $0x98] sm:$0xff]
        %v9578 = vld [vmem:[%s9557 + $0xa0] sm:$0xff]
        %v9579 = vld [vmem:[%s9557 + $0xa8] sm:$0xff]
        %v9580 = vld [vmem:[%s9557 + $0xb0] sm:$0xff]
        %v9581 = vld [vmem:[%s9557 + $0xb8] sm:$0xff]
        %v9582 = vld [vmem:[%s9557 + $0xc0] sm:$0xff]
        %v9583 = vld [vmem:[%s9557 + $0xc8] sm:$0xff]
        %v9584 = vld [vmem:[%s9557 + $0xd0] sm:$0xff]
        %v9585 = vld [vmem:[%s9557 + $0xd8] sm:$0xff]
        %v9586 = vld [vmem:[%s9557 + $0xe0] sm:$0xff]
        %v9587 = vld [vmem:[%s9557 + $0xe8] sm:$0xff]
        %v9588 = vld [vmem:[%s9557 + $0xf0] sm:$0xff]
        %v9589 = vld [vmem:[%s9557 + $0xf8] sm:$0xff]
        %v9590 = vld [vmem:[%s9557 + $0x100] sm:$0xff]
        %v9591 = vld [vmem:[%s9557 + $0x108] sm:$0xff]
        %v9592 = vld [vmem:[%s9557 + $0x110] sm:$0xff]
        %v9593 = vld [vmem:[%s9557 + $0x118] sm:$0xff]
        %s9594 = scalar_lea.vmem %s12, 2
        %v9595 = vld [vmem:[%s9594] sm:$0x1]
        %vm9596 = vcmask 256000
        %9597 = vst.msk [vmem:[#allocation4] sm:$0x7] %vm9596, 0.0
        %9598 = vst.msk [vmem:[#allocation4 + $0x7] sm:$0x7] %vm9596, 0.0
        %9599 = vst.msk [vmem:[#allocation4 + $0x3] sm:$0xf] %vm8129, %v9515
        %v9600 = vld [vmem:[#allocation4] sm:$0xf]
        %9602 = vset.pattern.permute.xlu0 0
        %9603 = vperm.xlu0 %9602, %v9516
        %v9604 = vpop.permute.xlu0 %9603
        %v9606 = vmul.f32 %v9600, %v9604
        %v9607 = vld [vmem:[#allocation4 + $0x1] sm:$0xf]
        %9608 = vset.pattern.permute.xlu0 1
        %9609 = vperm.xlu0 %9608, %v9516
        %v9610 = vpop.permute.xlu0 %9609
        %v9612 = vmul.f32 %v9607, %v9610
        %v9614 = vsel %vm1022, %v9612, 0
        %9616 = vmatpush.msra.mxu0 0.0
        %9617 = vmatpush.msra.mxu0 0.0
        %9618 = vmatpush.msra.mxu0 0.0
        %9619 = vmatpush.msra.mxu0 0.0
        %9620 = vmatpush.msra.mxu0 0.0
        %9621 = vmatpush.msra.mxu0 0.0
        %9622 = vmatpush.msra.mxu0 0.0
        %9623 = vmatpush.msra.mxu0 0.0
        %9624 = vmatpush.msra.mxu0 0.0
        %9625 = vmatpush.msra.mxu0 0.0
        %9626 = vmatpush.msra.mxu0 0.0
        %9627 = vmatpush.msra.mxu0 0.0
        %9628 = vmatpush.msra.mxu0 %v9526
        %9629 = vmatpush.msra.mxu0 %v9525
        %9630 = vmatpush.msra.mxu0 %v9524
        %9631 = vmatpush.msra.mxu0 %v9523
        %9632 = vmatmul.f32.gmra.mxu0 %v9614
        %v9633 = vpop.f32.mrf.mxu0
        %v9634 = vadd.f32 0.0, %v9633
        %9635 = vdwg.mxu0
        %v9637 = vsel %vm1022, %v9606, 0
        %9639 = vmatpush.msra.mxu0 0.0
        %9640 = vmatpush.msra.mxu0 0.0
        %9641 = vmatpush.msra.mxu0 0.0
        %9642 = vmatpush.msra.mxu0 0.0
        %9643 = vmatpush.msra.mxu0 0.0
        %9644 = vmatpush.msra.mxu0 0.0
        %9645 = vmatpush.msra.mxu0 0.0
        %9646 = vmatpush.msra.mxu0 0.0
        %9647 = vmatpush.msra.mxu0 0.0
        %9648 = vmatpush.msra.mxu0 0.0
        %9649 = vmatpush.msra.mxu0 0.0
        %9650 = vmatpush.msra.mxu0 0.0
        %9651 = vmatpush.msra.mxu0 %v9522
        %9652 = vmatpush.msra.mxu0 %v9521
        %9653 = vmatpush.msra.mxu0 %v9520
        %9654 = vmatpush.msra.mxu0 %v9519
        %9655 = vmatmul.f32.gmra.mxu0 %v9637
        %v9656 = vpop.f32.mrf.mxu0
        %v9657 = vadd.f32 %v9634, %v9656
        %9658 = vdwg.mxu0
        %v9659 = vld [vmem:[#allocation4 + $0x2] sm:$0xf]
        %9660 = vset.pattern.permute.xlu0 2
        %9661 = vperm.xlu0 %9660, %v9516
        %v9662 = vpop.permute.xlu0 %9661
        %v9664 = vmul.f32 %v9659, %v9662
        %v9666 = vsel %vm1022, %v9664, 0
        %9668 = vmatpush.msra.mxu0 0.0
        %9669 = vmatpush.msra.mxu0 0.0
        %9670 = vmatpush.msra.mxu0 0.0
        %9671 = vmatpush.msra.mxu0 0.0
        %9672 = vmatpush.msra.mxu0 0.0
        %9673 = vmatpush.msra.mxu0 0.0
        %9674 = vmatpush.msra.mxu0 0.0
        %9675 = vmatpush.msra.mxu0 0.0
        %9676 = vmatpush.msra.mxu0 0.0
        %9677 = vmatpush.msra.mxu0 0.0
        %9678 = vmatpush.msra.mxu0 0.0
        %9679 = vmatpush.msra.mxu0 0.0
        %9680 = vmatpush.msra.mxu0 %v9530
        %9681 = vmatpush.msra.mxu0 %v9529
        %9682 = vmatpush.msra.mxu0 %v9528
        %9683 = vmatpush.msra.mxu0 %v9527
        %9684 = vmatmul.f32.gmra.mxu0 %v9666
        %v9685 = vpop.f32.mrf.mxu0
        %v9686 = vadd.f32 0.0, %v9685
        %9687 = vdwg.mxu0
        %v9688 = vadd.f32 %v9657, %v9686
        %9689 = vset.pattern.permute.xlu0 3
        %9690 = vperm.xlu0 %9689, %v9516
        %v9691 = vpop.permute.xlu0 %9690
        %v9693 = vmul.f32 %v9659, %v9691
        %v9695 = vsel %vm1022, %v9693, 0
        %9697 = vmatpush.msra.mxu0 0.0
        %9698 = vmatpush.msra.mxu0 0.0
        %9699 = vmatpush.msra.mxu0 0.0
        %9700 = vmatpush.msra.mxu0 0.0
        %9701 = vmatpush.msra.mxu0 0.0
        %9702 = vmatpush.msra.mxu0 0.0
        %9703 = vmatpush.msra.mxu0 0.0
        %9704 = vmatpush.msra.mxu0 0.0
        %9705 = vmatpush.msra.mxu0 0.0
        %9706 = vmatpush.msra.mxu0 0.0
        %9707 = vmatpush.msra.mxu0 0.0
        %9708 = vmatpush.msra.mxu0 0.0
        %9709 = vmatpush.msra.mxu0 %v9534
        %9710 = vmatpush.msra.mxu0 %v9533
        %9711 = vmatpush.msra.mxu0 %v9532
        %9712 = vmatpush.msra.mxu0 %v9531
        %9713 = vmatmul.f32.gmra.mxu0 %v9695
        %v9714 = vpop.f32.mrf.mxu0
        %v9715 = vadd.f32 0.0, %v9714
        %9716 = vdwg.mxu0
        %v9717 = vadd.f32 %v9688, %v9715
        %v9718 = vld [vmem:[#allocation4 + $0x3] sm:$0xf]
        %9719 = vset.pattern.permute.xlu0 4
        %9720 = vperm.xlu0 %9719, %v9516
        %v9721 = vpop.permute.xlu0 %9720
        %v9723 = vmul.f32 %v9718, %v9721
        %v9725 = vsel %vm1022, %v9723, 0
        %9727 = vmatpush.msra.mxu0 0.0
        %9728 = vmatpush.msra.mxu0 0.0
        %9729 = vmatpush.msra.mxu0 0.0
        %9730 = vmatpush.msra.mxu0 0.0
        %9731 = vmatpush.msra.mxu0 0.0
        %9732 = vmatpush.msra.mxu0 0.0
        %9733 = vmatpush.msra.mxu0 0.0
        %9734 = vmatpush.msra.mxu0 0.0
        %9735 = vmatpush.msra.mxu0 0.0
        %9736 = vmatpush.msra.mxu0 0.0
        %9737 = vmatpush.msra.mxu0 0.0
        %9738 = vmatpush.msra.mxu0 0.0
        %9739 = vmatpush.msra.mxu0 %v9538
        %9740 = vmatpush.msra.mxu0 %v9537
        %9741 = vmatpush.msra.mxu0 %v9536
        %9742 = vmatpush.msra.mxu0 %v9535
        %9743 = vmatmul.f32.gmra.mxu0 %v9725
        %v9744 = vpop.f32.mrf.mxu0
        %v9745 = vadd.f32 0.0, %v9744
        %9746 = vdwg.mxu0
        %v9747 = vadd.f32 %v9717, %v9745
        %v9748 = vld [vmem:[#allocation4 + $0x4] sm:$0xf]
        %9749 = vset.pattern.permute.xlu0 5
        %9750 = vperm.xlu0 %9749, %v9516
        %v9751 = vpop.permute.xlu0 %9750
        %v9753 = vmul.f32 %v9748, %v9751
        %v9755 = vsel %vm1022, %v9753, 0
        %9757 = vmatpush.msra.mxu0 0.0
        %9758 = vmatpush.msra.mxu0 0.0
        %9759 = vmatpush.msra.mxu0 0.0
        %9760 = vmatpush.msra.mxu0 0.0
        %9761 = vmatpush.msra.mxu0 0.0
        %9762 = vmatpush.msra.mxu0 0.0
        %9763 = vmatpush.msra.mxu0 0.0
        %9764 = vmatpush.msra.mxu0 0.0
        %9765 = vmatpush.msra.mxu0 0.0
        %9766 = vmatpush.msra.mxu0 0.0
        %9767 = vmatpush.msra.mxu0 0.0
        %9768 = vmatpush.msra.mxu0 0.0
        %9769 = vmatpush.msra.mxu0 %v9542
        %9770 = vmatpush.msra.mxu0 %v9541
        %9771 = vmatpush.msra.mxu0 %v9540
        %9772 = vmatpush.msra.mxu0 %v9539
        %9773 = vmatmul.f32.gmra.mxu0 %v9755
        %v9774 = vpop.f32.mrf.mxu0
        %v9775 = vadd.f32 0.0, %v9774
        %9776 = vdwg.mxu0
        %v9777 = vadd.f32 %v9747, %v9775
        %9778 = vset.pattern.permute.xlu0 6
        %9779 = vperm.xlu0 %9778, %v9516
        %v9780 = vpop.permute.xlu0 %9779
        %v9782 = vmul.f32 %v9748, %v9780
        %v9784 = vsel %vm1022, %v9782, 0
        %9786 = vmatpush.msra.mxu0 0.0
        %9787 = vmatpush.msra.mxu0 0.0
        %9788 = vmatpush.msra.mxu0 0.0
        %9789 = vmatpush.msra.mxu0 0.0
        %9790 = vmatpush.msra.mxu0 0.0
        %9791 = vmatpush.msra.mxu0 0.0
        %9792 = vmatpush.msra.mxu0 0.0
        %9793 = vmatpush.msra.mxu0 0.0
        %9794 = vmatpush.msra.mxu0 0.0
        %9795 = vmatpush.msra.mxu0 0.0
        %9796 = vmatpush.msra.mxu0 0.0
        %9797 = vmatpush.msra.mxu0 0.0
        %9798 = vmatpush.msra.mxu0 %v9546
        %9799 = vmatpush.msra.mxu0 %v9545
        %9800 = vmatpush.msra.mxu0 %v9544
        %9801 = vmatpush.msra.mxu0 %v9543
        %9802 = vmatmul.f32.gmra.mxu0 %v9784
        %v9803 = vpop.f32.mrf.mxu0
        %v9804 = vadd.f32 0.0, %v9803
        %9805 = vdwg.mxu0
        %v9806 = vadd.f32 %v9777, %v9804
        %v9807 = vld [vmem:[#allocation4 + $0x5] sm:$0xf]
        %9808 = vset.pattern.permute.xlu0 7
        %9809 = vperm.xlu0 %9808, %v9516
        %v9810 = vpop.permute.xlu0 %9809
        %v9812 = vmul.f32 %v9807, %v9810
        %v9814 = vsel %vm1022, %v9812, 0
        %9816 = vmatpush.msra.mxu0 0.0
        %9817 = vmatpush.msra.mxu0 0.0
        %9818 = vmatpush.msra.mxu0 0.0
        %9819 = vmatpush.msra.mxu0 0.0
        %9820 = vmatpush.msra.mxu0 0.0
        %9821 = vmatpush.msra.mxu0 0.0
        %9822 = vmatpush.msra.mxu0 0.0
        %9823 = vmatpush.msra.mxu0 0.0
        %9824 = vmatpush.msra.mxu0 0.0
        %9825 = vmatpush.msra.mxu0 0.0
        %9826 = vmatpush.msra.mxu0 0.0
        %9827 = vmatpush.msra.mxu0 0.0
        %9828 = vmatpush.msra.mxu0 %v9550
        %9829 = vmatpush.msra.mxu0 %v9549
        %9830 = vmatpush.msra.mxu0 %v9548
        %9831 = vmatpush.msra.mxu0 %v9547
        %9832 = vmatmul.f32.gmra.mxu0 %v9814
        %v9833 = vpop.f32.mrf.mxu0
        %v9834 = vadd.f32 0.0, %v9833
        %9835 = vdwg.mxu0
        %v9836 = vadd.f32 %v9806, %v9834
        %v9837 = vld [vmem:[#allocation4 + $0x6] sm:$0xf]
        %9838 = vset.pattern.permute.xlu0 8
        %9839 = vperm.xlu0 %9838, %v9516
        %v9840 = vpop.permute.xlu0 %9839
        %v9842 = vmul.f32 %v9837, %v9840
        %v9844 = vsel %vm1022, %v9842, 0
        %9846 = vmatpush.msra.mxu0 0.0
        %9847 = vmatpush.msra.mxu0 0.0
        %9848 = vmatpush.msra.mxu0 0.0
        %9849 = vmatpush.msra.mxu0 0.0
        %9850 = vmatpush.msra.mxu0 0.0
        %9851 = vmatpush.msra.mxu0 0.0
        %9852 = vmatpush.msra.mxu0 0.0
        %9853 = vmatpush.msra.mxu0 0.0
        %9854 = vmatpush.msra.mxu0 0.0
        %9855 = vmatpush.msra.mxu0 0.0
        %9856 = vmatpush.msra.mxu0 0.0
        %9857 = vmatpush.msra.mxu0 0.0
        %9858 = vmatpush.msra.mxu0 %v9554
        %9859 = vmatpush.msra.mxu0 %v9553
        %9860 = vmatpush.msra.mxu0 %v9552
        %9861 = vmatpush.msra.mxu0 %v9551
        %9862 = vmatmul.f32.gmra.mxu0 %v9844
        %v9863 = vpop.f32.mrf.mxu0
        %v9864 = vadd.f32 0.0, %v9863
        %9865 = vdwg.mxu0
        %v9866 = vadd.f32 %v9836, %v9864
        %v9868 = vperm.slane %v9556, 0
        %v9870 = vadd.f32 %v9866, %v9868
        %vm9871 = vcmp.ge.f32.partialorder %v9870, 0.0
        %v9872 = vmul.f32 %v9870, 0.01
        %v9873 = vsel %vm9871, %v9870, %v9872
        %9875 = vrot.lane.b32.xlu0 %v9866, 96
        %v9876 = vpop.permute.xlu0 %9875
        %9877 = vrot.lane.b32.xlu0 %v9868, 96
        %v9878 = vpop.permute.xlu0 %9877
        %vm9880 = vcmask 31744
        %v9882 = vsel %vm9880, %v9517, 0
        %v9884 = vsel %vm8913, %v9876, 0
        %9886 = vmatpush.msra.mxu0 0.0
        %9887 = vmatpush.msra.mxu0 0.0
        %9888 = vmatpush.msra.mxu0 0.0
        %9889 = vmatpush.msra.mxu0 0.0
        %9890 = vmatpush.msra.mxu0 0.0
        %9891 = vmatpush.msra.mxu0 0.0
        %9892 = vmatpush.msra.mxu0 0.0
        %9893 = vmatpush.msra.mxu0 0.0
        %9894 = vmatpush.msra.mxu0 0.0
        %9895 = vmatpush.msra.mxu0 0.0
        %9896 = vmatpush.msra.mxu0 0.0
        %9897 = vmatpush.msra.mxu0 0.0
        %9898 = vmatpush.msra.mxu0 0.0
        %9899 = vmatpush.msra.mxu0 0.0
        %9900 = vmatpush.msra.mxu0 0.0
        %9901 = vmatpush.msra.mxu0 %v9884
        %9902 = vmatmul.f32.gmra.mxu0 %v9882
        %v9903 = vpop.f32.mrf.mxu0
        %v9904 = vadd.f32 %v9878, %v9903
        %9905 = vdwg.mxu0
        %9906 = vst.msk [vmem:[#allocation4 + $0x3] sm:$0xf] %vm8129, %v9873
        %v9907 = vld [vmem:[#allocation4] sm:$0xf]
        %v9908 = vmul.f32 %v9907, %v9604
        %v9909 = vld [vmem:[#allocation4 + $0x1] sm:$0xf]
        %v9910 = vmul.f32 %v9909, %v9610
        %v9912 = vsel %vm1022, %v9910, 0
        %9914 = vmatpush.msra.mxu0 0.0
        %9915 = vmatpush.msra.mxu0 0.0
        %9916 = vmatpush.msra.mxu0 0.0
        %9917 = vmatpush.msra.mxu0 0.0
        %9918 = vmatpush.msra.mxu0 0.0
        %9919 = vmatpush.msra.mxu0 0.0
        %9920 = vmatpush.msra.mxu0 0.0
        %9921 = vmatpush.msra.mxu0 0.0
        %9922 = vmatpush.msra.mxu0 0.0
        %9923 = vmatpush.msra.mxu0 0.0
        %9924 = vmatpush.msra.mxu0 0.0
        %9925 = vmatpush.msra.mxu0 0.0
        %9926 = vmatpush.msra.mxu0 %v9565
        %9927 = vmatpush.msra.mxu0 %v9564
        %9928 = vmatpush.msra.mxu0 %v9563
        %9929 = vmatpush.msra.mxu0 %v9562
        %9930 = vmatmul.f32.gmra.mxu0 %v9912
        %v9931 = vpop.f32.mrf.mxu0
        %v9932 = vadd.f32 0.0, %v9931
        %9933 = vdwg.mxu0
        %v9935 = vsel %vm1022, %v9908, 0
        %9937 = vmatpush.msra.mxu0 0.0
        %9938 = vmatpush.msra.mxu0 0.0
        %9939 = vmatpush.msra.mxu0 0.0
        %9940 = vmatpush.msra.mxu0 0.0
        %9941 = vmatpush.msra.mxu0 0.0
        %9942 = vmatpush.msra.mxu0 0.0
        %9943 = vmatpush.msra.mxu0 0.0
        %9944 = vmatpush.msra.mxu0 0.0
        %9945 = vmatpush.msra.mxu0 0.0
        %9946 = vmatpush.msra.mxu0 0.0
        %9947 = vmatpush.msra.mxu0 0.0
        %9948 = vmatpush.msra.mxu0 0.0
        %9949 = vmatpush.msra.mxu0 %v9561
        %9950 = vmatpush.msra.mxu0 %v9560
        %9951 = vmatpush.msra.mxu0 %v9559
        %9952 = vmatpush.msra.mxu0 %v9558
        %9953 = vmatmul.f32.gmra.mxu0 %v9935
        %v9954 = vpop.f32.mrf.mxu0
        %v9955 = vadd.f32 %v9932, %v9954
        %9956 = vdwg.mxu0
        %v9957 = vld [vmem:[#allocation4 + $0x2] sm:$0xf]
        %v9958 = vmul.f32 %v9957, %v9662
        %v9960 = vsel %vm1022, %v9958, 0
        %9962 = vmatpush.msra.mxu0 0.0
        %9963 = vmatpush.msra.mxu0 0.0
        %9964 = vmatpush.msra.mxu0 0.0
        %9965 = vmatpush.msra.mxu0 0.0
        %9966 = vmatpush.msra.mxu0 0.0
        %9967 = vmatpush.msra.mxu0 0.0
        %9968 = vmatpush.msra.mxu0 0.0
        %9969 = vmatpush.msra.mxu0 0.0
        %9970 = vmatpush.msra.mxu0 0.0
        %9971 = vmatpush.msra.mxu0 0.0
        %9972 = vmatpush.msra.mxu0 0.0
        %9973 = vmatpush.msra.mxu0 0.0
        %9974 = vmatpush.msra.mxu0 %v9569
        %9975 = vmatpush.msra.mxu0 %v9568
        %9976 = vmatpush.msra.mxu0 %v9567
        %9977 = vmatpush.msra.mxu0 %v9566
        %9978 = vmatmul.f32.gmra.mxu0 %v9960
        %v9979 = vpop.f32.mrf.mxu0
        %v9980 = vadd.f32 0.0, %v9979
        %9981 = vdwg.mxu0
        %v9982 = vadd.f32 %v9955, %v9980
        %v9983 = vmul.f32 %v9957, %v9691
        %v9985 = vsel %vm1022, %v9983, 0
        %9987 = vmatpush.msra.mxu0 0.0
        %9988 = vmatpush.msra.mxu0 0.0
        %9989 = vmatpush.msra.mxu0 0.0
        %9990 = vmatpush.msra.mxu0 0.0
        %9991 = vmatpush.msra.mxu0 0.0
        %9992 = vmatpush.msra.mxu0 0.0
        %9993 = vmatpush.msra.mxu0 0.0
        %9994 = vmatpush.msra.mxu0 0.0
        %9995 = vmatpush.msra.mxu0 0.0
        %9996 = vmatpush.msra.mxu0 0.0
        %9997 = vmatpush.msra.mxu0 0.0
        %9998 = vmatpush.msra.mxu0 0.0
        %9999 = vmatpush.msra.mxu0 %v9573
        %10000 = vmatpush.msra.mxu0 %v9572
        %10001 = vmatpush.msra.mxu0 %v9571
        %10002 = vmatpush.msra.mxu0 %v9570
        %10003 = vmatmul.f32.gmra.mxu0 %v9985
        %v10004 = vpop.f32.mrf.mxu0
        %v10005 = vadd.f32 0.0, %v10004
        %10006 = vdwg.mxu0
        %v10007 = vadd.f32 %v9982, %v10005
        %v10008 = vld [vmem:[#allocation4 + $0x3] sm:$0xf]
        %v10009 = vmul.f32 %v10008, %v9721
        %v10011 = vsel %vm1022, %v10009, 0
        %10013 = vmatpush.msra.mxu0 0.0
        %10014 = vmatpush.msra.mxu0 0.0
        %10015 = vmatpush.msra.mxu0 0.0
        %10016 = vmatpush.msra.mxu0 0.0
        %10017 = vmatpush.msra.mxu0 0.0
        %10018 = vmatpush.msra.mxu0 0.0
        %10019 = vmatpush.msra.mxu0 0.0
        %10020 = vmatpush.msra.mxu0 0.0
        %10021 = vmatpush.msra.mxu0 0.0
        %10022 = vmatpush.msra.mxu0 0.0
        %10023 = vmatpush.msra.mxu0 0.0
        %10024 = vmatpush.msra.mxu0 0.0
        %10025 = vmatpush.msra.mxu0 %v9577
        %10026 = vmatpush.msra.mxu0 %v9576
        %10027 = vmatpush.msra.mxu0 %v9575
        %10028 = vmatpush.msra.mxu0 %v9574
        %10029 = vmatmul.f32.gmra.mxu0 %v10011
        %v10030 = vpop.f32.mrf.mxu0
        %v10031 = vadd.f32 0.0, %v10030
        %10032 = vdwg.mxu0
        %v10033 = vadd.f32 %v10007, %v10031
        %v10034 = vld [vmem:[#allocation4 + $0x4] sm:$0xf]
        %v10035 = vmul.f32 %v10034, %v9751
        %v10037 = vsel %vm1022, %v10035, 0
        %10039 = vmatpush.msra.mxu0 0.0
        %10040 = vmatpush.msra.mxu0 0.0
        %10041 = vmatpush.msra.mxu0 0.0
        %10042 = vmatpush.msra.mxu0 0.0
        %10043 = vmatpush.msra.mxu0 0.0
        %10044 = vmatpush.msra.mxu0 0.0
        %10045 = vmatpush.msra.mxu0 0.0
        %10046 = vmatpush.msra.mxu0 0.0
        %10047 = vmatpush.msra.mxu0 0.0
        %10048 = vmatpush.msra.mxu0 0.0
        %10049 = vmatpush.msra.mxu0 0.0
        %10050 = vmatpush.msra.mxu0 0.0
        %10051 = vmatpush.msra.mxu0 %v9581
        %10052 = vmatpush.msra.mxu0 %v9580
        %10053 = vmatpush.msra.mxu0 %v9579
        %10054 = vmatpush.msra.mxu0 %v9578
        %10055 = vmatmul.f32.gmra.mxu0 %v10037
        %v10056 = vpop.f32.mrf.mxu0
        %v10057 = vadd.f32 0.0, %v10056
        %10058 = vdwg.mxu0
        %v10059 = vadd.f32 %v10033, %v10057
        %v10060 = vmul.f32 %v10034, %v9780
        %v10062 = vsel %vm1022, %v10060, 0
        %10064 = vmatpush.msra.mxu0 0.0
        %10065 = vmatpush.msra.mxu0 0.0
        %10066 = vmatpush.msra.mxu0 0.0
        %10067 = vmatpush.msra.mxu0 0.0
        %10068 = vmatpush.msra.mxu0 0.0
        %10069 = vmatpush.msra.mxu0 0.0
        %10070 = vmatpush.msra.mxu0 0.0
        %10071 = vmatpush.msra.mxu0 0.0
        %10072 = vmatpush.msra.mxu0 0.0
        %10073 = vmatpush.msra.mxu0 0.0
        %10074 = vmatpush.msra.mxu0 0.0
        %10075 = vmatpush.msra.mxu0 0.0
        %10076 = vmatpush.msra.mxu0 %v9585
        %10077 = vmatpush.msra.mxu0 %v9584
        %10078 = vmatpush.msra.mxu0 %v9583
        %10079 = vmatpush.msra.mxu0 %v9582
        %10080 = vmatmul.f32.gmra.mxu0 %v10062
        %v10081 = vpop.f32.mrf.mxu0
        %v10082 = vadd.f32 0.0, %v10081
        %10083 = vdwg.mxu0
        %v10084 = vadd.f32 %v10059, %v10082
        %v10085 = vld [vmem:[#allocation4 + $0x5] sm:$0xf]
        %v10086 = vmul.f32 %v10085, %v9810
        %v10088 = vsel %vm1022, %v10086, 0
        %10090 = vmatpush.msra.mxu0 0.0
        %10091 = vmatpush.msra.mxu0 0.0
        %10092 = vmatpush.msra.mxu0 0.0
        %10093 = vmatpush.msra.mxu0 0.0
        %10094 = vmatpush.msra.mxu0 0.0
        %10095 = vmatpush.msra.mxu0 0.0
        %10096 = vmatpush.msra.mxu0 0.0
        %10097 = vmatpush.msra.mxu0 0.0
        %10098 = vmatpush.msra.mxu0 0.0
        %10099 = vmatpush.msra.mxu0 0.0
        %10100 = vmatpush.msra.mxu0 0.0
        %10101 = vmatpush.msra.mxu0 0.0
        %10102 = vmatpush.msra.mxu0 %v9589
        %10103 = vmatpush.msra.mxu0 %v9588
        %10104 = vmatpush.msra.mxu0 %v9587
        %10105 = vmatpush.msra.mxu0 %v9586
        %10106 = vmatmul.f32.gmra.mxu0 %v10088
        %v10107 = vpop.f32.mrf.mxu0
        %v10108 = vadd.f32 0.0, %v10107
        %10109 = vdwg.mxu0
        %v10110 = vadd.f32 %v10084, %v10108
        %v10111 = vld [vmem:[#allocation4 + $0x6] sm:$0xf]
        %v10112 = vmul.f32 %v10111, %v9840
        %v10114 = vsel %vm1022, %v10112, 0
        %10116 = vmatpush.msra.mxu0 0.0
        %10117 = vmatpush.msra.mxu0 0.0
        %10118 = vmatpush.msra.mxu0 0.0
        %10119 = vmatpush.msra.mxu0 0.0
        %10120 = vmatpush.msra.mxu0 0.0
        %10121 = vmatpush.msra.mxu0 0.0
        %10122 = vmatpush.msra.mxu0 0.0
        %10123 = vmatpush.msra.mxu0 0.0
        %10124 = vmatpush.msra.mxu0 0.0
        %10125 = vmatpush.msra.mxu0 0.0
        %10126 = vmatpush.msra.mxu0 0.0
        %10127 = vmatpush.msra.mxu0 0.0
        %10128 = vmatpush.msra.mxu0 %v9593
        %10129 = vmatpush.msra.mxu0 %v9592
        %10130 = vmatpush.msra.mxu0 %v9591
        %10131 = vmatpush.msra.mxu0 %v9590
        %10132 = vmatmul.f32.gmra.mxu0 %v10114
        %v10133 = vpop.f32.mrf.mxu0
        %v10134 = vadd.f32 0.0, %v10133
        %10135 = vdwg.mxu0
        %v10136 = vadd.f32 %v10110, %v10134
        %v10138 = vsel %vm8913, %v10136, 0
        %10140 = vmatpush.msra.mxu0 0.0
        %10141 = vmatpush.msra.mxu0 0.0
        %10142 = vmatpush.msra.mxu0 0.0
        %10143 = vmatpush.msra.mxu0 0.0
        %10144 = vmatpush.msra.mxu0 0.0
        %10145 = vmatpush.msra.mxu0 0.0
        %10146 = vmatpush.msra.mxu0 0.0
        %10147 = vmatpush.msra.mxu0 0.0
        %10148 = vmatpush.msra.mxu0 0.0
        %10149 = vmatpush.msra.mxu0 0.0
        %10150 = vmatpush.msra.mxu0 0.0
        %10151 = vmatpush.msra.mxu0 0.0
        %10152 = vmatpush.msra.mxu0 0.0
        %10153 = vmatpush.msra.mxu0 0.0
        %10154 = vmatpush.msra.mxu0 0.0
        %10155 = vmatpush.msra.mxu0 %v10138
        %10156 = vmatmul.f32.gmra.mxu0 %v9882
        %v10157 = vpop.f32.mrf.mxu0
        %v10158 = vadd.f32 %v9595, %v10157
        %10159 = vdwg.mxu0
        %v10160 = vadd.f32 %v10158, %v9904
        %v10161 = vld [vmem:[%s13] sm:$0xff]
        %v10162 = vld [vmem:[%s13 + $0x8] sm:$0xff]
        %v10163 = vld [vmem:[%s13 + $0x10] sm:$0xff]
        %v10164 = vld [vmem:[%s13 + $0x18] sm:$0xff]
        %v10165 = vld [vmem:[%s14] sm:$0x1]
        %v10167 = vsel %vm1022, %v10160, 0
        %10169 = vmatpush.msra.mxu0 0.0
        %10170 = vmatpush.msra.mxu0 0.0
        %10171 = vmatpush.msra.mxu0 0.0
        %10172 = vmatpush.msra.mxu0 0.0
        %10173 = vmatpush.msra.mxu0 0.0
        %10174 = vmatpush.msra.mxu0 0.0
        %10175 = vmatpush.msra.mxu0 0.0
        %10176 = vmatpush.msra.mxu0 0.0
        %10177 = vmatpush.msra.mxu0 0.0
        %10178 = vmatpush.msra.mxu0 0.0
        %10179 = vmatpush.msra.mxu0 0.0
        %10180 = vmatpush.msra.mxu0 0.0
        %10181 = vmatpush.msra.mxu0 %v10164
        %10182 = vmatpush.msra.mxu0 %v10163
        %10183 = vmatpush.msra.mxu0 %v10162
        %10184 = vmatpush.msra.mxu0 %v10161
        %10185 = vmatmul.f32.gmra.mxu0 %v10167
        %v10186 = vpop.f32.mrf.mxu0
        %v10187 = vadd.f32 %v10165, %v10186
        %10188 = vdwg.mxu0
        %vm10189 = vcmp.ge.f32.partialorder %v10187, 0.0
        %v10190 = vmul.f32 %v10187, 0.01
        %v10191 = vsel %vm10189, %v10187, %v10190
        %v10192 = vld [vmem:[%s15] sm:$0xff]
        %v10193 = vld [vmem:[%s15 + $0x8] sm:$0xff]
        %v10194 = vld [vmem:[%s15 + $0x10] sm:$0xff]
        %v10195 = vld [vmem:[%s15 + $0x18] sm:$0xff]
        %v10196 = vld [vmem:[%s16] sm:$0x1]
        %v10198 = vsel %vm1022, %v10191, 0
        %10200 = vmatpush.msra.mxu0 0.0
        %10201 = vmatpush.msra.mxu0 0.0
        %10202 = vmatpush.msra.mxu0 0.0
        %10203 = vmatpush.msra.mxu0 0.0
        %10204 = vmatpush.msra.mxu0 0.0
        %10205 = vmatpush.msra.mxu0 0.0
        %10206 = vmatpush.msra.mxu0 0.0
        %10207 = vmatpush.msra.mxu0 0.0
        %10208 = vmatpush.msra.mxu0 0.0
        %10209 = vmatpush.msra.mxu0 0.0
        %10210 = vmatpush.msra.mxu0 0.0
        %10211 = vmatpush.msra.mxu0 0.0
        %10212 = vmatpush.msra.mxu0 %v10195
        %10213 = vmatpush.msra.mxu0 %v10194
        %10214 = vmatpush.msra.mxu0 %v10193
        %10215 = vmatpush.msra.mxu0 %v10192
        %10216 = vmatmul.f32.gmra.mxu0 %v10198
        %v10217 = vpop.f32.mrf.mxu0
        %v10218 = vadd.f32 %v10196, %v10217
        %10219 = vdwg.mxu0
        %10221 = vrot.lane.b32.xlu0 %v10187, 96
        %v10222 = vpop.permute.xlu0 %10221
        %v10224 = vadd.f32 %v10218, %v10222
        %s10225 = scalar_lea.vmem %s13, 32
        %v10226 = vld [vmem:[%s10225] sm:$0xff]
        %v10227 = vld [vmem:[%s10225 + $0x8] sm:$0xff]
        %v10228 = vld [vmem:[%s10225 + $0x10] sm:$0xff]
        %v10229 = vld [vmem:[%s10225 + $0x18] sm:$0xff]
        %s10230 = scalar_lea.vmem %s14, 1
        %v10231 = vld [vmem:[%s10230] sm:$0x1]
        %v10233 = vsel %vm1022, %v10224, 0
        %10235 = vmatpush.msra.mxu0 0.0
        %10236 = vmatpush.msra.mxu0 0.0
        %10237 = vmatpush.msra.mxu0 0.0
        %10238 = vmatpush.msra.mxu0 0.0
        %10239 = vmatpush.msra.mxu0 0.0
        %10240 = vmatpush.msra.mxu0 0.0
        %10241 = vmatpush.msra.mxu0 0.0
        %10242 = vmatpush.msra.mxu0 0.0
        %10243 = vmatpush.msra.mxu0 0.0
        %10244 = vmatpush.msra.mxu0 0.0
        %10245 = vmatpush.msra.mxu0 0.0
        %10246 = vmatpush.msra.mxu0 0.0
        %10247 = vmatpush.msra.mxu0 %v10229
        %10248 = vmatpush.msra.mxu0 %v10228
        %10249 = vmatpush.msra.mxu0 %v10227
        %10250 = vmatpush.msra.mxu0 %v10226
        %10251 = vmatmul.f32.gmra.mxu0 %v10233
        %v10252 = vpop.f32.mrf.mxu0
        %v10253 = vadd.f32 %v10231, %v10252
        %10254 = vdwg.mxu0
        %vm10255 = vcmp.ge.f32.partialorder %v10253, 0.0
        %v10256 = vmul.f32 %v10253, 0.01
        %v10257 = vsel %vm10255, %v10253, %v10256
        %s10258 = scalar_lea.vmem %s15, 32
        %v10259 = vld [vmem:[%s10258] sm:$0xff]
        %v10260 = vld [vmem:[%s10258 + $0x8] sm:$0xff]
        %v10261 = vld [vmem:[%s10258 + $0x10] sm:$0xff]
        %v10262 = vld [vmem:[%s10258 + $0x18] sm:$0xff]
        %s10263 = scalar_lea.vmem %s16, 1
        %v10264 = vld [vmem:[%s10263] sm:$0x1]
        %v10266 = vsel %vm1022, %v10257, 0
        %10268 = vmatpush.msra.mxu0 0.0
        %10269 = vmatpush.msra.mxu0 0.0
        %10270 = vmatpush.msra.mxu0 0.0
        %10271 = vmatpush.msra.mxu0 0.0
        %10272 = vmatpush.msra.mxu0 0.0
        %10273 = vmatpush.msra.mxu0 0.0
        %10274 = vmatpush.msra.mxu0 0.0
        %10275 = vmatpush.msra.mxu0 0.0
        %10276 = vmatpush.msra.mxu0 0.0
        %10277 = vmatpush.msra.mxu0 0.0
        %10278 = vmatpush.msra.mxu0 0.0
        %10279 = vmatpush.msra.mxu0 0.0
        %10280 = vmatpush.msra.mxu0 %v10262
        %10281 = vmatpush.msra.mxu0 %v10261
        %10282 = vmatpush.msra.mxu0 %v10260
        %10283 = vmatpush.msra.mxu0 %v10259
        %10284 = vmatmul.f32.gmra.mxu0 %v10266
        %v10285 = vpop.f32.mrf.mxu0
        %v10286 = vadd.f32 %v10264, %v10285
        %10287 = vdwg.mxu0
        %10289 = vrot.lane.b32.xlu0 %v10253, 96
        %v10290 = vpop.permute.xlu0 %10289
        %v10292 = vadd.f32 %v10286, %v10290
        %s10293 = scalar_lea.vmem %s13, 64
        %v10294 = vld [vmem:[%s10293] sm:$0xff]
        %v10295 = vld [vmem:[%s10293 + $0x8] sm:$0xff]
        %v10296 = vld [vmem:[%s10293 + $0x10] sm:$0xff]
        %v10297 = vld [vmem:[%s10293 + $0x18] sm:$0xff]
        %s10298 = scalar_lea.vmem %s14, 2
        %v10299 = vld [vmem:[%s10298] sm:$0x1]
        %v10301 = vsel %vm1022, %v10292, 0
        %10303 = vmatpush.msra.mxu0 0.0
        %10304 = vmatpush.msra.mxu0 0.0
        %10305 = vmatpush.msra.mxu0 0.0
        %10306 = vmatpush.msra.mxu0 0.0
        %10307 = vmatpush.msra.mxu0 0.0
        %10308 = vmatpush.msra.mxu0 0.0
        %10309 = vmatpush.msra.mxu0 0.0
        %10310 = vmatpush.msra.mxu0 0.0
        %10311 = vmatpush.msra.mxu0 0.0
        %10312 = vmatpush.msra.mxu0 0.0
        %10313 = vmatpush.msra.mxu0 0.0
        %10314 = vmatpush.msra.mxu0 0.0
        %10315 = vmatpush.msra.mxu0 %v10297
        %10316 = vmatpush.msra.mxu0 %v10296
        %10317 = vmatpush.msra.mxu0 %v10295
        %10318 = vmatpush.msra.mxu0 %v10294
        %10319 = vmatmul.f32.gmra.mxu0 %v10301
        %v10320 = vpop.f32.mrf.mxu0
        %v10321 = vadd.f32 %v10299, %v10320
        %10322 = vdwg.mxu0
        %vm10323 = vcmp.ge.f32.partialorder %v10321, 0.0
        %v10324 = vmul.f32 %v10321, 0.01
        %v10325 = vsel %vm10323, %v10321, %v10324
        %s10326 = scalar_lea.vmem %s15, 64
        %v10327 = vld [vmem:[%s10326] sm:$0xff]
        %v10328 = vld [vmem:[%s10326 + $0x8] sm:$0xff]
        %v10329 = vld [vmem:[%s10326 + $0x10] sm:$0xff]
        %v10330 = vld [vmem:[%s10326 + $0x18] sm:$0xff]
        %s10331 = scalar_lea.vmem %s16, 2
        %v10332 = vld [vmem:[%s10331] sm:$0x1]
        %v10334 = vsel %vm1022, %v10325, 0
        %10336 = vmatpush.msra.mxu0 0.0
        %10337 = vmatpush.msra.mxu0 0.0
        %10338 = vmatpush.msra.mxu0 0.0
        %10339 = vmatpush.msra.mxu0 0.0
        %10340 = vmatpush.msra.mxu0 0.0
        %10341 = vmatpush.msra.mxu0 0.0
        %10342 = vmatpush.msra.mxu0 0.0
        %10343 = vmatpush.msra.mxu0 0.0
        %10344 = vmatpush.msra.mxu0 0.0
        %10345 = vmatpush.msra.mxu0 0.0
        %10346 = vmatpush.msra.mxu0 0.0
        %10347 = vmatpush.msra.mxu0 0.0
        %10348 = vmatpush.msra.mxu0 %v10330
        %10349 = vmatpush.msra.mxu0 %v10329
        %10350 = vmatpush.msra.mxu0 %v10328
        %10351 = vmatpush.msra.mxu0 %v10327
        %10352 = vmatmul.f32.gmra.mxu0 %v10334
        %v10353 = vpop.f32.mrf.mxu0
        %v10354 = vadd.f32 %v10332, %v10353
        %10355 = vdwg.mxu0
        %10357 = vrot.lane.b32.xlu0 %v10321, 96
        %v10358 = vpop.permute.xlu0 %10357
        %v10360 = vadd.f32 %v10354, %v10358
        %s10361 = scalar_lea.vmem %s13, 96
        %v10362 = vld [vmem:[%s10361] sm:$0xff]
        %v10363 = vld [vmem:[%s10361 + $0x8] sm:$0xff]
        %v10364 = vld [vmem:[%s10361 + $0x10] sm:$0xff]
        %v10365 = vld [vmem:[%s10361 + $0x18] sm:$0xff]
        %s10366 = scalar_lea.vmem %s14, 3
        %v10367 = vld [vmem:[%s10366] sm:$0x1]
        %v10369 = vsel %vm1022, %v10360, 0
        %10371 = vmatpush.msra.mxu0 0.0
        %10372 = vmatpush.msra.mxu0 0.0
        %10373 = vmatpush.msra.mxu0 0.0
        %10374 = vmatpush.msra.mxu0 0.0
        %10375 = vmatpush.msra.mxu0 0.0
        %10376 = vmatpush.msra.mxu0 0.0
        %10377 = vmatpush.msra.mxu0 0.0
        %10378 = vmatpush.msra.mxu0 0.0
        %10379 = vmatpush.msra.mxu0 0.0
        %10380 = vmatpush.msra.mxu0 0.0
        %10381 = vmatpush.msra.mxu0 0.0
        %10382 = vmatpush.msra.mxu0 0.0
        %10383 = vmatpush.msra.mxu0 %v10365
        %10384 = vmatpush.msra.mxu0 %v10364
        %10385 = vmatpush.msra.mxu0 %v10363
        %10386 = vmatpush.msra.mxu0 %v10362
        %10387 = vmatmul.f32.gmra.mxu0 %v10369
        %v10388 = vpop.f32.mrf.mxu0
        %v10389 = vadd.f32 %v10367, %v10388
        %10390 = vdwg.mxu0
        %vm10391 = vcmp.ge.f32.partialorder %v10389, 0.0
        %v10392 = vmul.f32 %v10389, 0.01
        %v10393 = vsel %vm10391, %v10389, %v10392
        %s10394 = scalar_lea.vmem %s15, 96
        %v10395 = vld [vmem:[%s10394] sm:$0xff]
        %v10396 = vld [vmem:[%s10394 + $0x8] sm:$0xff]
        %v10397 = vld [vmem:[%s10394 + $0x10] sm:$0xff]
        %v10398 = vld [vmem:[%s10394 + $0x18] sm:$0xff]
        %s10399 = scalar_lea.vmem %s16, 3
        %v10400 = vld [vmem:[%s10399] sm:$0x1]
        %v10402 = vsel %vm1022, %v10393, 0
        %10404 = vmatpush.msra.mxu0 0.0
        %10405 = vmatpush.msra.mxu0 0.0
        %10406 = vmatpush.msra.mxu0 0.0
        %10407 = vmatpush.msra.mxu0 0.0
        %10408 = vmatpush.msra.mxu0 0.0
        %10409 = vmatpush.msra.mxu0 0.0
        %10410 = vmatpush.msra.mxu0 0.0
        %10411 = vmatpush.msra.mxu0 0.0
        %10412 = vmatpush.msra.mxu0 0.0
        %10413 = vmatpush.msra.mxu0 0.0
        %10414 = vmatpush.msra.mxu0 0.0
        %10415 = vmatpush.msra.mxu0 0.0
        %10416 = vmatpush.msra.mxu0 %v10398
        %10417 = vmatpush.msra.mxu0 %v10397
        %10418 = vmatpush.msra.mxu0 %v10396
        %10419 = vmatpush.msra.mxu0 %v10395
        %10420 = vmatmul.f32.gmra.mxu0 %v10402
        %v10421 = vpop.f32.mrf.mxu0
        %v10422 = vadd.f32 %v10400, %v10421
        %10423 = vdwg.mxu0
        %10425 = vrot.lane.b32.xlu0 %v10389, 96
        %v10426 = vpop.permute.xlu0 %10425
        %v10428 = vadd.f32 %v10422, %v10426
        %s10429 = scalar_lea.vmem %s13, 128
        %v10430 = vld [vmem:[%s10429] sm:$0xff]
        %v10431 = vld [vmem:[%s10429 + $0x8] sm:$0xff]
        %v10432 = vld [vmem:[%s10429 + $0x10] sm:$0xff]
        %v10433 = vld [vmem:[%s10429 + $0x18] sm:$0xff]
        %s10434 = scalar_lea.vmem %s14, 4
        %v10435 = vld [vmem:[%s10434] sm:$0x1]
        %v10437 = vsel %vm1022, %v10428, 0
        %10439 = vmatpush.msra.mxu0 0.0
        %10440 = vmatpush.msra.mxu0 0.0
        %10441 = vmatpush.msra.mxu0 0.0
        %10442 = vmatpush.msra.mxu0 0.0
        %10443 = vmatpush.msra.mxu0 0.0
        %10444 = vmatpush.msra.mxu0 0.0
        %10445 = vmatpush.msra.mxu0 0.0
        %10446 = vmatpush.msra.mxu0 0.0
        %10447 = vmatpush.msra.mxu0 0.0
        %10448 = vmatpush.msra.mxu0 0.0
        %10449 = vmatpush.msra.mxu0 0.0
        %10450 = vmatpush.msra.mxu0 0.0
        %10451 = vmatpush.msra.mxu0 %v10433
        %10452 = vmatpush.msra.mxu0 %v10432
        %10453 = vmatpush.msra.mxu0 %v10431
        %10454 = vmatpush.msra.mxu0 %v10430
        %10455 = vmatmul.f32.gmra.mxu0 %v10437
        %v10456 = vpop.f32.mrf.mxu0
        %v10457 = vadd.f32 %v10435, %v10456
        %10458 = vdwg.mxu0
        %vm10459 = vcmp.ge.f32.partialorder %v10457, 0.0
        %v10460 = vmul.f32 %v10457, 0.01
        %v10461 = vsel %vm10459, %v10457, %v10460
        %s10462 = scalar_lea.vmem %s15, 128
        %v10463 = vld [vmem:[%s10462] sm:$0xff]
        %v10464 = vld [vmem:[%s10462 + $0x8] sm:$0xff]
        %v10465 = vld [vmem:[%s10462 + $0x10] sm:$0xff]
        %v10466 = vld [vmem:[%s10462 + $0x18] sm:$0xff]
        %s10467 = scalar_lea.vmem %s16, 4
        %v10468 = vld [vmem:[%s10467] sm:$0x1]
        %v10470 = vsel %vm1022, %v10461, 0
        %10472 = vmatpush.msra.mxu0 0.0
        %10473 = vmatpush.msra.mxu0 0.0
        %10474 = vmatpush.msra.mxu0 0.0
        %10475 = vmatpush.msra.mxu0 0.0
        %10476 = vmatpush.msra.mxu0 0.0
        %10477 = vmatpush.msra.mxu0 0.0
        %10478 = vmatpush.msra.mxu0 0.0
        %10479 = vmatpush.msra.mxu0 0.0
        %10480 = vmatpush.msra.mxu0 0.0
        %10481 = vmatpush.msra.mxu0 0.0
        %10482 = vmatpush.msra.mxu0 0.0
        %10483 = vmatpush.msra.mxu0 0.0
        %10484 = vmatpush.msra.mxu0 %v10466
        %10485 = vmatpush.msra.mxu0 %v10465
        %10486 = vmatpush.msra.mxu0 %v10464
        %10487 = vmatpush.msra.mxu0 %v10463
        %10488 = vmatmul.f32.gmra.mxu0 %v10470
        %v10489 = vpop.f32.mrf.mxu0
        %v10490 = vadd.f32 %v10468, %v10489
        %10491 = vdwg.mxu0
        %10493 = vrot.lane.b32.xlu0 %v10457, 96
        %v10494 = vpop.permute.xlu0 %10493
        %v10496 = vadd.f32 %v10490, %v10494
        %s10497 = scalar_lea.vmem %s13, 160
        %v10498 = vld [vmem:[%s10497] sm:$0xff]
        %v10499 = vld [vmem:[%s10497 + $0x8] sm:$0xff]
        %v10500 = vld [vmem:[%s10497 + $0x10] sm:$0xff]
        %v10501 = vld [vmem:[%s10497 + $0x18] sm:$0xff]
        %s10502 = scalar_lea.vmem %s14, 5
        %v10503 = vld [vmem:[%s10502] sm:$0x1]
        %v10505 = vsel %vm1022, %v10496, 0
        %10507 = vmatpush.msra.mxu0 0.0
        %10508 = vmatpush.msra.mxu0 0.0
        %10509 = vmatpush.msra.mxu0 0.0
        %10510 = vmatpush.msra.mxu0 0.0
        %10511 = vmatpush.msra.mxu0 0.0
        %10512 = vmatpush.msra.mxu0 0.0
        %10513 = vmatpush.msra.mxu0 0.0
        %10514 = vmatpush.msra.mxu0 0.0
        %10515 = vmatpush.msra.mxu0 0.0
        %10516 = vmatpush.msra.mxu0 0.0
        %10517 = vmatpush.msra.mxu0 0.0
        %10518 = vmatpush.msra.mxu0 0.0
        %10519 = vmatpush.msra.mxu0 %v10501
        %10520 = vmatpush.msra.mxu0 %v10500
        %10521 = vmatpush.msra.mxu0 %v10499
        %10522 = vmatpush.msra.mxu0 %v10498
        %10523 = vmatmul.f32.gmra.mxu0 %v10505
        %v10524 = vpop.f32.mrf.mxu0
        %v10525 = vadd.f32 %v10503, %v10524
        %10526 = vdwg.mxu0
        %vm10527 = vcmp.ge.f32.partialorder %v10525, 0.0
        %v10528 = vmul.f32 %v10525, 0.01
        %v10529 = vsel %vm10527, %v10525, %v10528
        %s10530 = scalar_lea.vmem %s15, 160
        %v10531 = vld [vmem:[%s10530] sm:$0xff]
        %v10532 = vld [vmem:[%s10530 + $0x8] sm:$0xff]
        %v10533 = vld [vmem:[%s10530 + $0x10] sm:$0xff]
        %v10534 = vld [vmem:[%s10530 + $0x18] sm:$0xff]
        %s10535 = scalar_lea.vmem %s16, 5
        %v10536 = vld [vmem:[%s10535] sm:$0x1]
        %v10538 = vsel %vm1022, %v10529, 0
        %10540 = vmatpush.msra.mxu0 0.0
        %10541 = vmatpush.msra.mxu0 0.0
        %10542 = vmatpush.msra.mxu0 0.0
        %10543 = vmatpush.msra.mxu0 0.0
        %10544 = vmatpush.msra.mxu0 0.0
        %10545 = vmatpush.msra.mxu0 0.0
        %10546 = vmatpush.msra.mxu0 0.0
        %10547 = vmatpush.msra.mxu0 0.0
        %10548 = vmatpush.msra.mxu0 0.0
        %10549 = vmatpush.msra.mxu0 0.0
        %10550 = vmatpush.msra.mxu0 0.0
        %10551 = vmatpush.msra.mxu0 0.0
        %10552 = vmatpush.msra.mxu0 %v10534
        %10553 = vmatpush.msra.mxu0 %v10533
        %10554 = vmatpush.msra.mxu0 %v10532
        %10555 = vmatpush.msra.mxu0 %v10531
        %10556 = vmatmul.f32.gmra.mxu0 %v10538
        %v10557 = vpop.f32.mrf.mxu0
        %v10558 = vadd.f32 %v10536, %v10557
        %10559 = vdwg.mxu0
        %10561 = vrot.lane.b32.xlu0 %v10525, 96
        %v10562 = vpop.permute.xlu0 %10561
        %v10564 = vadd.f32 %v10558, %v10562
        %vm10565 = vcmp.ge.f32.partialorder %v10564, 0.0
        %v10566 = vmul.f32 %v10564, 0.01
        %v10567 = vsel %vm10565, %v10564, %v10566
        %v10568 = vld [vmem:[%s17] sm:$0xff]
        %v10569 = vld [vmem:[%s17 + $0x8] sm:$0xff]
        %v10570 = vld [vmem:[%s17 + $0x10] sm:$0xff]
        %v10571 = vld [vmem:[%s17 + $0x18] sm:$0xff]
        %v10572 = vld [vmem:[%s18] sm:$0x1]
        %v10574 = vsel %vm1022, %v10567, 0
        %10576 = vmatpush.msra.mxu0 0.0
        %10577 = vmatpush.msra.mxu0 0.0
        %10578 = vmatpush.msra.mxu0 0.0
        %10579 = vmatpush.msra.mxu0 0.0
        %10580 = vmatpush.msra.mxu0 0.0
        %10581 = vmatpush.msra.mxu0 0.0
        %10582 = vmatpush.msra.mxu0 0.0
        %10583 = vmatpush.msra.mxu0 0.0
        %10584 = vmatpush.msra.mxu0 0.0
        %10585 = vmatpush.msra.mxu0 0.0
        %10586 = vmatpush.msra.mxu0 0.0
        %10587 = vmatpush.msra.mxu0 0.0
        %10588 = vmatpush.msra.mxu0 %v10571
        %10589 = vmatpush.msra.mxu0 %v10570
        %10590 = vmatpush.msra.mxu0 %v10569
        %10591 = vmatpush.msra.mxu0 %v10568
        %10592 = vmatmul.f32.gmra.mxu0 %v10574
        %v10593 = vpop.f32.mrf.mxu0
        %v10594 = vadd.f32 %v10572, %v10593
        %10595 = vdwg.mxu0
        %vm10596 = vcmp.ge.f32.partialorder %v10594, 0.0
        %v10597 = vmul.f32 %v10594, 0.01
        %v10598 = vsel %vm10596, %v10594, %v10597
        %v10599 = vld [vmem:[%s19] sm:$0xff]
        %v10600 = vld [vmem:[%s19 + $0x8] sm:$0xff]
        %v10601 = vld [vmem:[%s19 + $0x10] sm:$0xff]
        %v10602 = vld [vmem:[%s19 + $0x18] sm:$0xff]
        %v10603 = vld [vmem:[%s19 + $0x20] sm:$0xff]
        %v10604 = vld [vmem:[%s19 + $0x28] sm:$0xff]
        %v10605 = vld [vmem:[%s19 + $0x30] sm:$0xff]
        %v10606 = vld [vmem:[%s19 + $0x38] sm:$0xff]
        %v10607 = vld [vmem:[%s19 + $0x40] sm:$0xff]
        %v10608 = vld [vmem:[%s19 + $0x48] sm:$0xff]
        %v10609 = vld [vmem:[%s19 + $0x50] sm:$0xff]
        %v10610 = vld [vmem:[%s19 + $0x58] sm:$0xff]
        %v10611 = vld [vmem:[%s19 + $0x60] sm:$0xff]
        %v10612 = vld [vmem:[%s19 + $0x68] sm:$0xff]
        %v10613 = vld [vmem:[%s19 + $0x70] sm:$0xff]
        %v10614 = vld [vmem:[%s19 + $0x78] sm:$0xff]
        %v10615 = vld [vmem:[%s20] sm:$0x1]
        %10616 = vmatpush.msra.mxu0 %v10614
        %10617 = vmatpush.msra.mxu0 %v10613
        %10618 = vmatpush.msra.mxu0 %v10612
        %10619 = vmatpush.msra.mxu0 %v10611
        %10620 = vmatpush.msra.mxu0 %v10610
        %10621 = vmatpush.msra.mxu0 %v10609
        %10622 = vmatpush.msra.mxu0 %v10608
        %10623 = vmatpush.msra.mxu0 %v10607
        %10624 = vmatpush.msra.mxu0 %v10606
        %10625 = vmatpush.msra.mxu0 %v10605
        %10626 = vmatpush.msra.mxu0 %v10604
        %10627 = vmatpush.msra.mxu0 %v10603
        %10628 = vmatpush.msra.mxu0 %v10602
        %10629 = vmatpush.msra.mxu0 %v10601
        %10630 = vmatpush.msra.mxu0 %v10600
        %10631 = vmatpush.msra.mxu0 %v10599
        %10632 = vmatmul.f32.gmra.mxu0 %v10598
        %v10633 = vpop.f32.mrf.mxu0
        %v10634 = vadd.f32 %v10615, %v10633
        %10635 = vdwg.mxu0
        %vm10636 = vcmask 8192
        %v10637 = vsel %vm10636, %v10634, -inf
        %10638 = vmax.xlane.f32.xlu0 %v10637
        %v10639 = vpop.xlane.xlu0 %10638
        %v10640 = vsub.f32 %v10634, %v10639
        %v10641 = vmul.f32 %v10640, 1.442695
        %v10642 = vpow.pop %v10641
        %v10643 = vsel %vm10636, %v10642, 0.0
        %10644 = vadd.xlane.f32.xlu0 %v10643
        %v10645 = vpop.xlane.xlu0 %10644
        %v10646 = vlog2.pop %v10645
        %v10647 = vmul.f32 %v10646, 0.6931472
        %v10648 = vsub.f32 %v10640, %v10647
        %10649 = vst.msk [vmem:[%s648] sm:$0x1] %vm10636, %v10648
        %s10650 = sand.u32 %s489, 1
        %s10651 = scalar_lea.sflag [#allocation6], %s10650
        %s10652 = sand.u32 %s489, 1
        %s10653 = scalar_lea.vmem [#allocation5], %s10652
        // Predicated region
        $region105: #{mfcc_forward.1} parent=103 // pred_check
          %p10654 = pneg %p499
        $region106: #{mfcc_forward.1} parent=103 // pred_check_branch
          %10656 = sbr.rel (%p10654) target = $region108
        $region107: #{mfcc_forward.1} parent=103 // pred_region
          %10658 = vsyncadd %s10651, 0
          %s10659 = scalar_lea.hbm %s21, %s35
          %s10661 = sshll.u32 %s10653, 4
          %s10662 = int_to_ptr.vmem [resolvable:$true] %s10661
          %s10663 = sshll.u32 %s10659, 4
          %s10664 = int_to_ptr.hbm [resolvable:$true] %s10663
          %10666 = dma.vmem_to_hbm [thread:$0]  %s10662, 16, %s10664, %s10651
        $region108: #{mfcc_forward.1} parent=103 // pred_fallthru
          _
      $region104: #{mfcc_forward.1} parent=5 // pred_fallthru
        _
      %p10667 = scmp.le.s32.totalorder 2, %s30
      // Predicated region
      $region109: #{mfcc_forward.1} parent=5 // pred_check
        %p10668 = pneg %p10667
      $region110: #{mfcc_forward.1} parent=5 // pred_check_branch
        %10670 = sbr.rel (%p10668) target = $region112
      $region111: #{mfcc_forward.1} parent=5 // pred_region
        %s10671 = ssub.s32 %s30, 2
        // Predicated region
        $region113: #{mfcc_forward.1} parent=111 // pred_check
          %p10672 = pneg %p505
        $region114: #{mfcc_forward.1} parent=111 // pred_check_branch
          %10674 = sbr.rel (%p10672) target = $region116
        $region115: #{mfcc_forward.1} parent=111 // pred_region
          %s10675 = sand.u32 %s490, 1
          %s10676 = scalar_lea.sflag [#allocation6], %s10675
          %s10677 = sand.u32 %s490, 1
          %s10678 = scalar_lea.vmem [#allocation5], %s10677
          %10680 = dma.done %s10676, 16
        $region116: #{mfcc_forward.1} parent=111 // pred_fallthru
          _
      $region112: #{mfcc_forward.1} parent=5 // pred_fallthru
        _
    $region6: #{mfcc_forward.1} parent=1 // loop_footer
      %s34 = sadd.s32 1, %s30
    $region7: #{mfcc_forward.1} parent=1 // loop_footer_branch
      %29 = sbr.rel target = $region3
    $region8: #{mfcc_forward.1} parent=1 // loop_exit
      _
    %10681 = vsyncpa [#allocation6], 1
    %s10682 = scalar_lea.sflag [#allocation6], 1
    %10683 = vsyncpa %s10682, 1

</llo_original>
